<compile_context>
chip_gen: v7x
topology: tpu7x:2x2x1
jax: 0.10.0
libtpu: 0.0.40
codegen_flags: <defaults>
</compile_context>

<pallas_src>
import jax
import jax.numpy as jnp
import numpy as np
from jax.experimental import pallas as pl
from jax.experimental.pallas import tpu as pltpu

BN_EPS = 1e-3  # ultralytics Conv uses nn.BatchNorm2d(eps=0.001)

# Safe on every generation: v5e/v6e have 128 MiB physical VMEM, v7x has 64 MiB.
_VMEM_LIMIT_BYTES = 48 * 1024 * 1024


def _round_up(x, m):
    return (x + m - 1) // m * m


def _pick_rows(total_rows, max_rows):
    """Largest divisor of total_rows that is <= max_rows (always >= 1)."""
    for t in range(min(total_rows, max_rows), 0, -1):
        if total_rows % t == 0:
            return t
    return total_rows


# ----------------------------------------------------------------------------
# Kernel 1: cv1 (3x3 conv + folded BN + SiLU) fused with the 2x2/stride-2
# ConvTranspose (one matmul; the 4 sub-pixel taps packed along the lanes).
# One grid step = one (image, row-tile).
# ----------------------------------------------------------------------------
def _cv1_upsample_kernel(x_ref, w1_ref, b1_ref, wup_ref, bup_ref, o_ref):
    _, _, R, Wp, Cin = x_ref.shape          # R = TH + 3 window rows, Wp % 8 == 0
    TH = R - 3
    NP = TH * Wp                            # flattened (row, col) tokens this tile owns

    # Layout-preserving flatten (Wp is a multiple of 8): no per-tap relayouts.
    flat = x_ref[0, 0].reshape(R * Wp, Cin)            # bf16
    span = NP + 2 * Wp
    # dx-shifted views of the slab: dx=0 is free, dx=1,2 cost one sublane shift each.
    shifted = [flat[dx:dx + span] for dx in range(3)]

    # cv1: 3x3 conv = 9 shifted MXU matmuls, bf16 operands, f32 accumulation.
    acc = None
    for dy in range(3):
        for dx in range(3):
            patch = shifted[dx][dy * Wp:dy * Wp + NP]            # (NP, Cin) bf16
            part = jnp.dot(patch, w1_ref[dy * 3 + dx],
                           preferred_element_type=jnp.float32)
            acc = part if acc is None else acc + part

    y = acc + b1_ref[0]                      # folded BN bias (f32)
    y = y * jax.nn.sigmoid(y)                # SiLU in f32 (VPU + EUP)

    # ConvTranspose2d(k=2, s=2): one (c_, 4*c_) matmul, columns = (dy, dx, cout).
    up = jnp.dot(y.astype(jnp.bfloat16), wup_ref[...],
                 preferred_element_type=jnp.float32) + bup_ref[0]
    o_ref[0] = up.astype(o_ref.dtype)        # lane-dense (NP, 4*c_) bf16 store


# ----------------------------------------------------------------------------
# Kernel 2: cv2 (3x3 conv + folded BN + SiLU) fused with cv3 (1x1 + BN + SiLU).
# One grid step = one (image, row-tile) of the upsampled (2H x 2W) image.
# ----------------------------------------------------------------------------
def _cv2_cv3_kernel(u_ref, w2_ref, b2_ref, w3_ref, b3_ref, o_ref):
    _, _, R, Wp, C = u_ref.shape
    T = R - 3
    NP = T * Wp

    flat = u_ref[0, 0].reshape(R * Wp, C)               # bf16
    span = NP + 2 * Wp
    shifted = [flat[dx:dx + span] for dx in range(3)]

    acc = None
    for dy in range(3):
        for dx in range(3):
            patch = shifted[dx][dy * Wp:dy * Wp + NP]
            part = jnp.dot(patch, w2_ref[dy * 3 + dx],
                           preferred_element_type=jnp.float32)
            acc = part if acc is None else acc + part

    y = acc + b2_ref[0]                      # cv2 folded BN bias
    y = y * jax.nn.sigmoid(y)                # SiLU (f32)

    z = jnp.dot(y.astype(jnp.bfloat16), w3_ref[...],
                preferred_element_type=jnp.float32) + b3_ref[0]   # cv3 (1x1)
    z = z * jax.nn.sigmoid(z)
    o_ref[0] = z.astype(o_ref.dtype)


# ----------------------------------------------------------------------------
# Eval-mode BN folding:  y = (conv(x) - mean)/sqrt(var+eps)*gamma + beta
# ----------------------------------------------------------------------------
def _fold_conv_bn(w_oihw, gamma, beta, mean, var):
    scale = gamma / jnp.sqrt(var + BN_EPS)                    # (Cout,)
    w_hwio = jnp.transpose(w_oihw, (2, 3, 1, 0)) * scale      # (kH,kW,Cin,Cout)
    bias = beta - mean * scale
    return w_hwio, bias


# ----------------------------------------------------------------------------
# Wrapper: layout glue (NCHW<->NHWC, halo windows, pixel shuffle) as fused XLA
# passes over bf16 data; the hot path runs in the two fused Pallas kernels.
# ----------------------------------------------------------------------------
def proto_forward(x_nchw, params, *, tile_rows1=8, tile_rows2=16):
    (w1, bn1, wt_up, b_up, w2, bn2, w3, bn3) = params
    B, c1, H, W = x_nchw.shape
    c_ = w1.shape[0]
    c2 = w3.shape[0]
    H2, W2 = 2 * H, 2 * W

    # ---- one-time parameter prep: fold BN, weights to bf16 (MXU operands) ----
    w1_hwio, b1 = _fold_conv_bn(w1, *bn1)                     # (3,3,c1,c_), (c_,)
    w2_hwio, b2 = _fold_conv_bn(w2, *bn2)                     # (3,3,c_,c_)
    w3_hwio, b3 = _fold_conv_bn(w3, *bn3)                     # (1,1,c_,c2)
    w1f = w1_hwio.reshape(9, c1, c_).astype(jnp.bfloat16)
    w2f = w2_hwio.reshape(9, c_, c_).astype(jnp.bfloat16)
    w3f = w3_hwio.reshape(c_, c2).astype(jnp.bfloat16)
    # ConvTranspose2d(k=2,s=2,p=0): one (c_, 4*c_) matmul, columns = (dy,dx,cout)
    wupf = jnp.transpose(wt_up, (0, 2, 3, 1)).reshape(c_, 4 * c_).astype(jnp.bfloat16)
    bupf = jnp.tile(b_up, 4).reshape(1, 4 * c_).astype(jnp.float32)
    b1 = b1.reshape(1, c_).astype(jnp.float32)
    b2 = b2.reshape(1, c_).astype(jnp.float32)
    b3 = b3.reshape(1, c2).astype(jnp.float32)

    par = pltpu.CompilerParams(
        dimension_semantics=("parallel", "parallel"),
        vmem_limit_bytes=_VMEM_LIMIT_BYTES,
    )

    # ------------------------- stage 1: cv1 + upsample -------------------------
    Wp1 = _round_up(W + 2, 8)               # 8-aligned padded width (layout-clean flatten)
    TH = _pick_rows(H, tile_rows1)
    n1 = H // TH

    x = jnp.transpose(x_nchw, (0, 2, 3, 1)).astype(jnp.bfloat16)       # NHWC, bf16
    xpad = jnp.pad(x, ((0, 0), (1, 2), (1, Wp1 - W - 1), (0, 0)))      # (B, H+3, Wp1, c1)
    ridx1 = jnp.arange(n1)[:, None] * TH + jnp.arange(TH + 3)[None, :]
    xtiles = xpad[:, ridx1]                                            # (B, n1, TH+3, Wp1, c1)

    cost1 = pl.CostEstimate(
        flops=int(2 * B * H * W * c_ * (9 * c1 + 4 * c_)),
        transcendentals=int(B * H * W * c_),
        bytes_accessed=int(xtiles.size * 2 + (w1f.size + wupf.size) * 2
                           + B * H * Wp1 * 4 * c_ * 2),
    )

    up_flat = pl.pallas_call(
        _cv1_upsample_kernel,
        out_shape=jax.ShapeDtypeStruct((B, H * Wp1, 4 * c_), jnp.bfloat16),
        grid=(B, n1),
        in_specs=[
            pl.BlockSpec((1, 1, TH + 3, Wp1, c1), lambda b, r: (b, r, 0, 0, 0)),
            pl.BlockSpec((9, c1, c_), lambda b, r: (0, 0, 0)),
            pl.BlockSpec((1, c_), lambda b, r: (0, 0)),
            pl.BlockSpec((c_, 4 * c_), lambda b, r: (0, 0)),
            pl.BlockSpec((1, 4 * c_), lambda b, r: (0, 0)),
        ],
        out_specs=pl.BlockSpec((1, TH * Wp1, 4 * c_), lambda b, r: (b, r, 0)),
        compiler_params=par,
        cost_estimate=cost1,
    )(xtiles, w1f, b1, wupf, bupf)

    # ---- glue (one fused XLA pass over the bf16 intermediate): pixel-shuffle the
    #      4 sub-pixel taps, add the 3x3 halo pad, gather the row-tile windows ----
    Wp2 = _round_up(W2 + 2, 8)
    T2 = _pick_rows(H2, tile_rows2)
    n2 = H2 // T2

    u = up_flat.reshape(B, H, Wp1, 2, 2, c_)[:, :, :W]                 # drop junk cols
    u = jnp.transpose(u, (0, 1, 3, 2, 4, 5)).reshape(B, H2, W2, c_)    # (B, 2H, 2W, c_)
    upad = jnp.pad(u, ((0, 0), (1, 2), (1, Wp2 - W2 - 1), (0, 0)))     # (B, H2+3, Wp2, c_)
    ridx2 = jnp.arange(n2)[:, None] * T2 + jnp.arange(T2 + 3)[None, :]
    utiles = upad[:, ridx2]                                            # (B, n2, T2+3, Wp2, c_)

    cost2 = pl.CostEstimate(
        flops=int(2 * B * H2 * W2 * c_ * (9 * c_ + c2)),
        transcendentals=int(B * H2 * W2 * (c_ + c2)),
        bytes_accessed=int(utiles.size * 2 + (w2f.size + w3f.size) * 2
                           + B * H2 * Wp2 * c2 * 4),
    )

    # --------------------------- stage 2: cv2 + cv3 ----------------------------
    out_flat = pl.pallas_call(
        _cv2_cv3_kernel,
        out_shape=jax.ShapeDtypeStruct((B, H2 * Wp2, c2), x_nchw.dtype),
        grid=(B, n2),
        in_specs=[
            pl.BlockSpec((1, 1, T2 + 3, Wp2, c_), lambda b, r: (b, r, 0, 0, 0)),
            pl.BlockSpec((9, c_, c_), lambda b, r: (0, 0, 0)),
            pl.BlockSpec((1, c_), lambda b, r: (0, 0)),
            pl.BlockSpec((c_, c2), lambda b, r: (0, 0)),
            pl.BlockSpec((1, c2), lambda b, r: (0, 0)),
        ],
        out_specs=pl.BlockSpec((1, T2 * Wp2, c2), lambda b, r: (b, r, 0)),
        compiler_params=par,
        cost_estimate=cost2,
    )(utiles, w2f, b2, w3f, b3)

    out = out_flat.reshape(B, H2, Wp2, c2)[:, :, :W2, :]               # drop junk cols
    return jnp.transpose(out, (0, 3, 1, 2))                            # NCHW


# ----------------------------------------------------------------------------
# Deterministic synthetic parameters (PyTorch shapes: Conv OIHW, ConvT (Cin,Cout,kH,kW)).
# ----------------------------------------------------------------------------
def make_params(key, c1, c_, c2):
    ks = jax.random.split(key, 8)

    def bn_params(k, c):
        kg, kb, km, kv = jax.random.split(k, 4)
        gamma = 1.0 + 0.1 * jax.random.normal(kg, (c,), jnp.float32)
        beta = 0.1 * jax.random.normal(kb, (c,), jnp.float32)
        mean = 0.1 * jax.random.normal(km, (c,), jnp.float32)
        var = jax.random.uniform(kv, (c,), jnp.float32, 0.5, 1.5)
        return (gamma, beta, mean, var)

    w1 = 0.1 * jax.random.normal(ks[0], (c_, c1, 3, 3), jnp.float32)
    bn1 = bn_params(ks[1], c_)
    wt_up = 0.1 * jax.random.normal(ks[2], (c_, c_, 2, 2), jnp.float32)
    b_up = 0.05 * jax.random.normal(ks[3], (c_,), jnp.float32)
    w2 = 0.1 * jax.random.normal(ks[4], (c_, c_, 3, 3), jnp.float32)
    bn2 = bn_params(ks[5], c_)
    w3 = 0.1 * jax.random.normal(ks[6], (c2, c_, 1, 1), jnp.float32)
    bn3 = bn_params(ks[7], c2)
    return (w1, bn1, wt_up, b_up, w2, bn2, w3, bn3)


# ----------------------------------------------------------------------------
# Pure-JAX f32 reference mirroring the PyTorch eval forward (independent path:
# lax.conv_general_dilated + explicit BN + explicit ConvTranspose).
# ----------------------------------------------------------------------------
def reference_forward(x_nchw, params):
    (w1, bn1, wt_up, b_up, w2, bn2, w3, bn3) = params

    def conv_bn_silu(x, w_oihw, bnp, pad):
        g, b, m, v = bnp
        w_hwio = jnp.transpose(w_oihw, (2, 3, 1, 0))
        y = jax.lax.conv_general_dilated(
            x, w_hwio, window_strides=(1, 1),
            padding=((pad, pad), (pad, pad)),
            dimension_numbers=('NHWC', 'HWIO', 'NHWC'))
        y = (y - m) / jnp.sqrt(v + BN_EPS) * g + b
        return y * jax.nn.sigmoid(y)

    x = jnp.transpose(x_nchw, (0, 2, 3, 1))
    y = conv_bn_silu(x, w1, bn1, 1)                           # cv1
    B, H, W, _ = y.shape
    t = jnp.einsum('bhwi,ioyx->bhwyxo', y, wt_up)             # ConvTranspose2d(2,2)
    u = jnp.transpose(t, (0, 1, 3, 2, 4, 5)).reshape(B, 2 * H, 2 * W, -1) + b_up
    z = conv_bn_silu(u, w2, bn2, 1)                           # cv2
    z = conv_bn_silu(z, w3, bn3, 0)                           # cv3 (1x1)
    return jnp.transpose(z, (0, 3, 1, 2))


if __name__ == "__main__":
    key = jax.random.PRNGKey(0)
    kx, kp = jax.random.split(key)

    # Small config consistent with Proto(c1, c_, c2): c1=16, c_=32, c2=32, 16x16 input.
    # With the default tile_rows this exercises a (B=2, n_tiles=2) grid per stage.
    B, c1, Hs, Ws = 2, 16, 16, 16
    c_, c2 = 32, 32

    x = jax.random.normal(kx, (B, c1, Hs, Ws), jnp.float32)
    params = make_params(kp, c1, c_, c2)

    proto_fn = jax.jit(proto_forward)
    out = proto_fn(x, params)
    out = jax.block_until_ready(out)
    assert out.shape == (B, c2, 2 * Hs, 2 * Ws)

    ref = reference_forward(x, params)
    # bf16 MXU operands + bf16 inter-stage tensor -> compare at a bf16-appropriate
    # tolerance (structural bugs would produce O(0.1+) errors).
    np.testing.assert_allclose(np.asarray(out), np.asarray(ref), atol=2e-2, rtol=2e-2)

    print("KERNEL_OK")
</pallas_src>

<mosaic_0001>
module attributes {stable_mosaic.version = 11 : i64} {
  func.func @_cv1_upsample_kernel(%arg0: i32, %arg1: i32, %arg2: memref<1x1x11x24x16xbf16, #tpu.memory_space<vmem>>, %arg3: memref<9x16x32xbf16, #tpu.memory_space<vmem>>, %arg4: memref<1x32xf32, #tpu.memory_space<vmem>>, %arg5: memref<32x128xbf16, #tpu.memory_space<vmem>>, %arg6: memref<1x128xf32, #tpu.memory_space<vmem>>, %arg7: memref<1x192x128xbf16, #tpu.memory_space<vmem>>) attributes {dimension_semantics = [#tpu.dimension_semantics<parallel>, #tpu.dimension_semantics<parallel>], iteration_bounds = array<i64: 2, 2>, scalar_prefetch = 0 : i64, scratch_operands = 0 : i64, tpu.core_type = #tpu.core_type<tc>, window_params = [{transform_indices = @transform_0, window_bounds = array<i64: 1, 1, 11, 24, 16>}, {pipeline_mode = #tpu.pipeline_mode<synchronous>, transform_indices = @transform_1, window_bounds = array<i64: 9, 16, 32>}, {pipeline_mode = #tpu.pipeline_mode<synchronous>, transform_indices = @transform_2, window_bounds = array<i64: 1, 32>}, {pipeline_mode = #tpu.pipeline_mode<synchronous>, transform_indices = @transform_3, window_bounds = array<i64: 32, 128>}, {pipeline_mode = #tpu.pipeline_mode<synchronous>, transform_indices = @transform_4, window_bounds = array<i64: 1, 128>}, {transform_indices = @transform_5, window_bounds = array<i64: 1, 192, 128>}]} {
    %c0 = arith.constant 0 : index
    %c0_0 = arith.constant 0 : index
    %c0_1 = arith.constant 0 : index
    %c0_2 = arith.constant 0 : index
    %c0_3 = arith.constant 0 : index
    %0 = vector.load %arg2[%c0, %c0_0, %c0_1, %c0_2, %c0_3] : memref<1x1x11x24x16xbf16, #tpu.memory_space<vmem>>, vector<1x1x11x24x16xbf16>
    %1 = vector.shape_cast %0 : vector<1x1x11x24x16xbf16> to vector<11x24x16xbf16>
    %2 = vector.shape_cast %1 : vector<11x24x16xbf16> to vector<264x16xbf16>
    %3 = vector.extract_strided_slice %2 {offsets = [0, 0], sizes = [240, 16], strides = [1, 1]} : vector<264x16xbf16> to vector<240x16xbf16>
    %4 = vector.extract_strided_slice %2 {offsets = [1, 0], sizes = [240, 16], strides = [1, 1]} : vector<264x16xbf16> to vector<240x16xbf16>
    %5 = vector.extract_strided_slice %2 {offsets = [2, 0], sizes = [240, 16], strides = [1, 1]} : vector<264x16xbf16> to vector<240x16xbf16>
    %6 = vector.extract_strided_slice %3 {offsets = [0, 0], sizes = [192, 16], strides = [1, 1]} : vector<240x16xbf16> to vector<192x16xbf16>
    %c0_4 = arith.constant 0 : index
    %c0_5 = arith.constant 0 : index
    %c0_6 = arith.constant 0 : index
    %7 = vector.load %arg3[%c0_4, %c0_5, %c0_6] : memref<9x16x32xbf16, #tpu.memory_space<vmem>>, vector<1x16x32xbf16>
    %8 = vector.shape_cast %7 : vector<1x16x32xbf16> to vector<16x32xbf16>
    %cst = arith.constant dense<0.000000e+00> : vector<192x32xf32>
    %9 = tpu.matmul %6, %8, %cst {dimension_numbers = #tpu.dot_dimension_numbers<[1], [0], [0], [1], [0, 0, 1, 1], [], []>} : vector<192x16xbf16>, vector<16x32xbf16>, vector<192x32xf32> -> vector<192x32xf32>
    %10 = vector.extract_strided_slice %4 {offsets = [0, 0], sizes = [192, 16], strides = [1, 1]} : vector<240x16xbf16> to vector<192x16xbf16>
    %c1 = arith.constant 1 : index
    %c0_7 = arith.constant 0 : index
    %c0_8 = arith.constant 0 : index
    %11 = vector.load %arg3[%c1, %c0_7, %c0_8] : memref<9x16x32xbf16, #tpu.memory_space<vmem>>, vector<1x16x32xbf16>
    %12 = vector.shape_cast %11 : vector<1x16x32xbf16> to vector<16x32xbf16>
    %cst_9 = arith.constant dense<0.000000e+00> : vector<192x32xf32>
    %13 = tpu.matmul %10, %12, %cst_9 {dimension_numbers = #tpu.dot_dimension_numbers<[1], [0], [0], [1], [0, 0, 1, 1], [], []>} : vector<192x16xbf16>, vector<16x32xbf16>, vector<192x32xf32> -> vector<192x32xf32>
    %14 = arith.addf %9, %13 : vector<192x32xf32>
    %15 = vector.extract_strided_slice %5 {offsets = [0, 0], sizes = [192, 16], strides = [1, 1]} : vector<240x16xbf16> to vector<192x16xbf16>
    %c2 = arith.constant 2 : index
    %c0_10 = arith.constant 0 : index
    %c0_11 = arith.constant 0 : index
    %16 = vector.load %arg3[%c2, %c0_10, %c0_11] : memref<9x16x32xbf16, #tpu.memory_space<vmem>>, vector<1x16x32xbf16>
    %17 = vector.shape_cast %16 : vector<1x16x32xbf16> to vector<16x32xbf16>
    %cst_12 = arith.constant dense<0.000000e+00> : vector<192x32xf32>
    %18 = tpu.matmul %15, %17, %cst_12 {dimension_numbers = #tpu.dot_dimension_numbers<[1], [0], [0], [1], [0, 0, 1, 1], [], []>} : vector<192x16xbf16>, vector<16x32xbf16>, vector<192x32xf32> -> vector<192x32xf32>
    %19 = arith.addf %14, %18 : vector<192x32xf32>
    %20 = vector.extract_strided_slice %3 {offsets = [24, 0], sizes = [192, 16], strides = [1, 1]} : vector<240x16xbf16> to vector<192x16xbf16>
    %c3 = arith.constant 3 : index
    %c0_13 = arith.constant 0 : index
    %c0_14 = arith.constant 0 : index
    %21 = vector.load %arg3[%c3, %c0_13, %c0_14] : memref<9x16x32xbf16, #tpu.memory_space<vmem>>, vector<1x16x32xbf16>
    %22 = vector.shape_cast %21 : vector<1x16x32xbf16> to vector<16x32xbf16>
    %cst_15 = arith.constant dense<0.000000e+00> : vector<192x32xf32>
    %23 = tpu.matmul %20, %22, %cst_15 {dimension_numbers = #tpu.dot_dimension_numbers<[1], [0], [0], [1], [0, 0, 1, 1], [], []>} : vector<192x16xbf16>, vector<16x32xbf16>, vector<192x32xf32> -> vector<192x32xf32>
    %24 = arith.addf %19, %23 : vector<192x32xf32>
    %25 = vector.extract_strided_slice %4 {offsets = [24, 0], sizes = [192, 16], strides = [1, 1]} : vector<240x16xbf16> to vector<192x16xbf16>
    %c4 = arith.constant 4 : index
    %c0_16 = arith.constant 0 : index
    %c0_17 = arith.constant 0 : index
    %26 = vector.load %arg3[%c4, %c0_16, %c0_17] : memref<9x16x32xbf16, #tpu.memory_space<vmem>>, vector<1x16x32xbf16>
    %27 = vector.shape_cast %26 : vector<1x16x32xbf16> to vector<16x32xbf16>
    %cst_18 = arith.constant dense<0.000000e+00> : vector<192x32xf32>
    %28 = tpu.matmul %25, %27, %cst_18 {dimension_numbers = #tpu.dot_dimension_numbers<[1], [0], [0], [1], [0, 0, 1, 1], [], []>} : vector<192x16xbf16>, vector<16x32xbf16>, vector<192x32xf32> -> vector<192x32xf32>
    %29 = arith.addf %24, %28 : vector<192x32xf32>
    %30 = vector.extract_strided_slice %5 {offsets = [24, 0], sizes = [192, 16], strides = [1, 1]} : vector<240x16xbf16> to vector<192x16xbf16>
    %c5 = arith.constant 5 : index
    %c0_19 = arith.constant 0 : index
    %c0_20 = arith.constant 0 : index
    %31 = vector.load %arg3[%c5, %c0_19, %c0_20] : memref<9x16x32xbf16, #tpu.memory_space<vmem>>, vector<1x16x32xbf16>
    %32 = vector.shape_cast %31 : vector<1x16x32xbf16> to vector<16x32xbf16>
    %cst_21 = arith.constant dense<0.000000e+00> : vector<192x32xf32>
    %33 = tpu.matmul %30, %32, %cst_21 {dimension_numbers = #tpu.dot_dimension_numbers<[1], [0], [0], [1], [0, 0, 1, 1], [], []>} : vector<192x16xbf16>, vector<16x32xbf16>, vector<192x32xf32> -> vector<192x32xf32>
    %34 = arith.addf %29, %33 : vector<192x32xf32>
    %35 = vector.extract_strided_slice %3 {offsets = [48, 0], sizes = [192, 16], strides = [1, 1]} : vector<240x16xbf16> to vector<192x16xbf16>
    %c6 = arith.constant 6 : index
    %c0_22 = arith.constant 0 : index
    %c0_23 = arith.constant 0 : index
    %36 = vector.load %arg3[%c6, %c0_22, %c0_23] : memref<9x16x32xbf16, #tpu.memory_space<vmem>>, vector<1x16x32xbf16>
    %37 = vector.shape_cast %36 : vector<1x16x32xbf16> to vector<16x32xbf16>
    %cst_24 = arith.constant dense<0.000000e+00> : vector<192x32xf32>
    %38 = tpu.matmul %35, %37, %cst_24 {dimension_numbers = #tpu.dot_dimension_numbers<[1], [0], [0], [1], [0, 0, 1, 1], [], []>} : vector<192x16xbf16>, vector<16x32xbf16>, vector<192x32xf32> -> vector<192x32xf32>
    %39 = arith.addf %34, %38 : vector<192x32xf32>
    %40 = vector.extract_strided_slice %4 {offsets = [48, 0], sizes = [192, 16], strides = [1, 1]} : vector<240x16xbf16> to vector<192x16xbf16>
    %c7 = arith.constant 7 : index
    %c0_25 = arith.constant 0 : index
    %c0_26 = arith.constant 0 : index
    %41 = vector.load %arg3[%c7, %c0_25, %c0_26] : memref<9x16x32xbf16, #tpu.memory_space<vmem>>, vector<1x16x32xbf16>
    %42 = vector.shape_cast %41 : vector<1x16x32xbf16> to vector<16x32xbf16>
    %cst_27 = arith.constant dense<0.000000e+00> : vector<192x32xf32>
    %43 = tpu.matmul %40, %42, %cst_27 {dimension_numbers = #tpu.dot_dimension_numbers<[1], [0], [0], [1], [0, 0, 1, 1], [], []>} : vector<192x16xbf16>, vector<16x32xbf16>, vector<192x32xf32> -> vector<192x32xf32>
    %44 = arith.addf %39, %43 : vector<192x32xf32>
    %45 = vector.extract_strided_slice %5 {offsets = [48, 0], sizes = [192, 16], strides = [1, 1]} : vector<240x16xbf16> to vector<192x16xbf16>
    %c8 = arith.constant 8 : index
    %c0_28 = arith.constant 0 : index
    %c0_29 = arith.constant 0 : index
    %46 = vector.load %arg3[%c8, %c0_28, %c0_29] : memref<9x16x32xbf16, #tpu.memory_space<vmem>>, vector<1x16x32xbf16>
    %47 = vector.shape_cast %46 : vector<1x16x32xbf16> to vector<16x32xbf16>
    %cst_30 = arith.constant dense<0.000000e+00> : vector<192x32xf32>
    %48 = tpu.matmul %45, %47, %cst_30 {dimension_numbers = #tpu.dot_dimension_numbers<[1], [0], [0], [1], [0, 0, 1, 1], [], []>} : vector<192x16xbf16>, vector<16x32xbf16>, vector<192x32xf32> -> vector<192x32xf32>
    %49 = arith.addf %44, %48 : vector<192x32xf32>
    %c0_31 = arith.constant 0 : index
    %c0_32 = arith.constant 0 : index
    %50 = vector.load %arg4[%c0_31, %c0_32] : memref<1x32xf32, #tpu.memory_space<vmem>>, vector<1x32xf32>
    %51 = vector.shape_cast %50 : vector<1x32xf32> to vector<32xf32>
    %52 = vector.shape_cast %51 : vector<32xf32> to vector<1x32xf32>
    %53 = vector.broadcast %52 : vector<1x32xf32> to vector<192x32xf32>
    %54 = arith.addf %49, %53 : vector<192x32xf32>
    %55 = arith.negf %54 : vector<192x32xf32>
    %56 = math.exp %55 : vector<192x32xf32>
    %cst_33 = arith.constant 1.000000e+00 : f32
    %57 = vector.broadcast %cst_33 : f32 to vector<192x32xf32>
    %58 = arith.addf %57, %56 : vector<192x32xf32>
    %59 = arith.divf %57, %58 : vector<192x32xf32>
    %60 = arith.mulf %54, %59 : vector<192x32xf32>
    %61 = arith.truncf %60 : vector<192x32xf32> to vector<192x32xbf16>
    %c0_34 = arith.constant 0 : index
    %c0_35 = arith.constant 0 : index
    %62 = vector.load %arg5[%c0_34, %c0_35] : memref<32x128xbf16, #tpu.memory_space<vmem>>, vector<32x128xbf16>
    %cst_36 = arith.constant dense<0.000000e+00> : vector<192x128xf32>
    %63 = tpu.matmul %61, %62, %cst_36 {dimension_numbers = #tpu.dot_dimension_numbers<[1], [0], [0], [1], [0, 0, 1, 1], [], []>} : vector<192x32xbf16>, vector<32x128xbf16>, vector<192x128xf32> -> vector<192x128xf32>
    %c0_37 = arith.constant 0 : index
    %c0_38 = arith.constant 0 : index
    %64 = vector.load %arg6[%c0_37, %c0_38] : memref<1x128xf32, #tpu.memory_space<vmem>>, vector<1x128xf32>
    %65 = vector.shape_cast %64 : vector<1x128xf32> to vector<128xf32>
    %66 = vector.shape_cast %65 : vector<128xf32> to vector<1x128xf32>
    %67 = vector.broadcast %66 : vector<1x128xf32> to vector<192x128xf32>
    %68 = arith.addf %63, %67 : vector<192x128xf32>
    %69 = arith.truncf %68 : vector<192x128xf32> to vector<192x128xbf16>
    %c0_39 = arith.constant 0 : index
    %c0_40 = arith.constant 0 : index
    %c0_41 = arith.constant 0 : index
    %70 = vector.load %arg7[%c0_39, %c0_40, %c0_41] : memref<1x192x128xbf16, #tpu.memory_space<vmem>>, vector<1x192x128xbf16>
    %71 = vector.shape_cast %70 : vector<1x192x128xbf16> to vector<192x128xbf16>
    %72 = vector.shape_cast %69 : vector<192x128xbf16> to vector<1x192x128xbf16>
    tpu.vector_store %arg7[%c0_39, %c0_40, %c0_41], %72 {strides = array<i32>} : memref<1x192x128xbf16, #tpu.memory_space<vmem>>, vector<1x192x128xbf16>,
    return
  }
  func.func @transform_0(%arg0: i32, %arg1: i32) -> (i32, i32, i32, i32, i32) {
    %c0_i32 = arith.constant 0 : i32
    %c0_i32_0 = arith.constant 0 : i32
    %c0_i32_1 = arith.constant 0 : i32
    %c0_i32_2 = arith.constant 0 : i32
    return %arg0, %arg1, %c0_i32, %c0_i32_0, %c0_i32_1 : i32, i32, i32, i32, i32
  }
  func.func @transform_1(%arg0: i32, %arg1: i32) -> (i32, i32, i32) {
    %c0_i32 = arith.constant 0 : i32
    %c0_i32_0 = arith.constant 0 : i32
    %c0_i32_1 = arith.constant 0 : i32
    %c0_i32_2 = arith.constant 0 : i32
    return %c0_i32, %c0_i32_0, %c0_i32_1 : i32, i32, i32
  }
  func.func @transform_2(%arg0: i32, %arg1: i32) -> (i32, i32) {
    %c0_i32 = arith.constant 0 : i32
    %c0_i32_0 = arith.constant 0 : i32
    %c0_i32_1 = arith.constant 0 : i32
    return %c0_i32, %c0_i32_0 : i32, i32
  }
  func.func @transform_3(%arg0: i32, %arg1: i32) -> (i32, i32) {
    %c0_i32 = arith.constant 0 : i32
    %c0_i32_0 = arith.constant 0 : i32
    %c0_i32_1 = arith.constant 0 : i32
    return %c0_i32, %c0_i32_0 : i32, i32
  }
  func.func @transform_4(%arg0: i32, %arg1: i32) -> (i32, i32) {
    %c0_i32 = arith.constant 0 : i32
    %c0_i32_0 = arith.constant 0 : i32
    %c0_i32_1 = arith.constant 0 : i32
    return %c0_i32, %c0_i32_0 : i32, i32
  }
  func.func @transform_5(%arg0: i32, %arg1: i32) -> (i32, i32, i32) {
    %c0_i32 = arith.constant 0 : i32
    %c0_i32_0 = arith.constant 0 : i32
    return %arg0, %arg1, %c0_i32 : i32, i32, i32
  }
}

module attributes {stable_mosaic.version = 11 : i64} {
  func.func @_cv2_cv3_kernel(%arg0: i32, %arg1: i32, %arg2: memref<1x1x19x40x32xbf16, #tpu.memory_space<vmem>>, %arg3: memref<9x32x32xbf16, #tpu.memory_space<vmem>>, %arg4: memref<1x32xf32, #tpu.memory_space<vmem>>, %arg5: memref<32x32xbf16, #tpu.memory_space<vmem>>, %arg6: memref<1x32xf32, #tpu.memory_space<vmem>>, %arg7: memref<1x640x32xf32, #tpu.memory_space<vmem>>) attributes {dimension_semantics = [#tpu.dimension_semantics<parallel>, #tpu.dimension_semantics<parallel>], iteration_bounds = array<i64: 2, 2>, scalar_prefetch = 0 : i64, scratch_operands = 0 : i64, tpu.core_type = #tpu.core_type<tc>, window_params = [{transform_indices = @transform_0, window_bounds = array<i64: 1, 1, 19, 40, 32>}, {pipeline_mode = #tpu.pipeline_mode<synchronous>, transform_indices = @transform_1, window_bounds = array<i64: 9, 32, 32>}, {pipeline_mode = #tpu.pipeline_mode<synchronous>, transform_indices = @transform_2, window_bounds = array<i64: 1, 32>}, {pipeline_mode = #tpu.pipeline_mode<synchronous>, transform_indices = @transform_3, window_bounds = array<i64: 32, 32>}, {pipeline_mode = #tpu.pipeline_mode<synchronous>, transform_indices = @transform_4, window_bounds = array<i64: 1, 32>}, {transform_indices = @transform_5, window_bounds = array<i64: 1, 640, 32>}]} {
    %c0 = arith.constant 0 : index
    %c0_0 = arith.constant 0 : index
    %c0_1 = arith.constant 0 : index
    %c0_2 = arith.constant 0 : index
    %c0_3 = arith.constant 0 : index
    %0 = vector.load %arg2[%c0, %c0_0, %c0_1, %c0_2, %c0_3] : memref<1x1x19x40x32xbf16, #tpu.memory_space<vmem>>, vector<1x1x19x40x32xbf16>
    %1 = vector.shape_cast %0 : vector<1x1x19x40x32xbf16> to vector<19x40x32xbf16>
    %2 = vector.shape_cast %1 : vector<19x40x32xbf16> to vector<760x32xbf16>
    %3 = vector.extract_strided_slice %2 {offsets = [0, 0], sizes = [720, 32], strides = [1, 1]} : vector<760x32xbf16> to vector<720x32xbf16>
    %4 = vector.extract_strided_slice %2 {offsets = [1, 0], sizes = [720, 32], strides = [1, 1]} : vector<760x32xbf16> to vector<720x32xbf16>
    %5 = vector.extract_strided_slice %2 {offsets = [2, 0], sizes = [720, 32], strides = [1, 1]} : vector<760x32xbf16> to vector<720x32xbf16>
    %6 = vector.extract_strided_slice %3 {offsets = [0, 0], sizes = [640, 32], strides = [1, 1]} : vector<720x32xbf16> to vector<640x32xbf16>
    %c0_4 = arith.constant 0 : index
    %c0_5 = arith.constant 0 : index
    %c0_6 = arith.constant 0 : index
    %7 = vector.load %arg3[%c0_4, %c0_5, %c0_6] : memref<9x32x32xbf16, #tpu.memory_space<vmem>>, vector<1x32x32xbf16>
    %8 = vector.shape_cast %7 : vector<1x32x32xbf16> to vector<32x32xbf16>
    %cst = arith.constant dense<0.000000e+00> : vector<640x32xf32>
    %9 = tpu.matmul %6, %8, %cst {dimension_numbers = #tpu.dot_dimension_numbers<[1], [0], [0], [1], [0, 0, 1, 1], [], []>} : vector<640x32xbf16>, vector<32x32xbf16>, vector<640x32xf32> -> vector<640x32xf32>
    %10 = vector.extract_strided_slice %4 {offsets = [0, 0], sizes = [640, 32], strides = [1, 1]} : vector<720x32xbf16> to vector<640x32xbf16>
    %c1 = arith.constant 1 : index
    %c0_7 = arith.constant 0 : index
    %c0_8 = arith.constant 0 : index
    %11 = vector.load %arg3[%c1, %c0_7, %c0_8] : memref<9x32x32xbf16, #tpu.memory_space<vmem>>, vector<1x32x32xbf16>
    %12 = vector.shape_cast %11 : vector<1x32x32xbf16> to vector<32x32xbf16>
    %cst_9 = arith.constant dense<0.000000e+00> : vector<640x32xf32>
    %13 = tpu.matmul %10, %12, %cst_9 {dimension_numbers = #tpu.dot_dimension_numbers<[1], [0], [0], [1], [0, 0, 1, 1], [], []>} : vector<640x32xbf16>, vector<32x32xbf16>, vector<640x32xf32> -> vector<640x32xf32>
    %14 = arith.addf %9, %13 : vector<640x32xf32>
    %15 = vector.extract_strided_slice %5 {offsets = [0, 0], sizes = [640, 32], strides = [1, 1]} : vector<720x32xbf16> to vector<640x32xbf16>
    %c2 = arith.constant 2 : index
    %c0_10 = arith.constant 0 : index
    %c0_11 = arith.constant 0 : index
    %16 = vector.load %arg3[%c2, %c0_10, %c0_11] : memref<9x32x32xbf16, #tpu.memory_space<vmem>>, vector<1x32x32xbf16>
    %17 = vector.shape_cast %16 : vector<1x32x32xbf16> to vector<32x32xbf16>
    %cst_12 = arith.constant dense<0.000000e+00> : vector<640x32xf32>
    %18 = tpu.matmul %15, %17, %cst_12 {dimension_numbers = #tpu.dot_dimension_numbers<[1], [0], [0], [1], [0, 0, 1, 1], [], []>} : vector<640x32xbf16>, vector<32x32xbf16>, vector<640x32xf32> -> vector<640x32xf32>
    %19 = arith.addf %14, %18 : vector<640x32xf32>
    %20 = vector.extract_strided_slice %3 {offsets = [40, 0], sizes = [640, 32], strides = [1, 1]} : vector<720x32xbf16> to vector<640x32xbf16>
    %c3 = arith.constant 3 : index
    %c0_13 = arith.constant 0 : index
    %c0_14 = arith.constant 0 : index
    %21 = vector.load %arg3[%c3, %c0_13, %c0_14] : memref<9x32x32xbf16, #tpu.memory_space<vmem>>, vector<1x32x32xbf16>
    %22 = vector.shape_cast %21 : vector<1x32x32xbf16> to vector<32x32xbf16>
    %cst_15 = arith.constant dense<0.000000e+00> : vector<640x32xf32>
    %23 = tpu.matmul %20, %22, %cst_15 {dimension_numbers = #tpu.dot_dimension_numbers<[1], [0], [0], [1], [0, 0, 1, 1], [], []>} : vector<640x32xbf16>, vector<32x32xbf16>, vector<640x32xf32> -> vector<640x32xf32>
    %24 = arith.addf %19, %23 : vector<640x32xf32>
    %25 = vector.extract_strided_slice %4 {offsets = [40, 0], sizes = [640, 32], strides = [1, 1]} : vector<720x32xbf16> to vector<640x32xbf16>
    %c4 = arith.constant 4 : index
    %c0_16 = arith.constant 0 : index
    %c0_17 = arith.constant 0 : index
    %26 = vector.load %arg3[%c4, %c0_16, %c0_17] : memref<9x32x32xbf16, #tpu.memory_space<vmem>>, vector<1x32x32xbf16>
    %27 = vector.shape_cast %26 : vector<1x32x32xbf16> to vector<32x32xbf16>
    %cst_18 = arith.constant dense<0.000000e+00> : vector<640x32xf32>
    %28 = tpu.matmul %25, %27, %cst_18 {dimension_numbers = #tpu.dot_dimension_numbers<[1], [0], [0], [1], [0, 0, 1, 1], [], []>} : vector<640x32xbf16>, vector<32x32xbf16>, vector<640x32xf32> -> vector<640x32xf32>
    %29 = arith.addf %24, %28 : vector<640x32xf32>
    %30 = vector.extract_strided_slice %5 {offsets = [40, 0], sizes = [640, 32], strides = [1, 1]} : vector<720x32xbf16> to vector<640x32xbf16>
    %c5 = arith.constant 5 : index
    %c0_19 = arith.constant 0 : index
    %c0_20 = arith.constant 0 : index
    %31 = vector.load %arg3[%c5, %c0_19, %c0_20] : memref<9x32x32xbf16, #tpu.memory_space<vmem>>, vector<1x32x32xbf16>
    %32 = vector.shape_cast %31 : vector<1x32x32xbf16> to vector<32x32xbf16>
    %cst_21 = arith.constant dense<0.000000e+00> : vector<640x32xf32>
    %33 = tpu.matmul %30, %32, %cst_21 {dimension_numbers = #tpu.dot_dimension_numbers<[1], [0], [0], [1], [0, 0, 1, 1], [], []>} : vector<640x32xbf16>, vector<32x32xbf16>, vector<640x32xf32> -> vector<640x32xf32>
    %34 = arith.addf %29, %33 : vector<640x32xf32>
    %35 = vector.extract_strided_slice %3 {offsets = [80, 0], sizes = [640, 32], strides = [1, 1]} : vector<720x32xbf16> to vector<640x32xbf16>
    %c6 = arith.constant 6 : index
    %c0_22 = arith.constant 0 : index
    %c0_23 = arith.constant 0 : index
    %36 = vector.load %arg3[%c6, %c0_22, %c0_23] : memref<9x32x32xbf16, #tpu.memory_space<vmem>>, vector<1x32x32xbf16>
    %37 = vector.shape_cast %36 : vector<1x32x32xbf16> to vector<32x32xbf16>
    %cst_24 = arith.constant dense<0.000000e+00> : vector<640x32xf32>
    %38 = tpu.matmul %35, %37, %cst_24 {dimension_numbers = #tpu.dot_dimension_numbers<[1], [0], [0], [1], [0, 0, 1, 1], [], []>} : vector<640x32xbf16>, vector<32x32xbf16>, vector<640x32xf32> -> vector<640x32xf32>
    %39 = arith.addf %34, %38 : vector<640x32xf32>
    %40 = vector.extract_strided_slice %4 {offsets = [80, 0], sizes = [640, 32], strides = [1, 1]} : vector<720x32xbf16> to vector<640x32xbf16>
    %c7 = arith.constant 7 : index
    %c0_25 = arith.constant 0 : index
    %c0_26 = arith.constant 0 : index
    %41 = vector.load %arg3[%c7, %c0_25, %c0_26] : memref<9x32x32xbf16, #tpu.memory_space<vmem>>, vector<1x32x32xbf16>
    %42 = vector.shape_cast %41 : vector<1x32x32xbf16> to vector<32x32xbf16>
    %cst_27 = arith.constant dense<0.000000e+00> : vector<640x32xf32>
    %43 = tpu.matmul %40, %42, %cst_27 {dimension_numbers = #tpu.dot_dimension_numbers<[1], [0], [0], [1], [0, 0, 1, 1], [], []>} : vector<640x32xbf16>, vector<32x32xbf16>, vector<640x32xf32> -> vector<640x32xf32>
    %44 = arith.addf %39, %43 : vector<640x32xf32>
    %45 = vector.extract_strided_slice %5 {offsets = [80, 0], sizes = [640, 32], strides = [1, 1]} : vector<720x32xbf16> to vector<640x32xbf16>
    %c8 = arith.constant 8 : index
    %c0_28 = arith.constant 0 : index
    %c0_29 = arith.constant 0 : index
    %46 = vector.load %arg3[%c8, %c0_28, %c0_29] : memref<9x32x32xbf16, #tpu.memory_space<vmem>>, vector<1x32x32xbf16>
    %47 = vector.shape_cast %46 : vector<1x32x32xbf16> to vector<32x32xbf16>
    %cst_30 = arith.constant dense<0.000000e+00> : vector<640x32xf32>
    %48 = tpu.matmul %45, %47, %cst_30 {dimension_numbers = #tpu.dot_dimension_numbers<[1], [0], [0], [1], [0, 0, 1, 1], [], []>} : vector<640x32xbf16>, vector<32x32xbf16>, vector<640x32xf32> -> vector<640x32xf32>
    %49 = arith.addf %44, %48 : vector<640x32xf32>
    %c0_31 = arith.constant 0 : index
    %c0_32 = arith.constant 0 : index
    %50 = vector.load %arg4[%c0_31, %c0_32] : memref<1x32xf32, #tpu.memory_space<vmem>>, vector<1x32xf32>
    %51 = vector.shape_cast %50 : vector<1x32xf32> to vector<32xf32>
    %52 = vector.shape_cast %51 : vector<32xf32> to vector<1x32xf32>
    %53 = vector.broadcast %52 : vector<1x32xf32> to vector<640x32xf32>
    %54 = arith.addf %49, %53 : vector<640x32xf32>
    %55 = arith.negf %54 : vector<640x32xf32>
    %56 = math.exp %55 : vector<640x32xf32>
    %cst_33 = arith.constant 1.000000e+00 : f32
    %57 = vector.broadcast %cst_33 : f32 to vector<640x32xf32>
    %58 = arith.addf %57, %56 : vector<640x32xf32>
    %59 = arith.divf %57, %58 : vector<640x32xf32>
    %60 = arith.mulf %54, %59 : vector<640x32xf32>
    %61 = arith.truncf %60 : vector<640x32xf32> to vector<640x32xbf16>
    %c0_34 = arith.constant 0 : index
    %c0_35 = arith.constant 0 : index
    %62 = vector.load %arg5[%c0_34, %c0_35] : memref<32x32xbf16, #tpu.memory_space<vmem>>, vector<32x32xbf16>
    %cst_36 = arith.constant dense<0.000000e+00> : vector<640x32xf32>
    %63 = tpu.matmul %61, %62, %cst_36 {dimension_numbers = #tpu.dot_dimension_numbers<[1], [0], [0], [1], [0, 0, 1, 1], [], []>} : vector<640x32xbf16>, vector<32x32xbf16>, vector<640x32xf32> -> vector<640x32xf32>
    %c0_37 = arith.constant 0 : index
    %c0_38 = arith.constant 0 : index
    %64 = vector.load %arg6[%c0_37, %c0_38] : memref<1x32xf32, #tpu.memory_space<vmem>>, vector<1x32xf32>
    %65 = vector.shape_cast %64 : vector<1x32xf32> to vector<32xf32>
    %66 = vector.shape_cast %65 : vector<32xf32> to vector<1x32xf32>
    %67 = vector.broadcast %66 : vector<1x32xf32> to vector<640x32xf32>
    %68 = arith.addf %63, %67 : vector<640x32xf32>
    %69 = arith.negf %68 : vector<640x32xf32>
    %70 = math.exp %69 : vector<640x32xf32>
    %cst_39 = arith.constant 1.000000e+00 : f32
    %71 = vector.broadcast %cst_39 : f32 to vector<640x32xf32>
    %72 = arith.addf %71, %70 : vector<640x32xf32>
    %73 = arith.divf %71, %72 : vector<640x32xf32>
    %74 = arith.mulf %68, %73 : vector<640x32xf32>
    %c0_40 = arith.constant 0 : index
    %c0_41 = arith.constant 0 : index
    %c0_42 = arith.constant 0 : index
    %75 = vector.load %arg7[%c0_40, %c0_41, %c0_42] : memref<1x640x32xf32, #tpu.memory_space<vmem>>, vector<1x640x32xf32>
    %76 = vector.shape_cast %75 : vector<1x640x32xf32> to vector<640x32xf32>
    %77 = vector.shape_cast %74 : vector<640x32xf32> to vector<1x640x32xf32>
    tpu.vector_store %arg7[%c0_40, %c0_41, %c0_42], %77 {strides = array<i32>} : memref<1x640x32xf32, #tpu.memory_space<vmem>>, vector<1x640x32xf32>,
    return
  }
  func.func @transform_0(%arg0: i32, %arg1: i32) -> (i32, i32, i32, i32, i32) {
    %c0_i32 = arith.constant 0 : i32
    %c0_i32_0 = arith.constant 0 : i32
    %c0_i32_1 = arith.constant 0 : i32
    %c0_i32_2 = arith.constant 0 : i32
    return %arg0, %arg1, %c0_i32, %c0_i32_0, %c0_i32_1 : i32, i32, i32, i32, i32
  }
  func.func @transform_1(%arg0: i32, %arg1: i32) -> (i32, i32, i32) {
    %c0_i32 = arith.constant 0 : i32
    %c0_i32_0 = arith.constant 0 : i32
    %c0_i32_1 = arith.constant 0 : i32
    %c0_i32_2 = arith.constant 0 : i32
    return %c0_i32, %c0_i32_0, %c0_i32_1 : i32, i32, i32
  }
  func.func @transform_2(%arg0: i32, %arg1: i32) -> (i32, i32) {
    %c0_i32 = arith.constant 0 : i32
    %c0_i32_0 = arith.constant 0 : i32
    %c0_i32_1 = arith.constant 0 : i32
    return %c0_i32, %c0_i32_0 : i32, i32
  }
  func.func @transform_3(%arg0: i32, %arg1: i32) -> (i32, i32) {
    %c0_i32 = arith.constant 0 : i32
    %c0_i32_0 = arith.constant 0 : i32
    %c0_i32_1 = arith.constant 0 : i32
    return %c0_i32, %c0_i32_0 : i32, i32
  }
  func.func @transform_4(%arg0: i32, %arg1: i32) -> (i32, i32) {
    %c0_i32 = arith.constant 0 : i32
    %c0_i32_0 = arith.constant 0 : i32
    %c0_i32_1 = arith.constant 0 : i32
    return %c0_i32, %c0_i32_0 : i32, i32
  }
  func.func @transform_5(%arg0: i32, %arg1: i32) -> (i32, i32, i32) {
    %c0_i32 = arith.constant 0 : i32
    %c0_i32_0 = arith.constant 0 : i32
    return %arg0, %arg1, %c0_i32 : i32, i32, i32
  }
}

</mosaic_0001>

<llo_original>
// kernel: tile.8
$region0: #{tile.8}
  #allocation2 [shape = 's32[1]{0}', space=sflag, size = 0x4, scoped, tag = 'scoped memory for tile.8']
  %s0 = inlined_call_operand.hbm [shape: f32[32], index: 0, kind: input, shape index: {}]
  %s1 = inlined_call_operand.vmem [shape: f32[4,32], index: 1, kind: output, shape index: {}]
  $region1: #{tile.8} parent=0
    #allocation0 [shape = 'u8[512]{0}', space=vmem, size = 0x400, scoped, tag = 'operand span for operand 0']
    #allocation1 [shape = 's32[1]{0}', space=sflag, size = 0x4, scoped, tag = 'scoped memory for tile.8']
    %2 = vsyncpa [#allocation1], 0
    // Predicated region
    $region2: #{tile.8} parent=1 // pred_check
      _
    $region3: #{tile.8} parent=1 // pred_check_branch
      %4 = sbr.rel (0) target = $region5
    $region4: #{tile.8} parent=1 // pred_region
      %s6 = ssub.s32 16, 16
      %7 = vsyncadd [#allocation1], %s6
      %s9 = sshll.u32 [#allocation0], 4
      %s10 = int_to_ptr.vmem [resolvable:$true] %s9
      %12 = dma.hbm_to_vmem [thread:$0]  %s0, 16, %s10, [#allocation1]
    $region5: #{tile.8} parent=1 // pred_fallthru
      _
    // Predicated region
    $region6: #{tile.8} parent=1 // pred_check
      _
    $region7: #{tile.8} parent=1 // pred_check_branch
      %14 = sbr.rel (0) target = $region9
    $region8: #{tile.8} parent=1 // pred_region
      %15 = dma.done [#allocation1], 16
    $region9: #{tile.8} parent=1 // pred_fallthru
      _
    %v16 = vld [vmem:[#allocation0] ss:$0 sm:$0xff]
    %17 = vst [vmem:[%s1] sm:$0xf] %v16
    %18 = vsyncpa [#allocation1], 1

// kernel: tile.9
$region0: #{tile.9}
  %s0 = inlined_call_operand.vmem [shape: f32[4,32], index: 0, kind: input, shape index: {}]
  %s1 = inlined_call_operand.vmem [shape: f32[1,128], index: 1, kind: output, shape index: {}]
  $region1: #{tile.9} parent=0
    #allocation0 [shape = 'u8[4096]{0}', space=vmem, size = 0x1000, scoped, tag = 'scoped mem for output reshape']
    #allocation1 [shape = 'u8[4096]{0}', space=vmem, size = 0x1000, scoped, tag = 'scoped mem for input reshape']
    %s3 = sshllo.u32 0, 4
    %v4 = vld [vmem:[%s0] sm:%s3]
    %5 = vst [vmem:[#allocation1] sm:%s3] %v4
    %v6 = vld [vmem:[#allocation1] sm:$0x1]
    %vm7 = vcmask 261120
    %8 = vst.msk [vmem:[#allocation0] sm:$0x1] %vm7, %v6
    %s9 = scalar_lea.vmem [#allocation1], 3
    %v10 = vld [vmem:[%s9] sm:$0x1]
    %11 = vrot.lane.b32.xlu0 %v10, 96
    %v12 = vpop.permute.xlu0 %11
    %vm13 = vcmask 1048320
    %14 = vst.msk [vmem:[#allocation0] sm:$0x1] %vm13, %v12
    %s15 = scalar_lea.vmem [#allocation1], 2
    %v16 = vld [vmem:[%s15] sm:$0x1]
    %17 = vrot.lane.b32.xlu0 %v16, 64
    %v18 = vpop.permute.xlu0 %17
    %vm19 = vcmask 785920
    %20 = vst.msk [vmem:[#allocation0] sm:$0x1] %vm19, %v18
    %s21 = scalar_lea.vmem [#allocation1], 1
    %v22 = vld [vmem:[%s21] sm:$0x1]
    %23 = vrot.lane.b32.xlu0 %v22, 32
    %v24 = vpop.permute.xlu0 %23
    %vm25 = vcmask 523520
    %26 = vst.msk [vmem:[#allocation0] sm:$0x1] %vm25, %v24
    %s28 = sshllo.u32 0, 1
    %v30 = vld [vmem:[#allocation0] sm:%s28]
    %s31 = sshllo.u32 0, 1
    %32 = vst [vmem:[%s1] sm:%s31] %v30

// kernel: proto_forward.2
$region0: #{proto_forward.2}
  #allocation0 [shape = 'u32[]', space=smem, size = 0x4, offset = 0x4, fixed_abs, tag = 'smem constant byte address 0x4 - core index']
  #allocation1 [shape = 'u32[144,128]{1,0:T(1,128)}', space=vmem, size = 0x12000, scoped, tag = 'internal scratch']
  %s0 = inlined_call_operand.vmem [shape: bf16[2,2,11,24,16], index: 0, kind: input, shape index: {}]
  %s1 = inlined_call_operand.vmem [shape: bf16[9,16,32], index: 1, kind: input, shape index: {}]
  %s2 = inlined_call_operand.vmem [shape: f32[1,32], index: 2, kind: input, shape index: {}]
  %s3 = inlined_call_operand.vmem [shape: bf16[32,128], index: 3, kind: input, shape index: {}]
  %s4 = inlined_call_operand.vmem [shape: f32[1,128], index: 4, kind: input, shape index: {}]
  %s5 = inlined_call_operand.vmem [shape: bf16[2,384,128], index: 5, kind: output, shape index: {}]
  %s6 = sld [smem:[#allocation0]]
  $region53: #{proto_forward.2} parent=0
    _
  %s8 = ssub.s32 1, %s6
  %s9 = scalar_select 0, %s8, %s6
  loop: start=0, step=1, limit=6
  $region2: #{proto_forward.2} parent=0 // loop_pre_header
    _
  $region3: #{proto_forward.2} parent=0 // loop_header
    %s11 = sphi 0, %s15
    %p12 = scmp.ge.s32.totalorder %s11, 6
    %s18 = sphi 0, %s30
    %s19 = sphi 0, %s26
    %s20 = sphi 0, %s18
    %s21 = sphi 0, %s19
    %s22 = sphi 0, %s20
    %s23 = sphi 0, %s21
    %s35 = sphi 0, %s37
    %s38 = sphi 0, %s35
    %s39 = sphi 0, %s38
    %s55 = sphi 0, %s39
    %s59 = sphi 0, %s59
    %s61 = sphi 0, %s59
    %s62 = sphi 0, %s61
    %s76 = sphi 0, %s62
    %s80 = sphi 0, %s80
    %s82 = sphi 0, %s80
    %s83 = sphi 0, %s82
    %s97 = sphi 0, %s83
    %s101 = sphi 0, %s101
    %s103 = sphi 0, %s101
    %s104 = sphi 0, %s103
    %s118 = sphi 0, %s104
    %s122 = sphi 0, %s122
    %s124 = sphi 0, %s122
    %s125 = sphi 0, %s124
    %s139 = sphi 0, %s125
    %s147 = sphi 0, %s149
    %s150 = sphi 0, %s147
    %s151 = sphi 0, %s150
    %s167 = sphi 0, %s151
  $region4: #{proto_forward.2} parent=0 // loop_header_branch
    %14 = sbr.rel (%p12) target = $region8
  $region5: #{proto_forward.2} parent=0 // loop_body
    %s16 = ssub.s32 %s11, 1
    %s17 = ssub.s32 %s11, 2
    %s24 = sadd.s32 1, %s19
    %p25 = scmp.ge.s32.totalorder %s24, 2
    %s26 = scalar_select %p25, 0, %s24
    %s27 = sadd.s32 1, %s18
    %s28 = scalar_select %p25, %s27, %s18
    %p29 = scmp.ge.s32.totalorder %s28, 2
    %s30 = scalar_select %p29, 0, %s28
    %s31 = ssub.s32 %s18, %s30
    %s32 = ssub.s32 %s19, %s26
    %s33 = sor.u32 %s31, %s32
    %p34 = scmp.eq.s32.totalorder %s33, 0
    %s36 = sadd.s32 %s35, 1
    %s37 = scalar_select %p34, %s35, %s36
    %p40 = pneg %p34
    %p41 = scmp.eq.s32.totalorder %s11, 3
    %p42 = por %p40, %p41
    %p43 = scmp.ne.s32.totalorder %s35, %s38
    %p44 = scmp.eq.s32.totalorder %s11, 0
    %p45 = por %p43, %p44
    %p46 = scmp.ne.s32.totalorder %s35, %s38
    %p47 = scmp.eq.s32.totalorder %s16, 3
    %p48 = por %p46, %p47
    %p49 = scmp.ne.s32.totalorder %s38, %s39
    %p50 = scmp.eq.s32.totalorder %s16, 0
    %p51 = por %p49, %p50
    %p52 = scmp.ne.s32.totalorder %s38, %s39
    %p53 = scmp.eq.s32.totalorder %s17, 3
    %p54 = por %p52, %p53
    %p56 = scmp.ne.s32.totalorder %s39, %s55
    %p57 = scmp.eq.s32.totalorder %s17, 0
    %p58 = por %p56, %p57
    %s60 = sadd.s32 %s59, 1
    %p63 = scmp.eq.s32.totalorder %s11, 3
    %p64 = scmp.ne.s32.totalorder %s59, %s61
    %p65 = scmp.eq.s32.totalorder %s11, 0
    %p66 = por %p64, %p65
    %p67 = scmp.ne.s32.totalorder %s59, %s61
    %p68 = scmp.eq.s32.totalorder %s16, 3
    %p69 = por %p67, %p68
    %p70 = scmp.ne.s32.totalorder %s61, %s62
    %p71 = scmp.eq.s32.totalorder %s16, 0
    %p72 = por %p70, %p71
    %p73 = scmp.ne.s32.totalorder %s61, %s62
    %p74 = scmp.eq.s32.totalorder %s17, 3
    %p75 = por %p73, %p74
    %p77 = scmp.ne.s32.totalorder %s62, %s76
    %p78 = scmp.eq.s32.totalorder %s17, 0
    %p79 = por %p77, %p78
    %s81 = sadd.s32 %s80, 1
    %p84 = scmp.eq.s32.totalorder %s11, 3
    %p85 = scmp.ne.s32.totalorder %s80, %s82
    %p86 = scmp.eq.s32.totalorder %s11, 0
    %p87 = por %p85, %p86
    %p88 = scmp.ne.s32.totalorder %s80, %s82
    %p89 = scmp.eq.s32.totalorder %s16, 3
    %p90 = por %p88, %p89
    %p91 = scmp.ne.s32.totalorder %s82, %s83
    %p92 = scmp.eq.s32.totalorder %s16, 0
    %p93 = por %p91, %p92
    %p94 = scmp.ne.s32.totalorder %s82, %s83
    %p95 = scmp.eq.s32.totalorder %s17, 3
    %p96 = por %p94, %p95
    %p98 = scmp.ne.s32.totalorder %s83, %s97
    %p99 = scmp.eq.s32.totalorder %s17, 0
    %p100 = por %p98, %p99
    %s102 = sadd.s32 %s101, 1
    %p105 = scmp.eq.s32.totalorder %s11, 3
    %p106 = scmp.ne.s32.totalorder %s101, %s103
    %p107 = scmp.eq.s32.totalorder %s11, 0
    %p108 = por %p106, %p107
    %p109 = scmp.ne.s32.totalorder %s101, %s103
    %p110 = scmp.eq.s32.totalorder %s16, 3
    %p111 = por %p109, %p110
    %p112 = scmp.ne.s32.totalorder %s103, %s104
    %p113 = scmp.eq.s32.totalorder %s16, 0
    %p114 = por %p112, %p113
    %p115 = scmp.ne.s32.totalorder %s103, %s104
    %p116 = scmp.eq.s32.totalorder %s17, 3
    %p117 = por %p115, %p116
    %p119 = scmp.ne.s32.totalorder %s104, %s118
    %p120 = scmp.eq.s32.totalorder %s17, 0
    %p121 = por %p119, %p120
    %s123 = sadd.s32 %s122, 1
    %p126 = scmp.eq.s32.totalorder %s11, 3
    %p127 = scmp.ne.s32.totalorder %s122, %s124
    %p128 = scmp.eq.s32.totalorder %s11, 0
    %p129 = por %p127, %p128
    %p130 = scmp.ne.s32.totalorder %s122, %s124
    %p131 = scmp.eq.s32.totalorder %s16, 3
    %p132 = por %p130, %p131
    %p133 = scmp.ne.s32.totalorder %s124, %s125
    %p134 = scmp.eq.s32.totalorder %s16, 0
    %p135 = por %p133, %p134
    %p136 = scmp.ne.s32.totalorder %s124, %s125
    %p137 = scmp.eq.s32.totalorder %s17, 3
    %p138 = por %p136, %p137
    %p140 = scmp.ne.s32.totalorder %s125, %s139
    %p141 = scmp.eq.s32.totalorder %s17, 0
    %p142 = por %p140, %p141
    %s143 = ssub.s32 %s18, %s30
    %s144 = ssub.s32 %s19, %s26
    %s145 = sor.u32 %s143, %s144
    %p146 = scmp.eq.s32.totalorder %s145, 0
    %s148 = sadd.s32 %s147, 1
    %s149 = scalar_select %p146, %s147, %s148
    %p152 = pneg %p146
    %p153 = scmp.eq.s32.totalorder %s11, 3
    %p154 = por %p152, %p153
    %p155 = scmp.ne.s32.totalorder %s147, %s150
    %p156 = scmp.eq.s32.totalorder %s11, 0
    %p157 = por %p155, %p156
    %p158 = scmp.ne.s32.totalorder %s147, %s150
    %p159 = scmp.eq.s32.totalorder %s16, 3
    %p160 = por %p158, %p159
    %p161 = scmp.ne.s32.totalorder %s150, %s151
    %p162 = scmp.eq.s32.totalorder %s16, 0
    %p163 = por %p161, %p162
    %p164 = scmp.ne.s32.totalorder %s150, %s151
    %p165 = scmp.eq.s32.totalorder %s17, 3
    %p166 = por %p164, %p165
    %p168 = scmp.ne.s32.totalorder %s151, %s167
    %p169 = scmp.eq.s32.totalorder %s17, 0
    %p170 = por %p168, %p169
    %p171 = scmp.le.s32.totalorder 1, %s11
    %p172 = scmp.lt.s32.totalorder %s11, 5
    %p173 = pnand %p171, %p172
    %p174 = pneg %p173
    // Predicated region
    $region9: #{proto_forward.2} parent=5 // pred_check
      _
    $region10: #{proto_forward.2} parent=5 // pred_check_branch
      %176 = sbr.rel (%p173) target = $region12
    $region11: #{proto_forward.2} parent=5 // pred_region
      %s177 = ssub.s32 %s11, 1
      // Predicated region
      $region13: #{proto_forward.2} parent=11 // pred_check
        %p178 = pneg %p72
      $region14: #{proto_forward.2} parent=11 // pred_check_branch
        %180 = sbr.rel (%p178) target = $region16
      $region15: #{proto_forward.2} parent=11 // pred_region
        _
      $region16: #{proto_forward.2} parent=11 // pred_fallthru
        _
      // Predicated region
      $region17: #{proto_forward.2} parent=11 // pred_check
        %p181 = pneg %p93
      $region18: #{proto_forward.2} parent=11 // pred_check_branch
        %183 = sbr.rel (%p181) target = $region20
      $region19: #{proto_forward.2} parent=11 // pred_region
        _
      $region20: #{proto_forward.2} parent=11 // pred_fallthru
        _
      // Predicated region
      $region21: #{proto_forward.2} parent=11 // pred_check
        %p184 = pneg %p114
      $region22: #{proto_forward.2} parent=11 // pred_check_branch
        %186 = sbr.rel (%p184) target = $region24
      $region23: #{proto_forward.2} parent=11 // pred_region
        _
      $region24: #{proto_forward.2} parent=11 // pred_fallthru
        _
      // Predicated region
      $region25: #{proto_forward.2} parent=11 // pred_check
        %p187 = pneg %p135
      $region26: #{proto_forward.2} parent=11 // pred_check_branch
        %189 = sbr.rel (%p187) target = $region28
      $region27: #{proto_forward.2} parent=11 // pred_region
        _
      $region28: #{proto_forward.2} parent=11 // pred_fallthru
        _
    $region12: #{proto_forward.2} parent=5 // pred_fallthru
      _
    %p190 = scmp.lt.s32.totalorder %s11, 4
    // Predicated region
    $region29: #{proto_forward.2} parent=5 // pred_check
      %p191 = pneg %p190
    $region30: #{proto_forward.2} parent=5 // pred_check_branch
      %193 = sbr.rel (%p191) target = $region32
    $region31: #{proto_forward.2} parent=5 // pred_region
      // Predicated region
      $region33: #{proto_forward.2} parent=31 // pred_check
        %p194 = pneg %p45
      $region34: #{proto_forward.2} parent=31 // pred_check_branch
        %196 = sbr.rel (%p194) target = $region36
      $region35: #{proto_forward.2} parent=31 // pred_region
        %p197 = scmp.lt.s32.totalorder %s18, 1
        %s198 = scalar_select %p197, %s18, 1
        %p199 = scmp.lt.s32.totalorder %s19, 1
        %s200 = scalar_select %p199, %s19, 1
        %s201 = smul.addr %s200, 33
        %s202 = smul.addr %s198, 66
        %s203 = sadd.s32 %s201, %s202
        %s204 = smul.addr %s203, 4
        %s205 = scalar_lea.vmem %s0, %s204
      $region36: #{proto_forward.2} parent=31 // pred_fallthru
        _
    $region32: #{proto_forward.2} parent=5 // pred_fallthru
      _
    %p206 = scmp.le.s32.totalorder 1, %s11
    %p207 = scmp.lt.s32.totalorder %s11, 5
    %p208 = pnand %p206, %p207
    %p209 = pneg %p208
    // Predicated region
    $region37: #{proto_forward.2} parent=5 // pred_check
      _
    $region38: #{proto_forward.2} parent=5 // pred_check_branch
      %211 = sbr.rel (%p208) target = $region40
    $region39: #{proto_forward.2} parent=5 // pred_region
      %s212 = ssub.s32 %s11, 1
      %p213 = scmp.lt.s32.totalorder %s20, 1
      %s214 = scalar_select %p213, %s20, 1
      %p215 = scmp.lt.s32.totalorder %s21, 1
      %s216 = scalar_select %p215, %s21, 1
      %s217 = smul.addr %s216, 33
      %s218 = smul.addr %s214, 66
      %s219 = sadd.s32 %s217, %s218
      %s220 = smul.addr %s219, 4
      %s221 = scalar_lea.vmem %s0, %s220
      %p222 = pneg %p51
      %p223 = pneg %p48
      %p224 = pneg %p72
      %p225 = pneg %p69
      %p226 = pneg %p93
      %p227 = pneg %p90
      %p228 = pneg %p114
      %p229 = pneg %p111
      %p230 = pneg %p135
      %p231 = pneg %p132
      %p232 = pneg %p163
      %p233 = pneg %p160
      %s234 = smul.u32 24, %s21
      %p235 = scmp.lt.s32.totalorder %s20, 1
      %s236 = scalar_select %p235, %s20, 1
      %p237 = scmp.lt.s32.totalorder %s234, 47
      %s238 = scalar_select %p237, %s234, 47
      %s239 = smul.addr %s236, 48
      %s240 = sadd.s32 %s238, %s239
      %s241 = smul.addr %s240, 4
      %s242 = scalar_lea.vmem %s5, %s241
      %p243 = scmp.lt.s32.totalorder %s20, 1
      %s244 = scalar_select %p243, %s20, 1
      %p245 = scmp.lt.s32.totalorder %s21, 1
      %s246 = scalar_select %p245, %s21, 1
      %s247 = smul.addr %s246, 33
      %s248 = smul.addr %s244, 66
      %s249 = sadd.s32 %s247, %s248
      %s250 = smul.addr %s249, 4
      %s251 = scalar_lea.vmem %s0, %s250
      %s252 = smul.u32 24, %s21
      %p253 = scmp.lt.s32.totalorder %s20, 1
      %s254 = scalar_select %p253, %s20, 1
      %p255 = scmp.lt.s32.totalorder %s252, 47
      %s256 = scalar_select %p255, %s252, 47
      %s257 = smul.addr %s254, 48
      %s258 = sadd.s32 %s256, %s257
      %s259 = smul.addr %s258, 4
      %s260 = scalar_lea.vmem %s5, %s259
      %s261 = smul.u32 24, %s21
      %v263 = vld [vmem:[%s251] sm:$0xf]
      %v264 = vld [vmem:[%s251 + $0x4] sm:$0xf]
      %v265 = vld [vmem:[%s251 + $0x8] sm:$0xf]
      %v266 = vld [vmem:[%s251 + $0xc] sm:$0xf]
      %v267 = vld [vmem:[%s251 + $0x10] sm:$0xf]
      %v268 = vld [vmem:[%s251 + $0x14] sm:$0xf]
      %v269 = vld [vmem:[%s251 + $0x18] sm:$0xf]
      %v270 = vld [vmem:[%s251 + $0x1c] sm:$0xf]
      %v271 = vld [vmem:[%s251 + $0x20] sm:$0xf]
      %v272 = vld [vmem:[%s251 + $0x24] sm:$0xf]
      %v273 = vld [vmem:[%s251 + $0x28] sm:$0xf]
      %v274 = vld [vmem:[%s251 + $0x2c] sm:$0xf]
      %v275 = vld [vmem:[%s251 + $0x30] sm:$0xf]
      %v276 = vld [vmem:[%s251 + $0x34] sm:$0xf]
      %v277 = vld [vmem:[%s251 + $0x38] sm:$0xf]
      %v278 = vld [vmem:[%s251 + $0x3c] sm:$0xf]
      %v279 = vld [vmem:[%s251 + $0x40] sm:$0xf]
      %v280 = vld [vmem:[%s251 + $0x44] sm:$0xf]
      %v281 = vld [vmem:[%s251 + $0x48] sm:$0xf]
      %v282 = vld [vmem:[%s251 + $0x4c] sm:$0xf]
      %v283 = vld [vmem:[%s251 + $0x50] sm:$0xf]
      %v284 = vld [vmem:[%s251 + $0x54] sm:$0xf]
      %v285 = vld [vmem:[%s251 + $0x58] sm:$0xf]
      %v286 = vld [vmem:[%s251 + $0x5c] sm:$0xf]
      %v287 = vld [vmem:[%s251 + $0x60] sm:$0xf]
      %v288 = vld [vmem:[%s251 + $0x64] sm:$0xf]
      %v289 = vld [vmem:[%s251 + $0x68] sm:$0xf]
      %v290 = vld [vmem:[%s251 + $0x6c] sm:$0xf]
      %v291 = vld [vmem:[%s251 + $0x70] sm:$0xf]
      %v292 = vld [vmem:[%s251 + $0x74] sm:$0xf]
      %v293 = vld [vmem:[%s251 + $0x78] sm:$0xf]
      %v294 = vld [vmem:[%s1] sm:$0xf]
      %v295 = vld [vmem:[%s1 + $0x4] sm:$0xf]
      %s296 = scalar_lea.vmem %s1, 8
      %v297 = vld [vmem:[%s296] sm:$0xf]
      %v298 = vld [vmem:[%s296 + $0x4] sm:$0xf]
      %v324 = vunpack.c.l.b16 %v263
      %v325 = vunpack.c.l.b16 %v264
      %v326 = vunpack.c.l.b16 %v265
      %v327 = vunpack.c.l.b16 %v266
      %v328 = vunpack.c.l.b16 %v267
      %v329 = vunpack.c.l.b16 %v268
      %v330 = vunpack.c.l.b16 %v269
      %v331 = vunpack.c.l.b16 %v270
      %v332 = vunpack.c.l.b16 %v271
      %v333 = vunpack.c.l.b16 %v272
      %v334 = vunpack.c.l.b16 %v273
      %v335 = vunpack.c.l.b16 %v274
      %v336 = vunpack.c.l.b16 %v275
      %v337 = vunpack.c.l.b16 %v276
      %v338 = vunpack.c.l.b16 %v277
      %v339 = vunpack.c.l.b16 %v278
      %v340 = vunpack.c.l.b16 %v279
      %v341 = vunpack.c.l.b16 %v280
      %v342 = vunpack.c.l.b16 %v281
      %v343 = vunpack.c.l.b16 %v282
      %v344 = vunpack.c.l.b16 %v283
      %v345 = vunpack.c.l.b16 %v284
      %v346 = vunpack.c.l.b16 %v285
      %v347 = vunpack.c.l.b16 %v286
      %v348 = vunpack.c.l.b16 %v287
      %v349 = vpack.c.b16 %v325, %v324
      %v350 = vpack.c.b16 %v327, %v326
      %v351 = vpack.c.b16 %v329, %v328
      %v352 = vpack.c.b16 %v331, %v330
      %v353 = vpack.c.b16 %v333, %v332
      %v354 = vpack.c.b16 %v335, %v334
      %v355 = vpack.c.b16 %v337, %v336
      %v356 = vpack.c.b16 %v339, %v338
      %v357 = vpack.c.b16 %v341, %v340
      %v358 = vpack.c.b16 %v343, %v342
      %v359 = vpack.c.b16 %v345, %v344
      %v360 = vpack.c.b16 %v347, %v346
      %v361 = vpack.c.b16 %v348, %v348
      %vm362 = vsmask.f32 7424
      %v364 = vshrl.u32 %v349, 16
      %v366 = vshll.u32 %v349, 16
      %v368 = vrot.slane %v366, 1
      %v369 = vor.u32 %v364, %v368
      %v371 = vshll.u32 %v350, 16
      %v373 = vrot.slane %v371, 1
      %v374 = vsel %vm362, %v369, %v373
      %v375 = vshrl.u32 %v350, 16
      %v377 = vor.u32 %v375, %v373
      %v379 = vshll.u32 %v351, 16
      %v381 = vrot.slane %v379, 1
      %v382 = vsel %vm362, %v377, %v381
      %v383 = vshrl.u32 %v351, 16
      %v385 = vor.u32 %v383, %v381
      %v387 = vshll.u32 %v352, 16
      %v389 = vrot.slane %v387, 1
      %v390 = vsel %vm362, %v385, %v389
      %v391 = vshrl.u32 %v352, 16
      %v393 = vor.u32 %v391, %v389
      %v395 = vshll.u32 %v353, 16
      %v397 = vrot.slane %v395, 1
      %v398 = vsel %vm362, %v393, %v397
      %v399 = vshrl.u32 %v353, 16
      %v401 = vor.u32 %v399, %v397
      %v403 = vshll.u32 %v354, 16
      %v405 = vrot.slane %v403, 1
      %v406 = vsel %vm362, %v401, %v405
      %v407 = vshrl.u32 %v354, 16
      %v409 = vor.u32 %v407, %v405
      %v411 = vshll.u32 %v355, 16
      %v413 = vrot.slane %v411, 1
      %v414 = vsel %vm362, %v409, %v413
      %v415 = vshrl.u32 %v355, 16
      %v417 = vor.u32 %v415, %v413
      %v419 = vshll.u32 %v356, 16
      %v421 = vrot.slane %v419, 1
      %v422 = vsel %vm362, %v417, %v421
      %v423 = vshrl.u32 %v356, 16
      %v425 = vor.u32 %v423, %v421
      %v427 = vshll.u32 %v357, 16
      %v429 = vrot.slane %v427, 1
      %v430 = vsel %vm362, %v425, %v429
      %v431 = vshrl.u32 %v357, 16
      %v433 = vor.u32 %v431, %v429
      %v435 = vshll.u32 %v358, 16
      %v437 = vrot.slane %v435, 1
      %v438 = vsel %vm362, %v433, %v437
      %v439 = vshrl.u32 %v358, 16
      %v441 = vor.u32 %v439, %v437
      %v443 = vshll.u32 %v359, 16
      %v445 = vrot.slane %v443, 1
      %v446 = vsel %vm362, %v441, %v445
      %v447 = vshrl.u32 %v359, 16
      %v449 = vor.u32 %v447, %v445
      %v451 = vshll.u32 %v360, 16
      %v453 = vrot.slane %v451, 1
      %v454 = vsel %vm362, %v449, %v453
      %v455 = vshrl.u32 %v360, 16
      %v457 = vor.u32 %v455, %v453
      %v459 = vshll.u32 %v361, 16
      %v461 = vrot.slane %v459, 1
      %v462 = vsel %vm362, %v457, %v461
      %v465 = vunpack.c.l.b16 %v297
      %v466 = vunpack.c.l.b16 %v298
      %v467 = vpack.c.b16 %v466, %v465
      %vm469 = vcmask 130048
      %v471 = vsel %vm469, %v374, 0
      %v474 = vsel %vm469, %v382, 0
      %v477 = vsel %vm469, %v390, 0
      %v480 = vsel %vm469, %v398, 0
      %v483 = vsel %vm469, %v406, 0
      %v486 = vsel %vm469, %v414, 0
      %v489 = vsel %vm469, %v422, 0
      %v492 = vsel %vm469, %v430, 0
      %v495 = vsel %vm469, %v438, 0
      %v498 = vsel %vm469, %v446, 0
      %v501 = vsel %vm469, %v454, 0
      %v504 = vsel %vm469, %v462, 0
      %506 = vmatprep.subr.bf16.mxu0 0
      %507 = vmatpush1.bf16.msra.mxu0 %v467
      %508 = vmatprep.subr.bf16.mxu0 0
      %509 = vmatpush1.bf16.msra.mxu0 0
      %510 = vmatprep.subr.bf16.mxu0 0
      %511 = vmatpush1.bf16.msra.mxu0 0
      %512 = vmatprep.subr.bf16.mxu0 0
      %513 = vmatpush1.bf16.msra.mxu0 0
      %514 = vmatprep.subr.bf16.mxu0 0
      %515 = vmatpush1.bf16.msra.mxu0 0
      %516 = vmatprep.subr.bf16.mxu0 0
      %517 = vmatpush1.bf16.msra.mxu0 0
      %518 = vmatprep.subr.bf16.mxu0 0
      %519 = vmatpush1.bf16.msra.mxu0 0
      %520 = vmatprep.subr.bf16.mxu0 0
      %521 = vmatpush1.bf16.msra.mxu0 0
      %522 = vmatprep.subr.bf16.mxu0 0
      %523 = vmatpush1.bf16.msra.mxu0 0
      %524 = vmatprep.subr.bf16.mxu0 0
      %525 = vmatpush1.bf16.msra.mxu0 0
      %526 = vmatprep.subr.bf16.mxu0 0
      %527 = vmatpush1.bf16.msra.mxu0 0
      %528 = vmatprep.subr.bf16.mxu0 0
      %529 = vmatpush1.bf16.msra.mxu0 0
      %530 = vmatprep.subr.bf16.mxu0 0
      %531 = vmatpush1.bf16.msra.mxu0 0
      %532 = vmatprep.subr.bf16.mxu0 0
      %533 = vmatpush1.bf16.msra.mxu0 0
      %534 = vmatprep.subr.bf16.mxu0 0
      %535 = vmatpush1.bf16.msra.mxu0 0
      %536 = vmatprep.subr.bf16.mxu0 0
      %537 = vmatpush1.bf16.msra.mxu0 0
      %538 = vmatprep.mubr.bf16.mxu0 0
      %539 = vmatmul.mubr.bf16.gmra.mrb[0].mxu0 %v471
      %v540 = vpop.f32.mrb[0].mxu0
      %v541 = vadd.f32 0.0, %v540
      %v542 = vpop.f32.mrb[0].mxu0
      %v543 = vpop.f32.mrb[0].mxu0
      %v544 = vadd.f32 0.0, %v543
      %v545 = vpop.f32.mrb[0].mxu0
      %546 = vmatprep.mubr.bf16.mxu0 0
      %547 = vmatmul.mubr.bf16.gmra.mrb[0].mxu0 %v474
      %v548 = vpop.f32.mrb[0].mxu0
      %v549 = vadd.f32 0.0, %v548
      %v550 = vpop.f32.mrb[0].mxu0
      %v551 = vpop.f32.mrb[0].mxu0
      %v552 = vadd.f32 0.0, %v551
      %v553 = vpop.f32.mrb[0].mxu0
      %554 = vmatprep.mubr.bf16.mxu0 0
      %555 = vmatmul.mubr.bf16.gmra.mrb[0].mxu0 %v477
      %v556 = vpop.f32.mrb[0].mxu0
      %v557 = vadd.f32 0.0, %v556
      %v558 = vpop.f32.mrb[0].mxu0
      %v559 = vpop.f32.mrb[0].mxu0
      %v560 = vadd.f32 0.0, %v559
      %v561 = vpop.f32.mrb[0].mxu0
      %562 = vmatprep.mubr.bf16.mxu0 0
      %563 = vmatmul.mubr.bf16.gmra.mrb[0].mxu0 %v480
      %v564 = vpop.f32.mrb[0].mxu0
      %v565 = vadd.f32 0.0, %v564
      %v566 = vpop.f32.mrb[0].mxu0
      %v567 = vpop.f32.mrb[0].mxu0
      %v568 = vadd.f32 0.0, %v567
      %v569 = vpop.f32.mrb[0].mxu0
      %570 = vmatprep.mubr.bf16.mxu0 0
      %571 = vmatmul.mubr.bf16.gmra.mrb[0].mxu0 %v483
      %v572 = vpop.f32.mrb[0].mxu0
      %v573 = vadd.f32 0.0, %v572
      %v574 = vpop.f32.mrb[0].mxu0
      %v575 = vpop.f32.mrb[0].mxu0
      %v576 = vadd.f32 0.0, %v575
      %v577 = vpop.f32.mrb[0].mxu0
      %578 = vmatprep.mubr.bf16.mxu0 0
      %579 = vmatmul.mubr.bf16.gmra.mrb[0].mxu0 %v486
      %v580 = vpop.f32.mrb[0].mxu0
      %v581 = vadd.f32 0.0, %v580
      %v582 = vpop.f32.mrb[0].mxu0
      %v583 = vpop.f32.mrb[0].mxu0
      %v584 = vadd.f32 0.0, %v583
      %v585 = vpop.f32.mrb[0].mxu0
      %586 = vmatprep.mubr.bf16.mxu0 0
      %587 = vmatmul.mubr.bf16.gmra.mrb[0].mxu0 %v489
      %v588 = vpop.f32.mrb[0].mxu0
      %v589 = vadd.f32 0.0, %v588
      %v590 = vpop.f32.mrb[0].mxu0
      %v591 = vpop.f32.mrb[0].mxu0
      %v592 = vadd.f32 0.0, %v591
      %v593 = vpop.f32.mrb[0].mxu0
      %594 = vmatprep.mubr.bf16.mxu0 0
      %595 = vmatmul.mubr.bf16.gmra.mrb[0].mxu0 %v492
      %v596 = vpop.f32.mrb[0].mxu0
      %v597 = vadd.f32 0.0, %v596
      %v598 = vpop.f32.mrb[0].mxu0
      %v599 = vpop.f32.mrb[0].mxu0
      %v600 = vadd.f32 0.0, %v599
      %v601 = vpop.f32.mrb[0].mxu0
      %602 = vmatprep.mubr.bf16.mxu0 0
      %603 = vmatmul.mubr.bf16.gmra.mrb[0].mxu0 %v495
      %v604 = vpop.f32.mrb[0].mxu0
      %v605 = vadd.f32 0.0, %v604
      %v606 = vpop.f32.mrb[0].mxu0
      %v607 = vpop.f32.mrb[0].mxu0
      %v608 = vadd.f32 0.0, %v607
      %v609 = vpop.f32.mrb[0].mxu0
      %610 = vmatprep.mubr.bf16.mxu0 0
      %611 = vmatmul.mubr.bf16.gmra.mrb[0].mxu0 %v498
      %v612 = vpop.f32.mrb[0].mxu0
      %v613 = vadd.f32 0.0, %v612
      %v614 = vpop.f32.mrb[0].mxu0
      %v615 = vpop.f32.mrb[0].mxu0
      %v616 = vadd.f32 0.0, %v615
      %v617 = vpop.f32.mrb[0].mxu0
      %618 = vmatprep.mubr.bf16.mxu0 0
      %619 = vmatmul.mubr.bf16.gmra.mrb[0].mxu0 %v501
      %v620 = vpop.f32.mrb[0].mxu0
      %v621 = vadd.f32 0.0, %v620
      %v622 = vpop.f32.mrb[0].mxu0
      %v623 = vpop.f32.mrb[0].mxu0
      %v624 = vadd.f32 0.0, %v623
      %v625 = vpop.f32.mrb[0].mxu0
      %626 = vmatprep.mubr.bf16.mxu0 0
      %627 = vmatmul.mubr.bf16.gmra.mrb[0].mxu0 %v504
      %v628 = vpop.f32.mrb[0].mxu0
      %v629 = vadd.f32 0.0, %v628
      %v630 = vpop.f32.mrb[0].mxu0
      %v631 = vpop.f32.mrb[0].mxu0
      %v632 = vadd.f32 0.0, %v631
      %v633 = vpop.f32.mrb[0].mxu0
      %634 = vdwg.mxu0
      %v637 = vunpack.c.l.b16 %v294
      %v638 = vunpack.c.l.b16 %v295
      %v639 = vpack.c.b16 %v638, %v637
      %v641 = vsel %vm469, %v349, 0
      %v643 = vsel %vm469, %v350, 0
      %v645 = vsel %vm469, %v351, 0
      %v647 = vsel %vm469, %v352, 0
      %v649 = vsel %vm469, %v353, 0
      %v651 = vsel %vm469, %v354, 0
      %v653 = vsel %vm469, %v355, 0
      %v655 = vsel %vm469, %v356, 0
      %v657 = vsel %vm469, %v357, 0
      %v659 = vsel %vm469, %v358, 0
      %v661 = vsel %vm469, %v359, 0
      %v663 = vsel %vm469, %v360, 0
      %665 = vmatprep.subr.bf16.mxu0 0
      %666 = vmatpush1.bf16.msra.mxu0 %v639
      %667 = vmatprep.subr.bf16.mxu0 0
      %668 = vmatpush1.bf16.msra.mxu0 0
      %669 = vmatprep.subr.bf16.mxu0 0
      %670 = vmatpush1.bf16.msra.mxu0 0
      %671 = vmatprep.subr.bf16.mxu0 0
      %672 = vmatpush1.bf16.msra.mxu0 0
      %673 = vmatprep.subr.bf16.mxu0 0
      %674 = vmatpush1.bf16.msra.mxu0 0
      %675 = vmatprep.subr.bf16.mxu0 0
      %676 = vmatpush1.bf16.msra.mxu0 0
      %677 = vmatprep.subr.bf16.mxu0 0
      %678 = vmatpush1.bf16.msra.mxu0 0
      %679 = vmatprep.subr.bf16.mxu0 0
      %680 = vmatpush1.bf16.msra.mxu0 0
      %681 = vmatprep.subr.bf16.mxu0 0
      %682 = vmatpush1.bf16.msra.mxu0 0
      %683 = vmatprep.subr.bf16.mxu0 0
      %684 = vmatpush1.bf16.msra.mxu0 0
      %685 = vmatprep.subr.bf16.mxu0 0
      %686 = vmatpush1.bf16.msra.mxu0 0
      %687 = vmatprep.subr.bf16.mxu0 0
      %688 = vmatpush1.bf16.msra.mxu0 0
      %689 = vmatprep.subr.bf16.mxu0 0
      %690 = vmatpush1.bf16.msra.mxu0 0
      %691 = vmatprep.subr.bf16.mxu0 0
      %692 = vmatpush1.bf16.msra.mxu0 0
      %693 = vmatprep.subr.bf16.mxu0 0
      %694 = vmatpush1.bf16.msra.mxu0 0
      %695 = vmatprep.subr.bf16.mxu0 0
      %696 = vmatpush1.bf16.msra.mxu0 0
      %697 = vmatprep.mubr.bf16.mxu0 0
      %698 = vmatmul.mubr.bf16.gmra.mrb[0].mxu0 %v641
      %v699 = vpop.f32.mrb[0].mxu0
      %v700 = vadd.f32 %v541, %v699
      %v701 = vpop.f32.mrb[0].mxu0
      %v702 = vpop.f32.mrb[0].mxu0
      %v703 = vadd.f32 %v544, %v702
      %v704 = vpop.f32.mrb[0].mxu0
      %705 = vmatprep.mubr.bf16.mxu0 0
      %706 = vmatmul.mubr.bf16.gmra.mrb[0].mxu0 %v643
      %v707 = vpop.f32.mrb[0].mxu0
      %v708 = vadd.f32 %v549, %v707
      %v709 = vpop.f32.mrb[0].mxu0
      %v710 = vpop.f32.mrb[0].mxu0
      %v711 = vadd.f32 %v552, %v710
      %v712 = vpop.f32.mrb[0].mxu0
      %713 = vmatprep.mubr.bf16.mxu0 0
      %714 = vmatmul.mubr.bf16.gmra.mrb[0].mxu0 %v645
      %v715 = vpop.f32.mrb[0].mxu0
      %v716 = vadd.f32 %v557, %v715
      %v717 = vpop.f32.mrb[0].mxu0
      %v718 = vpop.f32.mrb[0].mxu0
      %v719 = vadd.f32 %v560, %v718
      %v720 = vpop.f32.mrb[0].mxu0
      %721 = vmatprep.mubr.bf16.mxu0 0
      %722 = vmatmul.mubr.bf16.gmra.mrb[0].mxu0 %v647
      %v723 = vpop.f32.mrb[0].mxu0
      %v724 = vadd.f32 %v565, %v723
      %v725 = vpop.f32.mrb[0].mxu0
      %v726 = vpop.f32.mrb[0].mxu0
      %v727 = vadd.f32 %v568, %v726
      %v728 = vpop.f32.mrb[0].mxu0
      %729 = vmatprep.mubr.bf16.mxu0 0
      %730 = vmatmul.mubr.bf16.gmra.mrb[0].mxu0 %v649
      %v731 = vpop.f32.mrb[0].mxu0
      %v732 = vadd.f32 %v573, %v731
      %v733 = vpop.f32.mrb[0].mxu0
      %v734 = vpop.f32.mrb[0].mxu0
      %v735 = vadd.f32 %v576, %v734
      %v736 = vpop.f32.mrb[0].mxu0
      %737 = vmatprep.mubr.bf16.mxu0 0
      %738 = vmatmul.mubr.bf16.gmra.mrb[0].mxu0 %v651
      %v739 = vpop.f32.mrb[0].mxu0
      %v740 = vadd.f32 %v581, %v739
      %v741 = vpop.f32.mrb[0].mxu0
      %v742 = vpop.f32.mrb[0].mxu0
      %v743 = vadd.f32 %v584, %v742
      %v744 = vpop.f32.mrb[0].mxu0
      %745 = vmatprep.mubr.bf16.mxu0 0
      %746 = vmatmul.mubr.bf16.gmra.mrb[0].mxu0 %v653
      %v747 = vpop.f32.mrb[0].mxu0
      %v748 = vadd.f32 %v589, %v747
      %v749 = vpop.f32.mrb[0].mxu0
      %v750 = vpop.f32.mrb[0].mxu0
      %v751 = vadd.f32 %v592, %v750
      %v752 = vpop.f32.mrb[0].mxu0
      %753 = vmatprep.mubr.bf16.mxu0 0
      %754 = vmatmul.mubr.bf16.gmra.mrb[0].mxu0 %v655
      %v755 = vpop.f32.mrb[0].mxu0
      %v756 = vadd.f32 %v597, %v755
      %v757 = vpop.f32.mrb[0].mxu0
      %v758 = vpop.f32.mrb[0].mxu0
      %v759 = vadd.f32 %v600, %v758
      %v760 = vpop.f32.mrb[0].mxu0
      %761 = vmatprep.mubr.bf16.mxu0 0
      %762 = vmatmul.mubr.bf16.gmra.mrb[0].mxu0 %v657
      %v763 = vpop.f32.mrb[0].mxu0
      %v764 = vadd.f32 %v605, %v763
      %v765 = vpop.f32.mrb[0].mxu0
      %v766 = vpop.f32.mrb[0].mxu0
      %v767 = vadd.f32 %v608, %v766
      %v768 = vpop.f32.mrb[0].mxu0
      %769 = vmatprep.mubr.bf16.mxu0 0
      %770 = vmatmul.mubr.bf16.gmra.mrb[0].mxu0 %v659
      %v771 = vpop.f32.mrb[0].mxu0
      %v772 = vadd.f32 %v613, %v771
      %v773 = vpop.f32.mrb[0].mxu0
      %v774 = vpop.f32.mrb[0].mxu0
      %v775 = vadd.f32 %v616, %v774
      %v776 = vpop.f32.mrb[0].mxu0
      %777 = vmatprep.mubr.bf16.mxu0 0
      %778 = vmatmul.mubr.bf16.gmra.mrb[0].mxu0 %v661
      %v779 = vpop.f32.mrb[0].mxu0
      %v780 = vadd.f32 %v621, %v779
      %v781 = vpop.f32.mrb[0].mxu0
      %v782 = vpop.f32.mrb[0].mxu0
      %v783 = vadd.f32 %v624, %v782
      %v784 = vpop.f32.mrb[0].mxu0
      %785 = vmatprep.mubr.bf16.mxu0 0
      %786 = vmatmul.mubr.bf16.gmra.mrb[0].mxu0 %v663
      %v787 = vpop.f32.mrb[0].mxu0
      %v788 = vadd.f32 %v629, %v787
      %v789 = vpop.f32.mrb[0].mxu0
      %v790 = vpop.f32.mrb[0].mxu0
      %v791 = vadd.f32 %v632, %v790
      %v792 = vpop.f32.mrb[0].mxu0
      %793 = vdwg.mxu0
      %s794 = scalar_lea.vmem %s1, 16
      %v795 = vld [vmem:[%s794] sm:$0xf]
      %v796 = vld [vmem:[%s794 + $0x4] sm:$0xf]
      %vm797 = vcmask 1046528
      %v798 = vrot.slane %v349, 1
      %v799 = vrot.slane %v350, 1
      %v800 = vsel %vm797, %v798, %v799
      %v801 = vrot.slane %v351, 1
      %v802 = vsel %vm797, %v799, %v801
      %v803 = vrot.slane %v352, 1
      %v804 = vsel %vm797, %v801, %v803
      %v805 = vrot.slane %v353, 1
      %v806 = vsel %vm797, %v803, %v805
      %v807 = vrot.slane %v354, 1
      %v808 = vsel %vm797, %v805, %v807
      %v809 = vrot.slane %v355, 1
      %v810 = vsel %vm797, %v807, %v809
      %v811 = vrot.slane %v356, 1
      %v812 = vsel %vm797, %v809, %v811
      %v813 = vrot.slane %v357, 1
      %v814 = vsel %vm797, %v811, %v813
      %v815 = vrot.slane %v358, 1
      %v816 = vsel %vm797, %v813, %v815
      %v817 = vrot.slane %v359, 1
      %v818 = vsel %vm797, %v815, %v817
      %v819 = vrot.slane %v360, 1
      %v820 = vsel %vm797, %v817, %v819
      %v821 = vrot.slane %v361, 1
      %v822 = vsel %vm797, %v819, %v821
      %v825 = vunpack.c.l.b16 %v795
      %v826 = vunpack.c.l.b16 %v796
      %v827 = vpack.c.b16 %v826, %v825
      %v830 = vsel %vm469, %v800, 0
      %v833 = vsel %vm469, %v802, 0
      %v836 = vsel %vm469, %v804, 0
      %v839 = vsel %vm469, %v806, 0
      %v842 = vsel %vm469, %v808, 0
      %v845 = vsel %vm469, %v810, 0
      %v848 = vsel %vm469, %v812, 0
      %v851 = vsel %vm469, %v814, 0
      %v854 = vsel %vm469, %v816, 0
      %v857 = vsel %vm469, %v818, 0
      %v860 = vsel %vm469, %v820, 0
      %v863 = vsel %vm469, %v822, 0
      %865 = vmatprep.subr.bf16.mxu0 0
      %866 = vmatpush1.bf16.msra.mxu0 %v827
      %867 = vmatprep.subr.bf16.mxu0 0
      %868 = vmatpush1.bf16.msra.mxu0 0
      %869 = vmatprep.subr.bf16.mxu0 0
      %870 = vmatpush1.bf16.msra.mxu0 0
      %871 = vmatprep.subr.bf16.mxu0 0
      %872 = vmatpush1.bf16.msra.mxu0 0
      %873 = vmatprep.subr.bf16.mxu0 0
      %874 = vmatpush1.bf16.msra.mxu0 0
      %875 = vmatprep.subr.bf16.mxu0 0
      %876 = vmatpush1.bf16.msra.mxu0 0
      %877 = vmatprep.subr.bf16.mxu0 0
      %878 = vmatpush1.bf16.msra.mxu0 0
      %879 = vmatprep.subr.bf16.mxu0 0
      %880 = vmatpush1.bf16.msra.mxu0 0
      %881 = vmatprep.subr.bf16.mxu0 0
      %882 = vmatpush1.bf16.msra.mxu0 0
      %883 = vmatprep.subr.bf16.mxu0 0
      %884 = vmatpush1.bf16.msra.mxu0 0
      %885 = vmatprep.subr.bf16.mxu0 0
      %886 = vmatpush1.bf16.msra.mxu0 0
      %887 = vmatprep.subr.bf16.mxu0 0
      %888 = vmatpush1.bf16.msra.mxu0 0
      %889 = vmatprep.subr.bf16.mxu0 0
      %890 = vmatpush1.bf16.msra.mxu0 0
      %891 = vmatprep.subr.bf16.mxu0 0
      %892 = vmatpush1.bf16.msra.mxu0 0
      %893 = vmatprep.subr.bf16.mxu0 0
      %894 = vmatpush1.bf16.msra.mxu0 0
      %895 = vmatprep.subr.bf16.mxu0 0
      %896 = vmatpush1.bf16.msra.mxu0 0
      %897 = vmatprep.mubr.bf16.mxu0 0
      %898 = vmatmul.mubr.bf16.gmra.mrb[0].mxu0 %v830
      %v899 = vpop.f32.mrb[0].mxu0
      %v900 = vadd.f32 0.0, %v899
      %v901 = vpop.f32.mrb[0].mxu0
      %v902 = vpop.f32.mrb[0].mxu0
      %v903 = vadd.f32 0.0, %v902
      %v904 = vpop.f32.mrb[0].mxu0
      %905 = vmatprep.mubr.bf16.mxu0 0
      %906 = vmatmul.mubr.bf16.gmra.mrb[0].mxu0 %v833
      %v907 = vpop.f32.mrb[0].mxu0
      %v908 = vadd.f32 0.0, %v907
      %v909 = vpop.f32.mrb[0].mxu0
      %v910 = vpop.f32.mrb[0].mxu0
      %v911 = vadd.f32 0.0, %v910
      %v912 = vpop.f32.mrb[0].mxu0
      %913 = vmatprep.mubr.bf16.mxu0 0
      %914 = vmatmul.mubr.bf16.gmra.mrb[0].mxu0 %v836
      %v915 = vpop.f32.mrb[0].mxu0
      %v916 = vadd.f32 0.0, %v915
      %v917 = vpop.f32.mrb[0].mxu0
      %v918 = vpop.f32.mrb[0].mxu0
      %v919 = vadd.f32 0.0, %v918
      %v920 = vpop.f32.mrb[0].mxu0
      %921 = vmatprep.mubr.bf16.mxu0 0
      %922 = vmatmul.mubr.bf16.gmra.mrb[0].mxu0 %v839
      %v923 = vpop.f32.mrb[0].mxu0
      %v924 = vadd.f32 0.0, %v923
      %v925 = vpop.f32.mrb[0].mxu0
      %v926 = vpop.f32.mrb[0].mxu0
      %v927 = vadd.f32 0.0, %v926
      %v928 = vpop.f32.mrb[0].mxu0
      %929 = vmatprep.mubr.bf16.mxu0 0
      %930 = vmatmul.mubr.bf16.gmra.mrb[0].mxu0 %v842
      %v931 = vpop.f32.mrb[0].mxu0
      %v932 = vadd.f32 0.0, %v931
      %v933 = vpop.f32.mrb[0].mxu0
      %v934 = vpop.f32.mrb[0].mxu0
      %v935 = vadd.f32 0.0, %v934
      %v936 = vpop.f32.mrb[0].mxu0
      %937 = vmatprep.mubr.bf16.mxu0 0
      %938 = vmatmul.mubr.bf16.gmra.mrb[0].mxu0 %v845
      %v939 = vpop.f32.mrb[0].mxu0
      %v940 = vadd.f32 0.0, %v939
      %v941 = vpop.f32.mrb[0].mxu0
      %v942 = vpop.f32.mrb[0].mxu0
      %v943 = vadd.f32 0.0, %v942
      %v944 = vpop.f32.mrb[0].mxu0
      %945 = vmatprep.mubr.bf16.mxu0 0
      %946 = vmatmul.mubr.bf16.gmra.mrb[0].mxu0 %v848
      %v947 = vpop.f32.mrb[0].mxu0
      %v948 = vadd.f32 0.0, %v947
      %v949 = vpop.f32.mrb[0].mxu0
      %v950 = vpop.f32.mrb[0].mxu0
      %v951 = vadd.f32 0.0, %v950
      %v952 = vpop.f32.mrb[0].mxu0
      %953 = vmatprep.mubr.bf16.mxu0 0
      %954 = vmatmul.mubr.bf16.gmra.mrb[0].mxu0 %v851
      %v955 = vpop.f32.mrb[0].mxu0
      %v956 = vadd.f32 0.0, %v955
      %v957 = vpop.f32.mrb[0].mxu0
      %v958 = vpop.f32.mrb[0].mxu0
      %v959 = vadd.f32 0.0, %v958
      %v960 = vpop.f32.mrb[0].mxu0
      %961 = vmatprep.mubr.bf16.mxu0 0
      %962 = vmatmul.mubr.bf16.gmra.mrb[0].mxu0 %v854
      %v963 = vpop.f32.mrb[0].mxu0
      %v964 = vadd.f32 0.0, %v963
      %v965 = vpop.f32.mrb[0].mxu0
      %v966 = vpop.f32.mrb[0].mxu0
      %v967 = vadd.f32 0.0, %v966
      %v968 = vpop.f32.mrb[0].mxu0
      %969 = vmatprep.mubr.bf16.mxu0 0
      %970 = vmatmul.mubr.bf16.gmra.mrb[0].mxu0 %v857
      %v971 = vpop.f32.mrb[0].mxu0
      %v972 = vadd.f32 0.0, %v971
      %v973 = vpop.f32.mrb[0].mxu0
      %v974 = vpop.f32.mrb[0].mxu0
      %v975 = vadd.f32 0.0, %v974
      %v976 = vpop.f32.mrb[0].mxu0
      %977 = vmatprep.mubr.bf16.mxu0 0
      %978 = vmatmul.mubr.bf16.gmra.mrb[0].mxu0 %v860
      %v979 = vpop.f32.mrb[0].mxu0
      %v980 = vadd.f32 0.0, %v979
      %v981 = vpop.f32.mrb[0].mxu0
      %v982 = vpop.f32.mrb[0].mxu0
      %v983 = vadd.f32 0.0, %v982
      %v984 = vpop.f32.mrb[0].mxu0
      %985 = vmatprep.mubr.bf16.mxu0 0
      %986 = vmatmul.mubr.bf16.gmra.mrb[0].mxu0 %v863
      %v987 = vpop.f32.mrb[0].mxu0
      %v988 = vadd.f32 0.0, %v987
      %v989 = vpop.f32.mrb[0].mxu0
      %v990 = vpop.f32.mrb[0].mxu0
      %v991 = vadd.f32 0.0, %v990
      %v992 = vpop.f32.mrb[0].mxu0
      %993 = vdwg.mxu0
      %v994 = vadd.f32 %v700, %v900
      %v995 = vadd.f32 %v703, %v903
      %v996 = vadd.f32 %v708, %v908
      %v997 = vadd.f32 %v711, %v911
      %v998 = vadd.f32 %v716, %v916
      %v999 = vadd.f32 %v719, %v919
      %v1000 = vadd.f32 %v724, %v924
      %v1001 = vadd.f32 %v727, %v927
      %v1002 = vadd.f32 %v732, %v932
      %v1003 = vadd.f32 %v735, %v935
      %v1004 = vadd.f32 %v740, %v940
      %v1005 = vadd.f32 %v743, %v943
      %v1006 = vadd.f32 %v748, %v948
      %v1007 = vadd.f32 %v751, %v951
      %v1008 = vadd.f32 %v756, %v956
      %v1009 = vadd.f32 %v759, %v959
      %v1010 = vadd.f32 %v764, %v964
      %v1011 = vadd.f32 %v767, %v967
      %v1012 = vadd.f32 %v772, %v972
      %v1013 = vadd.f32 %v775, %v975
      %v1014 = vadd.f32 %v780, %v980
      %v1015 = vadd.f32 %v783, %v983
      %v1016 = vadd.f32 %v788, %v988
      %v1017 = vadd.f32 %v791, %v991
      %s1018 = scalar_lea.vmem %s1, 24
      %v1019 = vld [vmem:[%s1018] sm:$0xf]
      %v1020 = vld [vmem:[%s1018 + $0x4] sm:$0xf]
      %v1023 = vunpack.c.l.b16 %v288
      %v1024 = vunpack.c.l.b16 %v289
      %v1025 = vpack.c.b16 %v328, %v327
      %v1026 = vpack.c.b16 %v330, %v329
      %v1027 = vpack.c.b16 %v332, %v331
      %v1028 = vpack.c.b16 %v334, %v333
      %v1029 = vpack.c.b16 %v336, %v335
      %v1030 = vpack.c.b16 %v338, %v337
      %v1031 = vpack.c.b16 %v340, %v339
      %v1032 = vpack.c.b16 %v342, %v341
      %v1033 = vpack.c.b16 %v344, %v343
      %v1034 = vpack.c.b16 %v346, %v345
      %v1035 = vpack.c.b16 %v348, %v347
      %v1036 = vpack.c.b16 %v1024, %v1023
      %v1039 = vunpack.c.l.b16 %v1019
      %v1040 = vunpack.c.l.b16 %v1020
      %v1041 = vpack.c.b16 %v1040, %v1039
      %v1044 = vsel %vm469, %v1025, 0
      %v1047 = vsel %vm469, %v1026, 0
      %v1050 = vsel %vm469, %v1027, 0
      %v1053 = vsel %vm469, %v1028, 0
      %v1056 = vsel %vm469, %v1029, 0
      %v1059 = vsel %vm469, %v1030, 0
      %v1062 = vsel %vm469, %v1031, 0
      %v1065 = vsel %vm469, %v1032, 0
      %v1068 = vsel %vm469, %v1033, 0
      %v1071 = vsel %vm469, %v1034, 0
      %v1074 = vsel %vm469, %v1035, 0
      %v1077 = vsel %vm469, %v1036, 0
      %1079 = vmatprep.subr.bf16.mxu0 0
      %1080 = vmatpush1.bf16.msra.mxu0 %v1041
      %1081 = vmatprep.subr.bf16.mxu0 0
      %1082 = vmatpush1.bf16.msra.mxu0 0
      %1083 = vmatprep.subr.bf16.mxu0 0
      %1084 = vmatpush1.bf16.msra.mxu0 0
      %1085 = vmatprep.subr.bf16.mxu0 0
      %1086 = vmatpush1.bf16.msra.mxu0 0
      %1087 = vmatprep.subr.bf16.mxu0 0
      %1088 = vmatpush1.bf16.msra.mxu0 0
      %1089 = vmatprep.subr.bf16.mxu0 0
      %1090 = vmatpush1.bf16.msra.mxu0 0
      %1091 = vmatprep.subr.bf16.mxu0 0
      %1092 = vmatpush1.bf16.msra.mxu0 0
      %1093 = vmatprep.subr.bf16.mxu0 0
      %1094 = vmatpush1.bf16.msra.mxu0 0
      %1095 = vmatprep.subr.bf16.mxu0 0
      %1096 = vmatpush1.bf16.msra.mxu0 0
      %1097 = vmatprep.subr.bf16.mxu0 0
      %1098 = vmatpush1.bf16.msra.mxu0 0
      %1099 = vmatprep.subr.bf16.mxu0 0
      %1100 = vmatpush1.bf16.msra.mxu0 0
      %1101 = vmatprep.subr.bf16.mxu0 0
      %1102 = vmatpush1.bf16.msra.mxu0 0
      %1103 = vmatprep.subr.bf16.mxu0 0
      %1104 = vmatpush1.bf16.msra.mxu0 0
      %1105 = vmatprep.subr.bf16.mxu0 0
      %1106 = vmatpush1.bf16.msra.mxu0 0
      %1107 = vmatprep.subr.bf16.mxu0 0
      %1108 = vmatpush1.bf16.msra.mxu0 0
      %1109 = vmatprep.subr.bf16.mxu0 0
      %1110 = vmatpush1.bf16.msra.mxu0 0
      %1111 = vmatprep.mubr.bf16.mxu0 0
      %1112 = vmatmul.mubr.bf16.gmra.mrb[0].mxu0 %v1044
      %v1113 = vpop.f32.mrb[0].mxu0
      %v1114 = vadd.f32 0.0, %v1113
      %v1115 = vpop.f32.mrb[0].mxu0
      %v1116 = vpop.f32.mrb[0].mxu0
      %v1117 = vadd.f32 0.0, %v1116
      %v1118 = vpop.f32.mrb[0].mxu0
      %1119 = vmatprep.mubr.bf16.mxu0 0
      %1120 = vmatmul.mubr.bf16.gmra.mrb[0].mxu0 %v1047
      %v1121 = vpop.f32.mrb[0].mxu0
      %v1122 = vadd.f32 0.0, %v1121
      %v1123 = vpop.f32.mrb[0].mxu0
      %v1124 = vpop.f32.mrb[0].mxu0
      %v1125 = vadd.f32 0.0, %v1124
      %v1126 = vpop.f32.mrb[0].mxu0
      %1127 = vmatprep.mubr.bf16.mxu0 0
      %1128 = vmatmul.mubr.bf16.gmra.mrb[0].mxu0 %v1050
      %v1129 = vpop.f32.mrb[0].mxu0
      %v1130 = vadd.f32 0.0, %v1129
      %v1131 = vpop.f32.mrb[0].mxu0
      %v1132 = vpop.f32.mrb[0].mxu0
      %v1133 = vadd.f32 0.0, %v1132
      %v1134 = vpop.f32.mrb[0].mxu0
      %1135 = vmatprep.mubr.bf16.mxu0 0
      %1136 = vmatmul.mubr.bf16.gmra.mrb[0].mxu0 %v1053
      %v1137 = vpop.f32.mrb[0].mxu0
      %v1138 = vadd.f32 0.0, %v1137
      %v1139 = vpop.f32.mrb[0].mxu0
      %v1140 = vpop.f32.mrb[0].mxu0
      %v1141 = vadd.f32 0.0, %v1140
      %v1142 = vpop.f32.mrb[0].mxu0
      %1143 = vmatprep.mubr.bf16.mxu0 0
      %1144 = vmatmul.mubr.bf16.gmra.mrb[0].mxu0 %v1056
      %v1145 = vpop.f32.mrb[0].mxu0
      %v1146 = vadd.f32 0.0, %v1145
      %v1147 = vpop.f32.mrb[0].mxu0
      %v1148 = vpop.f32.mrb[0].mxu0
      %v1149 = vadd.f32 0.0, %v1148
      %v1150 = vpop.f32.mrb[0].mxu0
      %1151 = vmatprep.mubr.bf16.mxu0 0
      %1152 = vmatmul.mubr.bf16.gmra.mrb[0].mxu0 %v1059
      %v1153 = vpop.f32.mrb[0].mxu0
      %v1154 = vadd.f32 0.0, %v1153
      %v1155 = vpop.f32.mrb[0].mxu0
      %v1156 = vpop.f32.mrb[0].mxu0
      %v1157 = vadd.f32 0.0, %v1156
      %v1158 = vpop.f32.mrb[0].mxu0
      %1159 = vmatprep.mubr.bf16.mxu0 0
      %1160 = vmatmul.mubr.bf16.gmra.mrb[0].mxu0 %v1062
      %v1161 = vpop.f32.mrb[0].mxu0
      %v1162 = vadd.f32 0.0, %v1161
      %v1163 = vpop.f32.mrb[0].mxu0
      %v1164 = vpop.f32.mrb[0].mxu0
      %v1165 = vadd.f32 0.0, %v1164
      %v1166 = vpop.f32.mrb[0].mxu0
      %1167 = vmatprep.mubr.bf16.mxu0 0
      %1168 = vmatmul.mubr.bf16.gmra.mrb[0].mxu0 %v1065
      %v1169 = vpop.f32.mrb[0].mxu0
      %v1170 = vadd.f32 0.0, %v1169
      %v1171 = vpop.f32.mrb[0].mxu0
      %v1172 = vpop.f32.mrb[0].mxu0
      %v1173 = vadd.f32 0.0, %v1172
      %v1174 = vpop.f32.mrb[0].mxu0
      %1175 = vmatprep.mubr.bf16.mxu0 0
      %1176 = vmatmul.mubr.bf16.gmra.mrb[0].mxu0 %v1068
      %v1177 = vpop.f32.mrb[0].mxu0
      %v1178 = vadd.f32 0.0, %v1177
      %v1179 = vpop.f32.mrb[0].mxu0
      %v1180 = vpop.f32.mrb[0].mxu0
      %v1181 = vadd.f32 0.0, %v1180
      %v1182 = vpop.f32.mrb[0].mxu0
      %1183 = vmatprep.mubr.bf16.mxu0 0
      %1184 = vmatmul.mubr.bf16.gmra.mrb[0].mxu0 %v1071
      %v1185 = vpop.f32.mrb[0].mxu0
      %v1186 = vadd.f32 0.0, %v1185
      %v1187 = vpop.f32.mrb[0].mxu0
      %v1188 = vpop.f32.mrb[0].mxu0
      %v1189 = vadd.f32 0.0, %v1188
      %v1190 = vpop.f32.mrb[0].mxu0
      %1191 = vmatprep.mubr.bf16.mxu0 0
      %1192 = vmatmul.mubr.bf16.gmra.mrb[0].mxu0 %v1074
      %v1193 = vpop.f32.mrb[0].mxu0
      %v1194 = vadd.f32 0.0, %v1193
      %v1195 = vpop.f32.mrb[0].mxu0
      %v1196 = vpop.f32.mrb[0].mxu0
      %v1197 = vadd.f32 0.0, %v1196
      %v1198 = vpop.f32.mrb[0].mxu0
      %1199 = vmatprep.mubr.bf16.mxu0 0
      %1200 = vmatmul.mubr.bf16.gmra.mrb[0].mxu0 %v1077
      %v1201 = vpop.f32.mrb[0].mxu0
      %v1202 = vadd.f32 0.0, %v1201
      %v1203 = vpop.f32.mrb[0].mxu0
      %v1204 = vpop.f32.mrb[0].mxu0
      %v1205 = vadd.f32 0.0, %v1204
      %v1206 = vpop.f32.mrb[0].mxu0
      %1207 = vdwg.mxu0
      %v1208 = vadd.f32 %v994, %v1114
      %v1209 = vadd.f32 %v995, %v1117
      %v1210 = vadd.f32 %v996, %v1122
      %v1211 = vadd.f32 %v997, %v1125
      %v1212 = vadd.f32 %v998, %v1130
      %v1213 = vadd.f32 %v999, %v1133
      %v1214 = vadd.f32 %v1000, %v1138
      %v1215 = vadd.f32 %v1001, %v1141
      %v1216 = vadd.f32 %v1002, %v1146
      %v1217 = vadd.f32 %v1003, %v1149
      %v1218 = vadd.f32 %v1004, %v1154
      %v1219 = vadd.f32 %v1005, %v1157
      %v1220 = vadd.f32 %v1006, %v1162
      %v1221 = vadd.f32 %v1007, %v1165
      %v1222 = vadd.f32 %v1008, %v1170
      %v1223 = vadd.f32 %v1009, %v1173
      %v1224 = vadd.f32 %v1010, %v1178
      %v1225 = vadd.f32 %v1011, %v1181
      %v1226 = vadd.f32 %v1012, %v1186
      %v1227 = vadd.f32 %v1013, %v1189
      %v1228 = vadd.f32 %v1014, %v1194
      %v1229 = vadd.f32 %v1015, %v1197
      %v1230 = vadd.f32 %v1016, %v1202
      %v1231 = vadd.f32 %v1017, %v1205
      %s1232 = scalar_lea.vmem %s1, 32
      %v1233 = vld [vmem:[%s1232] sm:$0xf]
      %v1234 = vld [vmem:[%s1232 + $0x4] sm:$0xf]
      %v1236 = vunpack.c.l.b16 %v290
      %v1237 = vpack.c.b16 %v1236, %v1236
      %v1238 = vshrl.u32 %v1025, 16
      %v1240 = vshll.u32 %v1025, 16
      %v1242 = vrot.slane %v1240, 1
      %v1243 = vor.u32 %v1238, %v1242
      %v1244 = vshll.u32 %v1026, 16
      %v1246 = vrot.slane %v1244, 1
      %v1247 = vsel %vm362, %v1243, %v1246
      %v1248 = vshrl.u32 %v1026, 16
      %v1250 = vor.u32 %v1248, %v1246
      %v1251 = vshll.u32 %v1027, 16
      %v1253 = vrot.slane %v1251, 1
      %v1254 = vsel %vm362, %v1250, %v1253
      %v1255 = vshrl.u32 %v1027, 16
      %v1257 = vor.u32 %v1255, %v1253
      %v1258 = vshll.u32 %v1028, 16
      %v1260 = vrot.slane %v1258, 1
      %v1261 = vsel %vm362, %v1257, %v1260
      %v1262 = vshrl.u32 %v1028, 16
      %v1264 = vor.u32 %v1262, %v1260
      %v1265 = vshll.u32 %v1029, 16
      %v1267 = vrot.slane %v1265, 1
      %v1268 = vsel %vm362, %v1264, %v1267
      %v1269 = vshrl.u32 %v1029, 16
      %v1271 = vor.u32 %v1269, %v1267
      %v1272 = vshll.u32 %v1030, 16
      %v1274 = vrot.slane %v1272, 1
      %v1275 = vsel %vm362, %v1271, %v1274
      %v1276 = vshrl.u32 %v1030, 16
      %v1278 = vor.u32 %v1276, %v1274
      %v1279 = vshll.u32 %v1031, 16
      %v1281 = vrot.slane %v1279, 1
      %v1282 = vsel %vm362, %v1278, %v1281
      %v1283 = vshrl.u32 %v1031, 16
      %v1285 = vor.u32 %v1283, %v1281
      %v1286 = vshll.u32 %v1032, 16
      %v1288 = vrot.slane %v1286, 1
      %v1289 = vsel %vm362, %v1285, %v1288
      %v1290 = vshrl.u32 %v1032, 16
      %v1292 = vor.u32 %v1290, %v1288
      %v1293 = vshll.u32 %v1033, 16
      %v1295 = vrot.slane %v1293, 1
      %v1296 = vsel %vm362, %v1292, %v1295
      %v1297 = vshrl.u32 %v1033, 16
      %v1299 = vor.u32 %v1297, %v1295
      %v1300 = vshll.u32 %v1034, 16
      %v1302 = vrot.slane %v1300, 1
      %v1303 = vsel %vm362, %v1299, %v1302
      %v1304 = vshrl.u32 %v1034, 16
      %v1306 = vor.u32 %v1304, %v1302
      %v1307 = vshll.u32 %v1035, 16
      %v1309 = vrot.slane %v1307, 1
      %v1310 = vsel %vm362, %v1306, %v1309
      %v1311 = vshrl.u32 %v1035, 16
      %v1313 = vor.u32 %v1311, %v1309
      %v1314 = vshll.u32 %v1036, 16
      %v1316 = vrot.slane %v1314, 1
      %v1317 = vsel %vm362, %v1313, %v1316
      %v1318 = vshrl.u32 %v1036, 16
      %v1320 = vor.u32 %v1318, %v1316
      %v1322 = vshll.u32 %v1237, 16
      %v1324 = vrot.slane %v1322, 1
      %v1325 = vsel %vm362, %v1320, %v1324
      %v1328 = vunpack.c.l.b16 %v1233
      %v1329 = vunpack.c.l.b16 %v1234
      %v1330 = vpack.c.b16 %v1329, %v1328
      %v1333 = vsel %vm469, %v1247, 0
      %v1336 = vsel %vm469, %v1254, 0
      %v1339 = vsel %vm469, %v1261, 0
      %v1342 = vsel %vm469, %v1268, 0
      %v1345 = vsel %vm469, %v1275, 0
      %v1348 = vsel %vm469, %v1282, 0
      %v1351 = vsel %vm469, %v1289, 0
      %v1354 = vsel %vm469, %v1296, 0
      %v1357 = vsel %vm469, %v1303, 0
      %v1360 = vsel %vm469, %v1310, 0
      %v1363 = vsel %vm469, %v1317, 0
      %v1366 = vsel %vm469, %v1325, 0
      %1368 = vmatprep.subr.bf16.mxu0 0
      %1369 = vmatpush1.bf16.msra.mxu0 %v1330
      %1370 = vmatprep.subr.bf16.mxu0 0
      %1371 = vmatpush1.bf16.msra.mxu0 0
      %1372 = vmatprep.subr.bf16.mxu0 0
      %1373 = vmatpush1.bf16.msra.mxu0 0
      %1374 = vmatprep.subr.bf16.mxu0 0
      %1375 = vmatpush1.bf16.msra.mxu0 0
      %1376 = vmatprep.subr.bf16.mxu0 0
      %1377 = vmatpush1.bf16.msra.mxu0 0
      %1378 = vmatprep.subr.bf16.mxu0 0
      %1379 = vmatpush1.bf16.msra.mxu0 0
      %1380 = vmatprep.subr.bf16.mxu0 0
      %1381 = vmatpush1.bf16.msra.mxu0 0
      %1382 = vmatprep.subr.bf16.mxu0 0
      %1383 = vmatpush1.bf16.msra.mxu0 0
      %1384 = vmatprep.subr.bf16.mxu0 0
      %1385 = vmatpush1.bf16.msra.mxu0 0
      %1386 = vmatprep.subr.bf16.mxu0 0
      %1387 = vmatpush1.bf16.msra.mxu0 0
      %1388 = vmatprep.subr.bf16.mxu0 0
      %1389 = vmatpush1.bf16.msra.mxu0 0
      %1390 = vmatprep.subr.bf16.mxu0 0
      %1391 = vmatpush1.bf16.msra.mxu0 0
      %1392 = vmatprep.subr.bf16.mxu0 0
      %1393 = vmatpush1.bf16.msra.mxu0 0
      %1394 = vmatprep.subr.bf16.mxu0 0
      %1395 = vmatpush1.bf16.msra.mxu0 0
      %1396 = vmatprep.subr.bf16.mxu0 0
      %1397 = vmatpush1.bf16.msra.mxu0 0
      %1398 = vmatprep.subr.bf16.mxu0 0
      %1399 = vmatpush1.bf16.msra.mxu0 0
      %1400 = vmatprep.mubr.bf16.mxu0 0
      %1401 = vmatmul.mubr.bf16.gmra.mrb[0].mxu0 %v1333
      %v1402 = vpop.f32.mrb[0].mxu0
      %v1403 = vadd.f32 0.0, %v1402
      %v1404 = vpop.f32.mrb[0].mxu0
      %v1405 = vpop.f32.mrb[0].mxu0
      %v1406 = vadd.f32 0.0, %v1405
      %v1407 = vpop.f32.mrb[0].mxu0
      %1408 = vmatprep.mubr.bf16.mxu0 0
      %1409 = vmatmul.mubr.bf16.gmra.mrb[0].mxu0 %v1336
      %v1410 = vpop.f32.mrb[0].mxu0
      %v1411 = vadd.f32 0.0, %v1410
      %v1412 = vpop.f32.mrb[0].mxu0
      %v1413 = vpop.f32.mrb[0].mxu0
      %v1414 = vadd.f32 0.0, %v1413
      %v1415 = vpop.f32.mrb[0].mxu0
      %1416 = vmatprep.mubr.bf16.mxu0 0
      %1417 = vmatmul.mubr.bf16.gmra.mrb[0].mxu0 %v1339
      %v1418 = vpop.f32.mrb[0].mxu0
      %v1419 = vadd.f32 0.0, %v1418
      %v1420 = vpop.f32.mrb[0].mxu0
      %v1421 = vpop.f32.mrb[0].mxu0
      %v1422 = vadd.f32 0.0, %v1421
      %v1423 = vpop.f32.mrb[0].mxu0
      %1424 = vmatprep.mubr.bf16.mxu0 0
      %1425 = vmatmul.mubr.bf16.gmra.mrb[0].mxu0 %v1342
      %v1426 = vpop.f32.mrb[0].mxu0
      %v1427 = vadd.f32 0.0, %v1426
      %v1428 = vpop.f32.mrb[0].mxu0
      %v1429 = vpop.f32.mrb[0].mxu0
      %v1430 = vadd.f32 0.0, %v1429
      %v1431 = vpop.f32.mrb[0].mxu0
      %1432 = vmatprep.mubr.bf16.mxu0 0
      %1433 = vmatmul.mubr.bf16.gmra.mrb[0].mxu0 %v1345
      %v1434 = vpop.f32.mrb[0].mxu0
      %v1435 = vadd.f32 0.0, %v1434
      %v1436 = vpop.f32.mrb[0].mxu0
      %v1437 = vpop.f32.mrb[0].mxu0
      %v1438 = vadd.f32 0.0, %v1437
      %v1439 = vpop.f32.mrb[0].mxu0
      %1440 = vmatprep.mubr.bf16.mxu0 0
      %1441 = vmatmul.mubr.bf16.gmra.mrb[0].mxu0 %v1348
      %v1442 = vpop.f32.mrb[0].mxu0
      %v1443 = vadd.f32 0.0, %v1442
      %v1444 = vpop.f32.mrb[0].mxu0
      %v1445 = vpop.f32.mrb[0].mxu0
      %v1446 = vadd.f32 0.0, %v1445
      %v1447 = vpop.f32.mrb[0].mxu0
      %1448 = vmatprep.mubr.bf16.mxu0 0
      %1449 = vmatmul.mubr.bf16.gmra.mrb[0].mxu0 %v1351
      %v1450 = vpop.f32.mrb[0].mxu0
      %v1451 = vadd.f32 0.0, %v1450
      %v1452 = vpop.f32.mrb[0].mxu0
      %v1453 = vpop.f32.mrb[0].mxu0
      %v1454 = vadd.f32 0.0, %v1453
      %v1455 = vpop.f32.mrb[0].mxu0
      %1456 = vmatprep.mubr.bf16.mxu0 0
      %1457 = vmatmul.mubr.bf16.gmra.mrb[0].mxu0 %v1354
      %v1458 = vpop.f32.mrb[0].mxu0
      %v1459 = vadd.f32 0.0, %v1458
      %v1460 = vpop.f32.mrb[0].mxu0
      %v1461 = vpop.f32.mrb[0].mxu0
      %v1462 = vadd.f32 0.0, %v1461
      %v1463 = vpop.f32.mrb[0].mxu0
      %1464 = vmatprep.mubr.bf16.mxu0 0
      %1465 = vmatmul.mubr.bf16.gmra.mrb[0].mxu0 %v1357
      %v1466 = vpop.f32.mrb[0].mxu0
      %v1467 = vadd.f32 0.0, %v1466
      %v1468 = vpop.f32.mrb[0].mxu0
      %v1469 = vpop.f32.mrb[0].mxu0
      %v1470 = vadd.f32 0.0, %v1469
      %v1471 = vpop.f32.mrb[0].mxu0
      %1472 = vmatprep.mubr.bf16.mxu0 0
      %1473 = vmatmul.mubr.bf16.gmra.mrb[0].mxu0 %v1360
      %v1474 = vpop.f32.mrb[0].mxu0
      %v1475 = vadd.f32 0.0, %v1474
      %v1476 = vpop.f32.mrb[0].mxu0
      %v1477 = vpop.f32.mrb[0].mxu0
      %v1478 = vadd.f32 0.0, %v1477
      %v1479 = vpop.f32.mrb[0].mxu0
      %1480 = vmatprep.mubr.bf16.mxu0 0
      %1481 = vmatmul.mubr.bf16.gmra.mrb[0].mxu0 %v1363
      %v1482 = vpop.f32.mrb[0].mxu0
      %v1483 = vadd.f32 0.0, %v1482
      %v1484 = vpop.f32.mrb[0].mxu0
      %v1485 = vpop.f32.mrb[0].mxu0
      %v1486 = vadd.f32 0.0, %v1485
      %v1487 = vpop.f32.mrb[0].mxu0
      %1488 = vmatprep.mubr.bf16.mxu0 0
      %1489 = vmatmul.mubr.bf16.gmra.mrb[0].mxu0 %v1366
      %v1490 = vpop.f32.mrb[0].mxu0
      %v1491 = vadd.f32 0.0, %v1490
      %v1492 = vpop.f32.mrb[0].mxu0
      %v1493 = vpop.f32.mrb[0].mxu0
      %v1494 = vadd.f32 0.0, %v1493
      %v1495 = vpop.f32.mrb[0].mxu0
      %1496 = vdwg.mxu0
      %v1497 = vadd.f32 %v1208, %v1403
      %v1498 = vadd.f32 %v1209, %v1406
      %v1499 = vadd.f32 %v1210, %v1411
      %v1500 = vadd.f32 %v1211, %v1414
      %v1501 = vadd.f32 %v1212, %v1419
      %v1502 = vadd.f32 %v1213, %v1422
      %v1503 = vadd.f32 %v1214, %v1427
      %v1504 = vadd.f32 %v1215, %v1430
      %v1505 = vadd.f32 %v1216, %v1435
      %v1506 = vadd.f32 %v1217, %v1438
      %v1507 = vadd.f32 %v1218, %v1443
      %v1508 = vadd.f32 %v1219, %v1446
      %v1509 = vadd.f32 %v1220, %v1451
      %v1510 = vadd.f32 %v1221, %v1454
      %v1511 = vadd.f32 %v1222, %v1459
      %v1512 = vadd.f32 %v1223, %v1462
      %v1513 = vadd.f32 %v1224, %v1467
      %v1514 = vadd.f32 %v1225, %v1470
      %v1515 = vadd.f32 %v1226, %v1475
      %v1516 = vadd.f32 %v1227, %v1478
      %v1517 = vadd.f32 %v1228, %v1483
      %v1518 = vadd.f32 %v1229, %v1486
      %v1519 = vadd.f32 %v1230, %v1491
      %v1520 = vadd.f32 %v1231, %v1494
      %s1521 = scalar_lea.vmem %s1, 40
      %v1522 = vld [vmem:[%s1521] sm:$0xf]
      %v1523 = vld [vmem:[%s1521 + $0x4] sm:$0xf]
      %v1524 = vrot.slane %v1025, 1
      %v1525 = vrot.slane %v1026, 1
      %v1526 = vsel %vm797, %v1524, %v1525
      %v1527 = vrot.slane %v1027, 1
      %v1528 = vsel %vm797, %v1525, %v1527
      %v1529 = vrot.slane %v1028, 1
      %v1530 = vsel %vm797, %v1527, %v1529
      %v1531 = vrot.slane %v1029, 1
      %v1532 = vsel %vm797, %v1529, %v1531
      %v1533 = vrot.slane %v1030, 1
      %v1534 = vsel %vm797, %v1531, %v1533
      %v1535 = vrot.slane %v1031, 1
      %v1536 = vsel %vm797, %v1533, %v1535
      %v1537 = vrot.slane %v1032, 1
      %v1538 = vsel %vm797, %v1535, %v1537
      %v1539 = vrot.slane %v1033, 1
      %v1540 = vsel %vm797, %v1537, %v1539
      %v1541 = vrot.slane %v1034, 1
      %v1542 = vsel %vm797, %v1539, %v1541
      %v1543 = vrot.slane %v1035, 1
      %v1544 = vsel %vm797, %v1541, %v1543
      %v1545 = vrot.slane %v1036, 1
      %v1546 = vsel %vm797, %v1543, %v1545
      %v1547 = vrot.slane %v1237, 1
      %v1548 = vsel %vm797, %v1545, %v1547
      %v1551 = vunpack.c.l.b16 %v1522
      %v1552 = vunpack.c.l.b16 %v1523
      %v1553 = vpack.c.b16 %v1552, %v1551
      %v1556 = vsel %vm469, %v1526, 0
      %v1559 = vsel %vm469, %v1528, 0
      %v1562 = vsel %vm469, %v1530, 0
      %v1565 = vsel %vm469, %v1532, 0
      %v1568 = vsel %vm469, %v1534, 0
      %v1571 = vsel %vm469, %v1536, 0
      %v1574 = vsel %vm469, %v1538, 0
      %v1577 = vsel %vm469, %v1540, 0
      %v1580 = vsel %vm469, %v1542, 0
      %v1583 = vsel %vm469, %v1544, 0
      %v1586 = vsel %vm469, %v1546, 0
      %v1589 = vsel %vm469, %v1548, 0
      %1591 = vmatprep.subr.bf16.mxu0 0
      %1592 = vmatpush1.bf16.msra.mxu0 %v1553
      %1593 = vmatprep.subr.bf16.mxu0 0
      %1594 = vmatpush1.bf16.msra.mxu0 0
      %1595 = vmatprep.subr.bf16.mxu0 0
      %1596 = vmatpush1.bf16.msra.mxu0 0
      %1597 = vmatprep.subr.bf16.mxu0 0
      %1598 = vmatpush1.bf16.msra.mxu0 0
      %1599 = vmatprep.subr.bf16.mxu0 0
      %1600 = vmatpush1.bf16.msra.mxu0 0
      %1601 = vmatprep.subr.bf16.mxu0 0
      %1602 = vmatpush1.bf16.msra.mxu0 0
      %1603 = vmatprep.subr.bf16.mxu0 0
      %1604 = vmatpush1.bf16.msra.mxu0 0
      %1605 = vmatprep.subr.bf16.mxu0 0
      %1606 = vmatpush1.bf16.msra.mxu0 0
      %1607 = vmatprep.subr.bf16.mxu0 0
      %1608 = vmatpush1.bf16.msra.mxu0 0
      %1609 = vmatprep.subr.bf16.mxu0 0
      %1610 = vmatpush1.bf16.msra.mxu0 0
      %1611 = vmatprep.subr.bf16.mxu0 0
      %1612 = vmatpush1.bf16.msra.mxu0 0
      %1613 = vmatprep.subr.bf16.mxu0 0
      %1614 = vmatpush1.bf16.msra.mxu0 0
      %1615 = vmatprep.subr.bf16.mxu0 0
      %1616 = vmatpush1.bf16.msra.mxu0 0
      %1617 = vmatprep.subr.bf16.mxu0 0
      %1618 = vmatpush1.bf16.msra.mxu0 0
      %1619 = vmatprep.subr.bf16.mxu0 0
      %1620 = vmatpush1.bf16.msra.mxu0 0
      %1621 = vmatprep.subr.bf16.mxu0 0
      %1622 = vmatpush1.bf16.msra.mxu0 0
      %1623 = vmatprep.mubr.bf16.mxu0 0
      %1624 = vmatmul.mubr.bf16.gmra.mrb[0].mxu0 %v1556
      %v1625 = vpop.f32.mrb[0].mxu0
      %v1626 = vadd.f32 0.0, %v1625
      %v1627 = vpop.f32.mrb[0].mxu0
      %v1628 = vpop.f32.mrb[0].mxu0
      %v1629 = vadd.f32 0.0, %v1628
      %v1630 = vpop.f32.mrb[0].mxu0
      %1631 = vmatprep.mubr.bf16.mxu0 0
      %1632 = vmatmul.mubr.bf16.gmra.mrb[0].mxu0 %v1559
      %v1633 = vpop.f32.mrb[0].mxu0
      %v1634 = vadd.f32 0.0, %v1633
      %v1635 = vpop.f32.mrb[0].mxu0
      %v1636 = vpop.f32.mrb[0].mxu0
      %v1637 = vadd.f32 0.0, %v1636
      %v1638 = vpop.f32.mrb[0].mxu0
      %1639 = vmatprep.mubr.bf16.mxu0 0
      %1640 = vmatmul.mubr.bf16.gmra.mrb[0].mxu0 %v1562
      %v1641 = vpop.f32.mrb[0].mxu0
      %v1642 = vadd.f32 0.0, %v1641
      %v1643 = vpop.f32.mrb[0].mxu0
      %v1644 = vpop.f32.mrb[0].mxu0
      %v1645 = vadd.f32 0.0, %v1644
      %v1646 = vpop.f32.mrb[0].mxu0
      %1647 = vmatprep.mubr.bf16.mxu0 0
      %1648 = vmatmul.mubr.bf16.gmra.mrb[0].mxu0 %v1565
      %v1649 = vpop.f32.mrb[0].mxu0
      %v1650 = vadd.f32 0.0, %v1649
      %v1651 = vpop.f32.mrb[0].mxu0
      %v1652 = vpop.f32.mrb[0].mxu0
      %v1653 = vadd.f32 0.0, %v1652
      %v1654 = vpop.f32.mrb[0].mxu0
      %1655 = vmatprep.mubr.bf16.mxu0 0
      %1656 = vmatmul.mubr.bf16.gmra.mrb[0].mxu0 %v1568
      %v1657 = vpop.f32.mrb[0].mxu0
      %v1658 = vadd.f32 0.0, %v1657
      %v1659 = vpop.f32.mrb[0].mxu0
      %v1660 = vpop.f32.mrb[0].mxu0
      %v1661 = vadd.f32 0.0, %v1660
      %v1662 = vpop.f32.mrb[0].mxu0
      %1663 = vmatprep.mubr.bf16.mxu0 0
      %1664 = vmatmul.mubr.bf16.gmra.mrb[0].mxu0 %v1571
      %v1665 = vpop.f32.mrb[0].mxu0
      %v1666 = vadd.f32 0.0, %v1665
      %v1667 = vpop.f32.mrb[0].mxu0
      %v1668 = vpop.f32.mrb[0].mxu0
      %v1669 = vadd.f32 0.0, %v1668
      %v1670 = vpop.f32.mrb[0].mxu0
      %1671 = vmatprep.mubr.bf16.mxu0 0
      %1672 = vmatmul.mubr.bf16.gmra.mrb[0].mxu0 %v1574
      %v1673 = vpop.f32.mrb[0].mxu0
      %v1674 = vadd.f32 0.0, %v1673
      %v1675 = vpop.f32.mrb[0].mxu0
      %v1676 = vpop.f32.mrb[0].mxu0
      %v1677 = vadd.f32 0.0, %v1676
      %v1678 = vpop.f32.mrb[0].mxu0
      %1679 = vmatprep.mubr.bf16.mxu0 0
      %1680 = vmatmul.mubr.bf16.gmra.mrb[0].mxu0 %v1577
      %v1681 = vpop.f32.mrb[0].mxu0
      %v1682 = vadd.f32 0.0, %v1681
      %v1683 = vpop.f32.mrb[0].mxu0
      %v1684 = vpop.f32.mrb[0].mxu0
      %v1685 = vadd.f32 0.0, %v1684
      %v1686 = vpop.f32.mrb[0].mxu0
      %1687 = vmatprep.mubr.bf16.mxu0 0
      %1688 = vmatmul.mubr.bf16.gmra.mrb[0].mxu0 %v1580
      %v1689 = vpop.f32.mrb[0].mxu0
      %v1690 = vadd.f32 0.0, %v1689
      %v1691 = vpop.f32.mrb[0].mxu0
      %v1692 = vpop.f32.mrb[0].mxu0
      %v1693 = vadd.f32 0.0, %v1692
      %v1694 = vpop.f32.mrb[0].mxu0
      %1695 = vmatprep.mubr.bf16.mxu0 0
      %1696 = vmatmul.mubr.bf16.gmra.mrb[0].mxu0 %v1583
      %v1697 = vpop.f32.mrb[0].mxu0
      %v1698 = vadd.f32 0.0, %v1697
      %v1699 = vpop.f32.mrb[0].mxu0
      %v1700 = vpop.f32.mrb[0].mxu0
      %v1701 = vadd.f32 0.0, %v1700
      %v1702 = vpop.f32.mrb[0].mxu0
      %1703 = vmatprep.mubr.bf16.mxu0 0
      %1704 = vmatmul.mubr.bf16.gmra.mrb[0].mxu0 %v1586
      %v1705 = vpop.f32.mrb[0].mxu0
      %v1706 = vadd.f32 0.0, %v1705
      %v1707 = vpop.f32.mrb[0].mxu0
      %v1708 = vpop.f32.mrb[0].mxu0
      %v1709 = vadd.f32 0.0, %v1708
      %v1710 = vpop.f32.mrb[0].mxu0
      %1711 = vmatprep.mubr.bf16.mxu0 0
      %1712 = vmatmul.mubr.bf16.gmra.mrb[0].mxu0 %v1589
      %v1713 = vpop.f32.mrb[0].mxu0
      %v1714 = vadd.f32 0.0, %v1713
      %v1715 = vpop.f32.mrb[0].mxu0
      %v1716 = vpop.f32.mrb[0].mxu0
      %v1717 = vadd.f32 0.0, %v1716
      %v1718 = vpop.f32.mrb[0].mxu0
      %1719 = vdwg.mxu0
      %v1720 = vadd.f32 %v1497, %v1626
      %v1721 = vadd.f32 %v1498, %v1629
      %v1722 = vadd.f32 %v1499, %v1634
      %v1723 = vadd.f32 %v1500, %v1637
      %v1724 = vadd.f32 %v1501, %v1642
      %v1725 = vadd.f32 %v1502, %v1645
      %v1726 = vadd.f32 %v1503, %v1650
      %v1727 = vadd.f32 %v1504, %v1653
      %v1728 = vadd.f32 %v1505, %v1658
      %v1729 = vadd.f32 %v1506, %v1661
      %v1730 = vadd.f32 %v1507, %v1666
      %v1731 = vadd.f32 %v1508, %v1669
      %v1732 = vadd.f32 %v1509, %v1674
      %v1733 = vadd.f32 %v1510, %v1677
      %v1734 = vadd.f32 %v1511, %v1682
      %v1735 = vadd.f32 %v1512, %v1685
      %v1736 = vadd.f32 %v1513, %v1690
      %v1737 = vadd.f32 %v1514, %v1693
      %v1738 = vadd.f32 %v1515, %v1698
      %v1739 = vadd.f32 %v1516, %v1701
      %v1740 = vadd.f32 %v1517, %v1706
      %v1741 = vadd.f32 %v1518, %v1709
      %v1742 = vadd.f32 %v1519, %v1714
      %v1743 = vadd.f32 %v1520, %v1717
      %s1744 = scalar_lea.vmem %s1, 48
      %v1745 = vld [vmem:[%s1744] sm:$0xf]
      %v1746 = vld [vmem:[%s1744 + $0x4] sm:$0xf]
      %v1749 = vunpack.c.l.b16 %v291
      %v1750 = vunpack.c.l.b16 %v292
      %v1751 = vpack.c.b16 %v1023, %v348
      %v1752 = vpack.c.b16 %v1236, %v1024
      %v1753 = vpack.c.b16 %v1750, %v1749
      %v1756 = vunpack.c.l.b16 %v1745
      %v1757 = vunpack.c.l.b16 %v1746
      %v1758 = vpack.c.b16 %v1757, %v1756
      %v1761 = vsel %vm469, %v1751, 0
      %v1764 = vsel %vm469, %v1752, 0
      %v1767 = vsel %vm469, %v1753, 0
      %1769 = vmatprep.subr.bf16.mxu0 0
      %1770 = vmatpush1.bf16.msra.mxu0 %v1758
      %1771 = vmatprep.subr.bf16.mxu0 0
      %1772 = vmatpush1.bf16.msra.mxu0 0
      %1773 = vmatprep.subr.bf16.mxu0 0
      %1774 = vmatpush1.bf16.msra.mxu0 0
      %1775 = vmatprep.subr.bf16.mxu0 0
      %1776 = vmatpush1.bf16.msra.mxu0 0
      %1777 = vmatprep.subr.bf16.mxu0 0
      %1778 = vmatpush1.bf16.msra.mxu0 0
      %1779 = vmatprep.subr.bf16.mxu0 0
      %1780 = vmatpush1.bf16.msra.mxu0 0
      %1781 = vmatprep.subr.bf16.mxu0 0
      %1782 = vmatpush1.bf16.msra.mxu0 0
      %1783 = vmatprep.subr.bf16.mxu0 0
      %1784 = vmatpush1.bf16.msra.mxu0 0
      %1785 = vmatprep.subr.bf16.mxu0 0
      %1786 = vmatpush1.bf16.msra.mxu0 0
      %1787 = vmatprep.subr.bf16.mxu0 0
      %1788 = vmatpush1.bf16.msra.mxu0 0
      %1789 = vmatprep.subr.bf16.mxu0 0
      %1790 = vmatpush1.bf16.msra.mxu0 0
      %1791 = vmatprep.subr.bf16.mxu0 0
      %1792 = vmatpush1.bf16.msra.mxu0 0
      %1793 = vmatprep.subr.bf16.mxu0 0
      %1794 = vmatpush1.bf16.msra.mxu0 0
      %1795 = vmatprep.subr.bf16.mxu0 0
      %1796 = vmatpush1.bf16.msra.mxu0 0
      %1797 = vmatprep.subr.bf16.mxu0 0
      %1798 = vmatpush1.bf16.msra.mxu0 0
      %1799 = vmatprep.subr.bf16.mxu0 0
      %1800 = vmatpush1.bf16.msra.mxu0 0
      %1801 = vmatprep.mubr.bf16.mxu0 0
      %1802 = vmatmul.mubr.bf16.gmra.mrb[0].mxu0 %v647
      %v1803 = vpop.f32.mrb[0].mxu0
      %v1804 = vadd.f32 0.0, %v1803
      %v1805 = vpop.f32.mrb[0].mxu0
      %v1806 = vpop.f32.mrb[0].mxu0
      %v1807 = vadd.f32 0.0, %v1806
      %v1808 = vpop.f32.mrb[0].mxu0
      %1809 = vmatprep.mubr.bf16.mxu0 0
      %1810 = vmatmul.mubr.bf16.gmra.mrb[0].mxu0 %v649
      %v1811 = vpop.f32.mrb[0].mxu0
      %v1812 = vadd.f32 0.0, %v1811
      %v1813 = vpop.f32.mrb[0].mxu0
      %v1814 = vpop.f32.mrb[0].mxu0
      %v1815 = vadd.f32 0.0, %v1814
      %v1816 = vpop.f32.mrb[0].mxu0
      %1817 = vmatprep.mubr.bf16.mxu0 0
      %1818 = vmatmul.mubr.bf16.gmra.mrb[0].mxu0 %v651
      %v1819 = vpop.f32.mrb[0].mxu0
      %v1820 = vadd.f32 0.0, %v1819
      %v1821 = vpop.f32.mrb[0].mxu0
      %v1822 = vpop.f32.mrb[0].mxu0
      %v1823 = vadd.f32 0.0, %v1822
      %v1824 = vpop.f32.mrb[0].mxu0
      %1825 = vmatprep.mubr.bf16.mxu0 0
      %1826 = vmatmul.mubr.bf16.gmra.mrb[0].mxu0 %v653
      %v1827 = vpop.f32.mrb[0].mxu0
      %v1828 = vadd.f32 0.0, %v1827
      %v1829 = vpop.f32.mrb[0].mxu0
      %v1830 = vpop.f32.mrb[0].mxu0
      %v1831 = vadd.f32 0.0, %v1830
      %v1832 = vpop.f32.mrb[0].mxu0
      %1833 = vmatprep.mubr.bf16.mxu0 0
      %1834 = vmatmul.mubr.bf16.gmra.mrb[0].mxu0 %v655
      %v1835 = vpop.f32.mrb[0].mxu0
      %v1836 = vadd.f32 0.0, %v1835
      %v1837 = vpop.f32.mrb[0].mxu0
      %v1838 = vpop.f32.mrb[0].mxu0
      %v1839 = vadd.f32 0.0, %v1838
      %v1840 = vpop.f32.mrb[0].mxu0
      %1841 = vmatprep.mubr.bf16.mxu0 0
      %1842 = vmatmul.mubr.bf16.gmra.mrb[0].mxu0 %v657
      %v1843 = vpop.f32.mrb[0].mxu0
      %v1844 = vadd.f32 0.0, %v1843
      %v1845 = vpop.f32.mrb[0].mxu0
      %v1846 = vpop.f32.mrb[0].mxu0
      %v1847 = vadd.f32 0.0, %v1846
      %v1848 = vpop.f32.mrb[0].mxu0
      %1849 = vmatprep.mubr.bf16.mxu0 0
      %1850 = vmatmul.mubr.bf16.gmra.mrb[0].mxu0 %v659
      %v1851 = vpop.f32.mrb[0].mxu0
      %v1852 = vadd.f32 0.0, %v1851
      %v1853 = vpop.f32.mrb[0].mxu0
      %v1854 = vpop.f32.mrb[0].mxu0
      %v1855 = vadd.f32 0.0, %v1854
      %v1856 = vpop.f32.mrb[0].mxu0
      %1857 = vmatprep.mubr.bf16.mxu0 0
      %1858 = vmatmul.mubr.bf16.gmra.mrb[0].mxu0 %v661
      %v1859 = vpop.f32.mrb[0].mxu0
      %v1860 = vadd.f32 0.0, %v1859
      %v1861 = vpop.f32.mrb[0].mxu0
      %v1862 = vpop.f32.mrb[0].mxu0
      %v1863 = vadd.f32 0.0, %v1862
      %v1864 = vpop.f32.mrb[0].mxu0
      %1865 = vmatprep.mubr.bf16.mxu0 0
      %1866 = vmatmul.mubr.bf16.gmra.mrb[0].mxu0 %v663
      %v1867 = vpop.f32.mrb[0].mxu0
      %v1868 = vadd.f32 0.0, %v1867
      %v1869 = vpop.f32.mrb[0].mxu0
      %v1870 = vpop.f32.mrb[0].mxu0
      %v1871 = vadd.f32 0.0, %v1870
      %v1872 = vpop.f32.mrb[0].mxu0
      %1873 = vmatprep.mubr.bf16.mxu0 0
      %1874 = vmatmul.mubr.bf16.gmra.mrb[0].mxu0 %v1761
      %v1875 = vpop.f32.mrb[0].mxu0
      %v1876 = vadd.f32 0.0, %v1875
      %v1877 = vpop.f32.mrb[0].mxu0
      %v1878 = vpop.f32.mrb[0].mxu0
      %v1879 = vadd.f32 0.0, %v1878
      %v1880 = vpop.f32.mrb[0].mxu0
      %1881 = vmatprep.mubr.bf16.mxu0 0
      %1882 = vmatmul.mubr.bf16.gmra.mrb[0].mxu0 %v1764
      %v1883 = vpop.f32.mrb[0].mxu0
      %v1884 = vadd.f32 0.0, %v1883
      %v1885 = vpop.f32.mrb[0].mxu0
      %v1886 = vpop.f32.mrb[0].mxu0
      %v1887 = vadd.f32 0.0, %v1886
      %v1888 = vpop.f32.mrb[0].mxu0
      %1889 = vmatprep.mubr.bf16.mxu0 0
      %1890 = vmatmul.mubr.bf16.gmra.mrb[0].mxu0 %v1767
      %v1891 = vpop.f32.mrb[0].mxu0
      %v1892 = vadd.f32 0.0, %v1891
      %v1893 = vpop.f32.mrb[0].mxu0
      %v1894 = vpop.f32.mrb[0].mxu0
      %v1895 = vadd.f32 0.0, %v1894
      %v1896 = vpop.f32.mrb[0].mxu0
      %1897 = vdwg.mxu0
      %v1898 = vadd.f32 %v1720, %v1804
      %v1899 = vadd.f32 %v1721, %v1807
      %v1900 = vadd.f32 %v1722, %v1812
      %v1901 = vadd.f32 %v1723, %v1815
      %v1902 = vadd.f32 %v1724, %v1820
      %v1903 = vadd.f32 %v1725, %v1823
      %v1904 = vadd.f32 %v1726, %v1828
      %v1905 = vadd.f32 %v1727, %v1831
      %v1906 = vadd.f32 %v1728, %v1836
      %v1907 = vadd.f32 %v1729, %v1839
      %v1908 = vadd.f32 %v1730, %v1844
      %v1909 = vadd.f32 %v1731, %v1847
      %v1910 = vadd.f32 %v1732, %v1852
      %v1911 = vadd.f32 %v1733, %v1855
      %v1912 = vadd.f32 %v1734, %v1860
      %v1913 = vadd.f32 %v1735, %v1863
      %v1914 = vadd.f32 %v1736, %v1868
      %v1915 = vadd.f32 %v1737, %v1871
      %v1916 = vadd.f32 %v1738, %v1876
      %v1917 = vadd.f32 %v1739, %v1879
      %v1918 = vadd.f32 %v1740, %v1884
      %v1919 = vadd.f32 %v1741, %v1887
      %v1920 = vadd.f32 %v1742, %v1892
      %v1921 = vadd.f32 %v1743, %v1895
      %s1922 = scalar_lea.vmem %s1, 56
      %v1923 = vld [vmem:[%s1922] sm:$0xf]
      %v1924 = vld [vmem:[%s1922 + $0x4] sm:$0xf]
      %v1926 = vunpack.c.l.b16 %v293
      %v1927 = vpack.c.b16 %v1926, %v1926
      %v1928 = vshll.u32 %v1751, 16
      %v1930 = vrot.slane %v1928, 1
      %v1931 = vsel %vm362, %v457, %v1930
      %v1932 = vshrl.u32 %v1751, 16
      %v1934 = vor.u32 %v1932, %v1930
      %v1935 = vshll.u32 %v1752, 16
      %v1937 = vrot.slane %v1935, 1
      %v1938 = vsel %vm362, %v1934, %v1937
      %v1939 = vshrl.u32 %v1752, 16
      %v1941 = vor.u32 %v1939, %v1937
      %v1942 = vshll.u32 %v1753, 16
      %v1944 = vrot.slane %v1942, 1
      %v1945 = vsel %vm362, %v1941, %v1944
      %v1946 = vshrl.u32 %v1753, 16
      %v1948 = vor.u32 %v1946, %v1944
      %v1950 = vshll.u32 %v1927, 16
      %v1952 = vrot.slane %v1950, 1
      %v1953 = vsel %vm362, %v1948, %v1952
      %v1956 = vunpack.c.l.b16 %v1923
      %v1957 = vunpack.c.l.b16 %v1924
      %v1958 = vpack.c.b16 %v1957, %v1956
      %v1961 = vsel %vm469, %v1931, 0
      %v1964 = vsel %vm469, %v1938, 0
      %v1967 = vsel %vm469, %v1945, 0
      %v1970 = vsel %vm469, %v1953, 0
      %1972 = vmatprep.subr.bf16.mxu0 0
      %1973 = vmatpush1.bf16.msra.mxu0 %v1958
      %1974 = vmatprep.subr.bf16.mxu0 0
      %1975 = vmatpush1.bf16.msra.mxu0 0
      %1976 = vmatprep.subr.bf16.mxu0 0
      %1977 = vmatpush1.bf16.msra.mxu0 0
      %1978 = vmatprep.subr.bf16.mxu0 0
      %1979 = vmatpush1.bf16.msra.mxu0 0
      %1980 = vmatprep.subr.bf16.mxu0 0
      %1981 = vmatpush1.bf16.msra.mxu0 0
      %1982 = vmatprep.subr.bf16.mxu0 0
      %1983 = vmatpush1.bf16.msra.mxu0 0
      %1984 = vmatprep.subr.bf16.mxu0 0
      %1985 = vmatpush1.bf16.msra.mxu0 0
      %1986 = vmatprep.subr.bf16.mxu0 0
      %1987 = vmatpush1.bf16.msra.mxu0 0
      %1988 = vmatprep.subr.bf16.mxu0 0
      %1989 = vmatpush1.bf16.msra.mxu0 0
      %1990 = vmatprep.subr.bf16.mxu0 0
      %1991 = vmatpush1.bf16.msra.mxu0 0
      %1992 = vmatprep.subr.bf16.mxu0 0
      %1993 = vmatpush1.bf16.msra.mxu0 0
      %1994 = vmatprep.subr.bf16.mxu0 0
      %1995 = vmatpush1.bf16.msra.mxu0 0
      %1996 = vmatprep.subr.bf16.mxu0 0
      %1997 = vmatpush1.bf16.msra.mxu0 0
      %1998 = vmatprep.subr.bf16.mxu0 0
      %1999 = vmatpush1.bf16.msra.mxu0 0
      %2000 = vmatprep.subr.bf16.mxu0 0
      %2001 = vmatpush1.bf16.msra.mxu0 0
      %2002 = vmatprep.subr.bf16.mxu0 0
      %2003 = vmatpush1.bf16.msra.mxu0 0
      %2004 = vmatprep.mubr.bf16.mxu0 0
      %2005 = vmatmul.mubr.bf16.gmra.mrb[0].mxu0 %v480
      %v2006 = vpop.f32.mrb[0].mxu0
      %v2007 = vadd.f32 0.0, %v2006
      %v2008 = vpop.f32.mrb[0].mxu0
      %v2009 = vpop.f32.mrb[0].mxu0
      %v2010 = vadd.f32 0.0, %v2009
      %v2011 = vpop.f32.mrb[0].mxu0
      %2012 = vmatprep.mubr.bf16.mxu0 0
      %2013 = vmatmul.mubr.bf16.gmra.mrb[0].mxu0 %v483
      %v2014 = vpop.f32.mrb[0].mxu0
      %v2015 = vadd.f32 0.0, %v2014
      %v2016 = vpop.f32.mrb[0].mxu0
      %v2017 = vpop.f32.mrb[0].mxu0
      %v2018 = vadd.f32 0.0, %v2017
      %v2019 = vpop.f32.mrb[0].mxu0
      %2020 = vmatprep.mubr.bf16.mxu0 0
      %2021 = vmatmul.mubr.bf16.gmra.mrb[0].mxu0 %v486
      %v2022 = vpop.f32.mrb[0].mxu0
      %v2023 = vadd.f32 0.0, %v2022
      %v2024 = vpop.f32.mrb[0].mxu0
      %v2025 = vpop.f32.mrb[0].mxu0
      %v2026 = vadd.f32 0.0, %v2025
      %v2027 = vpop.f32.mrb[0].mxu0
      %2028 = vmatprep.mubr.bf16.mxu0 0
      %2029 = vmatmul.mubr.bf16.gmra.mrb[0].mxu0 %v489
      %v2030 = vpop.f32.mrb[0].mxu0
      %v2031 = vadd.f32 0.0, %v2030
      %v2032 = vpop.f32.mrb[0].mxu0
      %v2033 = vpop.f32.mrb[0].mxu0
      %v2034 = vadd.f32 0.0, %v2033
      %v2035 = vpop.f32.mrb[0].mxu0
      %2036 = vmatprep.mubr.bf16.mxu0 0
      %2037 = vmatmul.mubr.bf16.gmra.mrb[0].mxu0 %v492
      %v2038 = vpop.f32.mrb[0].mxu0
      %v2039 = vadd.f32 0.0, %v2038
      %v2040 = vpop.f32.mrb[0].mxu0
      %v2041 = vpop.f32.mrb[0].mxu0
      %v2042 = vadd.f32 0.0, %v2041
      %v2043 = vpop.f32.mrb[0].mxu0
      %2044 = vmatprep.mubr.bf16.mxu0 0
      %2045 = vmatmul.mubr.bf16.gmra.mrb[0].mxu0 %v495
      %v2046 = vpop.f32.mrb[0].mxu0
      %v2047 = vadd.f32 0.0, %v2046
      %v2048 = vpop.f32.mrb[0].mxu0
      %v2049 = vpop.f32.mrb[0].mxu0
      %v2050 = vadd.f32 0.0, %v2049
      %v2051 = vpop.f32.mrb[0].mxu0
      %2052 = vmatprep.mubr.bf16.mxu0 0
      %2053 = vmatmul.mubr.bf16.gmra.mrb[0].mxu0 %v498
      %v2054 = vpop.f32.mrb[0].mxu0
      %v2055 = vadd.f32 0.0, %v2054
      %v2056 = vpop.f32.mrb[0].mxu0
      %v2057 = vpop.f32.mrb[0].mxu0
      %v2058 = vadd.f32 0.0, %v2057
      %v2059 = vpop.f32.mrb[0].mxu0
      %2060 = vmatprep.mubr.bf16.mxu0 0
      %2061 = vmatmul.mubr.bf16.gmra.mrb[0].mxu0 %v501
      %v2062 = vpop.f32.mrb[0].mxu0
      %v2063 = vadd.f32 0.0, %v2062
      %v2064 = vpop.f32.mrb[0].mxu0
      %v2065 = vpop.f32.mrb[0].mxu0
      %v2066 = vadd.f32 0.0, %v2065
      %v2067 = vpop.f32.mrb[0].mxu0
      %2068 = vmatprep.mubr.bf16.mxu0 0
      %2069 = vmatmul.mubr.bf16.gmra.mrb[0].mxu0 %v1961
      %v2070 = vpop.f32.mrb[0].mxu0
      %v2071 = vadd.f32 0.0, %v2070
      %v2072 = vpop.f32.mrb[0].mxu0
      %v2073 = vpop.f32.mrb[0].mxu0
      %v2074 = vadd.f32 0.0, %v2073
      %v2075 = vpop.f32.mrb[0].mxu0
      %2076 = vmatprep.mubr.bf16.mxu0 0
      %2077 = vmatmul.mubr.bf16.gmra.mrb[0].mxu0 %v1964
      %v2078 = vpop.f32.mrb[0].mxu0
      %v2079 = vadd.f32 0.0, %v2078
      %v2080 = vpop.f32.mrb[0].mxu0
      %v2081 = vpop.f32.mrb[0].mxu0
      %v2082 = vadd.f32 0.0, %v2081
      %v2083 = vpop.f32.mrb[0].mxu0
      %2084 = vmatprep.mubr.bf16.mxu0 0
      %2085 = vmatmul.mubr.bf16.gmra.mrb[0].mxu0 %v1967
      %v2086 = vpop.f32.mrb[0].mxu0
      %v2087 = vadd.f32 0.0, %v2086
      %v2088 = vpop.f32.mrb[0].mxu0
      %v2089 = vpop.f32.mrb[0].mxu0
      %v2090 = vadd.f32 0.0, %v2089
      %v2091 = vpop.f32.mrb[0].mxu0
      %2092 = vmatprep.mubr.bf16.mxu0 0
      %2093 = vmatmul.mubr.bf16.gmra.mrb[0].mxu0 %v1970
      %v2094 = vpop.f32.mrb[0].mxu0
      %v2095 = vadd.f32 0.0, %v2094
      %v2096 = vpop.f32.mrb[0].mxu0
      %v2097 = vpop.f32.mrb[0].mxu0
      %v2098 = vadd.f32 0.0, %v2097
      %v2099 = vpop.f32.mrb[0].mxu0
      %2100 = vdwg.mxu0
      %v2101 = vadd.f32 %v1898, %v2007
      %v2102 = vadd.f32 %v1899, %v2010
      %v2103 = vadd.f32 %v1900, %v2015
      %v2104 = vadd.f32 %v1901, %v2018
      %v2105 = vadd.f32 %v1902, %v2023
      %v2106 = vadd.f32 %v1903, %v2026
      %v2107 = vadd.f32 %v1904, %v2031
      %v2108 = vadd.f32 %v1905, %v2034
      %v2109 = vadd.f32 %v1906, %v2039
      %v2110 = vadd.f32 %v1907, %v2042
      %v2111 = vadd.f32 %v1908, %v2047
      %v2112 = vadd.f32 %v1909, %v2050
      %v2113 = vadd.f32 %v1910, %v2055
      %v2114 = vadd.f32 %v1911, %v2058
      %v2115 = vadd.f32 %v1912, %v2063
      %v2116 = vadd.f32 %v1913, %v2066
      %v2117 = vadd.f32 %v1914, %v2071
      %v2118 = vadd.f32 %v1915, %v2074
      %v2119 = vadd.f32 %v1916, %v2079
      %v2120 = vadd.f32 %v1917, %v2082
      %v2121 = vadd.f32 %v1918, %v2087
      %v2122 = vadd.f32 %v1919, %v2090
      %v2123 = vadd.f32 %v1920, %v2095
      %v2124 = vadd.f32 %v1921, %v2098
      %s2125 = scalar_lea.vmem %s1, 64
      %v2126 = vld [vmem:[%s2125] sm:$0xf]
      %v2127 = vld [vmem:[%s2125 + $0x4] sm:$0xf]
      %v2128 = vrot.slane %v1751, 1
      %v2129 = vsel %vm797, %v819, %v2128
      %v2130 = vrot.slane %v1752, 1
      %v2131 = vsel %vm797, %v2128, %v2130
      %v2132 = vrot.slane %v1753, 1
      %v2133 = vsel %vm797, %v2130, %v2132
      %v2134 = vrot.slane %v1927, 1
      %v2135 = vsel %vm797, %v2132, %v2134
      %v2138 = vunpack.c.l.b16 %v2126
      %v2139 = vunpack.c.l.b16 %v2127
      %v2140 = vpack.c.b16 %v2139, %v2138
      %v2143 = vsel %vm469, %v2129, 0
      %v2146 = vsel %vm469, %v2131, 0
      %v2149 = vsel %vm469, %v2133, 0
      %v2152 = vsel %vm469, %v2135, 0
      %2154 = vmatprep.subr.bf16.mxu0 0
      %2155 = vmatpush1.bf16.msra.mxu0 %v2140
      %2156 = vmatprep.subr.bf16.mxu0 0
      %2157 = vmatpush1.bf16.msra.mxu0 0
      %2158 = vmatprep.subr.bf16.mxu0 0
      %2159 = vmatpush1.bf16.msra.mxu0 0
      %2160 = vmatprep.subr.bf16.mxu0 0
      %2161 = vmatpush1.bf16.msra.mxu0 0
      %2162 = vmatprep.subr.bf16.mxu0 0
      %2163 = vmatpush1.bf16.msra.mxu0 0
      %2164 = vmatprep.subr.bf16.mxu0 0
      %2165 = vmatpush1.bf16.msra.mxu0 0
      %2166 = vmatprep.subr.bf16.mxu0 0
      %2167 = vmatpush1.bf16.msra.mxu0 0
      %2168 = vmatprep.subr.bf16.mxu0 0
      %2169 = vmatpush1.bf16.msra.mxu0 0
      %2170 = vmatprep.subr.bf16.mxu0 0
      %2171 = vmatpush1.bf16.msra.mxu0 0
      %2172 = vmatprep.subr.bf16.mxu0 0
      %2173 = vmatpush1.bf16.msra.mxu0 0
      %2174 = vmatprep.subr.bf16.mxu0 0
      %2175 = vmatpush1.bf16.msra.mxu0 0
      %2176 = vmatprep.subr.bf16.mxu0 0
      %2177 = vmatpush1.bf16.msra.mxu0 0
      %2178 = vmatprep.subr.bf16.mxu0 0
      %2179 = vmatpush1.bf16.msra.mxu0 0
      %2180 = vmatprep.subr.bf16.mxu0 0
      %2181 = vmatpush1.bf16.msra.mxu0 0
      %2182 = vmatprep.subr.bf16.mxu0 0
      %2183 = vmatpush1.bf16.msra.mxu0 0
      %2184 = vmatprep.subr.bf16.mxu0 0
      %2185 = vmatpush1.bf16.msra.mxu0 0
      %2186 = vmatprep.mubr.bf16.mxu0 0
      %2187 = vmatmul.mubr.bf16.gmra.mrb[0].mxu0 %v839
      %v2188 = vpop.f32.mrb[0].mxu0
      %v2189 = vadd.f32 0.0, %v2188
      %v2190 = vpop.f32.mrb[0].mxu0
      %v2191 = vpop.f32.mrb[0].mxu0
      %v2192 = vadd.f32 0.0, %v2191
      %v2193 = vpop.f32.mrb[0].mxu0
      %2194 = vmatprep.mubr.bf16.mxu0 0
      %2195 = vmatmul.mubr.bf16.gmra.mrb[0].mxu0 %v842
      %v2196 = vpop.f32.mrb[0].mxu0
      %v2197 = vadd.f32 0.0, %v2196
      %v2198 = vpop.f32.mrb[0].mxu0
      %v2199 = vpop.f32.mrb[0].mxu0
      %v2200 = vadd.f32 0.0, %v2199
      %v2201 = vpop.f32.mrb[0].mxu0
      %2202 = vmatprep.mubr.bf16.mxu0 0
      %2203 = vmatmul.mubr.bf16.gmra.mrb[0].mxu0 %v845
      %v2204 = vpop.f32.mrb[0].mxu0
      %v2205 = vadd.f32 0.0, %v2204
      %v2206 = vpop.f32.mrb[0].mxu0
      %v2207 = vpop.f32.mrb[0].mxu0
      %v2208 = vadd.f32 0.0, %v2207
      %v2209 = vpop.f32.mrb[0].mxu0
      %2210 = vmatprep.mubr.bf16.mxu0 0
      %2211 = vmatmul.mubr.bf16.gmra.mrb[0].mxu0 %v848
      %v2212 = vpop.f32.mrb[0].mxu0
      %v2213 = vadd.f32 0.0, %v2212
      %v2214 = vpop.f32.mrb[0].mxu0
      %v2215 = vpop.f32.mrb[0].mxu0
      %v2216 = vadd.f32 0.0, %v2215
      %v2217 = vpop.f32.mrb[0].mxu0
      %2218 = vmatprep.mubr.bf16.mxu0 0
      %2219 = vmatmul.mubr.bf16.gmra.mrb[0].mxu0 %v851
      %v2220 = vpop.f32.mrb[0].mxu0
      %v2221 = vadd.f32 0.0, %v2220
      %v2222 = vpop.f32.mrb[0].mxu0
      %v2223 = vpop.f32.mrb[0].mxu0
      %v2224 = vadd.f32 0.0, %v2223
      %v2225 = vpop.f32.mrb[0].mxu0
      %2226 = vmatprep.mubr.bf16.mxu0 0
      %2227 = vmatmul.mubr.bf16.gmra.mrb[0].mxu0 %v854
      %v2228 = vpop.f32.mrb[0].mxu0
      %v2229 = vadd.f32 0.0, %v2228
      %v2230 = vpop.f32.mrb[0].mxu0
      %v2231 = vpop.f32.mrb[0].mxu0
      %v2232 = vadd.f32 0.0, %v2231
      %v2233 = vpop.f32.mrb[0].mxu0
      %2234 = vmatprep.mubr.bf16.mxu0 0
      %2235 = vmatmul.mubr.bf16.gmra.mrb[0].mxu0 %v857
      %v2236 = vpop.f32.mrb[0].mxu0
      %v2237 = vadd.f32 0.0, %v2236
      %v2238 = vpop.f32.mrb[0].mxu0
      %v2239 = vpop.f32.mrb[0].mxu0
      %v2240 = vadd.f32 0.0, %v2239
      %v2241 = vpop.f32.mrb[0].mxu0
      %2242 = vmatprep.mubr.bf16.mxu0 0
      %2243 = vmatmul.mubr.bf16.gmra.mrb[0].mxu0 %v860
      %v2244 = vpop.f32.mrb[0].mxu0
      %v2245 = vadd.f32 0.0, %v2244
      %v2246 = vpop.f32.mrb[0].mxu0
      %v2247 = vpop.f32.mrb[0].mxu0
      %v2248 = vadd.f32 0.0, %v2247
      %v2249 = vpop.f32.mrb[0].mxu0
      %2250 = vmatprep.mubr.bf16.mxu0 0
      %2251 = vmatmul.mubr.bf16.gmra.mrb[0].mxu0 %v2143
      %v2252 = vpop.f32.mrb[0].mxu0
      %v2253 = vadd.f32 0.0, %v2252
      %v2254 = vpop.f32.mrb[0].mxu0
      %v2255 = vpop.f32.mrb[0].mxu0
      %v2256 = vadd.f32 0.0, %v2255
      %v2257 = vpop.f32.mrb[0].mxu0
      %2258 = vmatprep.mubr.bf16.mxu0 0
      %2259 = vmatmul.mubr.bf16.gmra.mrb[0].mxu0 %v2146
      %v2260 = vpop.f32.mrb[0].mxu0
      %v2261 = vadd.f32 0.0, %v2260
      %v2262 = vpop.f32.mrb[0].mxu0
      %v2263 = vpop.f32.mrb[0].mxu0
      %v2264 = vadd.f32 0.0, %v2263
      %v2265 = vpop.f32.mrb[0].mxu0
      %2266 = vmatprep.mubr.bf16.mxu0 0
      %2267 = vmatmul.mubr.bf16.gmra.mrb[0].mxu0 %v2149
      %v2268 = vpop.f32.mrb[0].mxu0
      %v2269 = vadd.f32 0.0, %v2268
      %v2270 = vpop.f32.mrb[0].mxu0
      %v2271 = vpop.f32.mrb[0].mxu0
      %v2272 = vadd.f32 0.0, %v2271
      %v2273 = vpop.f32.mrb[0].mxu0
      %2274 = vmatprep.mubr.bf16.mxu0 0
      %2275 = vmatmul.mubr.bf16.gmra.mrb[0].mxu0 %v2152
      %v2276 = vpop.f32.mrb[0].mxu0
      %v2277 = vadd.f32 0.0, %v2276
      %v2278 = vpop.f32.mrb[0].mxu0
      %v2279 = vpop.f32.mrb[0].mxu0
      %v2280 = vadd.f32 0.0, %v2279
      %v2281 = vpop.f32.mrb[0].mxu0
      %2282 = vdwg.mxu0
      %v2283 = vadd.f32 %v2101, %v2189
      %v2284 = vadd.f32 %v2102, %v2192
      %v2285 = vadd.f32 %v2103, %v2197
      %v2286 = vadd.f32 %v2104, %v2200
      %v2287 = vadd.f32 %v2105, %v2205
      %v2288 = vadd.f32 %v2106, %v2208
      %v2289 = vadd.f32 %v2107, %v2213
      %v2290 = vadd.f32 %v2108, %v2216
      %v2291 = vadd.f32 %v2109, %v2221
      %v2292 = vadd.f32 %v2110, %v2224
      %v2293 = vadd.f32 %v2111, %v2229
      %v2294 = vadd.f32 %v2112, %v2232
      %v2295 = vadd.f32 %v2113, %v2237
      %v2296 = vadd.f32 %v2114, %v2240
      %v2297 = vadd.f32 %v2115, %v2245
      %v2298 = vadd.f32 %v2116, %v2248
      %v2299 = vadd.f32 %v2117, %v2253
      %v2300 = vadd.f32 %v2118, %v2256
      %v2301 = vadd.f32 %v2119, %v2261
      %v2302 = vadd.f32 %v2120, %v2264
      %v2303 = vadd.f32 %v2121, %v2269
      %v2304 = vadd.f32 %v2122, %v2272
      %v2305 = vadd.f32 %v2123, %v2277
      %v2306 = vadd.f32 %v2124, %v2280
      %v2307 = vld [vmem:[%s2] sm:$0x1]
      %v2309 = vlaneseq
      %v2310 = vshrl.u32 %v2309, 7
      %v2311 = vsub.s32 0, %v2310
      %v2312 = vrot.slane %v2307, %v2311
      %v2314 = vadd.f32 %v2283, %v2312
      %v2315 = vadd.f32 %v2284, %v2312
      %v2316 = vadd.f32 %v2285, %v2312
      %v2317 = vadd.f32 %v2286, %v2312
      %v2318 = vadd.f32 %v2287, %v2312
      %v2319 = vadd.f32 %v2288, %v2312
      %v2320 = vadd.f32 %v2289, %v2312
      %v2321 = vadd.f32 %v2290, %v2312
      %v2322 = vadd.f32 %v2291, %v2312
      %v2323 = vadd.f32 %v2292, %v2312
      %v2324 = vadd.f32 %v2293, %v2312
      %v2325 = vadd.f32 %v2294, %v2312
      %v2326 = vadd.f32 %v2295, %v2312
      %v2327 = vadd.f32 %v2296, %v2312
      %v2328 = vadd.f32 %v2297, %v2312
      %v2329 = vadd.f32 %v2298, %v2312
      %v2330 = vadd.f32 %v2299, %v2312
      %v2331 = vadd.f32 %v2300, %v2312
      %v2332 = vadd.f32 %v2301, %v2312
      %v2333 = vadd.f32 %v2302, %v2312
      %v2334 = vadd.f32 %v2303, %v2312
      %v2335 = vadd.f32 %v2304, %v2312
      %v2336 = vadd.f32 %v2305, %v2312
      %v2337 = vadd.f32 %v2306, %v2312
      %v2338 = vxor.u32 %v2314, 2147483648
      %v2339 = vxor.u32 %v2315, 2147483648
      %v2340 = vxor.u32 %v2316, 2147483648
      %v2341 = vxor.u32 %v2317, 2147483648
      %v2342 = vxor.u32 %v2318, 2147483648
      %v2343 = vxor.u32 %v2319, 2147483648
      %v2344 = vxor.u32 %v2320, 2147483648
      %v2345 = vxor.u32 %v2321, 2147483648
      %v2346 = vxor.u32 %v2322, 2147483648
      %v2347 = vxor.u32 %v2323, 2147483648
      %v2348 = vxor.u32 %v2324, 2147483648
      %v2349 = vxor.u32 %v2325, 2147483648
      %v2350 = vxor.u32 %v2326, 2147483648
      %v2351 = vxor.u32 %v2327, 2147483648
      %v2352 = vxor.u32 %v2328, 2147483648
      %v2353 = vxor.u32 %v2329, 2147483648
      %v2354 = vxor.u32 %v2330, 2147483648
      %v2355 = vxor.u32 %v2331, 2147483648
      %v2356 = vxor.u32 %v2332, 2147483648
      %v2357 = vxor.u32 %v2333, 2147483648
      %v2358 = vxor.u32 %v2334, 2147483648
      %v2359 = vxor.u32 %v2335, 2147483648
      %v2360 = vxor.u32 %v2336, 2147483648
      %v2361 = vxor.u32 %v2337, 2147483648
      %v2362 = vmul.f32 %v2338, 1.442695
      %v2363 = vpow.pop %v2362
      %v2364 = vmul.f32 %v2339, 1.442695
      %v2365 = vpow.pop %v2364
      %v2366 = vmul.f32 %v2340, 1.442695
      %v2367 = vpow.pop %v2366
      %v2368 = vmul.f32 %v2341, 1.442695
      %v2369 = vpow.pop %v2368
      %v2370 = vmul.f32 %v2342, 1.442695
      %v2371 = vpow.pop %v2370
      %v2372 = vmul.f32 %v2343, 1.442695
      %v2373 = vpow.pop %v2372
      %v2374 = vmul.f32 %v2344, 1.442695
      %v2375 = vpow.pop %v2374
      %v2376 = vmul.f32 %v2345, 1.442695
      %v2377 = vpow.pop %v2376
      %v2378 = vmul.f32 %v2346, 1.442695
      %v2379 = vpow.pop %v2378
      %v2380 = vmul.f32 %v2347, 1.442695
      %v2381 = vpow.pop %v2380
      %v2382 = vmul.f32 %v2348, 1.442695
      %v2383 = vpow.pop %v2382
      %v2384 = vmul.f32 %v2349, 1.442695
      %v2385 = vpow.pop %v2384
      %v2386 = vmul.f32 %v2350, 1.442695
      %v2387 = vpow.pop %v2386
      %v2388 = vmul.f32 %v2351, 1.442695
      %v2389 = vpow.pop %v2388
      %v2390 = vmul.f32 %v2352, 1.442695
      %v2391 = vpow.pop %v2390
      %v2392 = vmul.f32 %v2353, 1.442695
      %v2393 = vpow.pop %v2392
      %v2394 = vmul.f32 %v2354, 1.442695
      %v2395 = vpow.pop %v2394
      %v2396 = vmul.f32 %v2355, 1.442695
      %v2397 = vpow.pop %v2396
      %v2398 = vmul.f32 %v2356, 1.442695
      %v2399 = vpow.pop %v2398
      %v2400 = vmul.f32 %v2357, 1.442695
      %v2401 = vpow.pop %v2400
      %v2402 = vmul.f32 %v2358, 1.442695
      %v2403 = vpow.pop %v2402
      %v2404 = vmul.f32 %v2359, 1.442695
      %v2405 = vpow.pop %v2404
      %v2406 = vmul.f32 %v2360, 1.442695
      %v2407 = vpow.pop %v2406
      %v2408 = vmul.f32 %v2361, 1.442695
      %v2409 = vpow.pop %v2408
      %v2410 = vadd.f32 %v2363, 1.0
      %v2411 = vadd.f32 %v2365, 1.0
      %v2412 = vadd.f32 %v2367, 1.0
      %v2413 = vadd.f32 %v2369, 1.0
      %v2414 = vadd.f32 %v2371, 1.0
      %v2415 = vadd.f32 %v2373, 1.0
      %v2416 = vadd.f32 %v2375, 1.0
      %v2417 = vadd.f32 %v2377, 1.0
      %v2418 = vadd.f32 %v2379, 1.0
      %v2419 = vadd.f32 %v2381, 1.0
      %v2420 = vadd.f32 %v2383, 1.0
      %v2421 = vadd.f32 %v2385, 1.0
      %v2422 = vadd.f32 %v2387, 1.0
      %v2423 = vadd.f32 %v2389, 1.0
      %v2424 = vadd.f32 %v2391, 1.0
      %v2425 = vadd.f32 %v2393, 1.0
      %v2426 = vadd.f32 %v2395, 1.0
      %v2427 = vadd.f32 %v2397, 1.0
      %v2428 = vadd.f32 %v2399, 1.0
      %v2429 = vadd.f32 %v2401, 1.0
      %v2430 = vadd.f32 %v2403, 1.0
      %v2431 = vadd.f32 %v2405, 1.0
      %v2432 = vadd.f32 %v2407, 1.0
      %v2433 = vadd.f32 %v2409, 1.0
      %v2434 = vrcp.pop %v2410
      %v2435 = vmul.f32 1.0, %v2434
      %v2436 = vrcp.pop %v2411
      %v2437 = vmul.f32 1.0, %v2436
      %v2438 = vrcp.pop %v2412
      %v2439 = vmul.f32 1.0, %v2438
      %v2440 = vrcp.pop %v2413
      %v2441 = vmul.f32 1.0, %v2440
      %v2442 = vrcp.pop %v2414
      %v2443 = vmul.f32 1.0, %v2442
      %v2444 = vrcp.pop %v2415
      %v2445 = vmul.f32 1.0, %v2444
      %v2446 = vrcp.pop %v2416
      %v2447 = vmul.f32 1.0, %v2446
      %v2448 = vrcp.pop %v2417
      %v2449 = vmul.f32 1.0, %v2448
      %v2450 = vrcp.pop %v2418
      %v2451 = vmul.f32 1.0, %v2450
      %v2452 = vrcp.pop %v2419
      %v2453 = vmul.f32 1.0, %v2452
      %v2454 = vrcp.pop %v2420
      %v2455 = vmul.f32 1.0, %v2454
      %v2456 = vrcp.pop %v2421
      %v2457 = vmul.f32 1.0, %v2456
      %v2458 = vrcp.pop %v2422
      %v2459 = vmul.f32 1.0, %v2458
      %v2460 = vrcp.pop %v2423
      %v2461 = vmul.f32 1.0, %v2460
      %v2462 = vrcp.pop %v2424
      %v2463 = vmul.f32 1.0, %v2462
      %v2464 = vrcp.pop %v2425
      %v2465 = vmul.f32 1.0, %v2464
      %v2466 = vrcp.pop %v2426
      %v2467 = vmul.f32 1.0, %v2466
      %v2468 = vrcp.pop %v2427
      %v2469 = vmul.f32 1.0, %v2468
      %v2470 = vrcp.pop %v2428
      %v2471 = vmul.f32 1.0, %v2470
      %v2472 = vrcp.pop %v2429
      %v2473 = vmul.f32 1.0, %v2472
      %v2474 = vrcp.pop %v2430
      %v2475 = vmul.f32 1.0, %v2474
      %v2476 = vrcp.pop %v2431
      %v2477 = vmul.f32 1.0, %v2476
      %v2478 = vrcp.pop %v2432
      %v2479 = vmul.f32 1.0, %v2478
      %v2480 = vrcp.pop %v2433
      %v2481 = vmul.f32 1.0, %v2480
      %v2482 = vmul.f32 %v2314, %v2435
      %v2483 = vmul.f32 %v2315, %v2437
      %v2484 = vmul.f32 %v2316, %v2439
      %v2485 = vmul.f32 %v2317, %v2441
      %v2486 = vmul.f32 %v2318, %v2443
      %v2487 = vmul.f32 %v2319, %v2445
      %v2488 = vmul.f32 %v2320, %v2447
      %v2489 = vmul.f32 %v2321, %v2449
      %v2490 = vmul.f32 %v2322, %v2451
      %v2491 = vmul.f32 %v2323, %v2453
      %v2492 = vmul.f32 %v2324, %v2455
      %v2493 = vmul.f32 %v2325, %v2457
      %v2494 = vmul.f32 %v2326, %v2459
      %v2495 = vmul.f32 %v2327, %v2461
      %v2496 = vmul.f32 %v2328, %v2463
      %v2497 = vmul.f32 %v2329, %v2465
      %v2498 = vmul.f32 %v2330, %v2467
      %v2499 = vmul.f32 %v2331, %v2469
      %v2500 = vmul.f32 %v2332, %v2471
      %v2501 = vmul.f32 %v2333, %v2473
      %v2502 = vmul.f32 %v2334, %v2475
      %v2503 = vmul.f32 %v2335, %v2477
      %v2504 = vmul.f32 %v2336, %v2479
      %v2505 = vmul.f32 %v2337, %v2481
      %v2506 = vpack.c.bf16 %v2483, %v2482
      %v2507 = vpack.c.bf16 %v2485, %v2484
      %v2508 = vpack.c.bf16 %v2487, %v2486
      %v2509 = vpack.c.bf16 %v2489, %v2488
      %v2510 = vpack.c.bf16 %v2491, %v2490
      %v2511 = vpack.c.bf16 %v2493, %v2492
      %v2512 = vpack.c.bf16 %v2495, %v2494
      %v2513 = vpack.c.bf16 %v2497, %v2496
      %v2514 = vpack.c.bf16 %v2499, %v2498
      %v2515 = vpack.c.bf16 %v2501, %v2500
      %v2516 = vpack.c.bf16 %v2503, %v2502
      %v2517 = vpack.c.bf16 %v2505, %v2504
      %v2518 = vld [vmem:[%s3] sm:$0xf]
      %v2519 = vld [vmem:[%s3 + $0x4] sm:$0xf]
      %v2520 = vld [vmem:[%s3 + $0x8] sm:$0xf]
      %v2521 = vld [vmem:[%s3 + $0xc] sm:$0xf]
      %v2522 = vld [vmem:[%s4] sm:$0x1]
      %v2524 = vlaneseq
      %v2525 = vshrl.u32 %v2524, 7
      %v2526 = vsub.s32 0, %v2525
      %v2527 = vrot.slane %v2522, %v2526
      %v2533 = vunpack.c.l.b16 %v2518
      %v2534 = vunpack.c.l.b16 %v2519
      %v2535 = vunpack.c.l.b16 %v2520
      %v2536 = vunpack.c.l.b16 %v2521
      %v2537 = vpack.c.b16 %v2534, %v2533
      %v2538 = vpack.c.b16 %v2536, %v2535
      %vm2541 = vcmask 261120
      %v2543 = vsel %vm2541, %v2506, 0
      %v2546 = vsel %vm2541, %v2507, 0
      %v2549 = vsel %vm2541, %v2508, 0
      %v2552 = vsel %vm2541, %v2509, 0
      %v2555 = vsel %vm2541, %v2510, 0
      %v2558 = vsel %vm2541, %v2511, 0
      %v2561 = vsel %vm2541, %v2512, 0
      %v2564 = vsel %vm2541, %v2513, 0
      %v2567 = vsel %vm2541, %v2514, 0
      %v2570 = vsel %vm2541, %v2515, 0
      %v2573 = vsel %vm2541, %v2516, 0
      %v2576 = vsel %vm2541, %v2517, 0
      %2578 = vmatprep.subr.bf16.mxu0 0
      %2579 = vmatpush1.bf16.msra.mxu0 %v2537
      %2580 = vmatprep.subr.bf16.mxu0 0
      %2581 = vmatpush1.bf16.msra.mxu0 %v2538
      %2582 = vmatprep.subr.bf16.mxu0 0
      %2583 = vmatpush1.bf16.msra.mxu0 0
      %2584 = vmatprep.subr.bf16.mxu0 0
      %2585 = vmatpush1.bf16.msra.mxu0 0
      %2586 = vmatprep.subr.bf16.mxu0 0
      %2587 = vmatpush1.bf16.msra.mxu0 0
      %2588 = vmatprep.subr.bf16.mxu0 0
      %2589 = vmatpush1.bf16.msra.mxu0 0
      %2590 = vmatprep.subr.bf16.mxu0 0
      %2591 = vmatpush1.bf16.msra.mxu0 0
      %2592 = vmatprep.subr.bf16.mxu0 0
      %2593 = vmatpush1.bf16.msra.mxu0 0
      %2594 = vmatprep.subr.bf16.mxu0 0
      %2595 = vmatpush1.bf16.msra.mxu0 0
      %2596 = vmatprep.subr.bf16.mxu0 0
      %2597 = vmatpush1.bf16.msra.mxu0 0
      %2598 = vmatprep.subr.bf16.mxu0 0
      %2599 = vmatpush1.bf16.msra.mxu0 0
      %2600 = vmatprep.subr.bf16.mxu0 0
      %2601 = vmatpush1.bf16.msra.mxu0 0
      %2602 = vmatprep.subr.bf16.mxu0 0
      %2603 = vmatpush1.bf16.msra.mxu0 0
      %2604 = vmatprep.subr.bf16.mxu0 0
      %2605 = vmatpush1.bf16.msra.mxu0 0
      %2606 = vmatprep.subr.bf16.mxu0 0
      %2607 = vmatpush1.bf16.msra.mxu0 0
      %2608 = vmatprep.subr.bf16.mxu0 0
      %2609 = vmatpush1.bf16.msra.mxu0 0
      %2610 = vmatprep.mubr.bf16.mxu0 0
      %2611 = vmatmul.mubr.bf16.gmra.mrb[0].mxu0 %v2543
      %v2612 = vpop.f32.mrb[0].mxu0
      %v2613 = vadd.f32 %v2527, %v2612
      %v2614 = vpop.f32.mrb[0].mxu0
      %v2615 = vpop.f32.mrb[0].mxu0
      %v2616 = vadd.f32 %v2527, %v2615
      %v2617 = vpop.f32.mrb[0].mxu0
      %2618 = vmatprep.mubr.bf16.mxu0 0
      %2619 = vmatmul.mubr.bf16.gmra.mrb[0].mxu0 %v2546
      %v2620 = vpop.f32.mrb[0].mxu0
      %v2621 = vadd.f32 %v2527, %v2620
      %v2622 = vpop.f32.mrb[0].mxu0
      %v2623 = vpop.f32.mrb[0].mxu0
      %v2624 = vadd.f32 %v2527, %v2623
      %v2625 = vpop.f32.mrb[0].mxu0
      %2626 = vmatprep.mubr.bf16.mxu0 0
      %2627 = vmatmul.mubr.bf16.gmra.mrb[0].mxu0 %v2549
      %v2628 = vpop.f32.mrb[0].mxu0
      %v2629 = vadd.f32 %v2527, %v2628
      %v2630 = vpop.f32.mrb[0].mxu0
      %v2631 = vpop.f32.mrb[0].mxu0
      %v2632 = vadd.f32 %v2527, %v2631
      %v2633 = vpop.f32.mrb[0].mxu0
      %2634 = vmatprep.mubr.bf16.mxu0 0
      %2635 = vmatmul.mubr.bf16.gmra.mrb[0].mxu0 %v2552
      %v2636 = vpop.f32.mrb[0].mxu0
      %v2637 = vadd.f32 %v2527, %v2636
      %v2638 = vpop.f32.mrb[0].mxu0
      %v2639 = vpop.f32.mrb[0].mxu0
      %v2640 = vadd.f32 %v2527, %v2639
      %v2641 = vpop.f32.mrb[0].mxu0
      %2642 = vmatprep.mubr.bf16.mxu0 0
      %2643 = vmatmul.mubr.bf16.gmra.mrb[0].mxu0 %v2555
      %v2644 = vpop.f32.mrb[0].mxu0
      %v2645 = vadd.f32 %v2527, %v2644
      %v2646 = vpop.f32.mrb[0].mxu0
      %v2647 = vpop.f32.mrb[0].mxu0
      %v2648 = vadd.f32 %v2527, %v2647
      %v2649 = vpop.f32.mrb[0].mxu0
      %2650 = vmatprep.mubr.bf16.mxu0 0
      %2651 = vmatmul.mubr.bf16.gmra.mrb[0].mxu0 %v2558
      %v2652 = vpop.f32.mrb[0].mxu0
      %v2653 = vadd.f32 %v2527, %v2652
      %v2654 = vpop.f32.mrb[0].mxu0
      %v2655 = vpop.f32.mrb[0].mxu0
      %v2656 = vadd.f32 %v2527, %v2655
      %v2657 = vpop.f32.mrb[0].mxu0
      %2658 = vmatprep.mubr.bf16.mxu0 0
      %2659 = vmatmul.mubr.bf16.gmra.mrb[0].mxu0 %v2561
      %v2660 = vpop.f32.mrb[0].mxu0
      %v2661 = vadd.f32 %v2527, %v2660
      %v2662 = vpop.f32.mrb[0].mxu0
      %v2663 = vpop.f32.mrb[0].mxu0
      %v2664 = vadd.f32 %v2527, %v2663
      %v2665 = vpop.f32.mrb[0].mxu0
      %2666 = vmatprep.mubr.bf16.mxu0 0
      %2667 = vmatmul.mubr.bf16.gmra.mrb[0].mxu0 %v2564
      %v2668 = vpop.f32.mrb[0].mxu0
      %v2669 = vadd.f32 %v2527, %v2668
      %v2670 = vpop.f32.mrb[0].mxu0
      %v2671 = vpop.f32.mrb[0].mxu0
      %v2672 = vadd.f32 %v2527, %v2671
      %v2673 = vpop.f32.mrb[0].mxu0
      %2674 = vmatprep.mubr.bf16.mxu0 0
      %2675 = vmatmul.mubr.bf16.gmra.mrb[0].mxu0 %v2567
      %v2676 = vpop.f32.mrb[0].mxu0
      %v2677 = vadd.f32 %v2527, %v2676
      %v2678 = vpop.f32.mrb[0].mxu0
      %v2679 = vpop.f32.mrb[0].mxu0
      %v2680 = vadd.f32 %v2527, %v2679
      %v2681 = vpop.f32.mrb[0].mxu0
      %2682 = vmatprep.mubr.bf16.mxu0 0
      %2683 = vmatmul.mubr.bf16.gmra.mrb[0].mxu0 %v2570
      %v2684 = vpop.f32.mrb[0].mxu0
      %v2685 = vadd.f32 %v2527, %v2684
      %v2686 = vpop.f32.mrb[0].mxu0
      %v2687 = vpop.f32.mrb[0].mxu0
      %v2688 = vadd.f32 %v2527, %v2687
      %v2689 = vpop.f32.mrb[0].mxu0
      %2690 = vmatprep.mubr.bf16.mxu0 0
      %2691 = vmatmul.mubr.bf16.gmra.mrb[0].mxu0 %v2573
      %v2692 = vpop.f32.mrb[0].mxu0
      %v2693 = vadd.f32 %v2527, %v2692
      %v2694 = vpop.f32.mrb[0].mxu0
      %v2695 = vpop.f32.mrb[0].mxu0
      %v2696 = vadd.f32 %v2527, %v2695
      %v2697 = vpop.f32.mrb[0].mxu0
      %2698 = vmatprep.mubr.bf16.mxu0 0
      %2699 = vmatmul.mubr.bf16.gmra.mrb[0].mxu0 %v2576
      %v2700 = vpop.f32.mrb[0].mxu0
      %v2701 = vadd.f32 %v2527, %v2700
      %v2702 = vpop.f32.mrb[0].mxu0
      %v2703 = vpop.f32.mrb[0].mxu0
      %v2704 = vadd.f32 %v2527, %v2703
      %v2705 = vpop.f32.mrb[0].mxu0
      %2706 = vdwg.mxu0
      %v2707 = vpack.c.bf16 %v2616, %v2613
      %v2708 = vpack.c.bf16 %v2624, %v2621
      %v2709 = vpack.c.bf16 %v2632, %v2629
      %v2710 = vpack.c.bf16 %v2640, %v2637
      %v2711 = vpack.c.bf16 %v2648, %v2645
      %v2712 = vpack.c.bf16 %v2656, %v2653
      %v2713 = vpack.c.bf16 %v2664, %v2661
      %v2714 = vpack.c.bf16 %v2672, %v2669
      %v2715 = vpack.c.bf16 %v2680, %v2677
      %v2716 = vpack.c.bf16 %v2688, %v2685
      %v2717 = vpack.c.bf16 %v2696, %v2693
      %v2718 = vpack.c.bf16 %v2704, %v2701
      %v2731 = vunpack.c.l.b16 %v2707
      %v2732 = vunpack.c.h.b16 %v2707
      %v2733 = vunpack.c.l.b16 %v2708
      %v2734 = vunpack.c.h.b16 %v2708
      %v2735 = vunpack.c.l.b16 %v2709
      %v2736 = vunpack.c.h.b16 %v2709
      %v2737 = vunpack.c.l.b16 %v2710
      %v2738 = vunpack.c.h.b16 %v2710
      %v2739 = vunpack.c.l.b16 %v2711
      %v2740 = vunpack.c.h.b16 %v2711
      %v2741 = vunpack.c.l.b16 %v2712
      %v2742 = vunpack.c.h.b16 %v2712
      %v2743 = vunpack.c.l.b16 %v2713
      %v2744 = vunpack.c.h.b16 %v2713
      %v2745 = vunpack.c.l.b16 %v2714
      %v2746 = vunpack.c.h.b16 %v2714
      %v2747 = vunpack.c.l.b16 %v2715
      %v2748 = vunpack.c.h.b16 %v2715
      %v2749 = vunpack.c.l.b16 %v2716
      %v2750 = vunpack.c.h.b16 %v2716
      %v2751 = vunpack.c.l.b16 %v2717
      %v2752 = vunpack.c.h.b16 %v2717
      %v2753 = vunpack.c.l.b16 %v2718
      %v2754 = vunpack.c.h.b16 %v2718
      %v2755 = vpack.c.b16 %v2731, %v2731
      %v2756 = vpack.c.b16 %v2732, %v2732
      %v2757 = vpack.c.b16 %v2733, %v2733
      %v2758 = vpack.c.b16 %v2734, %v2734
      %v2759 = vpack.c.b16 %v2735, %v2735
      %v2760 = vpack.c.b16 %v2736, %v2736
      %v2761 = vpack.c.b16 %v2737, %v2737
      %v2762 = vpack.c.b16 %v2738, %v2738
      %v2763 = vpack.c.b16 %v2739, %v2739
      %v2764 = vpack.c.b16 %v2740, %v2740
      %v2765 = vpack.c.b16 %v2741, %v2741
      %v2766 = vpack.c.b16 %v2742, %v2742
      %v2767 = vpack.c.b16 %v2743, %v2743
      %v2768 = vpack.c.b16 %v2744, %v2744
      %v2769 = vpack.c.b16 %v2745, %v2745
      %v2770 = vpack.c.b16 %v2746, %v2746
      %v2771 = vpack.c.b16 %v2747, %v2747
      %v2772 = vpack.c.b16 %v2748, %v2748
      %v2773 = vpack.c.b16 %v2749, %v2749
      %v2774 = vpack.c.b16 %v2750, %v2750
      %v2775 = vpack.c.b16 %v2751, %v2751
      %v2776 = vpack.c.b16 %v2752, %v2752
      %v2777 = vpack.c.b16 %v2753, %v2753
      %v2778 = vpack.c.b16 %v2754, %v2754
      %2803 = vst [vmem:[%s260] sm:$0xf] %v2755
      %2804 = vst [vmem:[%s260 + $0x4] sm:$0xf] %v2756
      %2805 = vst [vmem:[%s260 + $0x8] sm:$0xf] %v2757
      %2806 = vst [vmem:[%s260 + $0xc] sm:$0xf] %v2758
      %2807 = vst [vmem:[%s260 + $0x10] sm:$0xf] %v2759
      %2808 = vst [vmem:[%s260 + $0x14] sm:$0xf] %v2760
      %2809 = vst [vmem:[%s260 + $0x18] sm:$0xf] %v2761
      %2810 = vst [vmem:[%s260 + $0x1c] sm:$0xf] %v2762
      %2811 = vst [vmem:[%s260 + $0x20] sm:$0xf] %v2763
      %2812 = vst [vmem:[%s260 + $0x24] sm:$0xf] %v2764
      %2813 = vst [vmem:[%s260 + $0x28] sm:$0xf] %v2765
      %2814 = vst [vmem:[%s260 + $0x2c] sm:$0xf] %v2766
      %2815 = vst [vmem:[%s260 + $0x30] sm:$0xf] %v2767
      %2816 = vst [vmem:[%s260 + $0x34] sm:$0xf] %v2768
      %2817 = vst [vmem:[%s260 + $0x38] sm:$0xf] %v2769
      %2818 = vst [vmem:[%s260 + $0x3c] sm:$0xf] %v2770
      %2819 = vst [vmem:[%s260 + $0x40] sm:$0xf] %v2771
      %2820 = vst [vmem:[%s260 + $0x44] sm:$0xf] %v2772
      %2821 = vst [vmem:[%s260 + $0x48] sm:$0xf] %v2773
      %2822 = vst [vmem:[%s260 + $0x4c] sm:$0xf] %v2774
      %2823 = vst [vmem:[%s260 + $0x50] sm:$0xf] %v2775
      %2824 = vst [vmem:[%s260 + $0x54] sm:$0xf] %v2776
      %2825 = vst [vmem:[%s260 + $0x58] sm:$0xf] %v2777
      %2826 = vst [vmem:[%s260 + $0x5c] sm:$0xf] %v2778
      %s2827 = smul.u32 24, %s21
      %p2828 = scmp.lt.s32.totalorder %s20, 1
      %s2829 = scalar_select %p2828, %s20, 1
      %p2830 = scmp.lt.s32.totalorder %s2827, 47
      %s2831 = scalar_select %p2830, %s2827, 47
      %s2832 = smul.addr %s2829, 48
      %s2833 = sadd.s32 %s2831, %s2832
      %s2834 = smul.addr %s2833, 4
      %s2835 = scalar_lea.vmem %s5, %s2834
      // Predicated region
      $region41: #{proto_forward.2} parent=39 // pred_check
        %p2836 = pneg %p160
      $region42: #{proto_forward.2} parent=39 // pred_check_branch
        %2838 = sbr.rel (%p2836) target = $region44
      $region43: #{proto_forward.2} parent=39 // pred_region
        %s2839 = smul.u32 24, %s21
      $region44: #{proto_forward.2} parent=39 // pred_fallthru
        _
    $region40: #{proto_forward.2} parent=5 // pred_fallthru
      _
    %p2840 = scmp.le.s32.totalorder 2, %s11
    // Predicated region
    $region45: #{proto_forward.2} parent=5 // pred_check
      %p2841 = pneg %p2840
    $region46: #{proto_forward.2} parent=5 // pred_check_branch
      %2843 = sbr.rel (%p2841) target = $region48
    $region47: #{proto_forward.2} parent=5 // pred_region
      %s2844 = ssub.s32 %s11, 2
      // Predicated region
      $region49: #{proto_forward.2} parent=47 // pred_check
        %p2845 = pneg %p166
      $region50: #{proto_forward.2} parent=47 // pred_check_branch
        %2847 = sbr.rel (%p2845) target = $region52
      $region51: #{proto_forward.2} parent=47 // pred_region
        %s2848 = smul.u32 24, %s23
        %p2849 = scmp.lt.s32.totalorder %s22, 1
        %s2850 = scalar_select %p2849, %s22, 1
        %p2851 = scmp.lt.s32.totalorder %s2848, 47
        %s2852 = scalar_select %p2851, %s2848, 47
        %s2853 = smul.addr %s2850, 48
        %s2854 = sadd.s32 %s2852, %s2853
        %s2855 = smul.addr %s2854, 4
        %s2856 = scalar_lea.vmem %s5, %s2855
      $region52: #{proto_forward.2} parent=47 // pred_fallthru
        _
    $region48: #{proto_forward.2} parent=5 // pred_fallthru
      _
  $region6: #{proto_forward.2} parent=0 // loop_footer
    %s15 = sadd.s32 1, %s11
  $region7: #{proto_forward.2} parent=0 // loop_footer_branch
    %10 = sbr.rel target = $region3
  $region8: #{proto_forward.2} parent=0 // loop_exit
    _

// kernel: proto_forward.3
$region0: #{proto_forward.3}
  #allocation0 [shape = 'u32[]', space=smem, size = 0x4, offset = 0x4, fixed_abs, tag = 'smem constant byte address 0x4 - core index']
  #allocation1 [shape = 'u32[144,128]{1,0:T(1,128)}', space=vmem, size = 0x12000, scoped, tag = 'internal scratch']
  %s0 = inlined_call_operand.vmem [shape: bf16[2,2,19,40,32], index: 0, kind: input, shape index: {}]
  %s1 = inlined_call_operand.vmem [shape: bf16[9,32,32], index: 1, kind: input, shape index: {}]
  %s2 = inlined_call_operand.vmem [shape: f32[1,32], index: 2, kind: input, shape index: {}]
  %s3 = inlined_call_operand.vmem [shape: bf16[32,32], index: 3, kind: input, shape index: {}]
  %s4 = inlined_call_operand.vmem [shape: f32[1,32], index: 4, kind: input, shape index: {}]
  %s5 = inlined_call_operand.vmem [shape: f32[2,1280,32], index: 5, kind: output, shape index: {}]
  %s6 = sld [smem:[#allocation0]]
  $region53: #{proto_forward.3} parent=0
    _
  %s8 = ssub.s32 1, %s6
  %s9 = scalar_select 0, %s8, %s6
  loop: start=0, step=1, limit=6
  $region2: #{proto_forward.3} parent=0 // loop_pre_header
    _
  $region3: #{proto_forward.3} parent=0 // loop_header
    %s11 = sphi 0, %s15
    %p12 = scmp.ge.s32.totalorder %s11, 6
    %s18 = sphi 0, %s30
    %s19 = sphi 0, %s26
    %s20 = sphi 0, %s18
    %s21 = sphi 0, %s19
    %s22 = sphi 0, %s20
    %s23 = sphi 0, %s21
    %s35 = sphi 0, %s37
    %s38 = sphi 0, %s35
    %s39 = sphi 0, %s38
    %s55 = sphi 0, %s39
    %s59 = sphi 0, %s59
    %s61 = sphi 0, %s59
    %s62 = sphi 0, %s61
    %s76 = sphi 0, %s62
    %s80 = sphi 0, %s80
    %s82 = sphi 0, %s80
    %s83 = sphi 0, %s82
    %s97 = sphi 0, %s83
    %s101 = sphi 0, %s101
    %s103 = sphi 0, %s101
    %s104 = sphi 0, %s103
    %s118 = sphi 0, %s104
    %s122 = sphi 0, %s122
    %s124 = sphi 0, %s122
    %s125 = sphi 0, %s124
    %s139 = sphi 0, %s125
    %s147 = sphi 0, %s149
    %s150 = sphi 0, %s147
    %s151 = sphi 0, %s150
    %s167 = sphi 0, %s151
  $region4: #{proto_forward.3} parent=0 // loop_header_branch
    %14 = sbr.rel (%p12) target = $region8
  $region5: #{proto_forward.3} parent=0 // loop_body
    %s16 = ssub.s32 %s11, 1
    %s17 = ssub.s32 %s11, 2
    %s24 = sadd.s32 1, %s19
    %p25 = scmp.ge.s32.totalorder %s24, 2
    %s26 = scalar_select %p25, 0, %s24
    %s27 = sadd.s32 1, %s18
    %s28 = scalar_select %p25, %s27, %s18
    %p29 = scmp.ge.s32.totalorder %s28, 2
    %s30 = scalar_select %p29, 0, %s28
    %s31 = ssub.s32 %s18, %s30
    %s32 = ssub.s32 %s19, %s26
    %s33 = sor.u32 %s31, %s32
    %p34 = scmp.eq.s32.totalorder %s33, 0
    %s36 = sadd.s32 %s35, 1
    %s37 = scalar_select %p34, %s35, %s36
    %p40 = pneg %p34
    %p41 = scmp.eq.s32.totalorder %s11, 3
    %p42 = por %p40, %p41
    %p43 = scmp.ne.s32.totalorder %s35, %s38
    %p44 = scmp.eq.s32.totalorder %s11, 0
    %p45 = por %p43, %p44
    %p46 = scmp.ne.s32.totalorder %s35, %s38
    %p47 = scmp.eq.s32.totalorder %s16, 3
    %p48 = por %p46, %p47
    %p49 = scmp.ne.s32.totalorder %s38, %s39
    %p50 = scmp.eq.s32.totalorder %s16, 0
    %p51 = por %p49, %p50
    %p52 = scmp.ne.s32.totalorder %s38, %s39
    %p53 = scmp.eq.s32.totalorder %s17, 3
    %p54 = por %p52, %p53
    %p56 = scmp.ne.s32.totalorder %s39, %s55
    %p57 = scmp.eq.s32.totalorder %s17, 0
    %p58 = por %p56, %p57
    %s60 = sadd.s32 %s59, 1
    %p63 = scmp.eq.s32.totalorder %s11, 3
    %p64 = scmp.ne.s32.totalorder %s59, %s61
    %p65 = scmp.eq.s32.totalorder %s11, 0
    %p66 = por %p64, %p65
    %p67 = scmp.ne.s32.totalorder %s59, %s61
    %p68 = scmp.eq.s32.totalorder %s16, 3
    %p69 = por %p67, %p68
    %p70 = scmp.ne.s32.totalorder %s61, %s62
    %p71 = scmp.eq.s32.totalorder %s16, 0
    %p72 = por %p70, %p71
    %p73 = scmp.ne.s32.totalorder %s61, %s62
    %p74 = scmp.eq.s32.totalorder %s17, 3
    %p75 = por %p73, %p74
    %p77 = scmp.ne.s32.totalorder %s62, %s76
    %p78 = scmp.eq.s32.totalorder %s17, 0
    %p79 = por %p77, %p78
    %s81 = sadd.s32 %s80, 1
    %p84 = scmp.eq.s32.totalorder %s11, 3
    %p85 = scmp.ne.s32.totalorder %s80, %s82
    %p86 = scmp.eq.s32.totalorder %s11, 0
    %p87 = por %p85, %p86
    %p88 = scmp.ne.s32.totalorder %s80, %s82
    %p89 = scmp.eq.s32.totalorder %s16, 3
    %p90 = por %p88, %p89
    %p91 = scmp.ne.s32.totalorder %s82, %s83
    %p92 = scmp.eq.s32.totalorder %s16, 0
    %p93 = por %p91, %p92
    %p94 = scmp.ne.s32.totalorder %s82, %s83
    %p95 = scmp.eq.s32.totalorder %s17, 3
    %p96 = por %p94, %p95
    %p98 = scmp.ne.s32.totalorder %s83, %s97
    %p99 = scmp.eq.s32.totalorder %s17, 0
    %p100 = por %p98, %p99
    %s102 = sadd.s32 %s101, 1
    %p105 = scmp.eq.s32.totalorder %s11, 3
    %p106 = scmp.ne.s32.totalorder %s101, %s103
    %p107 = scmp.eq.s32.totalorder %s11, 0
    %p108 = por %p106, %p107
    %p109 = scmp.ne.s32.totalorder %s101, %s103
    %p110 = scmp.eq.s32.totalorder %s16, 3
    %p111 = por %p109, %p110
    %p112 = scmp.ne.s32.totalorder %s103, %s104
    %p113 = scmp.eq.s32.totalorder %s16, 0
    %p114 = por %p112, %p113
    %p115 = scmp.ne.s32.totalorder %s103, %s104
    %p116 = scmp.eq.s32.totalorder %s17, 3
    %p117 = por %p115, %p116
    %p119 = scmp.ne.s32.totalorder %s104, %s118
    %p120 = scmp.eq.s32.totalorder %s17, 0
    %p121 = por %p119, %p120
    %s123 = sadd.s32 %s122, 1
    %p126 = scmp.eq.s32.totalorder %s11, 3
    %p127 = scmp.ne.s32.totalorder %s122, %s124
    %p128 = scmp.eq.s32.totalorder %s11, 0
    %p129 = por %p127, %p128
    %p130 = scmp.ne.s32.totalorder %s122, %s124
    %p131 = scmp.eq.s32.totalorder %s16, 3
    %p132 = por %p130, %p131
    %p133 = scmp.ne.s32.totalorder %s124, %s125
    %p134 = scmp.eq.s32.totalorder %s16, 0
    %p135 = por %p133, %p134
    %p136 = scmp.ne.s32.totalorder %s124, %s125
    %p137 = scmp.eq.s32.totalorder %s17, 3
    %p138 = por %p136, %p137
    %p140 = scmp.ne.s32.totalorder %s125, %s139
    %p141 = scmp.eq.s32.totalorder %s17, 0
    %p142 = por %p140, %p141
    %s143 = ssub.s32 %s18, %s30
    %s144 = ssub.s32 %s19, %s26
    %s145 = sor.u32 %s143, %s144
    %p146 = scmp.eq.s32.totalorder %s145, 0
    %s148 = sadd.s32 %s147, 1
    %s149 = scalar_select %p146, %s147, %s148
    %p152 = pneg %p146
    %p153 = scmp.eq.s32.totalorder %s11, 3
    %p154 = por %p152, %p153
    %p155 = scmp.ne.s32.totalorder %s147, %s150
    %p156 = scmp.eq.s32.totalorder %s11, 0
    %p157 = por %p155, %p156
    %p158 = scmp.ne.s32.totalorder %s147, %s150
    %p159 = scmp.eq.s32.totalorder %s16, 3
    %p160 = por %p158, %p159
    %p161 = scmp.ne.s32.totalorder %s150, %s151
    %p162 = scmp.eq.s32.totalorder %s16, 0
    %p163 = por %p161, %p162
    %p164 = scmp.ne.s32.totalorder %s150, %s151
    %p165 = scmp.eq.s32.totalorder %s17, 3
    %p166 = por %p164, %p165
    %p168 = scmp.ne.s32.totalorder %s151, %s167
    %p169 = scmp.eq.s32.totalorder %s17, 0
    %p170 = por %p168, %p169
    %p171 = scmp.le.s32.totalorder 1, %s11
    %p172 = scmp.lt.s32.totalorder %s11, 5
    %p173 = pnand %p171, %p172
    %p174 = pneg %p173
    // Predicated region
    $region9: #{proto_forward.3} parent=5 // pred_check
      _
    $region10: #{proto_forward.3} parent=5 // pred_check_branch
      %176 = sbr.rel (%p173) target = $region12
    $region11: #{proto_forward.3} parent=5 // pred_region
      %s177 = ssub.s32 %s11, 1
      // Predicated region
      $region13: #{proto_forward.3} parent=11 // pred_check
        %p178 = pneg %p72
      $region14: #{proto_forward.3} parent=11 // pred_check_branch
        %180 = sbr.rel (%p178) target = $region16
      $region15: #{proto_forward.3} parent=11 // pred_region
        _
      $region16: #{proto_forward.3} parent=11 // pred_fallthru
        _
      // Predicated region
      $region17: #{proto_forward.3} parent=11 // pred_check
        %p181 = pneg %p93
      $region18: #{proto_forward.3} parent=11 // pred_check_branch
        %183 = sbr.rel (%p181) target = $region20
      $region19: #{proto_forward.3} parent=11 // pred_region
        _
      $region20: #{proto_forward.3} parent=11 // pred_fallthru
        _
      // Predicated region
      $region21: #{proto_forward.3} parent=11 // pred_check
        %p184 = pneg %p114
      $region22: #{proto_forward.3} parent=11 // pred_check_branch
        %186 = sbr.rel (%p184) target = $region24
      $region23: #{proto_forward.3} parent=11 // pred_region
        _
      $region24: #{proto_forward.3} parent=11 // pred_fallthru
        _
      // Predicated region
      $region25: #{proto_forward.3} parent=11 // pred_check
        %p187 = pneg %p135
      $region26: #{proto_forward.3} parent=11 // pred_check_branch
        %189 = sbr.rel (%p187) target = $region28
      $region27: #{proto_forward.3} parent=11 // pred_region
        _
      $region28: #{proto_forward.3} parent=11 // pred_fallthru
        _
    $region12: #{proto_forward.3} parent=5 // pred_fallthru
      _
    %p190 = scmp.lt.s32.totalorder %s11, 4
    // Predicated region
    $region29: #{proto_forward.3} parent=5 // pred_check
      %p191 = pneg %p190
    $region30: #{proto_forward.3} parent=5 // pred_check_branch
      %193 = sbr.rel (%p191) target = $region32
    $region31: #{proto_forward.3} parent=5 // pred_region
      // Predicated region
      $region33: #{proto_forward.3} parent=31 // pred_check
        %p194 = pneg %p45
      $region34: #{proto_forward.3} parent=31 // pred_check_branch
        %196 = sbr.rel (%p194) target = $region36
      $region35: #{proto_forward.3} parent=31 // pred_region
        %p197 = scmp.lt.s32.totalorder %s18, 1
        %s198 = scalar_select %p197, %s18, 1
        %p199 = scmp.lt.s32.totalorder %s19, 1
        %s200 = scalar_select %p199, %s19, 1
        %s201 = smul.addr %s200, 95
        %s202 = smul.addr %s198, 190
        %s203 = sadd.s32 %s201, %s202
        %s204 = smul.addr %s203, 4
        %s205 = scalar_lea.vmem %s0, %s204
      $region36: #{proto_forward.3} parent=31 // pred_fallthru
        _
    $region32: #{proto_forward.3} parent=5 // pred_fallthru
      _
    %p206 = scmp.le.s32.totalorder 1, %s11
    %p207 = scmp.lt.s32.totalorder %s11, 5
    %p208 = pnand %p206, %p207
    %p209 = pneg %p208
    // Predicated region
    $region37: #{proto_forward.3} parent=5 // pred_check
      _
    $region38: #{proto_forward.3} parent=5 // pred_check_branch
      %211 = sbr.rel (%p208) target = $region40
    $region39: #{proto_forward.3} parent=5 // pred_region
      %s212 = ssub.s32 %s11, 1
      %p213 = scmp.lt.s32.totalorder %s20, 1
      %s214 = scalar_select %p213, %s20, 1
      %p215 = scmp.lt.s32.totalorder %s21, 1
      %s216 = scalar_select %p215, %s21, 1
      %s217 = smul.addr %s216, 95
      %s218 = smul.addr %s214, 190
      %s219 = sadd.s32 %s217, %s218
      %s220 = smul.addr %s219, 4
      %s221 = scalar_lea.vmem %s0, %s220
      %p222 = pneg %p51
      %p223 = pneg %p48
      %p224 = pneg %p72
      %p225 = pneg %p69
      %p226 = pneg %p93
      %p227 = pneg %p90
      %p228 = pneg %p114
      %p229 = pneg %p111
      %p230 = pneg %p135
      %p231 = pneg %p132
      %p232 = pneg %p163
      %p233 = pneg %p160
      %s234 = smul.u32 80, %s21
      %p235 = scmp.lt.s32.totalorder %s20, 1
      %s236 = scalar_select %p235, %s20, 1
      %p237 = scmp.lt.s32.totalorder %s234, 159
      %s238 = scalar_select %p237, %s234, 159
      %s239 = smul.addr %s236, 160
      %s240 = sadd.s32 %s238, %s239
      %s241 = smul.addr %s240, 8
      %s242 = scalar_lea.vmem %s5, %s241
      %p243 = scmp.lt.s32.totalorder %s20, 1
      %s244 = scalar_select %p243, %s20, 1
      %p245 = scmp.lt.s32.totalorder %s21, 1
      %s246 = scalar_select %p245, %s21, 1
      %s247 = smul.addr %s246, 95
      %s248 = smul.addr %s244, 190
      %s249 = sadd.s32 %s247, %s248
      %s250 = smul.addr %s249, 4
      %s251 = scalar_lea.vmem %s0, %s250
      %s252 = smul.u32 80, %s21
      %p253 = scmp.lt.s32.totalorder %s20, 1
      %s254 = scalar_select %p253, %s20, 1
      %p255 = scmp.lt.s32.totalorder %s252, 159
      %s256 = scalar_select %p255, %s252, 159
      %s257 = smul.addr %s254, 160
      %s258 = sadd.s32 %s256, %s257
      %s259 = smul.addr %s258, 8
      %s260 = scalar_lea.vmem %s5, %s259
      %s261 = smul.u32 80, %s21
      %v263 = vld [vmem:[%s251] sm:$0xf]
      %v264 = vld [vmem:[%s251 + $0x4] sm:$0xf]
      %v265 = vld [vmem:[%s251 + $0x8] sm:$0xf]
      %v266 = vld [vmem:[%s251 + $0xc] sm:$0xf]
      %v267 = vld [vmem:[%s251 + $0x10] sm:$0xf]
      %v268 = vld [vmem:[%s251 + $0x14] sm:$0xf]
      %v269 = vld [vmem:[%s251 + $0x18] sm:$0xf]
      %v270 = vld [vmem:[%s251 + $0x1c] sm:$0xf]
      %v271 = vld [vmem:[%s251 + $0x20] sm:$0xf]
      %v272 = vld [vmem:[%s251 + $0x24] sm:$0xf]
      %v273 = vld [vmem:[%s251 + $0x28] sm:$0xf]
      %v274 = vld [vmem:[%s251 + $0x2c] sm:$0xf]
      %v275 = vld [vmem:[%s251 + $0x30] sm:$0xf]
      %v276 = vld [vmem:[%s251 + $0x34] sm:$0xf]
      %v277 = vld [vmem:[%s251 + $0x38] sm:$0xf]
      %v278 = vld [vmem:[%s251 + $0x3c] sm:$0xf]
      %v279 = vld [vmem:[%s251 + $0x40] sm:$0xf]
      %v280 = vld [vmem:[%s251 + $0x44] sm:$0xf]
      %v281 = vld [vmem:[%s251 + $0x48] sm:$0xf]
      %v282 = vld [vmem:[%s251 + $0x4c] sm:$0xf]
      %v283 = vld [vmem:[%s251 + $0x50] sm:$0xf]
      %v284 = vld [vmem:[%s251 + $0x54] sm:$0xf]
      %v285 = vld [vmem:[%s251 + $0x58] sm:$0xf]
      %v286 = vld [vmem:[%s251 + $0x5c] sm:$0xf]
      %v287 = vld [vmem:[%s251 + $0x60] sm:$0xf]
      %v288 = vld [vmem:[%s251 + $0x64] sm:$0xf]
      %v289 = vld [vmem:[%s251 + $0x68] sm:$0xf]
      %v290 = vld [vmem:[%s251 + $0x6c] sm:$0xf]
      %v291 = vld [vmem:[%s251 + $0x70] sm:$0xf]
      %v292 = vld [vmem:[%s251 + $0x74] sm:$0xf]
      %v293 = vld [vmem:[%s251 + $0x78] sm:$0xf]
      %v294 = vld [vmem:[%s251 + $0x7c] sm:$0xf]
      %v295 = vld [vmem:[%s251 + $0x80] sm:$0xf]
      %v296 = vld [vmem:[%s251 + $0x84] sm:$0xf]
      %v297 = vld [vmem:[%s251 + $0x88] sm:$0xf]
      %v298 = vld [vmem:[%s251 + $0x8c] sm:$0xf]
      %v299 = vld [vmem:[%s251 + $0x90] sm:$0xf]
      %v300 = vld [vmem:[%s251 + $0x94] sm:$0xf]
      %v301 = vld [vmem:[%s251 + $0x98] sm:$0xf]
      %v302 = vld [vmem:[%s251 + $0x9c] sm:$0xf]
      %v303 = vld [vmem:[%s251 + $0xa0] sm:$0xf]
      %v304 = vld [vmem:[%s251 + $0xa4] sm:$0xf]
      %v305 = vld [vmem:[%s251 + $0xa8] sm:$0xf]
      %v306 = vld [vmem:[%s251 + $0xac] sm:$0xf]
      %v307 = vld [vmem:[%s251 + $0xb0] sm:$0xf]
      %v308 = vld [vmem:[%s251 + $0xb4] sm:$0xf]
      %v309 = vld [vmem:[%s251 + $0xb8] sm:$0xf]
      %v310 = vld [vmem:[%s251 + $0xbc] sm:$0xf]
      %v311 = vld [vmem:[%s251 + $0xc0] sm:$0xf]
      %v312 = vld [vmem:[%s251 + $0xc4] sm:$0xf]
      %v313 = vld [vmem:[%s251 + $0xc8] sm:$0xf]
      %v314 = vld [vmem:[%s251 + $0xcc] sm:$0xf]
      %v315 = vld [vmem:[%s251 + $0xd0] sm:$0xf]
      %v316 = vld [vmem:[%s251 + $0xd4] sm:$0xf]
      %v317 = vld [vmem:[%s251 + $0xd8] sm:$0xf]
      %v318 = vld [vmem:[%s251 + $0xdc] sm:$0xf]
      %v319 = vld [vmem:[%s251 + $0xe0] sm:$0xf]
      %v320 = vld [vmem:[%s251 + $0xe4] sm:$0xf]
      %v321 = vld [vmem:[%s251 + $0xe8] sm:$0xf]
      %v322 = vld [vmem:[%s251 + $0xec] sm:$0xf]
      %v323 = vld [vmem:[%s251 + $0xf0] sm:$0xf]
      %v324 = vld [vmem:[%s251 + $0xf4] sm:$0xf]
      %v325 = vld [vmem:[%s251 + $0xf8] sm:$0xf]
      %v326 = vld [vmem:[%s251 + $0xfc] sm:$0xf]
      %v327 = vld [vmem:[%s251 + $0x100] sm:$0xf]
      %v328 = vld [vmem:[%s251 + $0x104] sm:$0xf]
      %v329 = vld [vmem:[%s251 + $0x108] sm:$0xf]
      %v330 = vld [vmem:[%s251 + $0x10c] sm:$0xf]
      %v331 = vld [vmem:[%s251 + $0x110] sm:$0xf]
      %v332 = vld [vmem:[%s251 + $0x114] sm:$0xf]
      %v333 = vld [vmem:[%s251 + $0x118] sm:$0xf]
      %v334 = vld [vmem:[%s251 + $0x11c] sm:$0xf]
      %v335 = vld [vmem:[%s251 + $0x120] sm:$0xf]
      %v336 = vld [vmem:[%s251 + $0x124] sm:$0xf]
      %v337 = vld [vmem:[%s251 + $0x128] sm:$0xf]
      %v338 = vld [vmem:[%s251 + $0x12c] sm:$0xf]
      %v339 = vld [vmem:[%s251 + $0x130] sm:$0xf]
      %v340 = vld [vmem:[%s251 + $0x134] sm:$0xf]
      %v341 = vld [vmem:[%s251 + $0x138] sm:$0xf]
      %v342 = vld [vmem:[%s251 + $0x13c] sm:$0xf]
      %v343 = vld [vmem:[%s251 + $0x140] sm:$0xf]
      %v344 = vld [vmem:[%s251 + $0x144] sm:$0xf]
      %v345 = vld [vmem:[%s251 + $0x148] sm:$0xf]
      %v346 = vld [vmem:[%s251 + $0x14c] sm:$0xf]
      %v347 = vld [vmem:[%s251 + $0x150] sm:$0xf]
      %v348 = vld [vmem:[%s251 + $0x154] sm:$0xf]
      %v349 = vld [vmem:[%s251 + $0x158] sm:$0xf]
      %v350 = vld [vmem:[%s251 + $0x15c] sm:$0xf]
      %v351 = vld [vmem:[%s251 + $0x160] sm:$0xf]
      %v352 = vld [vmem:[%s251 + $0x164] sm:$0xf]
      %v353 = vld [vmem:[%s251 + $0x168] sm:$0xf]
      %v354 = vld [vmem:[%s1] sm:$0xf]
      %v355 = vld [vmem:[%s1 + $0x4] sm:$0xf]
      %v356 = vld [vmem:[%s1 + $0x8] sm:$0xf]
      %v357 = vld [vmem:[%s1 + $0xc] sm:$0xf]
      %s358 = scalar_lea.vmem %s1, 16
      %v359 = vld [vmem:[%s358] sm:$0xf]
      %v360 = vld [vmem:[%s358 + $0x4] sm:$0xf]
      %v361 = vld [vmem:[%s358 + $0x8] sm:$0xf]
      %v362 = vld [vmem:[%s358 + $0xc] sm:$0xf]
      %v444 = vunpack.c.l.b16 %v263
      %v445 = vunpack.c.l.b16 %v264
      %v446 = vunpack.c.l.b16 %v265
      %v447 = vunpack.c.l.b16 %v266
      %v448 = vunpack.c.l.b16 %v267
      %v449 = vunpack.c.l.b16 %v268
      %v450 = vunpack.c.l.b16 %v269
      %v451 = vunpack.c.l.b16 %v270
      %v452 = vunpack.c.l.b16 %v271
      %v453 = vunpack.c.l.b16 %v272
      %v454 = vunpack.c.l.b16 %v273
      %v455 = vunpack.c.l.b16 %v274
      %v456 = vunpack.c.l.b16 %v275
      %v457 = vunpack.c.l.b16 %v276
      %v458 = vunpack.c.l.b16 %v277
      %v459 = vunpack.c.l.b16 %v278
      %v460 = vunpack.c.l.b16 %v279
      %v461 = vunpack.c.l.b16 %v280
      %v462 = vunpack.c.l.b16 %v281
      %v463 = vunpack.c.l.b16 %v282
      %v464 = vunpack.c.l.b16 %v283
      %v465 = vunpack.c.l.b16 %v284
      %v466 = vunpack.c.l.b16 %v285
      %v467 = vunpack.c.l.b16 %v286
      %v468 = vunpack.c.l.b16 %v287
      %v469 = vunpack.c.l.b16 %v288
      %v470 = vunpack.c.l.b16 %v289
      %v471 = vunpack.c.l.b16 %v290
      %v472 = vunpack.c.l.b16 %v291
      %v473 = vunpack.c.l.b16 %v292
      %v474 = vunpack.c.l.b16 %v293
      %v475 = vunpack.c.l.b16 %v294
      %v476 = vunpack.c.l.b16 %v295
      %v477 = vunpack.c.l.b16 %v296
      %v478 = vunpack.c.l.b16 %v297
      %v479 = vunpack.c.l.b16 %v298
      %v480 = vunpack.c.l.b16 %v299
      %v481 = vunpack.c.l.b16 %v300
      %v482 = vunpack.c.l.b16 %v301
      %v483 = vunpack.c.l.b16 %v302
      %v484 = vunpack.c.l.b16 %v303
      %v485 = vunpack.c.l.b16 %v304
      %v486 = vunpack.c.l.b16 %v305
      %v487 = vunpack.c.l.b16 %v306
      %v488 = vunpack.c.l.b16 %v307
      %v489 = vunpack.c.l.b16 %v308
      %v490 = vunpack.c.l.b16 %v309
      %v491 = vunpack.c.l.b16 %v310
      %v492 = vunpack.c.l.b16 %v311
      %v493 = vunpack.c.l.b16 %v312
      %v494 = vunpack.c.l.b16 %v313
      %v495 = vunpack.c.l.b16 %v314
      %v496 = vunpack.c.l.b16 %v315
      %v497 = vunpack.c.l.b16 %v316
      %v498 = vunpack.c.l.b16 %v317
      %v499 = vunpack.c.l.b16 %v318
      %v500 = vunpack.c.l.b16 %v319
      %v501 = vunpack.c.l.b16 %v320
      %v502 = vunpack.c.l.b16 %v321
      %v503 = vunpack.c.l.b16 %v322
      %v504 = vunpack.c.l.b16 %v323
      %v505 = vunpack.c.l.b16 %v324
      %v506 = vunpack.c.l.b16 %v325
      %v507 = vunpack.c.l.b16 %v326
      %v508 = vunpack.c.l.b16 %v327
      %v509 = vunpack.c.l.b16 %v328
      %v510 = vunpack.c.l.b16 %v329
      %v511 = vunpack.c.l.b16 %v330
      %v512 = vunpack.c.l.b16 %v331
      %v513 = vunpack.c.l.b16 %v332
      %v514 = vunpack.c.l.b16 %v333
      %v515 = vunpack.c.l.b16 %v334
      %v516 = vunpack.c.l.b16 %v335
      %v517 = vunpack.c.l.b16 %v336
      %v518 = vunpack.c.l.b16 %v337
      %v519 = vunpack.c.l.b16 %v338
      %v520 = vunpack.c.l.b16 %v339
      %v521 = vunpack.c.l.b16 %v340
      %v522 = vunpack.c.l.b16 %v341
      %v523 = vunpack.c.l.b16 %v342
      %v524 = vunpack.c.l.b16 %v343
      %v525 = vpack.c.b16 %v445, %v444
      %v526 = vpack.c.b16 %v447, %v446
      %v527 = vpack.c.b16 %v449, %v448
      %v528 = vpack.c.b16 %v451, %v450
      %v529 = vpack.c.b16 %v453, %v452
      %v530 = vpack.c.b16 %v455, %v454
      %v531 = vpack.c.b16 %v457, %v456
      %v532 = vpack.c.b16 %v459, %v458
      %v533 = vpack.c.b16 %v461, %v460
      %v534 = vpack.c.b16 %v463, %v462
      %v535 = vpack.c.b16 %v465, %v464
      %v536 = vpack.c.b16 %v467, %v466
      %v537 = vpack.c.b16 %v469, %v468
      %v538 = vpack.c.b16 %v471, %v470
      %v539 = vpack.c.b16 %v473, %v472
      %v540 = vpack.c.b16 %v475, %v474
      %v541 = vpack.c.b16 %v477, %v476
      %v542 = vpack.c.b16 %v479, %v478
      %v543 = vpack.c.b16 %v481, %v480
      %v544 = vpack.c.b16 %v483, %v482
      %v545 = vpack.c.b16 %v485, %v484
      %v546 = vpack.c.b16 %v487, %v486
      %v547 = vpack.c.b16 %v489, %v488
      %v548 = vpack.c.b16 %v491, %v490
      %v549 = vpack.c.b16 %v493, %v492
      %v550 = vpack.c.b16 %v495, %v494
      %v551 = vpack.c.b16 %v497, %v496
      %v552 = vpack.c.b16 %v499, %v498
      %v553 = vpack.c.b16 %v501, %v500
      %v554 = vpack.c.b16 %v503, %v502
      %v555 = vpack.c.b16 %v505, %v504
      %v556 = vpack.c.b16 %v507, %v506
      %v557 = vpack.c.b16 %v509, %v508
      %v558 = vpack.c.b16 %v511, %v510
      %v559 = vpack.c.b16 %v513, %v512
      %v560 = vpack.c.b16 %v515, %v514
      %v561 = vpack.c.b16 %v517, %v516
      %v562 = vpack.c.b16 %v519, %v518
      %v563 = vpack.c.b16 %v521, %v520
      %v564 = vpack.c.b16 %v523, %v522
      %v565 = vpack.c.b16 %v524, %v524
      %vm566 = vsmask.f32 7424
      %v568 = vshrl.u32 %v525, 16
      %v570 = vshll.u32 %v525, 16
      %v572 = vrot.slane %v570, 1
      %v573 = vor.u32 %v568, %v572
      %v575 = vshll.u32 %v526, 16
      %v577 = vrot.slane %v575, 1
      %v578 = vsel %vm566, %v573, %v577
      %v579 = vshrl.u32 %v526, 16
      %v581 = vor.u32 %v579, %v577
      %v583 = vshll.u32 %v527, 16
      %v585 = vrot.slane %v583, 1
      %v586 = vsel %vm566, %v581, %v585
      %v587 = vshrl.u32 %v527, 16
      %v589 = vor.u32 %v587, %v585
      %v591 = vshll.u32 %v528, 16
      %v593 = vrot.slane %v591, 1
      %v594 = vsel %vm566, %v589, %v593
      %v595 = vshrl.u32 %v528, 16
      %v597 = vor.u32 %v595, %v593
      %v599 = vshll.u32 %v529, 16
      %v601 = vrot.slane %v599, 1
      %v602 = vsel %vm566, %v597, %v601
      %v603 = vshrl.u32 %v529, 16
      %v605 = vor.u32 %v603, %v601
      %v607 = vshll.u32 %v530, 16
      %v609 = vrot.slane %v607, 1
      %v610 = vsel %vm566, %v605, %v609
      %v611 = vshrl.u32 %v530, 16
      %v613 = vor.u32 %v611, %v609
      %v615 = vshll.u32 %v531, 16
      %v617 = vrot.slane %v615, 1
      %v618 = vsel %vm566, %v613, %v617
      %v619 = vshrl.u32 %v531, 16
      %v621 = vor.u32 %v619, %v617
      %v623 = vshll.u32 %v532, 16
      %v625 = vrot.slane %v623, 1
      %v626 = vsel %vm566, %v621, %v625
      %v627 = vshrl.u32 %v532, 16
      %v629 = vor.u32 %v627, %v625
      %v631 = vshll.u32 %v533, 16
      %v633 = vrot.slane %v631, 1
      %v634 = vsel %vm566, %v629, %v633
      %v635 = vshrl.u32 %v533, 16
      %v637 = vor.u32 %v635, %v633
      %v639 = vshll.u32 %v534, 16
      %v641 = vrot.slane %v639, 1
      %v642 = vsel %vm566, %v637, %v641
      %v643 = vshrl.u32 %v534, 16
      %v645 = vor.u32 %v643, %v641
      %v647 = vshll.u32 %v535, 16
      %v649 = vrot.slane %v647, 1
      %v650 = vsel %vm566, %v645, %v649
      %v651 = vshrl.u32 %v535, 16
      %v653 = vor.u32 %v651, %v649
      %v655 = vshll.u32 %v536, 16
      %v657 = vrot.slane %v655, 1
      %v658 = vsel %vm566, %v653, %v657
      %v659 = vshrl.u32 %v536, 16
      %v661 = vor.u32 %v659, %v657
      %v663 = vshll.u32 %v537, 16
      %v665 = vrot.slane %v663, 1
      %v666 = vsel %vm566, %v661, %v665
      %v667 = vshrl.u32 %v537, 16
      %v669 = vor.u32 %v667, %v665
      %v671 = vshll.u32 %v538, 16
      %v673 = vrot.slane %v671, 1
      %v674 = vsel %vm566, %v669, %v673
      %v675 = vshrl.u32 %v538, 16
      %v677 = vor.u32 %v675, %v673
      %v679 = vshll.u32 %v539, 16
      %v681 = vrot.slane %v679, 1
      %v682 = vsel %vm566, %v677, %v681
      %v683 = vshrl.u32 %v539, 16
      %v685 = vor.u32 %v683, %v681
      %v687 = vshll.u32 %v540, 16
      %v689 = vrot.slane %v687, 1
      %v690 = vsel %vm566, %v685, %v689
      %v691 = vshrl.u32 %v540, 16
      %v693 = vor.u32 %v691, %v689
      %v695 = vshll.u32 %v541, 16
      %v697 = vrot.slane %v695, 1
      %v698 = vsel %vm566, %v693, %v697
      %v699 = vshrl.u32 %v541, 16
      %v701 = vor.u32 %v699, %v697
      %v703 = vshll.u32 %v542, 16
      %v705 = vrot.slane %v703, 1
      %v706 = vsel %vm566, %v701, %v705
      %v707 = vshrl.u32 %v542, 16
      %v709 = vor.u32 %v707, %v705
      %v711 = vshll.u32 %v543, 16
      %v713 = vrot.slane %v711, 1
      %v714 = vsel %vm566, %v709, %v713
      %v715 = vshrl.u32 %v543, 16
      %v717 = vor.u32 %v715, %v713
      %v719 = vshll.u32 %v544, 16
      %v721 = vrot.slane %v719, 1
      %v722 = vsel %vm566, %v717, %v721
      %v723 = vshrl.u32 %v544, 16
      %v725 = vor.u32 %v723, %v721
      %v727 = vshll.u32 %v545, 16
      %v729 = vrot.slane %v727, 1
      %v730 = vsel %vm566, %v725, %v729
      %v731 = vshrl.u32 %v545, 16
      %v733 = vor.u32 %v731, %v729
      %v735 = vshll.u32 %v546, 16
      %v737 = vrot.slane %v735, 1
      %v738 = vsel %vm566, %v733, %v737
      %v739 = vshrl.u32 %v546, 16
      %v741 = vor.u32 %v739, %v737
      %v743 = vshll.u32 %v547, 16
      %v745 = vrot.slane %v743, 1
      %v746 = vsel %vm566, %v741, %v745
      %v747 = vshrl.u32 %v547, 16
      %v749 = vor.u32 %v747, %v745
      %v751 = vshll.u32 %v548, 16
      %v753 = vrot.slane %v751, 1
      %v754 = vsel %vm566, %v749, %v753
      %v755 = vshrl.u32 %v548, 16
      %v757 = vor.u32 %v755, %v753
      %v759 = vshll.u32 %v549, 16
      %v761 = vrot.slane %v759, 1
      %v762 = vsel %vm566, %v757, %v761
      %v763 = vshrl.u32 %v549, 16
      %v765 = vor.u32 %v763, %v761
      %v767 = vshll.u32 %v550, 16
      %v769 = vrot.slane %v767, 1
      %v770 = vsel %vm566, %v765, %v769
      %v771 = vshrl.u32 %v550, 16
      %v773 = vor.u32 %v771, %v769
      %v775 = vshll.u32 %v551, 16
      %v777 = vrot.slane %v775, 1
      %v778 = vsel %vm566, %v773, %v777
      %v779 = vshrl.u32 %v551, 16
      %v781 = vor.u32 %v779, %v777
      %v783 = vshll.u32 %v552, 16
      %v785 = vrot.slane %v783, 1
      %v786 = vsel %vm566, %v781, %v785
      %v787 = vshrl.u32 %v552, 16
      %v789 = vor.u32 %v787, %v785
      %v791 = vshll.u32 %v553, 16
      %v793 = vrot.slane %v791, 1
      %v794 = vsel %vm566, %v789, %v793
      %v795 = vshrl.u32 %v553, 16
      %v797 = vor.u32 %v795, %v793
      %v799 = vshll.u32 %v554, 16
      %v801 = vrot.slane %v799, 1
      %v802 = vsel %vm566, %v797, %v801
      %v803 = vshrl.u32 %v554, 16
      %v805 = vor.u32 %v803, %v801
      %v807 = vshll.u32 %v555, 16
      %v809 = vrot.slane %v807, 1
      %v810 = vsel %vm566, %v805, %v809
      %v811 = vshrl.u32 %v555, 16
      %v813 = vor.u32 %v811, %v809
      %v815 = vshll.u32 %v556, 16
      %v817 = vrot.slane %v815, 1
      %v818 = vsel %vm566, %v813, %v817
      %v819 = vshrl.u32 %v556, 16
      %v821 = vor.u32 %v819, %v817
      %v823 = vshll.u32 %v557, 16
      %v825 = vrot.slane %v823, 1
      %v826 = vsel %vm566, %v821, %v825
      %v827 = vshrl.u32 %v557, 16
      %v829 = vor.u32 %v827, %v825
      %v831 = vshll.u32 %v558, 16
      %v833 = vrot.slane %v831, 1
      %v834 = vsel %vm566, %v829, %v833
      %v835 = vshrl.u32 %v558, 16
      %v837 = vor.u32 %v835, %v833
      %v839 = vshll.u32 %v559, 16
      %v841 = vrot.slane %v839, 1
      %v842 = vsel %vm566, %v837, %v841
      %v843 = vshrl.u32 %v559, 16
      %v845 = vor.u32 %v843, %v841
      %v847 = vshll.u32 %v560, 16
      %v849 = vrot.slane %v847, 1
      %v850 = vsel %vm566, %v845, %v849
      %v851 = vshrl.u32 %v560, 16
      %v853 = vor.u32 %v851, %v849
      %v855 = vshll.u32 %v561, 16
      %v857 = vrot.slane %v855, 1
      %v858 = vsel %vm566, %v853, %v857
      %v859 = vshrl.u32 %v561, 16
      %v861 = vor.u32 %v859, %v857
      %v863 = vshll.u32 %v562, 16
      %v865 = vrot.slane %v863, 1
      %v866 = vsel %vm566, %v861, %v865
      %v867 = vshrl.u32 %v562, 16
      %v869 = vor.u32 %v867, %v865
      %v871 = vshll.u32 %v563, 16
      %v873 = vrot.slane %v871, 1
      %v874 = vsel %vm566, %v869, %v873
      %v875 = vshrl.u32 %v563, 16
      %v877 = vor.u32 %v875, %v873
      %v879 = vshll.u32 %v564, 16
      %v881 = vrot.slane %v879, 1
      %v882 = vsel %vm566, %v877, %v881
      %v883 = vshrl.u32 %v564, 16
      %v885 = vor.u32 %v883, %v881
      %v887 = vshll.u32 %v565, 16
      %v889 = vrot.slane %v887, 1
      %v890 = vsel %vm566, %v885, %v889
      %v895 = vunpack.c.l.b16 %v359
      %v896 = vunpack.c.l.b16 %v360
      %v897 = vunpack.c.l.b16 %v361
      %v898 = vunpack.c.l.b16 %v362
      %v899 = vpack.c.b16 %v896, %v895
      %v900 = vpack.c.b16 %v898, %v897
      %vm903 = vcmask 261120
      %v905 = vsel %vm903, %v578, 0
      %v908 = vsel %vm903, %v586, 0
      %v911 = vsel %vm903, %v594, 0
      %v914 = vsel %vm903, %v602, 0
      %v917 = vsel %vm903, %v610, 0
      %v920 = vsel %vm903, %v618, 0
      %v923 = vsel %vm903, %v626, 0
      %v926 = vsel %vm903, %v634, 0
      %v929 = vsel %vm903, %v642, 0
      %v932 = vsel %vm903, %v650, 0
      %v935 = vsel %vm903, %v658, 0
      %v938 = vsel %vm903, %v666, 0
      %v941 = vsel %vm903, %v674, 0
      %v944 = vsel %vm903, %v682, 0
      %v947 = vsel %vm903, %v690, 0
      %v950 = vsel %vm903, %v698, 0
      %v953 = vsel %vm903, %v706, 0
      %v956 = vsel %vm903, %v714, 0
      %v959 = vsel %vm903, %v722, 0
      %v962 = vsel %vm903, %v730, 0
      %v965 = vsel %vm903, %v738, 0
      %v968 = vsel %vm903, %v746, 0
      %v971 = vsel %vm903, %v754, 0
      %v974 = vsel %vm903, %v762, 0
      %v977 = vsel %vm903, %v770, 0
      %v980 = vsel %vm903, %v778, 0
      %v983 = vsel %vm903, %v786, 0
      %v986 = vsel %vm903, %v794, 0
      %v989 = vsel %vm903, %v802, 0
      %v992 = vsel %vm903, %v810, 0
      %v995 = vsel %vm903, %v818, 0
      %v998 = vsel %vm903, %v826, 0
      %v1001 = vsel %vm903, %v834, 0
      %v1004 = vsel %vm903, %v842, 0
      %v1007 = vsel %vm903, %v850, 0
      %v1010 = vsel %vm903, %v858, 0
      %v1013 = vsel %vm903, %v866, 0
      %v1016 = vsel %vm903, %v874, 0
      %v1019 = vsel %vm903, %v882, 0
      %v1022 = vsel %vm903, %v890, 0
      %1024 = vmatprep.subr.bf16.mxu0 0
      %1025 = vmatpush1.bf16.msra.mxu0 %v899
      %1026 = vmatprep.subr.bf16.mxu0 0
      %1027 = vmatpush1.bf16.msra.mxu0 %v900
      %1028 = vmatprep.subr.bf16.mxu0 0
      %1029 = vmatpush1.bf16.msra.mxu0 0
      %1030 = vmatprep.subr.bf16.mxu0 0
      %1031 = vmatpush1.bf16.msra.mxu0 0
      %1032 = vmatprep.subr.bf16.mxu0 0
      %1033 = vmatpush1.bf16.msra.mxu0 0
      %1034 = vmatprep.subr.bf16.mxu0 0
      %1035 = vmatpush1.bf16.msra.mxu0 0
      %1036 = vmatprep.subr.bf16.mxu0 0
      %1037 = vmatpush1.bf16.msra.mxu0 0
      %1038 = vmatprep.subr.bf16.mxu0 0
      %1039 = vmatpush1.bf16.msra.mxu0 0
      %1040 = vmatprep.subr.bf16.mxu0 0
      %1041 = vmatpush1.bf16.msra.mxu0 0
      %1042 = vmatprep.subr.bf16.mxu0 0
      %1043 = vmatpush1.bf16.msra.mxu0 0
      %1044 = vmatprep.subr.bf16.mxu0 0
      %1045 = vmatpush1.bf16.msra.mxu0 0
      %1046 = vmatprep.subr.bf16.mxu0 0
      %1047 = vmatpush1.bf16.msra.mxu0 0
      %1048 = vmatprep.subr.bf16.mxu0 0
      %1049 = vmatpush1.bf16.msra.mxu0 0
      %1050 = vmatprep.subr.bf16.mxu0 0
      %1051 = vmatpush1.bf16.msra.mxu0 0
      %1052 = vmatprep.subr.bf16.mxu0 0
      %1053 = vmatpush1.bf16.msra.mxu0 0
      %1054 = vmatprep.subr.bf16.mxu0 0
      %1055 = vmatpush1.bf16.msra.mxu0 0
      %1056 = vmatprep.mubr.bf16.mxu0 0
      %1057 = vmatmul.mubr.bf16.gmra.mrb[0].mxu0 %v905
      %v1058 = vpop.f32.mrb[0].mxu0
      %v1059 = vadd.f32 0.0, %v1058
      %v1060 = vpop.f32.mrb[0].mxu0
      %v1061 = vpop.f32.mrb[0].mxu0
      %v1062 = vadd.f32 0.0, %v1061
      %v1063 = vpop.f32.mrb[0].mxu0
      %1064 = vmatprep.mubr.bf16.mxu0 0
      %1065 = vmatmul.mubr.bf16.gmra.mrb[0].mxu0 %v908
      %v1066 = vpop.f32.mrb[0].mxu0
      %v1067 = vadd.f32 0.0, %v1066
      %v1068 = vpop.f32.mrb[0].mxu0
      %v1069 = vpop.f32.mrb[0].mxu0
      %v1070 = vadd.f32 0.0, %v1069
      %v1071 = vpop.f32.mrb[0].mxu0
      %1072 = vmatprep.mubr.bf16.mxu0 0
      %1073 = vmatmul.mubr.bf16.gmra.mrb[0].mxu0 %v911
      %v1074 = vpop.f32.mrb[0].mxu0
      %v1075 = vadd.f32 0.0, %v1074
      %v1076 = vpop.f32.mrb[0].mxu0
      %v1077 = vpop.f32.mrb[0].mxu0
      %v1078 = vadd.f32 0.0, %v1077
      %v1079 = vpop.f32.mrb[0].mxu0
      %1080 = vmatprep.mubr.bf16.mxu0 0
      %1081 = vmatmul.mubr.bf16.gmra.mrb[0].mxu0 %v914
      %v1082 = vpop.f32.mrb[0].mxu0
      %v1083 = vadd.f32 0.0, %v1082
      %v1084 = vpop.f32.mrb[0].mxu0
      %v1085 = vpop.f32.mrb[0].mxu0
      %v1086 = vadd.f32 0.0, %v1085
      %v1087 = vpop.f32.mrb[0].mxu0
      %1088 = vmatprep.mubr.bf16.mxu0 0
      %1089 = vmatmul.mubr.bf16.gmra.mrb[0].mxu0 %v917
      %v1090 = vpop.f32.mrb[0].mxu0
      %v1091 = vadd.f32 0.0, %v1090
      %v1092 = vpop.f32.mrb[0].mxu0
      %v1093 = vpop.f32.mrb[0].mxu0
      %v1094 = vadd.f32 0.0, %v1093
      %v1095 = vpop.f32.mrb[0].mxu0
      %1096 = vmatprep.mubr.bf16.mxu0 0
      %1097 = vmatmul.mubr.bf16.gmra.mrb[0].mxu0 %v920
      %v1098 = vpop.f32.mrb[0].mxu0
      %v1099 = vadd.f32 0.0, %v1098
      %v1100 = vpop.f32.mrb[0].mxu0
      %v1101 = vpop.f32.mrb[0].mxu0
      %v1102 = vadd.f32 0.0, %v1101
      %v1103 = vpop.f32.mrb[0].mxu0
      %1104 = vmatprep.mubr.bf16.mxu0 0
      %1105 = vmatmul.mubr.bf16.gmra.mrb[0].mxu0 %v923
      %v1106 = vpop.f32.mrb[0].mxu0
      %v1107 = vadd.f32 0.0, %v1106
      %v1108 = vpop.f32.mrb[0].mxu0
      %v1109 = vpop.f32.mrb[0].mxu0
      %v1110 = vadd.f32 0.0, %v1109
      %v1111 = vpop.f32.mrb[0].mxu0
      %1112 = vmatprep.mubr.bf16.mxu0 0
      %1113 = vmatmul.mubr.bf16.gmra.mrb[0].mxu0 %v926
      %v1114 = vpop.f32.mrb[0].mxu0
      %v1115 = vadd.f32 0.0, %v1114
      %v1116 = vpop.f32.mrb[0].mxu0
      %v1117 = vpop.f32.mrb[0].mxu0
      %v1118 = vadd.f32 0.0, %v1117
      %v1119 = vpop.f32.mrb[0].mxu0
      %1120 = vmatprep.mubr.bf16.mxu0 0
      %1121 = vmatmul.mubr.bf16.gmra.mrb[0].mxu0 %v929
      %v1122 = vpop.f32.mrb[0].mxu0
      %v1123 = vadd.f32 0.0, %v1122
      %v1124 = vpop.f32.mrb[0].mxu0
      %v1125 = vpop.f32.mrb[0].mxu0
      %v1126 = vadd.f32 0.0, %v1125
      %v1127 = vpop.f32.mrb[0].mxu0
      %1128 = vmatprep.mubr.bf16.mxu0 0
      %1129 = vmatmul.mubr.bf16.gmra.mrb[0].mxu0 %v932
      %v1130 = vpop.f32.mrb[0].mxu0
      %v1131 = vadd.f32 0.0, %v1130
      %v1132 = vpop.f32.mrb[0].mxu0
      %v1133 = vpop.f32.mrb[0].mxu0
      %v1134 = vadd.f32 0.0, %v1133
      %v1135 = vpop.f32.mrb[0].mxu0
      %1136 = vmatprep.mubr.bf16.mxu0 0
      %1137 = vmatmul.mubr.bf16.gmra.mrb[0].mxu0 %v935
      %v1138 = vpop.f32.mrb[0].mxu0
      %v1139 = vadd.f32 0.0, %v1138
      %v1140 = vpop.f32.mrb[0].mxu0
      %v1141 = vpop.f32.mrb[0].mxu0
      %v1142 = vadd.f32 0.0, %v1141
      %v1143 = vpop.f32.mrb[0].mxu0
      %1144 = vmatprep.mubr.bf16.mxu0 0
      %1145 = vmatmul.mubr.bf16.gmra.mrb[0].mxu0 %v938
      %v1146 = vpop.f32.mrb[0].mxu0
      %v1147 = vadd.f32 0.0, %v1146
      %v1148 = vpop.f32.mrb[0].mxu0
      %v1149 = vpop.f32.mrb[0].mxu0
      %v1150 = vadd.f32 0.0, %v1149
      %v1151 = vpop.f32.mrb[0].mxu0
      %1152 = vmatprep.mubr.bf16.mxu0 0
      %1153 = vmatmul.mubr.bf16.gmra.mrb[0].mxu0 %v941
      %v1154 = vpop.f32.mrb[0].mxu0
      %v1155 = vadd.f32 0.0, %v1154
      %v1156 = vpop.f32.mrb[0].mxu0
      %v1157 = vpop.f32.mrb[0].mxu0
      %v1158 = vadd.f32 0.0, %v1157
      %v1159 = vpop.f32.mrb[0].mxu0
      %1160 = vmatprep.mubr.bf16.mxu0 0
      %1161 = vmatmul.mubr.bf16.gmra.mrb[0].mxu0 %v944
      %v1162 = vpop.f32.mrb[0].mxu0
      %v1163 = vadd.f32 0.0, %v1162
      %v1164 = vpop.f32.mrb[0].mxu0
      %v1165 = vpop.f32.mrb[0].mxu0
      %v1166 = vadd.f32 0.0, %v1165
      %v1167 = vpop.f32.mrb[0].mxu0
      %1168 = vmatprep.mubr.bf16.mxu0 0
      %1169 = vmatmul.mubr.bf16.gmra.mrb[0].mxu0 %v947
      %v1170 = vpop.f32.mrb[0].mxu0
      %v1171 = vadd.f32 0.0, %v1170
      %v1172 = vpop.f32.mrb[0].mxu0
      %v1173 = vpop.f32.mrb[0].mxu0
      %v1174 = vadd.f32 0.0, %v1173
      %v1175 = vpop.f32.mrb[0].mxu0
      %1176 = vmatprep.mubr.bf16.mxu0 0
      %1177 = vmatmul.mubr.bf16.gmra.mrb[0].mxu0 %v950
      %v1178 = vpop.f32.mrb[0].mxu0
      %v1179 = vadd.f32 0.0, %v1178
      %v1180 = vpop.f32.mrb[0].mxu0
      %v1181 = vpop.f32.mrb[0].mxu0
      %v1182 = vadd.f32 0.0, %v1181
      %v1183 = vpop.f32.mrb[0].mxu0
      %1184 = vmatprep.mubr.bf16.mxu0 0
      %1185 = vmatmul.mubr.bf16.gmra.mrb[0].mxu0 %v953
      %v1186 = vpop.f32.mrb[0].mxu0
      %v1187 = vadd.f32 0.0, %v1186
      %v1188 = vpop.f32.mrb[0].mxu0
      %v1189 = vpop.f32.mrb[0].mxu0
      %v1190 = vadd.f32 0.0, %v1189
      %v1191 = vpop.f32.mrb[0].mxu0
      %1192 = vmatprep.mubr.bf16.mxu0 0
      %1193 = vmatmul.mubr.bf16.gmra.mrb[0].mxu0 %v956
      %v1194 = vpop.f32.mrb[0].mxu0
      %v1195 = vadd.f32 0.0, %v1194
      %v1196 = vpop.f32.mrb[0].mxu0
      %v1197 = vpop.f32.mrb[0].mxu0
      %v1198 = vadd.f32 0.0, %v1197
      %v1199 = vpop.f32.mrb[0].mxu0
      %1200 = vmatprep.mubr.bf16.mxu0 0
      %1201 = vmatmul.mubr.bf16.gmra.mrb[0].mxu0 %v959
      %v1202 = vpop.f32.mrb[0].mxu0
      %v1203 = vadd.f32 0.0, %v1202
      %v1204 = vpop.f32.mrb[0].mxu0
      %v1205 = vpop.f32.mrb[0].mxu0
      %v1206 = vadd.f32 0.0, %v1205
      %v1207 = vpop.f32.mrb[0].mxu0
      %1208 = vmatprep.mubr.bf16.mxu0 0
      %1209 = vmatmul.mubr.bf16.gmra.mrb[0].mxu0 %v962
      %v1210 = vpop.f32.mrb[0].mxu0
      %v1211 = vadd.f32 0.0, %v1210
      %v1212 = vpop.f32.mrb[0].mxu0
      %v1213 = vpop.f32.mrb[0].mxu0
      %v1214 = vadd.f32 0.0, %v1213
      %v1215 = vpop.f32.mrb[0].mxu0
      %1216 = vmatprep.mubr.bf16.mxu0 0
      %1217 = vmatmul.mubr.bf16.gmra.mrb[0].mxu0 %v965
      %v1218 = vpop.f32.mrb[0].mxu0
      %v1219 = vadd.f32 0.0, %v1218
      %v1220 = vpop.f32.mrb[0].mxu0
      %v1221 = vpop.f32.mrb[0].mxu0
      %v1222 = vadd.f32 0.0, %v1221
      %v1223 = vpop.f32.mrb[0].mxu0
      %1224 = vmatprep.mubr.bf16.mxu0 0
      %1225 = vmatmul.mubr.bf16.gmra.mrb[0].mxu0 %v968
      %v1226 = vpop.f32.mrb[0].mxu0
      %v1227 = vadd.f32 0.0, %v1226
      %v1228 = vpop.f32.mrb[0].mxu0
      %v1229 = vpop.f32.mrb[0].mxu0
      %v1230 = vadd.f32 0.0, %v1229
      %v1231 = vpop.f32.mrb[0].mxu0
      %1232 = vmatprep.mubr.bf16.mxu0 0
      %1233 = vmatmul.mubr.bf16.gmra.mrb[0].mxu0 %v971
      %v1234 = vpop.f32.mrb[0].mxu0
      %v1235 = vadd.f32 0.0, %v1234
      %v1236 = vpop.f32.mrb[0].mxu0
      %v1237 = vpop.f32.mrb[0].mxu0
      %v1238 = vadd.f32 0.0, %v1237
      %v1239 = vpop.f32.mrb[0].mxu0
      %1240 = vmatprep.mubr.bf16.mxu0 0
      %1241 = vmatmul.mubr.bf16.gmra.mrb[0].mxu0 %v974
      %v1242 = vpop.f32.mrb[0].mxu0
      %v1243 = vadd.f32 0.0, %v1242
      %v1244 = vpop.f32.mrb[0].mxu0
      %v1245 = vpop.f32.mrb[0].mxu0
      %v1246 = vadd.f32 0.0, %v1245
      %v1247 = vpop.f32.mrb[0].mxu0
      %1248 = vmatprep.mubr.bf16.mxu0 0
      %1249 = vmatmul.mubr.bf16.gmra.mrb[0].mxu0 %v977
      %v1250 = vpop.f32.mrb[0].mxu0
      %v1251 = vadd.f32 0.0, %v1250
      %v1252 = vpop.f32.mrb[0].mxu0
      %v1253 = vpop.f32.mrb[0].mxu0
      %v1254 = vadd.f32 0.0, %v1253
      %v1255 = vpop.f32.mrb[0].mxu0
      %1256 = vmatprep.mubr.bf16.mxu0 0
      %1257 = vmatmul.mubr.bf16.gmra.mrb[0].mxu0 %v980
      %v1258 = vpop.f32.mrb[0].mxu0
      %v1259 = vadd.f32 0.0, %v1258
      %v1260 = vpop.f32.mrb[0].mxu0
      %v1261 = vpop.f32.mrb[0].mxu0
      %v1262 = vadd.f32 0.0, %v1261
      %v1263 = vpop.f32.mrb[0].mxu0
      %1264 = vmatprep.mubr.bf16.mxu0 0
      %1265 = vmatmul.mubr.bf16.gmra.mrb[0].mxu0 %v983
      %v1266 = vpop.f32.mrb[0].mxu0
      %v1267 = vadd.f32 0.0, %v1266
      %v1268 = vpop.f32.mrb[0].mxu0
      %v1269 = vpop.f32.mrb[0].mxu0
      %v1270 = vadd.f32 0.0, %v1269
      %v1271 = vpop.f32.mrb[0].mxu0
      %1272 = vmatprep.mubr.bf16.mxu0 0
      %1273 = vmatmul.mubr.bf16.gmra.mrb[0].mxu0 %v986
      %v1274 = vpop.f32.mrb[0].mxu0
      %v1275 = vadd.f32 0.0, %v1274
      %v1276 = vpop.f32.mrb[0].mxu0
      %v1277 = vpop.f32.mrb[0].mxu0
      %v1278 = vadd.f32 0.0, %v1277
      %v1279 = vpop.f32.mrb[0].mxu0
      %1280 = vmatprep.mubr.bf16.mxu0 0
      %1281 = vmatmul.mubr.bf16.gmra.mrb[0].mxu0 %v989
      %v1282 = vpop.f32.mrb[0].mxu0
      %v1283 = vadd.f32 0.0, %v1282
      %v1284 = vpop.f32.mrb[0].mxu0
      %v1285 = vpop.f32.mrb[0].mxu0
      %v1286 = vadd.f32 0.0, %v1285
      %v1287 = vpop.f32.mrb[0].mxu0
      %1288 = vmatprep.mubr.bf16.mxu0 0
      %1289 = vmatmul.mubr.bf16.gmra.mrb[0].mxu0 %v992
      %v1290 = vpop.f32.mrb[0].mxu0
      %v1291 = vadd.f32 0.0, %v1290
      %v1292 = vpop.f32.mrb[0].mxu0
      %v1293 = vpop.f32.mrb[0].mxu0
      %v1294 = vadd.f32 0.0, %v1293
      %v1295 = vpop.f32.mrb[0].mxu0
      %1296 = vmatprep.mubr.bf16.mxu0 0
      %1297 = vmatmul.mubr.bf16.gmra.mrb[0].mxu0 %v995
      %v1298 = vpop.f32.mrb[0].mxu0
      %v1299 = vadd.f32 0.0, %v1298
      %v1300 = vpop.f32.mrb[0].mxu0
      %v1301 = vpop.f32.mrb[0].mxu0
      %v1302 = vadd.f32 0.0, %v1301
      %v1303 = vpop.f32.mrb[0].mxu0
      %1304 = vmatprep.mubr.bf16.mxu0 0
      %1305 = vmatmul.mubr.bf16.gmra.mrb[0].mxu0 %v998
      %v1306 = vpop.f32.mrb[0].mxu0
      %v1307 = vadd.f32 0.0, %v1306
      %v1308 = vpop.f32.mrb[0].mxu0
      %v1309 = vpop.f32.mrb[0].mxu0
      %v1310 = vadd.f32 0.0, %v1309
      %v1311 = vpop.f32.mrb[0].mxu0
      %1312 = vmatprep.mubr.bf16.mxu0 0
      %1313 = vmatmul.mubr.bf16.gmra.mrb[0].mxu0 %v1001
      %v1314 = vpop.f32.mrb[0].mxu0
      %v1315 = vadd.f32 0.0, %v1314
      %v1316 = vpop.f32.mrb[0].mxu0
      %v1317 = vpop.f32.mrb[0].mxu0
      %v1318 = vadd.f32 0.0, %v1317
      %v1319 = vpop.f32.mrb[0].mxu0
      %1320 = vmatprep.mubr.bf16.mxu0 0
      %1321 = vmatmul.mubr.bf16.gmra.mrb[0].mxu0 %v1004
      %v1322 = vpop.f32.mrb[0].mxu0
      %v1323 = vadd.f32 0.0, %v1322
      %v1324 = vpop.f32.mrb[0].mxu0
      %v1325 = vpop.f32.mrb[0].mxu0
      %v1326 = vadd.f32 0.0, %v1325
      %v1327 = vpop.f32.mrb[0].mxu0
      %1328 = vmatprep.mubr.bf16.mxu0 0
      %1329 = vmatmul.mubr.bf16.gmra.mrb[0].mxu0 %v1007
      %v1330 = vpop.f32.mrb[0].mxu0
      %v1331 = vadd.f32 0.0, %v1330
      %v1332 = vpop.f32.mrb[0].mxu0
      %v1333 = vpop.f32.mrb[0].mxu0
      %v1334 = vadd.f32 0.0, %v1333
      %v1335 = vpop.f32.mrb[0].mxu0
      %1336 = vmatprep.mubr.bf16.mxu0 0
      %1337 = vmatmul.mubr.bf16.gmra.mrb[0].mxu0 %v1010
      %v1338 = vpop.f32.mrb[0].mxu0
      %v1339 = vadd.f32 0.0, %v1338
      %v1340 = vpop.f32.mrb[0].mxu0
      %v1341 = vpop.f32.mrb[0].mxu0
      %v1342 = vadd.f32 0.0, %v1341
      %v1343 = vpop.f32.mrb[0].mxu0
      %1344 = vmatprep.mubr.bf16.mxu0 0
      %1345 = vmatmul.mubr.bf16.gmra.mrb[0].mxu0 %v1013
      %v1346 = vpop.f32.mrb[0].mxu0
      %v1347 = vadd.f32 0.0, %v1346
      %v1348 = vpop.f32.mrb[0].mxu0
      %v1349 = vpop.f32.mrb[0].mxu0
      %v1350 = vadd.f32 0.0, %v1349
      %v1351 = vpop.f32.mrb[0].mxu0
      %1352 = vmatprep.mubr.bf16.mxu0 0
      %1353 = vmatmul.mubr.bf16.gmra.mrb[0].mxu0 %v1016
      %v1354 = vpop.f32.mrb[0].mxu0
      %v1355 = vadd.f32 0.0, %v1354
      %v1356 = vpop.f32.mrb[0].mxu0
      %v1357 = vpop.f32.mrb[0].mxu0
      %v1358 = vadd.f32 0.0, %v1357
      %v1359 = vpop.f32.mrb[0].mxu0
      %1360 = vmatprep.mubr.bf16.mxu0 0
      %1361 = vmatmul.mubr.bf16.gmra.mrb[0].mxu0 %v1019
      %v1362 = vpop.f32.mrb[0].mxu0
      %v1363 = vadd.f32 0.0, %v1362
      %v1364 = vpop.f32.mrb[0].mxu0
      %v1365 = vpop.f32.mrb[0].mxu0
      %v1366 = vadd.f32 0.0, %v1365
      %v1367 = vpop.f32.mrb[0].mxu0
      %1368 = vmatprep.mubr.bf16.mxu0 0
      %1369 = vmatmul.mubr.bf16.gmra.mrb[0].mxu0 %v1022
      %v1370 = vpop.f32.mrb[0].mxu0
      %v1371 = vadd.f32 0.0, %v1370
      %v1372 = vpop.f32.mrb[0].mxu0
      %v1373 = vpop.f32.mrb[0].mxu0
      %v1374 = vadd.f32 0.0, %v1373
      %v1375 = vpop.f32.mrb[0].mxu0
      %1376 = vdwg.mxu0
      %v1381 = vunpack.c.l.b16 %v354
      %v1382 = vunpack.c.l.b16 %v355
      %v1383 = vunpack.c.l.b16 %v356
      %v1384 = vunpack.c.l.b16 %v357
      %v1385 = vpack.c.b16 %v1382, %v1381
      %v1386 = vpack.c.b16 %v1384, %v1383
      %v1389 = vsel %vm903, %v525, 0
      %v1391 = vsel %vm903, %v526, 0
      %v1393 = vsel %vm903, %v527, 0
      %v1395 = vsel %vm903, %v528, 0
      %v1397 = vsel %vm903, %v529, 0
      %v1399 = vsel %vm903, %v530, 0
      %v1401 = vsel %vm903, %v531, 0
      %v1403 = vsel %vm903, %v532, 0
      %v1405 = vsel %vm903, %v533, 0
      %v1407 = vsel %vm903, %v534, 0
      %v1409 = vsel %vm903, %v535, 0
      %v1411 = vsel %vm903, %v536, 0
      %v1413 = vsel %vm903, %v537, 0
      %v1415 = vsel %vm903, %v538, 0
      %v1417 = vsel %vm903, %v539, 0
      %v1419 = vsel %vm903, %v540, 0
      %v1421 = vsel %vm903, %v541, 0
      %v1423 = vsel %vm903, %v542, 0
      %v1425 = vsel %vm903, %v543, 0
      %v1427 = vsel %vm903, %v544, 0
      %v1429 = vsel %vm903, %v545, 0
      %v1431 = vsel %vm903, %v546, 0
      %v1433 = vsel %vm903, %v547, 0
      %v1435 = vsel %vm903, %v548, 0
      %v1437 = vsel %vm903, %v549, 0
      %v1439 = vsel %vm903, %v550, 0
      %v1441 = vsel %vm903, %v551, 0
      %v1443 = vsel %vm903, %v552, 0
      %v1445 = vsel %vm903, %v553, 0
      %v1447 = vsel %vm903, %v554, 0
      %v1449 = vsel %vm903, %v555, 0
      %v1451 = vsel %vm903, %v556, 0
      %v1453 = vsel %vm903, %v557, 0
      %v1455 = vsel %vm903, %v558, 0
      %v1457 = vsel %vm903, %v559, 0
      %v1459 = vsel %vm903, %v560, 0
      %v1461 = vsel %vm903, %v561, 0
      %v1463 = vsel %vm903, %v562, 0
      %v1465 = vsel %vm903, %v563, 0
      %v1467 = vsel %vm903, %v564, 0
      %1469 = vmatprep.subr.bf16.mxu0 0
      %1470 = vmatpush1.bf16.msra.mxu0 %v1385
      %1471 = vmatprep.subr.bf16.mxu0 0
      %1472 = vmatpush1.bf16.msra.mxu0 %v1386
      %1473 = vmatprep.subr.bf16.mxu0 0
      %1474 = vmatpush1.bf16.msra.mxu0 0
      %1475 = vmatprep.subr.bf16.mxu0 0
      %1476 = vmatpush1.bf16.msra.mxu0 0
      %1477 = vmatprep.subr.bf16.mxu0 0
      %1478 = vmatpush1.bf16.msra.mxu0 0
      %1479 = vmatprep.subr.bf16.mxu0 0
      %1480 = vmatpush1.bf16.msra.mxu0 0
      %1481 = vmatprep.subr.bf16.mxu0 0
      %1482 = vmatpush1.bf16.msra.mxu0 0
      %1483 = vmatprep.subr.bf16.mxu0 0
      %1484 = vmatpush1.bf16.msra.mxu0 0
      %1485 = vmatprep.subr.bf16.mxu0 0
      %1486 = vmatpush1.bf16.msra.mxu0 0
      %1487 = vmatprep.subr.bf16.mxu0 0
      %1488 = vmatpush1.bf16.msra.mxu0 0
      %1489 = vmatprep.subr.bf16.mxu0 0
      %1490 = vmatpush1.bf16.msra.mxu0 0
      %1491 = vmatprep.subr.bf16.mxu0 0
      %1492 = vmatpush1.bf16.msra.mxu0 0
      %1493 = vmatprep.subr.bf16.mxu0 0
      %1494 = vmatpush1.bf16.msra.mxu0 0
      %1495 = vmatprep.subr.bf16.mxu0 0
      %1496 = vmatpush1.bf16.msra.mxu0 0
      %1497 = vmatprep.subr.bf16.mxu0 0
      %1498 = vmatpush1.bf16.msra.mxu0 0
      %1499 = vmatprep.subr.bf16.mxu0 0
      %1500 = vmatpush1.bf16.msra.mxu0 0
      %1501 = vmatprep.mubr.bf16.mxu0 0
      %1502 = vmatmul.mubr.bf16.gmra.mrb[0].mxu0 %v1389
      %v1503 = vpop.f32.mrb[0].mxu0
      %v1504 = vadd.f32 %v1059, %v1503
      %v1505 = vpop.f32.mrb[0].mxu0
      %v1506 = vpop.f32.mrb[0].mxu0
      %v1507 = vadd.f32 %v1062, %v1506
      %v1508 = vpop.f32.mrb[0].mxu0
      %1509 = vmatprep.mubr.bf16.mxu0 0
      %1510 = vmatmul.mubr.bf16.gmra.mrb[0].mxu0 %v1391
      %v1511 = vpop.f32.mrb[0].mxu0
      %v1512 = vadd.f32 %v1067, %v1511
      %v1513 = vpop.f32.mrb[0].mxu0
      %v1514 = vpop.f32.mrb[0].mxu0
      %v1515 = vadd.f32 %v1070, %v1514
      %v1516 = vpop.f32.mrb[0].mxu0
      %1517 = vmatprep.mubr.bf16.mxu0 0
      %1518 = vmatmul.mubr.bf16.gmra.mrb[0].mxu0 %v1393
      %v1519 = vpop.f32.mrb[0].mxu0
      %v1520 = vadd.f32 %v1075, %v1519
      %v1521 = vpop.f32.mrb[0].mxu0
      %v1522 = vpop.f32.mrb[0].mxu0
      %v1523 = vadd.f32 %v1078, %v1522
      %v1524 = vpop.f32.mrb[0].mxu0
      %1525 = vmatprep.mubr.bf16.mxu0 0
      %1526 = vmatmul.mubr.bf16.gmra.mrb[0].mxu0 %v1395
      %v1527 = vpop.f32.mrb[0].mxu0
      %v1528 = vadd.f32 %v1083, %v1527
      %v1529 = vpop.f32.mrb[0].mxu0
      %v1530 = vpop.f32.mrb[0].mxu0
      %v1531 = vadd.f32 %v1086, %v1530
      %v1532 = vpop.f32.mrb[0].mxu0
      %1533 = vmatprep.mubr.bf16.mxu0 0
      %1534 = vmatmul.mubr.bf16.gmra.mrb[0].mxu0 %v1397
      %v1535 = vpop.f32.mrb[0].mxu0
      %v1536 = vadd.f32 %v1091, %v1535
      %v1537 = vpop.f32.mrb[0].mxu0
      %v1538 = vpop.f32.mrb[0].mxu0
      %v1539 = vadd.f32 %v1094, %v1538
      %v1540 = vpop.f32.mrb[0].mxu0
      %1541 = vmatprep.mubr.bf16.mxu0 0
      %1542 = vmatmul.mubr.bf16.gmra.mrb[0].mxu0 %v1399
      %v1543 = vpop.f32.mrb[0].mxu0
      %v1544 = vadd.f32 %v1099, %v1543
      %v1545 = vpop.f32.mrb[0].mxu0
      %v1546 = vpop.f32.mrb[0].mxu0
      %v1547 = vadd.f32 %v1102, %v1546
      %v1548 = vpop.f32.mrb[0].mxu0
      %1549 = vmatprep.mubr.bf16.mxu0 0
      %1550 = vmatmul.mubr.bf16.gmra.mrb[0].mxu0 %v1401
      %v1551 = vpop.f32.mrb[0].mxu0
      %v1552 = vadd.f32 %v1107, %v1551
      %v1553 = vpop.f32.mrb[0].mxu0
      %v1554 = vpop.f32.mrb[0].mxu0
      %v1555 = vadd.f32 %v1110, %v1554
      %v1556 = vpop.f32.mrb[0].mxu0
      %1557 = vmatprep.mubr.bf16.mxu0 0
      %1558 = vmatmul.mubr.bf16.gmra.mrb[0].mxu0 %v1403
      %v1559 = vpop.f32.mrb[0].mxu0
      %v1560 = vadd.f32 %v1115, %v1559
      %v1561 = vpop.f32.mrb[0].mxu0
      %v1562 = vpop.f32.mrb[0].mxu0
      %v1563 = vadd.f32 %v1118, %v1562
      %v1564 = vpop.f32.mrb[0].mxu0
      %1565 = vmatprep.mubr.bf16.mxu0 0
      %1566 = vmatmul.mubr.bf16.gmra.mrb[0].mxu0 %v1405
      %v1567 = vpop.f32.mrb[0].mxu0
      %v1568 = vadd.f32 %v1123, %v1567
      %v1569 = vpop.f32.mrb[0].mxu0
      %v1570 = vpop.f32.mrb[0].mxu0
      %v1571 = vadd.f32 %v1126, %v1570
      %v1572 = vpop.f32.mrb[0].mxu0
      %1573 = vmatprep.mubr.bf16.mxu0 0
      %1574 = vmatmul.mubr.bf16.gmra.mrb[0].mxu0 %v1407
      %v1575 = vpop.f32.mrb[0].mxu0
      %v1576 = vadd.f32 %v1131, %v1575
      %v1577 = vpop.f32.mrb[0].mxu0
      %v1578 = vpop.f32.mrb[0].mxu0
      %v1579 = vadd.f32 %v1134, %v1578
      %v1580 = vpop.f32.mrb[0].mxu0
      %1581 = vmatprep.mubr.bf16.mxu0 0
      %1582 = vmatmul.mubr.bf16.gmra.mrb[0].mxu0 %v1409
      %v1583 = vpop.f32.mrb[0].mxu0
      %v1584 = vadd.f32 %v1139, %v1583
      %v1585 = vpop.f32.mrb[0].mxu0
      %v1586 = vpop.f32.mrb[0].mxu0
      %v1587 = vadd.f32 %v1142, %v1586
      %v1588 = vpop.f32.mrb[0].mxu0
      %1589 = vmatprep.mubr.bf16.mxu0 0
      %1590 = vmatmul.mubr.bf16.gmra.mrb[0].mxu0 %v1411
      %v1591 = vpop.f32.mrb[0].mxu0
      %v1592 = vadd.f32 %v1147, %v1591
      %v1593 = vpop.f32.mrb[0].mxu0
      %v1594 = vpop.f32.mrb[0].mxu0
      %v1595 = vadd.f32 %v1150, %v1594
      %v1596 = vpop.f32.mrb[0].mxu0
      %1597 = vmatprep.mubr.bf16.mxu0 0
      %1598 = vmatmul.mubr.bf16.gmra.mrb[0].mxu0 %v1413
      %v1599 = vpop.f32.mrb[0].mxu0
      %v1600 = vadd.f32 %v1155, %v1599
      %v1601 = vpop.f32.mrb[0].mxu0
      %v1602 = vpop.f32.mrb[0].mxu0
      %v1603 = vadd.f32 %v1158, %v1602
      %v1604 = vpop.f32.mrb[0].mxu0
      %1605 = vmatprep.mubr.bf16.mxu0 0
      %1606 = vmatmul.mubr.bf16.gmra.mrb[0].mxu0 %v1415
      %v1607 = vpop.f32.mrb[0].mxu0
      %v1608 = vadd.f32 %v1163, %v1607
      %v1609 = vpop.f32.mrb[0].mxu0
      %v1610 = vpop.f32.mrb[0].mxu0
      %v1611 = vadd.f32 %v1166, %v1610
      %v1612 = vpop.f32.mrb[0].mxu0
      %1613 = vmatprep.mubr.bf16.mxu0 0
      %1614 = vmatmul.mubr.bf16.gmra.mrb[0].mxu0 %v1417
      %v1615 = vpop.f32.mrb[0].mxu0
      %v1616 = vadd.f32 %v1171, %v1615
      %v1617 = vpop.f32.mrb[0].mxu0
      %v1618 = vpop.f32.mrb[0].mxu0
      %v1619 = vadd.f32 %v1174, %v1618
      %v1620 = vpop.f32.mrb[0].mxu0
      %1621 = vmatprep.mubr.bf16.mxu0 0
      %1622 = vmatmul.mubr.bf16.gmra.mrb[0].mxu0 %v1419
      %v1623 = vpop.f32.mrb[0].mxu0
      %v1624 = vadd.f32 %v1179, %v1623
      %v1625 = vpop.f32.mrb[0].mxu0
      %v1626 = vpop.f32.mrb[0].mxu0
      %v1627 = vadd.f32 %v1182, %v1626
      %v1628 = vpop.f32.mrb[0].mxu0
      %1629 = vmatprep.mubr.bf16.mxu0 0
      %1630 = vmatmul.mubr.bf16.gmra.mrb[0].mxu0 %v1421
      %v1631 = vpop.f32.mrb[0].mxu0
      %v1632 = vadd.f32 %v1187, %v1631
      %v1633 = vpop.f32.mrb[0].mxu0
      %v1634 = vpop.f32.mrb[0].mxu0
      %v1635 = vadd.f32 %v1190, %v1634
      %v1636 = vpop.f32.mrb[0].mxu0
      %1637 = vmatprep.mubr.bf16.mxu0 0
      %1638 = vmatmul.mubr.bf16.gmra.mrb[0].mxu0 %v1423
      %v1639 = vpop.f32.mrb[0].mxu0
      %v1640 = vadd.f32 %v1195, %v1639
      %v1641 = vpop.f32.mrb[0].mxu0
      %v1642 = vpop.f32.mrb[0].mxu0
      %v1643 = vadd.f32 %v1198, %v1642
      %v1644 = vpop.f32.mrb[0].mxu0
      %1645 = vmatprep.mubr.bf16.mxu0 0
      %1646 = vmatmul.mubr.bf16.gmra.mrb[0].mxu0 %v1425
      %v1647 = vpop.f32.mrb[0].mxu0
      %v1648 = vadd.f32 %v1203, %v1647
      %v1649 = vpop.f32.mrb[0].mxu0
      %v1650 = vpop.f32.mrb[0].mxu0
      %v1651 = vadd.f32 %v1206, %v1650
      %v1652 = vpop.f32.mrb[0].mxu0
      %1653 = vmatprep.mubr.bf16.mxu0 0
      %1654 = vmatmul.mubr.bf16.gmra.mrb[0].mxu0 %v1427
      %v1655 = vpop.f32.mrb[0].mxu0
      %v1656 = vadd.f32 %v1211, %v1655
      %v1657 = vpop.f32.mrb[0].mxu0
      %v1658 = vpop.f32.mrb[0].mxu0
      %v1659 = vadd.f32 %v1214, %v1658
      %v1660 = vpop.f32.mrb[0].mxu0
      %1661 = vmatprep.mubr.bf16.mxu0 0
      %1662 = vmatmul.mubr.bf16.gmra.mrb[0].mxu0 %v1429
      %v1663 = vpop.f32.mrb[0].mxu0
      %v1664 = vadd.f32 %v1219, %v1663
      %v1665 = vpop.f32.mrb[0].mxu0
      %v1666 = vpop.f32.mrb[0].mxu0
      %v1667 = vadd.f32 %v1222, %v1666
      %v1668 = vpop.f32.mrb[0].mxu0
      %1669 = vmatprep.mubr.bf16.mxu0 0
      %1670 = vmatmul.mubr.bf16.gmra.mrb[0].mxu0 %v1431
      %v1671 = vpop.f32.mrb[0].mxu0
      %v1672 = vadd.f32 %v1227, %v1671
      %v1673 = vpop.f32.mrb[0].mxu0
      %v1674 = vpop.f32.mrb[0].mxu0
      %v1675 = vadd.f32 %v1230, %v1674
      %v1676 = vpop.f32.mrb[0].mxu0
      %1677 = vmatprep.mubr.bf16.mxu0 0
      %1678 = vmatmul.mubr.bf16.gmra.mrb[0].mxu0 %v1433
      %v1679 = vpop.f32.mrb[0].mxu0
      %v1680 = vadd.f32 %v1235, %v1679
      %v1681 = vpop.f32.mrb[0].mxu0
      %v1682 = vpop.f32.mrb[0].mxu0
      %v1683 = vadd.f32 %v1238, %v1682
      %v1684 = vpop.f32.mrb[0].mxu0
      %1685 = vmatprep.mubr.bf16.mxu0 0
      %1686 = vmatmul.mubr.bf16.gmra.mrb[0].mxu0 %v1435
      %v1687 = vpop.f32.mrb[0].mxu0
      %v1688 = vadd.f32 %v1243, %v1687
      %v1689 = vpop.f32.mrb[0].mxu0
      %v1690 = vpop.f32.mrb[0].mxu0
      %v1691 = vadd.f32 %v1246, %v1690
      %v1692 = vpop.f32.mrb[0].mxu0
      %1693 = vmatprep.mubr.bf16.mxu0 0
      %1694 = vmatmul.mubr.bf16.gmra.mrb[0].mxu0 %v1437
      %v1695 = vpop.f32.mrb[0].mxu0
      %v1696 = vadd.f32 %v1251, %v1695
      %v1697 = vpop.f32.mrb[0].mxu0
      %v1698 = vpop.f32.mrb[0].mxu0
      %v1699 = vadd.f32 %v1254, %v1698
      %v1700 = vpop.f32.mrb[0].mxu0
      %1701 = vmatprep.mubr.bf16.mxu0 0
      %1702 = vmatmul.mubr.bf16.gmra.mrb[0].mxu0 %v1439
      %v1703 = vpop.f32.mrb[0].mxu0
      %v1704 = vadd.f32 %v1259, %v1703
      %v1705 = vpop.f32.mrb[0].mxu0
      %v1706 = vpop.f32.mrb[0].mxu0
      %v1707 = vadd.f32 %v1262, %v1706
      %v1708 = vpop.f32.mrb[0].mxu0
      %1709 = vmatprep.mubr.bf16.mxu0 0
      %1710 = vmatmul.mubr.bf16.gmra.mrb[0].mxu0 %v1441
      %v1711 = vpop.f32.mrb[0].mxu0
      %v1712 = vadd.f32 %v1267, %v1711
      %v1713 = vpop.f32.mrb[0].mxu0
      %v1714 = vpop.f32.mrb[0].mxu0
      %v1715 = vadd.f32 %v1270, %v1714
      %v1716 = vpop.f32.mrb[0].mxu0
      %1717 = vmatprep.mubr.bf16.mxu0 0
      %1718 = vmatmul.mubr.bf16.gmra.mrb[0].mxu0 %v1443
      %v1719 = vpop.f32.mrb[0].mxu0
      %v1720 = vadd.f32 %v1275, %v1719
      %v1721 = vpop.f32.mrb[0].mxu0
      %v1722 = vpop.f32.mrb[0].mxu0
      %v1723 = vadd.f32 %v1278, %v1722
      %v1724 = vpop.f32.mrb[0].mxu0
      %1725 = vmatprep.mubr.bf16.mxu0 0
      %1726 = vmatmul.mubr.bf16.gmra.mrb[0].mxu0 %v1445
      %v1727 = vpop.f32.mrb[0].mxu0
      %v1728 = vadd.f32 %v1283, %v1727
      %v1729 = vpop.f32.mrb[0].mxu0
      %v1730 = vpop.f32.mrb[0].mxu0
      %v1731 = vadd.f32 %v1286, %v1730
      %v1732 = vpop.f32.mrb[0].mxu0
      %1733 = vmatprep.mubr.bf16.mxu0 0
      %1734 = vmatmul.mubr.bf16.gmra.mrb[0].mxu0 %v1447
      %v1735 = vpop.f32.mrb[0].mxu0
      %v1736 = vadd.f32 %v1291, %v1735
      %v1737 = vpop.f32.mrb[0].mxu0
      %v1738 = vpop.f32.mrb[0].mxu0
      %v1739 = vadd.f32 %v1294, %v1738
      %v1740 = vpop.f32.mrb[0].mxu0
      %1741 = vmatprep.mubr.bf16.mxu0 0
      %1742 = vmatmul.mubr.bf16.gmra.mrb[0].mxu0 %v1449
      %v1743 = vpop.f32.mrb[0].mxu0
      %v1744 = vadd.f32 %v1299, %v1743
      %v1745 = vpop.f32.mrb[0].mxu0
      %v1746 = vpop.f32.mrb[0].mxu0
      %v1747 = vadd.f32 %v1302, %v1746
      %v1748 = vpop.f32.mrb[0].mxu0
      %1749 = vmatprep.mubr.bf16.mxu0 0
      %1750 = vmatmul.mubr.bf16.gmra.mrb[0].mxu0 %v1451
      %v1751 = vpop.f32.mrb[0].mxu0
      %v1752 = vadd.f32 %v1307, %v1751
      %v1753 = vpop.f32.mrb[0].mxu0
      %v1754 = vpop.f32.mrb[0].mxu0
      %v1755 = vadd.f32 %v1310, %v1754
      %v1756 = vpop.f32.mrb[0].mxu0
      %1757 = vmatprep.mubr.bf16.mxu0 0
      %1758 = vmatmul.mubr.bf16.gmra.mrb[0].mxu0 %v1453
      %v1759 = vpop.f32.mrb[0].mxu0
      %v1760 = vadd.f32 %v1315, %v1759
      %v1761 = vpop.f32.mrb[0].mxu0
      %v1762 = vpop.f32.mrb[0].mxu0
      %v1763 = vadd.f32 %v1318, %v1762
      %v1764 = vpop.f32.mrb[0].mxu0
      %1765 = vmatprep.mubr.bf16.mxu0 0
      %1766 = vmatmul.mubr.bf16.gmra.mrb[0].mxu0 %v1455
      %v1767 = vpop.f32.mrb[0].mxu0
      %v1768 = vadd.f32 %v1323, %v1767
      %v1769 = vpop.f32.mrb[0].mxu0
      %v1770 = vpop.f32.mrb[0].mxu0
      %v1771 = vadd.f32 %v1326, %v1770
      %v1772 = vpop.f32.mrb[0].mxu0
      %1773 = vmatprep.mubr.bf16.mxu0 0
      %1774 = vmatmul.mubr.bf16.gmra.mrb[0].mxu0 %v1457
      %v1775 = vpop.f32.mrb[0].mxu0
      %v1776 = vadd.f32 %v1331, %v1775
      %v1777 = vpop.f32.mrb[0].mxu0
      %v1778 = vpop.f32.mrb[0].mxu0
      %v1779 = vadd.f32 %v1334, %v1778
      %v1780 = vpop.f32.mrb[0].mxu0
      %1781 = vmatprep.mubr.bf16.mxu0 0
      %1782 = vmatmul.mubr.bf16.gmra.mrb[0].mxu0 %v1459
      %v1783 = vpop.f32.mrb[0].mxu0
      %v1784 = vadd.f32 %v1339, %v1783
      %v1785 = vpop.f32.mrb[0].mxu0
      %v1786 = vpop.f32.mrb[0].mxu0
      %v1787 = vadd.f32 %v1342, %v1786
      %v1788 = vpop.f32.mrb[0].mxu0
      %1789 = vmatprep.mubr.bf16.mxu0 0
      %1790 = vmatmul.mubr.bf16.gmra.mrb[0].mxu0 %v1461
      %v1791 = vpop.f32.mrb[0].mxu0
      %v1792 = vadd.f32 %v1347, %v1791
      %v1793 = vpop.f32.mrb[0].mxu0
      %v1794 = vpop.f32.mrb[0].mxu0
      %v1795 = vadd.f32 %v1350, %v1794
      %v1796 = vpop.f32.mrb[0].mxu0
      %1797 = vmatprep.mubr.bf16.mxu0 0
      %1798 = vmatmul.mubr.bf16.gmra.mrb[0].mxu0 %v1463
      %v1799 = vpop.f32.mrb[0].mxu0
      %v1800 = vadd.f32 %v1355, %v1799
      %v1801 = vpop.f32.mrb[0].mxu0
      %v1802 = vpop.f32.mrb[0].mxu0
      %v1803 = vadd.f32 %v1358, %v1802
      %v1804 = vpop.f32.mrb[0].mxu0
      %1805 = vmatprep.mubr.bf16.mxu0 0
      %1806 = vmatmul.mubr.bf16.gmra.mrb[0].mxu0 %v1465
      %v1807 = vpop.f32.mrb[0].mxu0
      %v1808 = vadd.f32 %v1363, %v1807
      %v1809 = vpop.f32.mrb[0].mxu0
      %v1810 = vpop.f32.mrb[0].mxu0
      %v1811 = vadd.f32 %v1366, %v1810
      %v1812 = vpop.f32.mrb[0].mxu0
      %1813 = vmatprep.mubr.bf16.mxu0 0
      %1814 = vmatmul.mubr.bf16.gmra.mrb[0].mxu0 %v1467
      %v1815 = vpop.f32.mrb[0].mxu0
      %v1816 = vadd.f32 %v1371, %v1815
      %v1817 = vpop.f32.mrb[0].mxu0
      %v1818 = vpop.f32.mrb[0].mxu0
      %v1819 = vadd.f32 %v1374, %v1818
      %v1820 = vpop.f32.mrb[0].mxu0
      %1821 = vdwg.mxu0
      %s1822 = scalar_lea.vmem %s1, 32
      %v1823 = vld [vmem:[%s1822] sm:$0xf]
      %v1824 = vld [vmem:[%s1822 + $0x4] sm:$0xf]
      %v1825 = vld [vmem:[%s1822 + $0x8] sm:$0xf]
      %v1826 = vld [vmem:[%s1822 + $0xc] sm:$0xf]
      %vm1827 = vcmask 1046528
      %v1828 = vrot.slane %v525, 1
      %v1829 = vrot.slane %v526, 1
      %v1830 = vsel %vm1827, %v1828, %v1829
      %v1831 = vrot.slane %v527, 1
      %v1832 = vsel %vm1827, %v1829, %v1831
      %v1833 = vrot.slane %v528, 1
      %v1834 = vsel %vm1827, %v1831, %v1833
      %v1835 = vrot.slane %v529, 1
      %v1836 = vsel %vm1827, %v1833, %v1835
      %v1837 = vrot.slane %v530, 1
      %v1838 = vsel %vm1827, %v1835, %v1837
      %v1839 = vrot.slane %v531, 1
      %v1840 = vsel %vm1827, %v1837, %v1839
      %v1841 = vrot.slane %v532, 1
      %v1842 = vsel %vm1827, %v1839, %v1841
      %v1843 = vrot.slane %v533, 1
      %v1844 = vsel %vm1827, %v1841, %v1843
      %v1845 = vrot.slane %v534, 1
      %v1846 = vsel %vm1827, %v1843, %v1845
      %v1847 = vrot.slane %v535, 1
      %v1848 = vsel %vm1827, %v1845, %v1847
      %v1849 = vrot.slane %v536, 1
      %v1850 = vsel %vm1827, %v1847, %v1849
      %v1851 = vrot.slane %v537, 1
      %v1852 = vsel %vm1827, %v1849, %v1851
      %v1853 = vrot.slane %v538, 1
      %v1854 = vsel %vm1827, %v1851, %v1853
      %v1855 = vrot.slane %v539, 1
      %v1856 = vsel %vm1827, %v1853, %v1855
      %v1857 = vrot.slane %v540, 1
      %v1858 = vsel %vm1827, %v1855, %v1857
      %v1859 = vrot.slane %v541, 1
      %v1860 = vsel %vm1827, %v1857, %v1859
      %v1861 = vrot.slane %v542, 1
      %v1862 = vsel %vm1827, %v1859, %v1861
      %v1863 = vrot.slane %v543, 1
      %v1864 = vsel %vm1827, %v1861, %v1863
      %v1865 = vrot.slane %v544, 1
      %v1866 = vsel %vm1827, %v1863, %v1865
      %v1867 = vrot.slane %v545, 1
      %v1868 = vsel %vm1827, %v1865, %v1867
      %v1869 = vrot.slane %v546, 1
      %v1870 = vsel %vm1827, %v1867, %v1869
      %v1871 = vrot.slane %v547, 1
      %v1872 = vsel %vm1827, %v1869, %v1871
      %v1873 = vrot.slane %v548, 1
      %v1874 = vsel %vm1827, %v1871, %v1873
      %v1875 = vrot.slane %v549, 1
      %v1876 = vsel %vm1827, %v1873, %v1875
      %v1877 = vrot.slane %v550, 1
      %v1878 = vsel %vm1827, %v1875, %v1877
      %v1879 = vrot.slane %v551, 1
      %v1880 = vsel %vm1827, %v1877, %v1879
      %v1881 = vrot.slane %v552, 1
      %v1882 = vsel %vm1827, %v1879, %v1881
      %v1883 = vrot.slane %v553, 1
      %v1884 = vsel %vm1827, %v1881, %v1883
      %v1885 = vrot.slane %v554, 1
      %v1886 = vsel %vm1827, %v1883, %v1885
      %v1887 = vrot.slane %v555, 1
      %v1888 = vsel %vm1827, %v1885, %v1887
      %v1889 = vrot.slane %v556, 1
      %v1890 = vsel %vm1827, %v1887, %v1889
      %v1891 = vrot.slane %v557, 1
      %v1892 = vsel %vm1827, %v1889, %v1891
      %v1893 = vrot.slane %v558, 1
      %v1894 = vsel %vm1827, %v1891, %v1893
      %v1895 = vrot.slane %v559, 1
      %v1896 = vsel %vm1827, %v1893, %v1895
      %v1897 = vrot.slane %v560, 1
      %v1898 = vsel %vm1827, %v1895, %v1897
      %v1899 = vrot.slane %v561, 1
      %v1900 = vsel %vm1827, %v1897, %v1899
      %v1901 = vrot.slane %v562, 1
      %v1902 = vsel %vm1827, %v1899, %v1901
      %v1903 = vrot.slane %v563, 1
      %v1904 = vsel %vm1827, %v1901, %v1903
      %v1905 = vrot.slane %v564, 1
      %v1906 = vsel %vm1827, %v1903, %v1905
      %v1907 = vrot.slane %v565, 1
      %v1908 = vsel %vm1827, %v1905, %v1907
      %v1913 = vunpack.c.l.b16 %v1823
      %v1914 = vunpack.c.l.b16 %v1824
      %v1915 = vunpack.c.l.b16 %v1825
      %v1916 = vunpack.c.l.b16 %v1826
      %v1917 = vpack.c.b16 %v1914, %v1913
      %v1918 = vpack.c.b16 %v1916, %v1915
      %v1922 = vsel %vm903, %v1830, 0
      %v1925 = vsel %vm903, %v1832, 0
      %v1928 = vsel %vm903, %v1834, 0
      %v1931 = vsel %vm903, %v1836, 0
      %v1934 = vsel %vm903, %v1838, 0
      %v1937 = vsel %vm903, %v1840, 0
      %v1940 = vsel %vm903, %v1842, 0
      %v1943 = vsel %vm903, %v1844, 0
      %v1946 = vsel %vm903, %v1846, 0
      %v1949 = vsel %vm903, %v1848, 0
      %v1952 = vsel %vm903, %v1850, 0
      %v1955 = vsel %vm903, %v1852, 0
      %v1958 = vsel %vm903, %v1854, 0
      %v1961 = vsel %vm903, %v1856, 0
      %v1964 = vsel %vm903, %v1858, 0
      %v1967 = vsel %vm903, %v1860, 0
      %v1970 = vsel %vm903, %v1862, 0
      %v1973 = vsel %vm903, %v1864, 0
      %v1976 = vsel %vm903, %v1866, 0
      %v1979 = vsel %vm903, %v1868, 0
      %v1982 = vsel %vm903, %v1870, 0
      %v1985 = vsel %vm903, %v1872, 0
      %v1988 = vsel %vm903, %v1874, 0
      %v1991 = vsel %vm903, %v1876, 0
      %v1994 = vsel %vm903, %v1878, 0
      %v1997 = vsel %vm903, %v1880, 0
      %v2000 = vsel %vm903, %v1882, 0
      %v2003 = vsel %vm903, %v1884, 0
      %v2006 = vsel %vm903, %v1886, 0
      %v2009 = vsel %vm903, %v1888, 0
      %v2012 = vsel %vm903, %v1890, 0
      %v2015 = vsel %vm903, %v1892, 0
      %v2018 = vsel %vm903, %v1894, 0
      %v2021 = vsel %vm903, %v1896, 0
      %v2024 = vsel %vm903, %v1898, 0
      %v2027 = vsel %vm903, %v1900, 0
      %v2030 = vsel %vm903, %v1902, 0
      %v2033 = vsel %vm903, %v1904, 0
      %v2036 = vsel %vm903, %v1906, 0
      %v2039 = vsel %vm903, %v1908, 0
      %2041 = vmatprep.subr.bf16.mxu0 0
      %2042 = vmatpush1.bf16.msra.mxu0 %v1917
      %2043 = vmatprep.subr.bf16.mxu0 0
      %2044 = vmatpush1.bf16.msra.mxu0 %v1918
      %2045 = vmatprep.subr.bf16.mxu0 0
      %2046 = vmatpush1.bf16.msra.mxu0 0
      %2047 = vmatprep.subr.bf16.mxu0 0
      %2048 = vmatpush1.bf16.msra.mxu0 0
      %2049 = vmatprep.subr.bf16.mxu0 0
      %2050 = vmatpush1.bf16.msra.mxu0 0
      %2051 = vmatprep.subr.bf16.mxu0 0
      %2052 = vmatpush1.bf16.msra.mxu0 0
      %2053 = vmatprep.subr.bf16.mxu0 0
      %2054 = vmatpush1.bf16.msra.mxu0 0
      %2055 = vmatprep.subr.bf16.mxu0 0
      %2056 = vmatpush1.bf16.msra.mxu0 0
      %2057 = vmatprep.subr.bf16.mxu0 0
      %2058 = vmatpush1.bf16.msra.mxu0 0
      %2059 = vmatprep.subr.bf16.mxu0 0
      %2060 = vmatpush1.bf16.msra.mxu0 0
      %2061 = vmatprep.subr.bf16.mxu0 0
      %2062 = vmatpush1.bf16.msra.mxu0 0
      %2063 = vmatprep.subr.bf16.mxu0 0
      %2064 = vmatpush1.bf16.msra.mxu0 0
      %2065 = vmatprep.subr.bf16.mxu0 0
      %2066 = vmatpush1.bf16.msra.mxu0 0
      %2067 = vmatprep.subr.bf16.mxu0 0
      %2068 = vmatpush1.bf16.msra.mxu0 0
      %2069 = vmatprep.subr.bf16.mxu0 0
      %2070 = vmatpush1.bf16.msra.mxu0 0
      %2071 = vmatprep.subr.bf16.mxu0 0
      %2072 = vmatpush1.bf16.msra.mxu0 0
      %2073 = vmatprep.mubr.bf16.mxu0 0
      %2074 = vmatmul.mubr.bf16.gmra.mrb[0].mxu0 %v1922
      %v2075 = vpop.f32.mrb[0].mxu0
      %v2076 = vadd.f32 0.0, %v2075
      %v2077 = vpop.f32.mrb[0].mxu0
      %v2078 = vpop.f32.mrb[0].mxu0
      %v2079 = vadd.f32 0.0, %v2078
      %v2080 = vpop.f32.mrb[0].mxu0
      %2081 = vmatprep.mubr.bf16.mxu0 0
      %2082 = vmatmul.mubr.bf16.gmra.mrb[0].mxu0 %v1925
      %v2083 = vpop.f32.mrb[0].mxu0
      %v2084 = vadd.f32 0.0, %v2083
      %v2085 = vpop.f32.mrb[0].mxu0
      %v2086 = vpop.f32.mrb[0].mxu0
      %v2087 = vadd.f32 0.0, %v2086
      %v2088 = vpop.f32.mrb[0].mxu0
      %2089 = vmatprep.mubr.bf16.mxu0 0
      %2090 = vmatmul.mubr.bf16.gmra.mrb[0].mxu0 %v1928
      %v2091 = vpop.f32.mrb[0].mxu0
      %v2092 = vadd.f32 0.0, %v2091
      %v2093 = vpop.f32.mrb[0].mxu0
      %v2094 = vpop.f32.mrb[0].mxu0
      %v2095 = vadd.f32 0.0, %v2094
      %v2096 = vpop.f32.mrb[0].mxu0
      %2097 = vmatprep.mubr.bf16.mxu0 0
      %2098 = vmatmul.mubr.bf16.gmra.mrb[0].mxu0 %v1931
      %v2099 = vpop.f32.mrb[0].mxu0
      %v2100 = vadd.f32 0.0, %v2099
      %v2101 = vpop.f32.mrb[0].mxu0
      %v2102 = vpop.f32.mrb[0].mxu0
      %v2103 = vadd.f32 0.0, %v2102
      %v2104 = vpop.f32.mrb[0].mxu0
      %2105 = vmatprep.mubr.bf16.mxu0 0
      %2106 = vmatmul.mubr.bf16.gmra.mrb[0].mxu0 %v1934
      %v2107 = vpop.f32.mrb[0].mxu0
      %v2108 = vadd.f32 0.0, %v2107
      %v2109 = vpop.f32.mrb[0].mxu0
      %v2110 = vpop.f32.mrb[0].mxu0
      %v2111 = vadd.f32 0.0, %v2110
      %v2112 = vpop.f32.mrb[0].mxu0
      %2113 = vmatprep.mubr.bf16.mxu0 0
      %2114 = vmatmul.mubr.bf16.gmra.mrb[0].mxu0 %v1937
      %v2115 = vpop.f32.mrb[0].mxu0
      %v2116 = vadd.f32 0.0, %v2115
      %v2117 = vpop.f32.mrb[0].mxu0
      %v2118 = vpop.f32.mrb[0].mxu0
      %v2119 = vadd.f32 0.0, %v2118
      %v2120 = vpop.f32.mrb[0].mxu0
      %2121 = vmatprep.mubr.bf16.mxu0 0
      %2122 = vmatmul.mubr.bf16.gmra.mrb[0].mxu0 %v1940
      %v2123 = vpop.f32.mrb[0].mxu0
      %v2124 = vadd.f32 0.0, %v2123
      %v2125 = vpop.f32.mrb[0].mxu0
      %v2126 = vpop.f32.mrb[0].mxu0
      %v2127 = vadd.f32 0.0, %v2126
      %v2128 = vpop.f32.mrb[0].mxu0
      %2129 = vmatprep.mubr.bf16.mxu0 0
      %2130 = vmatmul.mubr.bf16.gmra.mrb[0].mxu0 %v1943
      %v2131 = vpop.f32.mrb[0].mxu0
      %v2132 = vadd.f32 0.0, %v2131
      %v2133 = vpop.f32.mrb[0].mxu0
      %v2134 = vpop.f32.mrb[0].mxu0
      %v2135 = vadd.f32 0.0, %v2134
      %v2136 = vpop.f32.mrb[0].mxu0
      %2137 = vmatprep.mubr.bf16.mxu0 0
      %2138 = vmatmul.mubr.bf16.gmra.mrb[0].mxu0 %v1946
      %v2139 = vpop.f32.mrb[0].mxu0
      %v2140 = vadd.f32 0.0, %v2139
      %v2141 = vpop.f32.mrb[0].mxu0
      %v2142 = vpop.f32.mrb[0].mxu0
      %v2143 = vadd.f32 0.0, %v2142
      %v2144 = vpop.f32.mrb[0].mxu0
      %2145 = vmatprep.mubr.bf16.mxu0 0
      %2146 = vmatmul.mubr.bf16.gmra.mrb[0].mxu0 %v1949
      %v2147 = vpop.f32.mrb[0].mxu0
      %v2148 = vadd.f32 0.0, %v2147
      %v2149 = vpop.f32.mrb[0].mxu0
      %v2150 = vpop.f32.mrb[0].mxu0
      %v2151 = vadd.f32 0.0, %v2150
      %v2152 = vpop.f32.mrb[0].mxu0
      %2153 = vmatprep.mubr.bf16.mxu0 0
      %2154 = vmatmul.mubr.bf16.gmra.mrb[0].mxu0 %v1952
      %v2155 = vpop.f32.mrb[0].mxu0
      %v2156 = vadd.f32 0.0, %v2155
      %v2157 = vpop.f32.mrb[0].mxu0
      %v2158 = vpop.f32.mrb[0].mxu0
      %v2159 = vadd.f32 0.0, %v2158
      %v2160 = vpop.f32.mrb[0].mxu0
      %2161 = vmatprep.mubr.bf16.mxu0 0
      %2162 = vmatmul.mubr.bf16.gmra.mrb[0].mxu0 %v1955
      %v2163 = vpop.f32.mrb[0].mxu0
      %v2164 = vadd.f32 0.0, %v2163
      %v2165 = vpop.f32.mrb[0].mxu0
      %v2166 = vpop.f32.mrb[0].mxu0
      %v2167 = vadd.f32 0.0, %v2166
      %v2168 = vpop.f32.mrb[0].mxu0
      %2169 = vmatprep.mubr.bf16.mxu0 0
      %2170 = vmatmul.mubr.bf16.gmra.mrb[0].mxu0 %v1958
      %v2171 = vpop.f32.mrb[0].mxu0
      %v2172 = vadd.f32 0.0, %v2171
      %v2173 = vpop.f32.mrb[0].mxu0
      %v2174 = vpop.f32.mrb[0].mxu0
      %v2175 = vadd.f32 0.0, %v2174
      %v2176 = vpop.f32.mrb[0].mxu0
      %2177 = vmatprep.mubr.bf16.mxu0 0
      %2178 = vmatmul.mubr.bf16.gmra.mrb[0].mxu0 %v1961
      %v2179 = vpop.f32.mrb[0].mxu0
      %v2180 = vadd.f32 0.0, %v2179
      %v2181 = vpop.f32.mrb[0].mxu0
      %v2182 = vpop.f32.mrb[0].mxu0
      %v2183 = vadd.f32 0.0, %v2182
      %v2184 = vpop.f32.mrb[0].mxu0
      %2185 = vmatprep.mubr.bf16.mxu0 0
      %2186 = vmatmul.mubr.bf16.gmra.mrb[0].mxu0 %v1964
      %v2187 = vpop.f32.mrb[0].mxu0
      %v2188 = vadd.f32 0.0, %v2187
      %v2189 = vpop.f32.mrb[0].mxu0
      %v2190 = vpop.f32.mrb[0].mxu0
      %v2191 = vadd.f32 0.0, %v2190
      %v2192 = vpop.f32.mrb[0].mxu0
      %2193 = vmatprep.mubr.bf16.mxu0 0
      %2194 = vmatmul.mubr.bf16.gmra.mrb[0].mxu0 %v1967
      %v2195 = vpop.f32.mrb[0].mxu0
      %v2196 = vadd.f32 0.0, %v2195
      %v2197 = vpop.f32.mrb[0].mxu0
      %v2198 = vpop.f32.mrb[0].mxu0
      %v2199 = vadd.f32 0.0, %v2198
      %v2200 = vpop.f32.mrb[0].mxu0
      %2201 = vmatprep.mubr.bf16.mxu0 0
      %2202 = vmatmul.mubr.bf16.gmra.mrb[0].mxu0 %v1970
      %v2203 = vpop.f32.mrb[0].mxu0
      %v2204 = vadd.f32 0.0, %v2203
      %v2205 = vpop.f32.mrb[0].mxu0
      %v2206 = vpop.f32.mrb[0].mxu0
      %v2207 = vadd.f32 0.0, %v2206
      %v2208 = vpop.f32.mrb[0].mxu0
      %2209 = vmatprep.mubr.bf16.mxu0 0
      %2210 = vmatmul.mubr.bf16.gmra.mrb[0].mxu0 %v1973
      %v2211 = vpop.f32.mrb[0].mxu0
      %v2212 = vadd.f32 0.0, %v2211
      %v2213 = vpop.f32.mrb[0].mxu0
      %v2214 = vpop.f32.mrb[0].mxu0
      %v2215 = vadd.f32 0.0, %v2214
      %v2216 = vpop.f32.mrb[0].mxu0
      %2217 = vmatprep.mubr.bf16.mxu0 0
      %2218 = vmatmul.mubr.bf16.gmra.mrb[0].mxu0 %v1976
      %v2219 = vpop.f32.mrb[0].mxu0
      %v2220 = vadd.f32 0.0, %v2219
      %v2221 = vpop.f32.mrb[0].mxu0
      %v2222 = vpop.f32.mrb[0].mxu0
      %v2223 = vadd.f32 0.0, %v2222
      %v2224 = vpop.f32.mrb[0].mxu0
      %2225 = vmatprep.mubr.bf16.mxu0 0
      %2226 = vmatmul.mubr.bf16.gmra.mrb[0].mxu0 %v1979
      %v2227 = vpop.f32.mrb[0].mxu0
      %v2228 = vadd.f32 0.0, %v2227
      %v2229 = vpop.f32.mrb[0].mxu0
      %v2230 = vpop.f32.mrb[0].mxu0
      %v2231 = vadd.f32 0.0, %v2230
      %v2232 = vpop.f32.mrb[0].mxu0
      %2233 = vmatprep.mubr.bf16.mxu0 0
      %2234 = vmatmul.mubr.bf16.gmra.mrb[0].mxu0 %v1982
      %v2235 = vpop.f32.mrb[0].mxu0
      %v2236 = vadd.f32 0.0, %v2235
      %v2237 = vpop.f32.mrb[0].mxu0
      %v2238 = vpop.f32.mrb[0].mxu0
      %v2239 = vadd.f32 0.0, %v2238
      %v2240 = vpop.f32.mrb[0].mxu0
      %2241 = vmatprep.mubr.bf16.mxu0 0
      %2242 = vmatmul.mubr.bf16.gmra.mrb[0].mxu0 %v1985
      %v2243 = vpop.f32.mrb[0].mxu0
      %v2244 = vadd.f32 0.0, %v2243
      %v2245 = vpop.f32.mrb[0].mxu0
      %v2246 = vpop.f32.mrb[0].mxu0
      %v2247 = vadd.f32 0.0, %v2246
      %v2248 = vpop.f32.mrb[0].mxu0
      %2249 = vmatprep.mubr.bf16.mxu0 0
      %2250 = vmatmul.mubr.bf16.gmra.mrb[0].mxu0 %v1988
      %v2251 = vpop.f32.mrb[0].mxu0
      %v2252 = vadd.f32 0.0, %v2251
      %v2253 = vpop.f32.mrb[0].mxu0
      %v2254 = vpop.f32.mrb[0].mxu0
      %v2255 = vadd.f32 0.0, %v2254
      %v2256 = vpop.f32.mrb[0].mxu0
      %2257 = vmatprep.mubr.bf16.mxu0 0
      %2258 = vmatmul.mubr.bf16.gmra.mrb[0].mxu0 %v1991
      %v2259 = vpop.f32.mrb[0].mxu0
      %v2260 = vadd.f32 0.0, %v2259
      %v2261 = vpop.f32.mrb[0].mxu0
      %v2262 = vpop.f32.mrb[0].mxu0
      %v2263 = vadd.f32 0.0, %v2262
      %v2264 = vpop.f32.mrb[0].mxu0
      %2265 = vmatprep.mubr.bf16.mxu0 0
      %2266 = vmatmul.mubr.bf16.gmra.mrb[0].mxu0 %v1994
      %v2267 = vpop.f32.mrb[0].mxu0
      %v2268 = vadd.f32 0.0, %v2267
      %v2269 = vpop.f32.mrb[0].mxu0
      %v2270 = vpop.f32.mrb[0].mxu0
      %v2271 = vadd.f32 0.0, %v2270
      %v2272 = vpop.f32.mrb[0].mxu0
      %2273 = vmatprep.mubr.bf16.mxu0 0
      %2274 = vmatmul.mubr.bf16.gmra.mrb[0].mxu0 %v1997
      %v2275 = vpop.f32.mrb[0].mxu0
      %v2276 = vadd.f32 0.0, %v2275
      %v2277 = vpop.f32.mrb[0].mxu0
      %v2278 = vpop.f32.mrb[0].mxu0
      %v2279 = vadd.f32 0.0, %v2278
      %v2280 = vpop.f32.mrb[0].mxu0
      %2281 = vmatprep.mubr.bf16.mxu0 0
      %2282 = vmatmul.mubr.bf16.gmra.mrb[0].mxu0 %v2000
      %v2283 = vpop.f32.mrb[0].mxu0
      %v2284 = vadd.f32 0.0, %v2283
      %v2285 = vpop.f32.mrb[0].mxu0
      %v2286 = vpop.f32.mrb[0].mxu0
      %v2287 = vadd.f32 0.0, %v2286
      %v2288 = vpop.f32.mrb[0].mxu0
      %2289 = vmatprep.mubr.bf16.mxu0 0
      %2290 = vmatmul.mubr.bf16.gmra.mrb[0].mxu0 %v2003
      %v2291 = vpop.f32.mrb[0].mxu0
      %v2292 = vadd.f32 0.0, %v2291
      %v2293 = vpop.f32.mrb[0].mxu0
      %v2294 = vpop.f32.mrb[0].mxu0
      %v2295 = vadd.f32 0.0, %v2294
      %v2296 = vpop.f32.mrb[0].mxu0
      %2297 = vmatprep.mubr.bf16.mxu0 0
      %2298 = vmatmul.mubr.bf16.gmra.mrb[0].mxu0 %v2006
      %v2299 = vpop.f32.mrb[0].mxu0
      %v2300 = vadd.f32 0.0, %v2299
      %v2301 = vpop.f32.mrb[0].mxu0
      %v2302 = vpop.f32.mrb[0].mxu0
      %v2303 = vadd.f32 0.0, %v2302
      %v2304 = vpop.f32.mrb[0].mxu0
      %2305 = vmatprep.mubr.bf16.mxu0 0
      %2306 = vmatmul.mubr.bf16.gmra.mrb[0].mxu0 %v2009
      %v2307 = vpop.f32.mrb[0].mxu0
      %v2308 = vadd.f32 0.0, %v2307
      %v2309 = vpop.f32.mrb[0].mxu0
      %v2310 = vpop.f32.mrb[0].mxu0
      %v2311 = vadd.f32 0.0, %v2310
      %v2312 = vpop.f32.mrb[0].mxu0
      %2313 = vmatprep.mubr.bf16.mxu0 0
      %2314 = vmatmul.mubr.bf16.gmra.mrb[0].mxu0 %v2012
      %v2315 = vpop.f32.mrb[0].mxu0
      %v2316 = vadd.f32 0.0, %v2315
      %v2317 = vpop.f32.mrb[0].mxu0
      %v2318 = vpop.f32.mrb[0].mxu0
      %v2319 = vadd.f32 0.0, %v2318
      %v2320 = vpop.f32.mrb[0].mxu0
      %2321 = vmatprep.mubr.bf16.mxu0 0
      %2322 = vmatmul.mubr.bf16.gmra.mrb[0].mxu0 %v2015
      %v2323 = vpop.f32.mrb[0].mxu0
      %v2324 = vadd.f32 0.0, %v2323
      %v2325 = vpop.f32.mrb[0].mxu0
      %v2326 = vpop.f32.mrb[0].mxu0
      %v2327 = vadd.f32 0.0, %v2326
      %v2328 = vpop.f32.mrb[0].mxu0
      %2329 = vmatprep.mubr.bf16.mxu0 0
      %2330 = vmatmul.mubr.bf16.gmra.mrb[0].mxu0 %v2018
      %v2331 = vpop.f32.mrb[0].mxu0
      %v2332 = vadd.f32 0.0, %v2331
      %v2333 = vpop.f32.mrb[0].mxu0
      %v2334 = vpop.f32.mrb[0].mxu0
      %v2335 = vadd.f32 0.0, %v2334
      %v2336 = vpop.f32.mrb[0].mxu0
      %2337 = vmatprep.mubr.bf16.mxu0 0
      %2338 = vmatmul.mubr.bf16.gmra.mrb[0].mxu0 %v2021
      %v2339 = vpop.f32.mrb[0].mxu0
      %v2340 = vadd.f32 0.0, %v2339
      %v2341 = vpop.f32.mrb[0].mxu0
      %v2342 = vpop.f32.mrb[0].mxu0
      %v2343 = vadd.f32 0.0, %v2342
      %v2344 = vpop.f32.mrb[0].mxu0
      %2345 = vmatprep.mubr.bf16.mxu0 0
      %2346 = vmatmul.mubr.bf16.gmra.mrb[0].mxu0 %v2024
      %v2347 = vpop.f32.mrb[0].mxu0
      %v2348 = vadd.f32 0.0, %v2347
      %v2349 = vpop.f32.mrb[0].mxu0
      %v2350 = vpop.f32.mrb[0].mxu0
      %v2351 = vadd.f32 0.0, %v2350
      %v2352 = vpop.f32.mrb[0].mxu0
      %2353 = vmatprep.mubr.bf16.mxu0 0
      %2354 = vmatmul.mubr.bf16.gmra.mrb[0].mxu0 %v2027
      %v2355 = vpop.f32.mrb[0].mxu0
      %v2356 = vadd.f32 0.0, %v2355
      %v2357 = vpop.f32.mrb[0].mxu0
      %v2358 = vpop.f32.mrb[0].mxu0
      %v2359 = vadd.f32 0.0, %v2358
      %v2360 = vpop.f32.mrb[0].mxu0
      %2361 = vmatprep.mubr.bf16.mxu0 0
      %2362 = vmatmul.mubr.bf16.gmra.mrb[0].mxu0 %v2030
      %v2363 = vpop.f32.mrb[0].mxu0
      %v2364 = vadd.f32 0.0, %v2363
      %v2365 = vpop.f32.mrb[0].mxu0
      %v2366 = vpop.f32.mrb[0].mxu0
      %v2367 = vadd.f32 0.0, %v2366
      %v2368 = vpop.f32.mrb[0].mxu0
      %2369 = vmatprep.mubr.bf16.mxu0 0
      %2370 = vmatmul.mubr.bf16.gmra.mrb[0].mxu0 %v2033
      %v2371 = vpop.f32.mrb[0].mxu0
      %v2372 = vadd.f32 0.0, %v2371
      %v2373 = vpop.f32.mrb[0].mxu0
      %v2374 = vpop.f32.mrb[0].mxu0
      %v2375 = vadd.f32 0.0, %v2374
      %v2376 = vpop.f32.mrb[0].mxu0
      %2377 = vmatprep.mubr.bf16.mxu0 0
      %2378 = vmatmul.mubr.bf16.gmra.mrb[0].mxu0 %v2036
      %v2379 = vpop.f32.mrb[0].mxu0
      %v2380 = vadd.f32 0.0, %v2379
      %v2381 = vpop.f32.mrb[0].mxu0
      %v2382 = vpop.f32.mrb[0].mxu0
      %v2383 = vadd.f32 0.0, %v2382
      %v2384 = vpop.f32.mrb[0].mxu0
      %2385 = vmatprep.mubr.bf16.mxu0 0
      %2386 = vmatmul.mubr.bf16.gmra.mrb[0].mxu0 %v2039
      %v2387 = vpop.f32.mrb[0].mxu0
      %v2388 = vadd.f32 0.0, %v2387
      %v2389 = vpop.f32.mrb[0].mxu0
      %v2390 = vpop.f32.mrb[0].mxu0
      %v2391 = vadd.f32 0.0, %v2390
      %v2392 = vpop.f32.mrb[0].mxu0
      %2393 = vdwg.mxu0
      %v2394 = vadd.f32 %v1504, %v2076
      %v2395 = vadd.f32 %v1507, %v2079
      %v2396 = vadd.f32 %v1512, %v2084
      %v2397 = vadd.f32 %v1515, %v2087
      %v2398 = vadd.f32 %v1520, %v2092
      %v2399 = vadd.f32 %v1523, %v2095
      %v2400 = vadd.f32 %v1528, %v2100
      %v2401 = vadd.f32 %v1531, %v2103
      %v2402 = vadd.f32 %v1536, %v2108
      %v2403 = vadd.f32 %v1539, %v2111
      %v2404 = vadd.f32 %v1544, %v2116
      %v2405 = vadd.f32 %v1547, %v2119
      %v2406 = vadd.f32 %v1552, %v2124
      %v2407 = vadd.f32 %v1555, %v2127
      %v2408 = vadd.f32 %v1560, %v2132
      %v2409 = vadd.f32 %v1563, %v2135
      %v2410 = vadd.f32 %v1568, %v2140
      %v2411 = vadd.f32 %v1571, %v2143
      %v2412 = vadd.f32 %v1576, %v2148
      %v2413 = vadd.f32 %v1579, %v2151
      %v2414 = vadd.f32 %v1584, %v2156
      %v2415 = vadd.f32 %v1587, %v2159
      %v2416 = vadd.f32 %v1592, %v2164
      %v2417 = vadd.f32 %v1595, %v2167
      %v2418 = vadd.f32 %v1600, %v2172
      %v2419 = vadd.f32 %v1603, %v2175
      %v2420 = vadd.f32 %v1608, %v2180
      %v2421 = vadd.f32 %v1611, %v2183
      %v2422 = vadd.f32 %v1616, %v2188
      %v2423 = vadd.f32 %v1619, %v2191
      %v2424 = vadd.f32 %v1624, %v2196
      %v2425 = vadd.f32 %v1627, %v2199
      %v2426 = vadd.f32 %v1632, %v2204
      %v2427 = vadd.f32 %v1635, %v2207
      %v2428 = vadd.f32 %v1640, %v2212
      %v2429 = vadd.f32 %v1643, %v2215
      %v2430 = vadd.f32 %v1648, %v2220
      %v2431 = vadd.f32 %v1651, %v2223
      %v2432 = vadd.f32 %v1656, %v2228
      %v2433 = vadd.f32 %v1659, %v2231
      %v2434 = vadd.f32 %v1664, %v2236
      %v2435 = vadd.f32 %v1667, %v2239
      %v2436 = vadd.f32 %v1672, %v2244
      %v2437 = vadd.f32 %v1675, %v2247
      %v2438 = vadd.f32 %v1680, %v2252
      %v2439 = vadd.f32 %v1683, %v2255
      %v2440 = vadd.f32 %v1688, %v2260
      %v2441 = vadd.f32 %v1691, %v2263
      %v2442 = vadd.f32 %v1696, %v2268
      %v2443 = vadd.f32 %v1699, %v2271
      %v2444 = vadd.f32 %v1704, %v2276
      %v2445 = vadd.f32 %v1707, %v2279
      %v2446 = vadd.f32 %v1712, %v2284
      %v2447 = vadd.f32 %v1715, %v2287
      %v2448 = vadd.f32 %v1720, %v2292
      %v2449 = vadd.f32 %v1723, %v2295
      %v2450 = vadd.f32 %v1728, %v2300
      %v2451 = vadd.f32 %v1731, %v2303
      %v2452 = vadd.f32 %v1736, %v2308
      %v2453 = vadd.f32 %v1739, %v2311
      %v2454 = vadd.f32 %v1744, %v2316
      %v2455 = vadd.f32 %v1747, %v2319
      %v2456 = vadd.f32 %v1752, %v2324
      %v2457 = vadd.f32 %v1755, %v2327
      %v2458 = vadd.f32 %v1760, %v2332
      %v2459 = vadd.f32 %v1763, %v2335
      %v2460 = vadd.f32 %v1768, %v2340
      %v2461 = vadd.f32 %v1771, %v2343
      %v2462 = vadd.f32 %v1776, %v2348
      %v2463 = vadd.f32 %v1779, %v2351
      %v2464 = vadd.f32 %v1784, %v2356
      %v2465 = vadd.f32 %v1787, %v2359
      %v2466 = vadd.f32 %v1792, %v2364
      %v2467 = vadd.f32 %v1795, %v2367
      %v2468 = vadd.f32 %v1800, %v2372
      %v2469 = vadd.f32 %v1803, %v2375
      %v2470 = vadd.f32 %v1808, %v2380
      %v2471 = vadd.f32 %v1811, %v2383
      %v2472 = vadd.f32 %v1816, %v2388
      %v2473 = vadd.f32 %v1819, %v2391
      %s2474 = scalar_lea.vmem %s1, 48
      %v2475 = vld [vmem:[%s2474] sm:$0xf]
      %v2476 = vld [vmem:[%s2474 + $0x4] sm:$0xf]
      %v2477 = vld [vmem:[%s2474 + $0x8] sm:$0xf]
      %v2478 = vld [vmem:[%s2474 + $0xc] sm:$0xf]
      %v2483 = vunpack.c.l.b16 %v344
      %v2484 = vunpack.c.l.b16 %v345
      %v2485 = vunpack.c.l.b16 %v346
      %v2486 = vunpack.c.l.b16 %v347
      %v2487 = vpack.c.b16 %v450, %v449
      %v2488 = vpack.c.b16 %v452, %v451
      %v2489 = vpack.c.b16 %v454, %v453
      %v2490 = vpack.c.b16 %v456, %v455
      %v2491 = vpack.c.b16 %v458, %v457
      %v2492 = vpack.c.b16 %v460, %v459
      %v2493 = vpack.c.b16 %v462, %v461
      %v2494 = vpack.c.b16 %v464, %v463
      %v2495 = vpack.c.b16 %v466, %v465
      %v2496 = vpack.c.b16 %v468, %v467
      %v2497 = vpack.c.b16 %v470, %v469
      %v2498 = vpack.c.b16 %v472, %v471
      %v2499 = vpack.c.b16 %v474, %v473
      %v2500 = vpack.c.b16 %v476, %v475
      %v2501 = vpack.c.b16 %v478, %v477
      %v2502 = vpack.c.b16 %v480, %v479
      %v2503 = vpack.c.b16 %v482, %v481
      %v2504 = vpack.c.b16 %v484, %v483
      %v2505 = vpack.c.b16 %v486, %v485
      %v2506 = vpack.c.b16 %v488, %v487
      %v2507 = vpack.c.b16 %v490, %v489
      %v2508 = vpack.c.b16 %v492, %v491
      %v2509 = vpack.c.b16 %v494, %v493
      %v2510 = vpack.c.b16 %v496, %v495
      %v2511 = vpack.c.b16 %v498, %v497
      %v2512 = vpack.c.b16 %v500, %v499
      %v2513 = vpack.c.b16 %v502, %v501
      %v2514 = vpack.c.b16 %v504, %v503
      %v2515 = vpack.c.b16 %v506, %v505
      %v2516 = vpack.c.b16 %v508, %v507
      %v2517 = vpack.c.b16 %v510, %v509
      %v2518 = vpack.c.b16 %v512, %v511
      %v2519 = vpack.c.b16 %v514, %v513
      %v2520 = vpack.c.b16 %v516, %v515
      %v2521 = vpack.c.b16 %v518, %v517
      %v2522 = vpack.c.b16 %v520, %v519
      %v2523 = vpack.c.b16 %v522, %v521
      %v2524 = vpack.c.b16 %v524, %v523
      %v2525 = vpack.c.b16 %v2484, %v2483
      %v2526 = vpack.c.b16 %v2486, %v2485
      %v2531 = vunpack.c.l.b16 %v2475
      %v2532 = vunpack.c.l.b16 %v2476
      %v2533 = vunpack.c.l.b16 %v2477
      %v2534 = vunpack.c.l.b16 %v2478
      %v2535 = vpack.c.b16 %v2532, %v2531
      %v2536 = vpack.c.b16 %v2534, %v2533
      %v2540 = vsel %vm903, %v2487, 0
      %v2543 = vsel %vm903, %v2488, 0
      %v2546 = vsel %vm903, %v2489, 0
      %v2549 = vsel %vm903, %v2490, 0
      %v2552 = vsel %vm903, %v2491, 0
      %v2555 = vsel %vm903, %v2492, 0
      %v2558 = vsel %vm903, %v2493, 0
      %v2561 = vsel %vm903, %v2494, 0
      %v2564 = vsel %vm903, %v2495, 0
      %v2567 = vsel %vm903, %v2496, 0
      %v2570 = vsel %vm903, %v2497, 0
      %v2573 = vsel %vm903, %v2498, 0
      %v2576 = vsel %vm903, %v2499, 0
      %v2579 = vsel %vm903, %v2500, 0
      %v2582 = vsel %vm903, %v2501, 0
      %v2585 = vsel %vm903, %v2502, 0
      %v2588 = vsel %vm903, %v2503, 0
      %v2591 = vsel %vm903, %v2504, 0
      %v2594 = vsel %vm903, %v2505, 0
      %v2597 = vsel %vm903, %v2506, 0
      %v2600 = vsel %vm903, %v2507, 0
      %v2603 = vsel %vm903, %v2508, 0
      %v2606 = vsel %vm903, %v2509, 0
      %v2609 = vsel %vm903, %v2510, 0
      %v2612 = vsel %vm903, %v2511, 0
      %v2615 = vsel %vm903, %v2512, 0
      %v2618 = vsel %vm903, %v2513, 0
      %v2621 = vsel %vm903, %v2514, 0
      %v2624 = vsel %vm903, %v2515, 0
      %v2627 = vsel %vm903, %v2516, 0
      %v2630 = vsel %vm903, %v2517, 0
      %v2633 = vsel %vm903, %v2518, 0
      %v2636 = vsel %vm903, %v2519, 0
      %v2639 = vsel %vm903, %v2520, 0
      %v2642 = vsel %vm903, %v2521, 0
      %v2645 = vsel %vm903, %v2522, 0
      %v2648 = vsel %vm903, %v2523, 0
      %v2651 = vsel %vm903, %v2524, 0
      %v2654 = vsel %vm903, %v2525, 0
      %v2657 = vsel %vm903, %v2526, 0
      %2659 = vmatprep.subr.bf16.mxu0 0
      %2660 = vmatpush1.bf16.msra.mxu0 %v2535
      %2661 = vmatprep.subr.bf16.mxu0 0
      %2662 = vmatpush1.bf16.msra.mxu0 %v2536
      %2663 = vmatprep.subr.bf16.mxu0 0
      %2664 = vmatpush1.bf16.msra.mxu0 0
      %2665 = vmatprep.subr.bf16.mxu0 0
      %2666 = vmatpush1.bf16.msra.mxu0 0
      %2667 = vmatprep.subr.bf16.mxu0 0
      %2668 = vmatpush1.bf16.msra.mxu0 0
      %2669 = vmatprep.subr.bf16.mxu0 0
      %2670 = vmatpush1.bf16.msra.mxu0 0
      %2671 = vmatprep.subr.bf16.mxu0 0
      %2672 = vmatpush1.bf16.msra.mxu0 0
      %2673 = vmatprep.subr.bf16.mxu0 0
      %2674 = vmatpush1.bf16.msra.mxu0 0
      %2675 = vmatprep.subr.bf16.mxu0 0
      %2676 = vmatpush1.bf16.msra.mxu0 0
      %2677 = vmatprep.subr.bf16.mxu0 0
      %2678 = vmatpush1.bf16.msra.mxu0 0
      %2679 = vmatprep.subr.bf16.mxu0 0
      %2680 = vmatpush1.bf16.msra.mxu0 0
      %2681 = vmatprep.subr.bf16.mxu0 0
      %2682 = vmatpush1.bf16.msra.mxu0 0
      %2683 = vmatprep.subr.bf16.mxu0 0
      %2684 = vmatpush1.bf16.msra.mxu0 0
      %2685 = vmatprep.subr.bf16.mxu0 0
      %2686 = vmatpush1.bf16.msra.mxu0 0
      %2687 = vmatprep.subr.bf16.mxu0 0
      %2688 = vmatpush1.bf16.msra.mxu0 0
      %2689 = vmatprep.subr.bf16.mxu0 0
      %2690 = vmatpush1.bf16.msra.mxu0 0
      %2691 = vmatprep.mubr.bf16.mxu0 0
      %2692 = vmatmul.mubr.bf16.gmra.mrb[0].mxu0 %v2540
      %v2693 = vpop.f32.mrb[0].mxu0
      %v2694 = vadd.f32 0.0, %v2693
      %v2695 = vpop.f32.mrb[0].mxu0
      %v2696 = vpop.f32.mrb[0].mxu0
      %v2697 = vadd.f32 0.0, %v2696
      %v2698 = vpop.f32.mrb[0].mxu0
      %2699 = vmatprep.mubr.bf16.mxu0 0
      %2700 = vmatmul.mubr.bf16.gmra.mrb[0].mxu0 %v2543
      %v2701 = vpop.f32.mrb[0].mxu0
      %v2702 = vadd.f32 0.0, %v2701
      %v2703 = vpop.f32.mrb[0].mxu0
      %v2704 = vpop.f32.mrb[0].mxu0
      %v2705 = vadd.f32 0.0, %v2704
      %v2706 = vpop.f32.mrb[0].mxu0
      %2707 = vmatprep.mubr.bf16.mxu0 0
      %2708 = vmatmul.mubr.bf16.gmra.mrb[0].mxu0 %v2546
      %v2709 = vpop.f32.mrb[0].mxu0
      %v2710 = vadd.f32 0.0, %v2709
      %v2711 = vpop.f32.mrb[0].mxu0
      %v2712 = vpop.f32.mrb[0].mxu0
      %v2713 = vadd.f32 0.0, %v2712
      %v2714 = vpop.f32.mrb[0].mxu0
      %2715 = vmatprep.mubr.bf16.mxu0 0
      %2716 = vmatmul.mubr.bf16.gmra.mrb[0].mxu0 %v2549
      %v2717 = vpop.f32.mrb[0].mxu0
      %v2718 = vadd.f32 0.0, %v2717
      %v2719 = vpop.f32.mrb[0].mxu0
      %v2720 = vpop.f32.mrb[0].mxu0
      %v2721 = vadd.f32 0.0, %v2720
      %v2722 = vpop.f32.mrb[0].mxu0
      %2723 = vmatprep.mubr.bf16.mxu0 0
      %2724 = vmatmul.mubr.bf16.gmra.mrb[0].mxu0 %v2552
      %v2725 = vpop.f32.mrb[0].mxu0
      %v2726 = vadd.f32 0.0, %v2725
      %v2727 = vpop.f32.mrb[0].mxu0
      %v2728 = vpop.f32.mrb[0].mxu0
      %v2729 = vadd.f32 0.0, %v2728
      %v2730 = vpop.f32.mrb[0].mxu0
      %2731 = vmatprep.mubr.bf16.mxu0 0
      %2732 = vmatmul.mubr.bf16.gmra.mrb[0].mxu0 %v2555
      %v2733 = vpop.f32.mrb[0].mxu0
      %v2734 = vadd.f32 0.0, %v2733
      %v2735 = vpop.f32.mrb[0].mxu0
      %v2736 = vpop.f32.mrb[0].mxu0
      %v2737 = vadd.f32 0.0, %v2736
      %v2738 = vpop.f32.mrb[0].mxu0
      %2739 = vmatprep.mubr.bf16.mxu0 0
      %2740 = vmatmul.mubr.bf16.gmra.mrb[0].mxu0 %v2558
      %v2741 = vpop.f32.mrb[0].mxu0
      %v2742 = vadd.f32 0.0, %v2741
      %v2743 = vpop.f32.mrb[0].mxu0
      %v2744 = vpop.f32.mrb[0].mxu0
      %v2745 = vadd.f32 0.0, %v2744
      %v2746 = vpop.f32.mrb[0].mxu0
      %2747 = vmatprep.mubr.bf16.mxu0 0
      %2748 = vmatmul.mubr.bf16.gmra.mrb[0].mxu0 %v2561
      %v2749 = vpop.f32.mrb[0].mxu0
      %v2750 = vadd.f32 0.0, %v2749
      %v2751 = vpop.f32.mrb[0].mxu0
      %v2752 = vpop.f32.mrb[0].mxu0
      %v2753 = vadd.f32 0.0, %v2752
      %v2754 = vpop.f32.mrb[0].mxu0
      %2755 = vmatprep.mubr.bf16.mxu0 0
      %2756 = vmatmul.mubr.bf16.gmra.mrb[0].mxu0 %v2564
      %v2757 = vpop.f32.mrb[0].mxu0
      %v2758 = vadd.f32 0.0, %v2757
      %v2759 = vpop.f32.mrb[0].mxu0
      %v2760 = vpop.f32.mrb[0].mxu0
      %v2761 = vadd.f32 0.0, %v2760
      %v2762 = vpop.f32.mrb[0].mxu0
      %2763 = vmatprep.mubr.bf16.mxu0 0
      %2764 = vmatmul.mubr.bf16.gmra.mrb[0].mxu0 %v2567
      %v2765 = vpop.f32.mrb[0].mxu0
      %v2766 = vadd.f32 0.0, %v2765
      %v2767 = vpop.f32.mrb[0].mxu0
      %v2768 = vpop.f32.mrb[0].mxu0
      %v2769 = vadd.f32 0.0, %v2768
      %v2770 = vpop.f32.mrb[0].mxu0
      %2771 = vmatprep.mubr.bf16.mxu0 0
      %2772 = vmatmul.mubr.bf16.gmra.mrb[0].mxu0 %v2570
      %v2773 = vpop.f32.mrb[0].mxu0
      %v2774 = vadd.f32 0.0, %v2773
      %v2775 = vpop.f32.mrb[0].mxu0
      %v2776 = vpop.f32.mrb[0].mxu0
      %v2777 = vadd.f32 0.0, %v2776
      %v2778 = vpop.f32.mrb[0].mxu0
      %2779 = vmatprep.mubr.bf16.mxu0 0
      %2780 = vmatmul.mubr.bf16.gmra.mrb[0].mxu0 %v2573
      %v2781 = vpop.f32.mrb[0].mxu0
      %v2782 = vadd.f32 0.0, %v2781
      %v2783 = vpop.f32.mrb[0].mxu0
      %v2784 = vpop.f32.mrb[0].mxu0
      %v2785 = vadd.f32 0.0, %v2784
      %v2786 = vpop.f32.mrb[0].mxu0
      %2787 = vmatprep.mubr.bf16.mxu0 0
      %2788 = vmatmul.mubr.bf16.gmra.mrb[0].mxu0 %v2576
      %v2789 = vpop.f32.mrb[0].mxu0
      %v2790 = vadd.f32 0.0, %v2789
      %v2791 = vpop.f32.mrb[0].mxu0
      %v2792 = vpop.f32.mrb[0].mxu0
      %v2793 = vadd.f32 0.0, %v2792
      %v2794 = vpop.f32.mrb[0].mxu0
      %2795 = vmatprep.mubr.bf16.mxu0 0
      %2796 = vmatmul.mubr.bf16.gmra.mrb[0].mxu0 %v2579
      %v2797 = vpop.f32.mrb[0].mxu0
      %v2798 = vadd.f32 0.0, %v2797
      %v2799 = vpop.f32.mrb[0].mxu0
      %v2800 = vpop.f32.mrb[0].mxu0
      %v2801 = vadd.f32 0.0, %v2800
      %v2802 = vpop.f32.mrb[0].mxu0
      %2803 = vmatprep.mubr.bf16.mxu0 0
      %2804 = vmatmul.mubr.bf16.gmra.mrb[0].mxu0 %v2582
      %v2805 = vpop.f32.mrb[0].mxu0
      %v2806 = vadd.f32 0.0, %v2805
      %v2807 = vpop.f32.mrb[0].mxu0
      %v2808 = vpop.f32.mrb[0].mxu0
      %v2809 = vadd.f32 0.0, %v2808
      %v2810 = vpop.f32.mrb[0].mxu0
      %2811 = vmatprep.mubr.bf16.mxu0 0
      %2812 = vmatmul.mubr.bf16.gmra.mrb[0].mxu0 %v2585
      %v2813 = vpop.f32.mrb[0].mxu0
      %v2814 = vadd.f32 0.0, %v2813
      %v2815 = vpop.f32.mrb[0].mxu0
      %v2816 = vpop.f32.mrb[0].mxu0
      %v2817 = vadd.f32 0.0, %v2816
      %v2818 = vpop.f32.mrb[0].mxu0
      %2819 = vmatprep.mubr.bf16.mxu0 0
      %2820 = vmatmul.mubr.bf16.gmra.mrb[0].mxu0 %v2588
      %v2821 = vpop.f32.mrb[0].mxu0
      %v2822 = vadd.f32 0.0, %v2821
      %v2823 = vpop.f32.mrb[0].mxu0
      %v2824 = vpop.f32.mrb[0].mxu0
      %v2825 = vadd.f32 0.0, %v2824
      %v2826 = vpop.f32.mrb[0].mxu0
      %2827 = vmatprep.mubr.bf16.mxu0 0
      %2828 = vmatmul.mubr.bf16.gmra.mrb[0].mxu0 %v2591
      %v2829 = vpop.f32.mrb[0].mxu0
      %v2830 = vadd.f32 0.0, %v2829
      %v2831 = vpop.f32.mrb[0].mxu0
      %v2832 = vpop.f32.mrb[0].mxu0
      %v2833 = vadd.f32 0.0, %v2832
      %v2834 = vpop.f32.mrb[0].mxu0
      %2835 = vmatprep.mubr.bf16.mxu0 0
      %2836 = vmatmul.mubr.bf16.gmra.mrb[0].mxu0 %v2594
      %v2837 = vpop.f32.mrb[0].mxu0
      %v2838 = vadd.f32 0.0, %v2837
      %v2839 = vpop.f32.mrb[0].mxu0
      %v2840 = vpop.f32.mrb[0].mxu0
      %v2841 = vadd.f32 0.0, %v2840
      %v2842 = vpop.f32.mrb[0].mxu0
      %2843 = vmatprep.mubr.bf16.mxu0 0
      %2844 = vmatmul.mubr.bf16.gmra.mrb[0].mxu0 %v2597
      %v2845 = vpop.f32.mrb[0].mxu0
      %v2846 = vadd.f32 0.0, %v2845
      %v2847 = vpop.f32.mrb[0].mxu0
      %v2848 = vpop.f32.mrb[0].mxu0
      %v2849 = vadd.f32 0.0, %v2848
      %v2850 = vpop.f32.mrb[0].mxu0
      %2851 = vmatprep.mubr.bf16.mxu0 0
      %2852 = vmatmul.mubr.bf16.gmra.mrb[0].mxu0 %v2600
      %v2853 = vpop.f32.mrb[0].mxu0
      %v2854 = vadd.f32 0.0, %v2853
      %v2855 = vpop.f32.mrb[0].mxu0
      %v2856 = vpop.f32.mrb[0].mxu0
      %v2857 = vadd.f32 0.0, %v2856
      %v2858 = vpop.f32.mrb[0].mxu0
      %2859 = vmatprep.mubr.bf16.mxu0 0
      %2860 = vmatmul.mubr.bf16.gmra.mrb[0].mxu0 %v2603
      %v2861 = vpop.f32.mrb[0].mxu0
      %v2862 = vadd.f32 0.0, %v2861
      %v2863 = vpop.f32.mrb[0].mxu0
      %v2864 = vpop.f32.mrb[0].mxu0
      %v2865 = vadd.f32 0.0, %v2864
      %v2866 = vpop.f32.mrb[0].mxu0
      %2867 = vmatprep.mubr.bf16.mxu0 0
      %2868 = vmatmul.mubr.bf16.gmra.mrb[0].mxu0 %v2606
      %v2869 = vpop.f32.mrb[0].mxu0
      %v2870 = vadd.f32 0.0, %v2869
      %v2871 = vpop.f32.mrb[0].mxu0
      %v2872 = vpop.f32.mrb[0].mxu0
      %v2873 = vadd.f32 0.0, %v2872
      %v2874 = vpop.f32.mrb[0].mxu0
      %2875 = vmatprep.mubr.bf16.mxu0 0
      %2876 = vmatmul.mubr.bf16.gmra.mrb[0].mxu0 %v2609
      %v2877 = vpop.f32.mrb[0].mxu0
      %v2878 = vadd.f32 0.0, %v2877
      %v2879 = vpop.f32.mrb[0].mxu0
      %v2880 = vpop.f32.mrb[0].mxu0
      %v2881 = vadd.f32 0.0, %v2880
      %v2882 = vpop.f32.mrb[0].mxu0
      %2883 = vmatprep.mubr.bf16.mxu0 0
      %2884 = vmatmul.mubr.bf16.gmra.mrb[0].mxu0 %v2612
      %v2885 = vpop.f32.mrb[0].mxu0
      %v2886 = vadd.f32 0.0, %v2885
      %v2887 = vpop.f32.mrb[0].mxu0
      %v2888 = vpop.f32.mrb[0].mxu0
      %v2889 = vadd.f32 0.0, %v2888
      %v2890 = vpop.f32.mrb[0].mxu0
      %2891 = vmatprep.mubr.bf16.mxu0 0
      %2892 = vmatmul.mubr.bf16.gmra.mrb[0].mxu0 %v2615
      %v2893 = vpop.f32.mrb[0].mxu0
      %v2894 = vadd.f32 0.0, %v2893
      %v2895 = vpop.f32.mrb[0].mxu0
      %v2896 = vpop.f32.mrb[0].mxu0
      %v2897 = vadd.f32 0.0, %v2896
      %v2898 = vpop.f32.mrb[0].mxu0
      %2899 = vmatprep.mubr.bf16.mxu0 0
      %2900 = vmatmul.mubr.bf16.gmra.mrb[0].mxu0 %v2618
      %v2901 = vpop.f32.mrb[0].mxu0
      %v2902 = vadd.f32 0.0, %v2901
      %v2903 = vpop.f32.mrb[0].mxu0
      %v2904 = vpop.f32.mrb[0].mxu0
      %v2905 = vadd.f32 0.0, %v2904
      %v2906 = vpop.f32.mrb[0].mxu0
      %2907 = vmatprep.mubr.bf16.mxu0 0
      %2908 = vmatmul.mubr.bf16.gmra.mrb[0].mxu0 %v2621
      %v2909 = vpop.f32.mrb[0].mxu0
      %v2910 = vadd.f32 0.0, %v2909
      %v2911 = vpop.f32.mrb[0].mxu0
      %v2912 = vpop.f32.mrb[0].mxu0
      %v2913 = vadd.f32 0.0, %v2912
      %v2914 = vpop.f32.mrb[0].mxu0
      %2915 = vmatprep.mubr.bf16.mxu0 0
      %2916 = vmatmul.mubr.bf16.gmra.mrb[0].mxu0 %v2624
      %v2917 = vpop.f32.mrb[0].mxu0
      %v2918 = vadd.f32 0.0, %v2917
      %v2919 = vpop.f32.mrb[0].mxu0
      %v2920 = vpop.f32.mrb[0].mxu0
      %v2921 = vadd.f32 0.0, %v2920
      %v2922 = vpop.f32.mrb[0].mxu0
      %2923 = vmatprep.mubr.bf16.mxu0 0
      %2924 = vmatmul.mubr.bf16.gmra.mrb[0].mxu0 %v2627
      %v2925 = vpop.f32.mrb[0].mxu0
      %v2926 = vadd.f32 0.0, %v2925
      %v2927 = vpop.f32.mrb[0].mxu0
      %v2928 = vpop.f32.mrb[0].mxu0
      %v2929 = vadd.f32 0.0, %v2928
      %v2930 = vpop.f32.mrb[0].mxu0
      %2931 = vmatprep.mubr.bf16.mxu0 0
      %2932 = vmatmul.mubr.bf16.gmra.mrb[0].mxu0 %v2630
      %v2933 = vpop.f32.mrb[0].mxu0
      %v2934 = vadd.f32 0.0, %v2933
      %v2935 = vpop.f32.mrb[0].mxu0
      %v2936 = vpop.f32.mrb[0].mxu0
      %v2937 = vadd.f32 0.0, %v2936
      %v2938 = vpop.f32.mrb[0].mxu0
      %2939 = vmatprep.mubr.bf16.mxu0 0
      %2940 = vmatmul.mubr.bf16.gmra.mrb[0].mxu0 %v2633
      %v2941 = vpop.f32.mrb[0].mxu0
      %v2942 = vadd.f32 0.0, %v2941
      %v2943 = vpop.f32.mrb[0].mxu0
      %v2944 = vpop.f32.mrb[0].mxu0
      %v2945 = vadd.f32 0.0, %v2944
      %v2946 = vpop.f32.mrb[0].mxu0
      %2947 = vmatprep.mubr.bf16.mxu0 0
      %2948 = vmatmul.mubr.bf16.gmra.mrb[0].mxu0 %v2636
      %v2949 = vpop.f32.mrb[0].mxu0
      %v2950 = vadd.f32 0.0, %v2949
      %v2951 = vpop.f32.mrb[0].mxu0
      %v2952 = vpop.f32.mrb[0].mxu0
      %v2953 = vadd.f32 0.0, %v2952
      %v2954 = vpop.f32.mrb[0].mxu0
      %2955 = vmatprep.mubr.bf16.mxu0 0
      %2956 = vmatmul.mubr.bf16.gmra.mrb[0].mxu0 %v2639
      %v2957 = vpop.f32.mrb[0].mxu0
      %v2958 = vadd.f32 0.0, %v2957
      %v2959 = vpop.f32.mrb[0].mxu0
      %v2960 = vpop.f32.mrb[0].mxu0
      %v2961 = vadd.f32 0.0, %v2960
      %v2962 = vpop.f32.mrb[0].mxu0
      %2963 = vmatprep.mubr.bf16.mxu0 0
      %2964 = vmatmul.mubr.bf16.gmra.mrb[0].mxu0 %v2642
      %v2965 = vpop.f32.mrb[0].mxu0
      %v2966 = vadd.f32 0.0, %v2965
      %v2967 = vpop.f32.mrb[0].mxu0
      %v2968 = vpop.f32.mrb[0].mxu0
      %v2969 = vadd.f32 0.0, %v2968
      %v2970 = vpop.f32.mrb[0].mxu0
      %2971 = vmatprep.mubr.bf16.mxu0 0
      %2972 = vmatmul.mubr.bf16.gmra.mrb[0].mxu0 %v2645
      %v2973 = vpop.f32.mrb[0].mxu0
      %v2974 = vadd.f32 0.0, %v2973
      %v2975 = vpop.f32.mrb[0].mxu0
      %v2976 = vpop.f32.mrb[0].mxu0
      %v2977 = vadd.f32 0.0, %v2976
      %v2978 = vpop.f32.mrb[0].mxu0
      %2979 = vmatprep.mubr.bf16.mxu0 0
      %2980 = vmatmul.mubr.bf16.gmra.mrb[0].mxu0 %v2648
      %v2981 = vpop.f32.mrb[0].mxu0
      %v2982 = vadd.f32 0.0, %v2981
      %v2983 = vpop.f32.mrb[0].mxu0
      %v2984 = vpop.f32.mrb[0].mxu0
      %v2985 = vadd.f32 0.0, %v2984
      %v2986 = vpop.f32.mrb[0].mxu0
      %2987 = vmatprep.mubr.bf16.mxu0 0
      %2988 = vmatmul.mubr.bf16.gmra.mrb[0].mxu0 %v2651
      %v2989 = vpop.f32.mrb[0].mxu0
      %v2990 = vadd.f32 0.0, %v2989
      %v2991 = vpop.f32.mrb[0].mxu0
      %v2992 = vpop.f32.mrb[0].mxu0
      %v2993 = vadd.f32 0.0, %v2992
      %v2994 = vpop.f32.mrb[0].mxu0
      %2995 = vmatprep.mubr.bf16.mxu0 0
      %2996 = vmatmul.mubr.bf16.gmra.mrb[0].mxu0 %v2654
      %v2997 = vpop.f32.mrb[0].mxu0
      %v2998 = vadd.f32 0.0, %v2997
      %v2999 = vpop.f32.mrb[0].mxu0
      %v3000 = vpop.f32.mrb[0].mxu0
      %v3001 = vadd.f32 0.0, %v3000
      %v3002 = vpop.f32.mrb[0].mxu0
      %3003 = vmatprep.mubr.bf16.mxu0 0
      %3004 = vmatmul.mubr.bf16.gmra.mrb[0].mxu0 %v2657
      %v3005 = vpop.f32.mrb[0].mxu0
      %v3006 = vadd.f32 0.0, %v3005
      %v3007 = vpop.f32.mrb[0].mxu0
      %v3008 = vpop.f32.mrb[0].mxu0
      %v3009 = vadd.f32 0.0, %v3008
      %v3010 = vpop.f32.mrb[0].mxu0
      %3011 = vdwg.mxu0
      %v3012 = vadd.f32 %v2394, %v2694
      %v3013 = vadd.f32 %v2395, %v2697
      %v3014 = vadd.f32 %v2396, %v2702
      %v3015 = vadd.f32 %v2397, %v2705
      %v3016 = vadd.f32 %v2398, %v2710
      %v3017 = vadd.f32 %v2399, %v2713
      %v3018 = vadd.f32 %v2400, %v2718
      %v3019 = vadd.f32 %v2401, %v2721
      %v3020 = vadd.f32 %v2402, %v2726
      %v3021 = vadd.f32 %v2403, %v2729
      %v3022 = vadd.f32 %v2404, %v2734
      %v3023 = vadd.f32 %v2405, %v2737
      %v3024 = vadd.f32 %v2406, %v2742
      %v3025 = vadd.f32 %v2407, %v2745
      %v3026 = vadd.f32 %v2408, %v2750
      %v3027 = vadd.f32 %v2409, %v2753
      %v3028 = vadd.f32 %v2410, %v2758
      %v3029 = vadd.f32 %v2411, %v2761
      %v3030 = vadd.f32 %v2412, %v2766
      %v3031 = vadd.f32 %v2413, %v2769
      %v3032 = vadd.f32 %v2414, %v2774
      %v3033 = vadd.f32 %v2415, %v2777
      %v3034 = vadd.f32 %v2416, %v2782
      %v3035 = vadd.f32 %v2417, %v2785
      %v3036 = vadd.f32 %v2418, %v2790
      %v3037 = vadd.f32 %v2419, %v2793
      %v3038 = vadd.f32 %v2420, %v2798
      %v3039 = vadd.f32 %v2421, %v2801
      %v3040 = vadd.f32 %v2422, %v2806
      %v3041 = vadd.f32 %v2423, %v2809
      %v3042 = vadd.f32 %v2424, %v2814
      %v3043 = vadd.f32 %v2425, %v2817
      %v3044 = vadd.f32 %v2426, %v2822
      %v3045 = vadd.f32 %v2427, %v2825
      %v3046 = vadd.f32 %v2428, %v2830
      %v3047 = vadd.f32 %v2429, %v2833
      %v3048 = vadd.f32 %v2430, %v2838
      %v3049 = vadd.f32 %v2431, %v2841
      %v3050 = vadd.f32 %v2432, %v2846
      %v3051 = vadd.f32 %v2433, %v2849
      %v3052 = vadd.f32 %v2434, %v2854
      %v3053 = vadd.f32 %v2435, %v2857
      %v3054 = vadd.f32 %v2436, %v2862
      %v3055 = vadd.f32 %v2437, %v2865
      %v3056 = vadd.f32 %v2438, %v2870
      %v3057 = vadd.f32 %v2439, %v2873
      %v3058 = vadd.f32 %v2440, %v2878
      %v3059 = vadd.f32 %v2441, %v2881
      %v3060 = vadd.f32 %v2442, %v2886
      %v3061 = vadd.f32 %v2443, %v2889
      %v3062 = vadd.f32 %v2444, %v2894
      %v3063 = vadd.f32 %v2445, %v2897
      %v3064 = vadd.f32 %v2446, %v2902
      %v3065 = vadd.f32 %v2447, %v2905
      %v3066 = vadd.f32 %v2448, %v2910
      %v3067 = vadd.f32 %v2449, %v2913
      %v3068 = vadd.f32 %v2450, %v2918
      %v3069 = vadd.f32 %v2451, %v2921
      %v3070 = vadd.f32 %v2452, %v2926
      %v3071 = vadd.f32 %v2453, %v2929
      %v3072 = vadd.f32 %v2454, %v2934
      %v3073 = vadd.f32 %v2455, %v2937
      %v3074 = vadd.f32 %v2456, %v2942
      %v3075 = vadd.f32 %v2457, %v2945
      %v3076 = vadd.f32 %v2458, %v2950
      %v3077 = vadd.f32 %v2459, %v2953
      %v3078 = vadd.f32 %v2460, %v2958
      %v3079 = vadd.f32 %v2461, %v2961
      %v3080 = vadd.f32 %v2462, %v2966
      %v3081 = vadd.f32 %v2463, %v2969
      %v3082 = vadd.f32 %v2464, %v2974
      %v3083 = vadd.f32 %v2465, %v2977
      %v3084 = vadd.f32 %v2466, %v2982
      %v3085 = vadd.f32 %v2467, %v2985
      %v3086 = vadd.f32 %v2468, %v2990
      %v3087 = vadd.f32 %v2469, %v2993
      %v3088 = vadd.f32 %v2470, %v2998
      %v3089 = vadd.f32 %v2471, %v3001
      %v3090 = vadd.f32 %v2472, %v3006
      %v3091 = vadd.f32 %v2473, %v3009
      %s3092 = scalar_lea.vmem %s1, 64
      %v3093 = vld [vmem:[%s3092] sm:$0xf]
      %v3094 = vld [vmem:[%s3092 + $0x4] sm:$0xf]
      %v3095 = vld [vmem:[%s3092 + $0x8] sm:$0xf]
      %v3096 = vld [vmem:[%s3092 + $0xc] sm:$0xf]
      %v3098 = vunpack.c.l.b16 %v348
      %v3099 = vpack.c.b16 %v3098, %v3098
      %v3100 = vshrl.u32 %v2487, 16
      %v3102 = vshll.u32 %v2487, 16
      %v3104 = vrot.slane %v3102, 1
      %v3105 = vor.u32 %v3100, %v3104
      %v3106 = vshll.u32 %v2488, 16
      %v3108 = vrot.slane %v3106, 1
      %v3109 = vsel %vm566, %v3105, %v3108
      %v3110 = vshrl.u32 %v2488, 16
      %v3112 = vor.u32 %v3110, %v3108
      %v3113 = vshll.u32 %v2489, 16
      %v3115 = vrot.slane %v3113, 1
      %v3116 = vsel %vm566, %v3112, %v3115
      %v3117 = vshrl.u32 %v2489, 16
      %v3119 = vor.u32 %v3117, %v3115
      %v3120 = vshll.u32 %v2490, 16
      %v3122 = vrot.slane %v3120, 1
      %v3123 = vsel %vm566, %v3119, %v3122
      %v3124 = vshrl.u32 %v2490, 16
      %v3126 = vor.u32 %v3124, %v3122
      %v3127 = vshll.u32 %v2491, 16
      %v3129 = vrot.slane %v3127, 1
      %v3130 = vsel %vm566, %v3126, %v3129
      %v3131 = vshrl.u32 %v2491, 16
      %v3133 = vor.u32 %v3131, %v3129
      %v3134 = vshll.u32 %v2492, 16
      %v3136 = vrot.slane %v3134, 1
      %v3137 = vsel %vm566, %v3133, %v3136
      %v3138 = vshrl.u32 %v2492, 16
      %v3140 = vor.u32 %v3138, %v3136
      %v3141 = vshll.u32 %v2493, 16
      %v3143 = vrot.slane %v3141, 1
      %v3144 = vsel %vm566, %v3140, %v3143
      %v3145 = vshrl.u32 %v2493, 16
      %v3147 = vor.u32 %v3145, %v3143
      %v3148 = vshll.u32 %v2494, 16
      %v3150 = vrot.slane %v3148, 1
      %v3151 = vsel %vm566, %v3147, %v3150
      %v3152 = vshrl.u32 %v2494, 16
      %v3154 = vor.u32 %v3152, %v3150
      %v3155 = vshll.u32 %v2495, 16
      %v3157 = vrot.slane %v3155, 1
      %v3158 = vsel %vm566, %v3154, %v3157
      %v3159 = vshrl.u32 %v2495, 16
      %v3161 = vor.u32 %v3159, %v3157
      %v3162 = vshll.u32 %v2496, 16
      %v3164 = vrot.slane %v3162, 1
      %v3165 = vsel %vm566, %v3161, %v3164
      %v3166 = vshrl.u32 %v2496, 16
      %v3168 = vor.u32 %v3166, %v3164
      %v3169 = vshll.u32 %v2497, 16
      %v3171 = vrot.slane %v3169, 1
      %v3172 = vsel %vm566, %v3168, %v3171
      %v3173 = vshrl.u32 %v2497, 16
      %v3175 = vor.u32 %v3173, %v3171
      %v3176 = vshll.u32 %v2498, 16
      %v3178 = vrot.slane %v3176, 1
      %v3179 = vsel %vm566, %v3175, %v3178
      %v3180 = vshrl.u32 %v2498, 16
      %v3182 = vor.u32 %v3180, %v3178
      %v3183 = vshll.u32 %v2499, 16
      %v3185 = vrot.slane %v3183, 1
      %v3186 = vsel %vm566, %v3182, %v3185
      %v3187 = vshrl.u32 %v2499, 16
      %v3189 = vor.u32 %v3187, %v3185
      %v3190 = vshll.u32 %v2500, 16
      %v3192 = vrot.slane %v3190, 1
      %v3193 = vsel %vm566, %v3189, %v3192
      %v3194 = vshrl.u32 %v2500, 16
      %v3196 = vor.u32 %v3194, %v3192
      %v3197 = vshll.u32 %v2501, 16
      %v3199 = vrot.slane %v3197, 1
      %v3200 = vsel %vm566, %v3196, %v3199
      %v3201 = vshrl.u32 %v2501, 16
      %v3203 = vor.u32 %v3201, %v3199
      %v3204 = vshll.u32 %v2502, 16
      %v3206 = vrot.slane %v3204, 1
      %v3207 = vsel %vm566, %v3203, %v3206
      %v3208 = vshrl.u32 %v2502, 16
      %v3210 = vor.u32 %v3208, %v3206
      %v3211 = vshll.u32 %v2503, 16
      %v3213 = vrot.slane %v3211, 1
      %v3214 = vsel %vm566, %v3210, %v3213
      %v3215 = vshrl.u32 %v2503, 16
      %v3217 = vor.u32 %v3215, %v3213
      %v3218 = vshll.u32 %v2504, 16
      %v3220 = vrot.slane %v3218, 1
      %v3221 = vsel %vm566, %v3217, %v3220
      %v3222 = vshrl.u32 %v2504, 16
      %v3224 = vor.u32 %v3222, %v3220
      %v3225 = vshll.u32 %v2505, 16
      %v3227 = vrot.slane %v3225, 1
      %v3228 = vsel %vm566, %v3224, %v3227
      %v3229 = vshrl.u32 %v2505, 16
      %v3231 = vor.u32 %v3229, %v3227
      %v3232 = vshll.u32 %v2506, 16
      %v3234 = vrot.slane %v3232, 1
      %v3235 = vsel %vm566, %v3231, %v3234
      %v3236 = vshrl.u32 %v2506, 16
      %v3238 = vor.u32 %v3236, %v3234
      %v3239 = vshll.u32 %v2507, 16
      %v3241 = vrot.slane %v3239, 1
      %v3242 = vsel %vm566, %v3238, %v3241
      %v3243 = vshrl.u32 %v2507, 16
      %v3245 = vor.u32 %v3243, %v3241
      %v3246 = vshll.u32 %v2508, 16
      %v3248 = vrot.slane %v3246, 1
      %v3249 = vsel %vm566, %v3245, %v3248
      %v3250 = vshrl.u32 %v2508, 16
      %v3252 = vor.u32 %v3250, %v3248
      %v3253 = vshll.u32 %v2509, 16
      %v3255 = vrot.slane %v3253, 1
      %v3256 = vsel %vm566, %v3252, %v3255
      %v3257 = vshrl.u32 %v2509, 16
      %v3259 = vor.u32 %v3257, %v3255
      %v3260 = vshll.u32 %v2510, 16
      %v3262 = vrot.slane %v3260, 1
      %v3263 = vsel %vm566, %v3259, %v3262
      %v3264 = vshrl.u32 %v2510, 16
      %v3266 = vor.u32 %v3264, %v3262
      %v3267 = vshll.u32 %v2511, 16
      %v3269 = vrot.slane %v3267, 1
      %v3270 = vsel %vm566, %v3266, %v3269
      %v3271 = vshrl.u32 %v2511, 16
      %v3273 = vor.u32 %v3271, %v3269
      %v3274 = vshll.u32 %v2512, 16
      %v3276 = vrot.slane %v3274, 1
      %v3277 = vsel %vm566, %v3273, %v3276
      %v3278 = vshrl.u32 %v2512, 16
      %v3280 = vor.u32 %v3278, %v3276
      %v3281 = vshll.u32 %v2513, 16
      %v3283 = vrot.slane %v3281, 1
      %v3284 = vsel %vm566, %v3280, %v3283
      %v3285 = vshrl.u32 %v2513, 16
      %v3287 = vor.u32 %v3285, %v3283
      %v3288 = vshll.u32 %v2514, 16
      %v3290 = vrot.slane %v3288, 1
      %v3291 = vsel %vm566, %v3287, %v3290
      %v3292 = vshrl.u32 %v2514, 16
      %v3294 = vor.u32 %v3292, %v3290
      %v3295 = vshll.u32 %v2515, 16
      %v3297 = vrot.slane %v3295, 1
      %v3298 = vsel %vm566, %v3294, %v3297
      %v3299 = vshrl.u32 %v2515, 16
      %v3301 = vor.u32 %v3299, %v3297
      %v3302 = vshll.u32 %v2516, 16
      %v3304 = vrot.slane %v3302, 1
      %v3305 = vsel %vm566, %v3301, %v3304
      %v3306 = vshrl.u32 %v2516, 16
      %v3308 = vor.u32 %v3306, %v3304
      %v3309 = vshll.u32 %v2517, 16
      %v3311 = vrot.slane %v3309, 1
      %v3312 = vsel %vm566, %v3308, %v3311
      %v3313 = vshrl.u32 %v2517, 16
      %v3315 = vor.u32 %v3313, %v3311
      %v3316 = vshll.u32 %v2518, 16
      %v3318 = vrot.slane %v3316, 1
      %v3319 = vsel %vm566, %v3315, %v3318
      %v3320 = vshrl.u32 %v2518, 16
      %v3322 = vor.u32 %v3320, %v3318
      %v3323 = vshll.u32 %v2519, 16
      %v3325 = vrot.slane %v3323, 1
      %v3326 = vsel %vm566, %v3322, %v3325
      %v3327 = vshrl.u32 %v2519, 16
      %v3329 = vor.u32 %v3327, %v3325
      %v3330 = vshll.u32 %v2520, 16
      %v3332 = vrot.slane %v3330, 1
      %v3333 = vsel %vm566, %v3329, %v3332
      %v3334 = vshrl.u32 %v2520, 16
      %v3336 = vor.u32 %v3334, %v3332
      %v3337 = vshll.u32 %v2521, 16
      %v3339 = vrot.slane %v3337, 1
      %v3340 = vsel %vm566, %v3336, %v3339
      %v3341 = vshrl.u32 %v2521, 16
      %v3343 = vor.u32 %v3341, %v3339
      %v3344 = vshll.u32 %v2522, 16
      %v3346 = vrot.slane %v3344, 1
      %v3347 = vsel %vm566, %v3343, %v3346
      %v3348 = vshrl.u32 %v2522, 16
      %v3350 = vor.u32 %v3348, %v3346
      %v3351 = vshll.u32 %v2523, 16
      %v3353 = vrot.slane %v3351, 1
      %v3354 = vsel %vm566, %v3350, %v3353
      %v3355 = vshrl.u32 %v2523, 16
      %v3357 = vor.u32 %v3355, %v3353
      %v3358 = vshll.u32 %v2524, 16
      %v3360 = vrot.slane %v3358, 1
      %v3361 = vsel %vm566, %v3357, %v3360
      %v3362 = vshrl.u32 %v2524, 16
      %v3364 = vor.u32 %v3362, %v3360
      %v3365 = vshll.u32 %v2525, 16
      %v3367 = vrot.slane %v3365, 1
      %v3368 = vsel %vm566, %v3364, %v3367
      %v3369 = vshrl.u32 %v2525, 16
      %v3371 = vor.u32 %v3369, %v3367
      %v3372 = vshll.u32 %v2526, 16
      %v3374 = vrot.slane %v3372, 1
      %v3375 = vsel %vm566, %v3371, %v3374
      %v3376 = vshrl.u32 %v2526, 16
      %v3378 = vor.u32 %v3376, %v3374
      %v3380 = vshll.u32 %v3099, 16
      %v3382 = vrot.slane %v3380, 1
      %v3383 = vsel %vm566, %v3378, %v3382
      %v3388 = vunpack.c.l.b16 %v3093
      %v3389 = vunpack.c.l.b16 %v3094
      %v3390 = vunpack.c.l.b16 %v3095
      %v3391 = vunpack.c.l.b16 %v3096
      %v3392 = vpack.c.b16 %v3389, %v3388
      %v3393 = vpack.c.b16 %v3391, %v3390
      %v3397 = vsel %vm903, %v3109, 0
      %v3400 = vsel %vm903, %v3116, 0
      %v3403 = vsel %vm903, %v3123, 0
      %v3406 = vsel %vm903, %v3130, 0
      %v3409 = vsel %vm903, %v3137, 0
      %v3412 = vsel %vm903, %v3144, 0
      %v3415 = vsel %vm903, %v3151, 0
      %v3418 = vsel %vm903, %v3158, 0
      %v3421 = vsel %vm903, %v3165, 0
      %v3424 = vsel %vm903, %v3172, 0
      %v3427 = vsel %vm903, %v3179, 0
      %v3430 = vsel %vm903, %v3186, 0
      %v3433 = vsel %vm903, %v3193, 0
      %v3436 = vsel %vm903, %v3200, 0
      %v3439 = vsel %vm903, %v3207, 0
      %v3442 = vsel %vm903, %v3214, 0
      %v3445 = vsel %vm903, %v3221, 0
      %v3448 = vsel %vm903, %v3228, 0
      %v3451 = vsel %vm903, %v3235, 0
      %v3454 = vsel %vm903, %v3242, 0
      %v3457 = vsel %vm903, %v3249, 0
      %v3460 = vsel %vm903, %v3256, 0
      %v3463 = vsel %vm903, %v3263, 0
      %v3466 = vsel %vm903, %v3270, 0
      %v3469 = vsel %vm903, %v3277, 0
      %v3472 = vsel %vm903, %v3284, 0
      %v3475 = vsel %vm903, %v3291, 0
      %v3478 = vsel %vm903, %v3298, 0
      %v3481 = vsel %vm903, %v3305, 0
      %v3484 = vsel %vm903, %v3312, 0
      %v3487 = vsel %vm903, %v3319, 0
      %v3490 = vsel %vm903, %v3326, 0
      %v3493 = vsel %vm903, %v3333, 0
      %v3496 = vsel %vm903, %v3340, 0
      %v3499 = vsel %vm903, %v3347, 0
      %v3502 = vsel %vm903, %v3354, 0
      %v3505 = vsel %vm903, %v3361, 0
      %v3508 = vsel %vm903, %v3368, 0
      %v3511 = vsel %vm903, %v3375, 0
      %v3514 = vsel %vm903, %v3383, 0
      %3516 = vmatprep.subr.bf16.mxu0 0
      %3517 = vmatpush1.bf16.msra.mxu0 %v3392
      %3518 = vmatprep.subr.bf16.mxu0 0
      %3519 = vmatpush1.bf16.msra.mxu0 %v3393
      %3520 = vmatprep.subr.bf16.mxu0 0
      %3521 = vmatpush1.bf16.msra.mxu0 0
      %3522 = vmatprep.subr.bf16.mxu0 0
      %3523 = vmatpush1.bf16.msra.mxu0 0
      %3524 = vmatprep.subr.bf16.mxu0 0
      %3525 = vmatpush1.bf16.msra.mxu0 0
      %3526 = vmatprep.subr.bf16.mxu0 0
      %3527 = vmatpush1.bf16.msra.mxu0 0
      %3528 = vmatprep.subr.bf16.mxu0 0
      %3529 = vmatpush1.bf16.msra.mxu0 0
      %3530 = vmatprep.subr.bf16.mxu0 0
      %3531 = vmatpush1.bf16.msra.mxu0 0
      %3532 = vmatprep.subr.bf16.mxu0 0
      %3533 = vmatpush1.bf16.msra.mxu0 0
      %3534 = vmatprep.subr.bf16.mxu0 0
      %3535 = vmatpush1.bf16.msra.mxu0 0
      %3536 = vmatprep.subr.bf16.mxu0 0
      %3537 = vmatpush1.bf16.msra.mxu0 0
      %3538 = vmatprep.subr.bf16.mxu0 0
      %3539 = vmatpush1.bf16.msra.mxu0 0
      %3540 = vmatprep.subr.bf16.mxu0 0
      %3541 = vmatpush1.bf16.msra.mxu0 0
      %3542 = vmatprep.subr.bf16.mxu0 0
      %3543 = vmatpush1.bf16.msra.mxu0 0
      %3544 = vmatprep.subr.bf16.mxu0 0
      %3545 = vmatpush1.bf16.msra.mxu0 0
      %3546 = vmatprep.subr.bf16.mxu0 0
      %3547 = vmatpush1.bf16.msra.mxu0 0
      %3548 = vmatprep.mubr.bf16.mxu0 0
      %3549 = vmatmul.mubr.bf16.gmra.mrb[0].mxu0 %v3397
      %v3550 = vpop.f32.mrb[0].mxu0
      %v3551 = vadd.f32 0.0, %v3550
      %v3552 = vpop.f32.mrb[0].mxu0
      %v3553 = vpop.f32.mrb[0].mxu0
      %v3554 = vadd.f32 0.0, %v3553
      %v3555 = vpop.f32.mrb[0].mxu0
      %3556 = vmatprep.mubr.bf16.mxu0 0
      %3557 = vmatmul.mubr.bf16.gmra.mrb[0].mxu0 %v3400
      %v3558 = vpop.f32.mrb[0].mxu0
      %v3559 = vadd.f32 0.0, %v3558
      %v3560 = vpop.f32.mrb[0].mxu0
      %v3561 = vpop.f32.mrb[0].mxu0
      %v3562 = vadd.f32 0.0, %v3561
      %v3563 = vpop.f32.mrb[0].mxu0
      %3564 = vmatprep.mubr.bf16.mxu0 0
      %3565 = vmatmul.mubr.bf16.gmra.mrb[0].mxu0 %v3403
      %v3566 = vpop.f32.mrb[0].mxu0
      %v3567 = vadd.f32 0.0, %v3566
      %v3568 = vpop.f32.mrb[0].mxu0
      %v3569 = vpop.f32.mrb[0].mxu0
      %v3570 = vadd.f32 0.0, %v3569
      %v3571 = vpop.f32.mrb[0].mxu0
      %3572 = vmatprep.mubr.bf16.mxu0 0
      %3573 = vmatmul.mubr.bf16.gmra.mrb[0].mxu0 %v3406
      %v3574 = vpop.f32.mrb[0].mxu0
      %v3575 = vadd.f32 0.0, %v3574
      %v3576 = vpop.f32.mrb[0].mxu0
      %v3577 = vpop.f32.mrb[0].mxu0
      %v3578 = vadd.f32 0.0, %v3577
      %v3579 = vpop.f32.mrb[0].mxu0
      %3580 = vmatprep.mubr.bf16.mxu0 0
      %3581 = vmatmul.mubr.bf16.gmra.mrb[0].mxu0 %v3409
      %v3582 = vpop.f32.mrb[0].mxu0
      %v3583 = vadd.f32 0.0, %v3582
      %v3584 = vpop.f32.mrb[0].mxu0
      %v3585 = vpop.f32.mrb[0].mxu0
      %v3586 = vadd.f32 0.0, %v3585
      %v3587 = vpop.f32.mrb[0].mxu0
      %3588 = vmatprep.mubr.bf16.mxu0 0
      %3589 = vmatmul.mubr.bf16.gmra.mrb[0].mxu0 %v3412
      %v3590 = vpop.f32.mrb[0].mxu0
      %v3591 = vadd.f32 0.0, %v3590
      %v3592 = vpop.f32.mrb[0].mxu0
      %v3593 = vpop.f32.mrb[0].mxu0
      %v3594 = vadd.f32 0.0, %v3593
      %v3595 = vpop.f32.mrb[0].mxu0
      %3596 = vmatprep.mubr.bf16.mxu0 0
      %3597 = vmatmul.mubr.bf16.gmra.mrb[0].mxu0 %v3415
      %v3598 = vpop.f32.mrb[0].mxu0
      %v3599 = vadd.f32 0.0, %v3598
      %v3600 = vpop.f32.mrb[0].mxu0
      %v3601 = vpop.f32.mrb[0].mxu0
      %v3602 = vadd.f32 0.0, %v3601
      %v3603 = vpop.f32.mrb[0].mxu0
      %3604 = vmatprep.mubr.bf16.mxu0 0
      %3605 = vmatmul.mubr.bf16.gmra.mrb[0].mxu0 %v3418
      %v3606 = vpop.f32.mrb[0].mxu0
      %v3607 = vadd.f32 0.0, %v3606
      %v3608 = vpop.f32.mrb[0].mxu0
      %v3609 = vpop.f32.mrb[0].mxu0
      %v3610 = vadd.f32 0.0, %v3609
      %v3611 = vpop.f32.mrb[0].mxu0
      %3612 = vmatprep.mubr.bf16.mxu0 0
      %3613 = vmatmul.mubr.bf16.gmra.mrb[0].mxu0 %v3421
      %v3614 = vpop.f32.mrb[0].mxu0
      %v3615 = vadd.f32 0.0, %v3614
      %v3616 = vpop.f32.mrb[0].mxu0
      %v3617 = vpop.f32.mrb[0].mxu0
      %v3618 = vadd.f32 0.0, %v3617
      %v3619 = vpop.f32.mrb[0].mxu0
      %3620 = vmatprep.mubr.bf16.mxu0 0
      %3621 = vmatmul.mubr.bf16.gmra.mrb[0].mxu0 %v3424
      %v3622 = vpop.f32.mrb[0].mxu0
      %v3623 = vadd.f32 0.0, %v3622
      %v3624 = vpop.f32.mrb[0].mxu0
      %v3625 = vpop.f32.mrb[0].mxu0
      %v3626 = vadd.f32 0.0, %v3625
      %v3627 = vpop.f32.mrb[0].mxu0
      %3628 = vmatprep.mubr.bf16.mxu0 0
      %3629 = vmatmul.mubr.bf16.gmra.mrb[0].mxu0 %v3427
      %v3630 = vpop.f32.mrb[0].mxu0
      %v3631 = vadd.f32 0.0, %v3630
      %v3632 = vpop.f32.mrb[0].mxu0
      %v3633 = vpop.f32.mrb[0].mxu0
      %v3634 = vadd.f32 0.0, %v3633
      %v3635 = vpop.f32.mrb[0].mxu0
      %3636 = vmatprep.mubr.bf16.mxu0 0
      %3637 = vmatmul.mubr.bf16.gmra.mrb[0].mxu0 %v3430
      %v3638 = vpop.f32.mrb[0].mxu0
      %v3639 = vadd.f32 0.0, %v3638
      %v3640 = vpop.f32.mrb[0].mxu0
      %v3641 = vpop.f32.mrb[0].mxu0
      %v3642 = vadd.f32 0.0, %v3641
      %v3643 = vpop.f32.mrb[0].mxu0
      %3644 = vmatprep.mubr.bf16.mxu0 0
      %3645 = vmatmul.mubr.bf16.gmra.mrb[0].mxu0 %v3433
      %v3646 = vpop.f32.mrb[0].mxu0
      %v3647 = vadd.f32 0.0, %v3646
      %v3648 = vpop.f32.mrb[0].mxu0
      %v3649 = vpop.f32.mrb[0].mxu0
      %v3650 = vadd.f32 0.0, %v3649
      %v3651 = vpop.f32.mrb[0].mxu0
      %3652 = vmatprep.mubr.bf16.mxu0 0
      %3653 = vmatmul.mubr.bf16.gmra.mrb[0].mxu0 %v3436
      %v3654 = vpop.f32.mrb[0].mxu0
      %v3655 = vadd.f32 0.0, %v3654
      %v3656 = vpop.f32.mrb[0].mxu0
      %v3657 = vpop.f32.mrb[0].mxu0
      %v3658 = vadd.f32 0.0, %v3657
      %v3659 = vpop.f32.mrb[0].mxu0
      %3660 = vmatprep.mubr.bf16.mxu0 0
      %3661 = vmatmul.mubr.bf16.gmra.mrb[0].mxu0 %v3439
      %v3662 = vpop.f32.mrb[0].mxu0
      %v3663 = vadd.f32 0.0, %v3662
      %v3664 = vpop.f32.mrb[0].mxu0
      %v3665 = vpop.f32.mrb[0].mxu0
      %v3666 = vadd.f32 0.0, %v3665
      %v3667 = vpop.f32.mrb[0].mxu0
      %3668 = vmatprep.mubr.bf16.mxu0 0
      %3669 = vmatmul.mubr.bf16.gmra.mrb[0].mxu0 %v3442
      %v3670 = vpop.f32.mrb[0].mxu0
      %v3671 = vadd.f32 0.0, %v3670
      %v3672 = vpop.f32.mrb[0].mxu0
      %v3673 = vpop.f32.mrb[0].mxu0
      %v3674 = vadd.f32 0.0, %v3673
      %v3675 = vpop.f32.mrb[0].mxu0
      %3676 = vmatprep.mubr.bf16.mxu0 0
      %3677 = vmatmul.mubr.bf16.gmra.mrb[0].mxu0 %v3445
      %v3678 = vpop.f32.mrb[0].mxu0
      %v3679 = vadd.f32 0.0, %v3678
      %v3680 = vpop.f32.mrb[0].mxu0
      %v3681 = vpop.f32.mrb[0].mxu0
      %v3682 = vadd.f32 0.0, %v3681
      %v3683 = vpop.f32.mrb[0].mxu0
      %3684 = vmatprep.mubr.bf16.mxu0 0
      %3685 = vmatmul.mubr.bf16.gmra.mrb[0].mxu0 %v3448
      %v3686 = vpop.f32.mrb[0].mxu0
      %v3687 = vadd.f32 0.0, %v3686
      %v3688 = vpop.f32.mrb[0].mxu0
      %v3689 = vpop.f32.mrb[0].mxu0
      %v3690 = vadd.f32 0.0, %v3689
      %v3691 = vpop.f32.mrb[0].mxu0
      %3692 = vmatprep.mubr.bf16.mxu0 0
      %3693 = vmatmul.mubr.bf16.gmra.mrb[0].mxu0 %v3451
      %v3694 = vpop.f32.mrb[0].mxu0
      %v3695 = vadd.f32 0.0, %v3694
      %v3696 = vpop.f32.mrb[0].mxu0
      %v3697 = vpop.f32.mrb[0].mxu0
      %v3698 = vadd.f32 0.0, %v3697
      %v3699 = vpop.f32.mrb[0].mxu0
      %3700 = vmatprep.mubr.bf16.mxu0 0
      %3701 = vmatmul.mubr.bf16.gmra.mrb[0].mxu0 %v3454
      %v3702 = vpop.f32.mrb[0].mxu0
      %v3703 = vadd.f32 0.0, %v3702
      %v3704 = vpop.f32.mrb[0].mxu0
      %v3705 = vpop.f32.mrb[0].mxu0
      %v3706 = vadd.f32 0.0, %v3705
      %v3707 = vpop.f32.mrb[0].mxu0
      %3708 = vmatprep.mubr.bf16.mxu0 0
      %3709 = vmatmul.mubr.bf16.gmra.mrb[0].mxu0 %v3457
      %v3710 = vpop.f32.mrb[0].mxu0
      %v3711 = vadd.f32 0.0, %v3710
      %v3712 = vpop.f32.mrb[0].mxu0
      %v3713 = vpop.f32.mrb[0].mxu0
      %v3714 = vadd.f32 0.0, %v3713
      %v3715 = vpop.f32.mrb[0].mxu0
      %3716 = vmatprep.mubr.bf16.mxu0 0
      %3717 = vmatmul.mubr.bf16.gmra.mrb[0].mxu0 %v3460
      %v3718 = vpop.f32.mrb[0].mxu0
      %v3719 = vadd.f32 0.0, %v3718
      %v3720 = vpop.f32.mrb[0].mxu0
      %v3721 = vpop.f32.mrb[0].mxu0
      %v3722 = vadd.f32 0.0, %v3721
      %v3723 = vpop.f32.mrb[0].mxu0
      %3724 = vmatprep.mubr.bf16.mxu0 0
      %3725 = vmatmul.mubr.bf16.gmra.mrb[0].mxu0 %v3463
      %v3726 = vpop.f32.mrb[0].mxu0
      %v3727 = vadd.f32 0.0, %v3726
      %v3728 = vpop.f32.mrb[0].mxu0
      %v3729 = vpop.f32.mrb[0].mxu0
      %v3730 = vadd.f32 0.0, %v3729
      %v3731 = vpop.f32.mrb[0].mxu0
      %3732 = vmatprep.mubr.bf16.mxu0 0
      %3733 = vmatmul.mubr.bf16.gmra.mrb[0].mxu0 %v3466
      %v3734 = vpop.f32.mrb[0].mxu0
      %v3735 = vadd.f32 0.0, %v3734
      %v3736 = vpop.f32.mrb[0].mxu0
      %v3737 = vpop.f32.mrb[0].mxu0
      %v3738 = vadd.f32 0.0, %v3737
      %v3739 = vpop.f32.mrb[0].mxu0
      %3740 = vmatprep.mubr.bf16.mxu0 0
      %3741 = vmatmul.mubr.bf16.gmra.mrb[0].mxu0 %v3469
      %v3742 = vpop.f32.mrb[0].mxu0
      %v3743 = vadd.f32 0.0, %v3742
      %v3744 = vpop.f32.mrb[0].mxu0
      %v3745 = vpop.f32.mrb[0].mxu0
      %v3746 = vadd.f32 0.0, %v3745
      %v3747 = vpop.f32.mrb[0].mxu0
      %3748 = vmatprep.mubr.bf16.mxu0 0
      %3749 = vmatmul.mubr.bf16.gmra.mrb[0].mxu0 %v3472
      %v3750 = vpop.f32.mrb[0].mxu0
      %v3751 = vadd.f32 0.0, %v3750
      %v3752 = vpop.f32.mrb[0].mxu0
      %v3753 = vpop.f32.mrb[0].mxu0
      %v3754 = vadd.f32 0.0, %v3753
      %v3755 = vpop.f32.mrb[0].mxu0
      %3756 = vmatprep.mubr.bf16.mxu0 0
      %3757 = vmatmul.mubr.bf16.gmra.mrb[0].mxu0 %v3475
      %v3758 = vpop.f32.mrb[0].mxu0
      %v3759 = vadd.f32 0.0, %v3758
      %v3760 = vpop.f32.mrb[0].mxu0
      %v3761 = vpop.f32.mrb[0].mxu0
      %v3762 = vadd.f32 0.0, %v3761
      %v3763 = vpop.f32.mrb[0].mxu0
      %3764 = vmatprep.mubr.bf16.mxu0 0
      %3765 = vmatmul.mubr.bf16.gmra.mrb[0].mxu0 %v3478
      %v3766 = vpop.f32.mrb[0].mxu0
      %v3767 = vadd.f32 0.0, %v3766
      %v3768 = vpop.f32.mrb[0].mxu0
      %v3769 = vpop.f32.mrb[0].mxu0
      %v3770 = vadd.f32 0.0, %v3769
      %v3771 = vpop.f32.mrb[0].mxu0
      %3772 = vmatprep.mubr.bf16.mxu0 0
      %3773 = vmatmul.mubr.bf16.gmra.mrb[0].mxu0 %v3481
      %v3774 = vpop.f32.mrb[0].mxu0
      %v3775 = vadd.f32 0.0, %v3774
      %v3776 = vpop.f32.mrb[0].mxu0
      %v3777 = vpop.f32.mrb[0].mxu0
      %v3778 = vadd.f32 0.0, %v3777
      %v3779 = vpop.f32.mrb[0].mxu0
      %3780 = vmatprep.mubr.bf16.mxu0 0
      %3781 = vmatmul.mubr.bf16.gmra.mrb[0].mxu0 %v3484
      %v3782 = vpop.f32.mrb[0].mxu0
      %v3783 = vadd.f32 0.0, %v3782
      %v3784 = vpop.f32.mrb[0].mxu0
      %v3785 = vpop.f32.mrb[0].mxu0
      %v3786 = vadd.f32 0.0, %v3785
      %v3787 = vpop.f32.mrb[0].mxu0
      %3788 = vmatprep.mubr.bf16.mxu0 0
      %3789 = vmatmul.mubr.bf16.gmra.mrb[0].mxu0 %v3487
      %v3790 = vpop.f32.mrb[0].mxu0
      %v3791 = vadd.f32 0.0, %v3790
      %v3792 = vpop.f32.mrb[0].mxu0
      %v3793 = vpop.f32.mrb[0].mxu0
      %v3794 = vadd.f32 0.0, %v3793
      %v3795 = vpop.f32.mrb[0].mxu0
      %3796 = vmatprep.mubr.bf16.mxu0 0
      %3797 = vmatmul.mubr.bf16.gmra.mrb[0].mxu0 %v3490
      %v3798 = vpop.f32.mrb[0].mxu0
      %v3799 = vadd.f32 0.0, %v3798
      %v3800 = vpop.f32.mrb[0].mxu0
      %v3801 = vpop.f32.mrb[0].mxu0
      %v3802 = vadd.f32 0.0, %v3801
      %v3803 = vpop.f32.mrb[0].mxu0
      %3804 = vmatprep.mubr.bf16.mxu0 0
      %3805 = vmatmul.mubr.bf16.gmra.mrb[0].mxu0 %v3493
      %v3806 = vpop.f32.mrb[0].mxu0
      %v3807 = vadd.f32 0.0, %v3806
      %v3808 = vpop.f32.mrb[0].mxu0
      %v3809 = vpop.f32.mrb[0].mxu0
      %v3810 = vadd.f32 0.0, %v3809
      %v3811 = vpop.f32.mrb[0].mxu0
      %3812 = vmatprep.mubr.bf16.mxu0 0
      %3813 = vmatmul.mubr.bf16.gmra.mrb[0].mxu0 %v3496
      %v3814 = vpop.f32.mrb[0].mxu0
      %v3815 = vadd.f32 0.0, %v3814
      %v3816 = vpop.f32.mrb[0].mxu0
      %v3817 = vpop.f32.mrb[0].mxu0
      %v3818 = vadd.f32 0.0, %v3817
      %v3819 = vpop.f32.mrb[0].mxu0
      %3820 = vmatprep.mubr.bf16.mxu0 0
      %3821 = vmatmul.mubr.bf16.gmra.mrb[0].mxu0 %v3499
      %v3822 = vpop.f32.mrb[0].mxu0
      %v3823 = vadd.f32 0.0, %v3822
      %v3824 = vpop.f32.mrb[0].mxu0
      %v3825 = vpop.f32.mrb[0].mxu0
      %v3826 = vadd.f32 0.0, %v3825
      %v3827 = vpop.f32.mrb[0].mxu0
      %3828 = vmatprep.mubr.bf16.mxu0 0
      %3829 = vmatmul.mubr.bf16.gmra.mrb[0].mxu0 %v3502
      %v3830 = vpop.f32.mrb[0].mxu0
      %v3831 = vadd.f32 0.0, %v3830
      %v3832 = vpop.f32.mrb[0].mxu0
      %v3833 = vpop.f32.mrb[0].mxu0
      %v3834 = vadd.f32 0.0, %v3833
      %v3835 = vpop.f32.mrb[0].mxu0
      %3836 = vmatprep.mubr.bf16.mxu0 0
      %3837 = vmatmul.mubr.bf16.gmra.mrb[0].mxu0 %v3505
      %v3838 = vpop.f32.mrb[0].mxu0
      %v3839 = vadd.f32 0.0, %v3838
      %v3840 = vpop.f32.mrb[0].mxu0
      %v3841 = vpop.f32.mrb[0].mxu0
      %v3842 = vadd.f32 0.0, %v3841
      %v3843 = vpop.f32.mrb[0].mxu0
      %3844 = vmatprep.mubr.bf16.mxu0 0
      %3845 = vmatmul.mubr.bf16.gmra.mrb[0].mxu0 %v3508
      %v3846 = vpop.f32.mrb[0].mxu0
      %v3847 = vadd.f32 0.0, %v3846
      %v3848 = vpop.f32.mrb[0].mxu0
      %v3849 = vpop.f32.mrb[0].mxu0
      %v3850 = vadd.f32 0.0, %v3849
      %v3851 = vpop.f32.mrb[0].mxu0
      %3852 = vmatprep.mubr.bf16.mxu0 0
      %3853 = vmatmul.mubr.bf16.gmra.mrb[0].mxu0 %v3511
      %v3854 = vpop.f32.mrb[0].mxu0
      %v3855 = vadd.f32 0.0, %v3854
      %v3856 = vpop.f32.mrb[0].mxu0
      %v3857 = vpop.f32.mrb[0].mxu0
      %v3858 = vadd.f32 0.0, %v3857
      %v3859 = vpop.f32.mrb[0].mxu0
      %3860 = vmatprep.mubr.bf16.mxu0 0
      %3861 = vmatmul.mubr.bf16.gmra.mrb[0].mxu0 %v3514
      %v3862 = vpop.f32.mrb[0].mxu0
      %v3863 = vadd.f32 0.0, %v3862
      %v3864 = vpop.f32.mrb[0].mxu0
      %v3865 = vpop.f32.mrb[0].mxu0
      %v3866 = vadd.f32 0.0, %v3865
      %v3867 = vpop.f32.mrb[0].mxu0
      %3868 = vdwg.mxu0
      %v3869 = vadd.f32 %v3012, %v3551
      %v3870 = vadd.f32 %v3013, %v3554
      %v3871 = vadd.f32 %v3014, %v3559
      %v3872 = vadd.f32 %v3015, %v3562
      %v3873 = vadd.f32 %v3016, %v3567
      %v3874 = vadd.f32 %v3017, %v3570
      %v3875 = vadd.f32 %v3018, %v3575
      %v3876 = vadd.f32 %v3019, %v3578
      %v3877 = vadd.f32 %v3020, %v3583
      %v3878 = vadd.f32 %v3021, %v3586
      %v3879 = vadd.f32 %v3022, %v3591
      %v3880 = vadd.f32 %v3023, %v3594
      %v3881 = vadd.f32 %v3024, %v3599
      %v3882 = vadd.f32 %v3025, %v3602
      %v3883 = vadd.f32 %v3026, %v3607
      %v3884 = vadd.f32 %v3027, %v3610
      %v3885 = vadd.f32 %v3028, %v3615
      %v3886 = vadd.f32 %v3029, %v3618
      %v3887 = vadd.f32 %v3030, %v3623
      %v3888 = vadd.f32 %v3031, %v3626
      %v3889 = vadd.f32 %v3032, %v3631
      %v3890 = vadd.f32 %v3033, %v3634
      %v3891 = vadd.f32 %v3034, %v3639
      %v3892 = vadd.f32 %v3035, %v3642
      %v3893 = vadd.f32 %v3036, %v3647
      %v3894 = vadd.f32 %v3037, %v3650
      %v3895 = vadd.f32 %v3038, %v3655
      %v3896 = vadd.f32 %v3039, %v3658
      %v3897 = vadd.f32 %v3040, %v3663
      %v3898 = vadd.f32 %v3041, %v3666
      %v3899 = vadd.f32 %v3042, %v3671
      %v3900 = vadd.f32 %v3043, %v3674
      %v3901 = vadd.f32 %v3044, %v3679
      %v3902 = vadd.f32 %v3045, %v3682
      %v3903 = vadd.f32 %v3046, %v3687
      %v3904 = vadd.f32 %v3047, %v3690
      %v3905 = vadd.f32 %v3048, %v3695
      %v3906 = vadd.f32 %v3049, %v3698
      %v3907 = vadd.f32 %v3050, %v3703
      %v3908 = vadd.f32 %v3051, %v3706
      %v3909 = vadd.f32 %v3052, %v3711
      %v3910 = vadd.f32 %v3053, %v3714
      %v3911 = vadd.f32 %v3054, %v3719
      %v3912 = vadd.f32 %v3055, %v3722
      %v3913 = vadd.f32 %v3056, %v3727
      %v3914 = vadd.f32 %v3057, %v3730
      %v3915 = vadd.f32 %v3058, %v3735
      %v3916 = vadd.f32 %v3059, %v3738
      %v3917 = vadd.f32 %v3060, %v3743
      %v3918 = vadd.f32 %v3061, %v3746
      %v3919 = vadd.f32 %v3062, %v3751
      %v3920 = vadd.f32 %v3063, %v3754
      %v3921 = vadd.f32 %v3064, %v3759
      %v3922 = vadd.f32 %v3065, %v3762
      %v3923 = vadd.f32 %v3066, %v3767
      %v3924 = vadd.f32 %v3067, %v3770
      %v3925 = vadd.f32 %v3068, %v3775
      %v3926 = vadd.f32 %v3069, %v3778
      %v3927 = vadd.f32 %v3070, %v3783
      %v3928 = vadd.f32 %v3071, %v3786
      %v3929 = vadd.f32 %v3072, %v3791
      %v3930 = vadd.f32 %v3073, %v3794
      %v3931 = vadd.f32 %v3074, %v3799
      %v3932 = vadd.f32 %v3075, %v3802
      %v3933 = vadd.f32 %v3076, %v3807
      %v3934 = vadd.f32 %v3077, %v3810
      %v3935 = vadd.f32 %v3078, %v3815
      %v3936 = vadd.f32 %v3079, %v3818
      %v3937 = vadd.f32 %v3080, %v3823
      %v3938 = vadd.f32 %v3081, %v3826
      %v3939 = vadd.f32 %v3082, %v3831
      %v3940 = vadd.f32 %v3083, %v3834
      %v3941 = vadd.f32 %v3084, %v3839
      %v3942 = vadd.f32 %v3085, %v3842
      %v3943 = vadd.f32 %v3086, %v3847
      %v3944 = vadd.f32 %v3087, %v3850
      %v3945 = vadd.f32 %v3088, %v3855
      %v3946 = vadd.f32 %v3089, %v3858
      %v3947 = vadd.f32 %v3090, %v3863
      %v3948 = vadd.f32 %v3091, %v3866
      %s3949 = scalar_lea.vmem %s1, 80
      %v3950 = vld [vmem:[%s3949] sm:$0xf]
      %v3951 = vld [vmem:[%s3949 + $0x4] sm:$0xf]
      %v3952 = vld [vmem:[%s3949 + $0x8] sm:$0xf]
      %v3953 = vld [vmem:[%s3949 + $0xc] sm:$0xf]
      %v3954 = vrot.slane %v2487, 1
      %v3955 = vrot.slane %v2488, 1
      %v3956 = vsel %vm1827, %v3954, %v3955
      %v3957 = vrot.slane %v2489, 1
      %v3958 = vsel %vm1827, %v3955, %v3957
      %v3959 = vrot.slane %v2490, 1
      %v3960 = vsel %vm1827, %v3957, %v3959
      %v3961 = vrot.slane %v2491, 1
      %v3962 = vsel %vm1827, %v3959, %v3961
      %v3963 = vrot.slane %v2492, 1
      %v3964 = vsel %vm1827, %v3961, %v3963
      %v3965 = vrot.slane %v2493, 1
      %v3966 = vsel %vm1827, %v3963, %v3965
      %v3967 = vrot.slane %v2494, 1
      %v3968 = vsel %vm1827, %v3965, %v3967
      %v3969 = vrot.slane %v2495, 1
      %v3970 = vsel %vm1827, %v3967, %v3969
      %v3971 = vrot.slane %v2496, 1
      %v3972 = vsel %vm1827, %v3969, %v3971
      %v3973 = vrot.slane %v2497, 1
      %v3974 = vsel %vm1827, %v3971, %v3973
      %v3975 = vrot.slane %v2498, 1
      %v3976 = vsel %vm1827, %v3973, %v3975
      %v3977 = vrot.slane %v2499, 1
      %v3978 = vsel %vm1827, %v3975, %v3977
      %v3979 = vrot.slane %v2500, 1
      %v3980 = vsel %vm1827, %v3977, %v3979
      %v3981 = vrot.slane %v2501, 1
      %v3982 = vsel %vm1827, %v3979, %v3981
      %v3983 = vrot.slane %v2502, 1
      %v3984 = vsel %vm1827, %v3981, %v3983
      %v3985 = vrot.slane %v2503, 1
      %v3986 = vsel %vm1827, %v3983, %v3985
      %v3987 = vrot.slane %v2504, 1
      %v3988 = vsel %vm1827, %v3985, %v3987
      %v3989 = vrot.slane %v2505, 1
      %v3990 = vsel %vm1827, %v3987, %v3989
      %v3991 = vrot.slane %v2506, 1
      %v3992 = vsel %vm1827, %v3989, %v3991
      %v3993 = vrot.slane %v2507, 1
      %v3994 = vsel %vm1827, %v3991, %v3993
      %v3995 = vrot.slane %v2508, 1
      %v3996 = vsel %vm1827, %v3993, %v3995
      %v3997 = vrot.slane %v2509, 1
      %v3998 = vsel %vm1827, %v3995, %v3997
      %v3999 = vrot.slane %v2510, 1
      %v4000 = vsel %vm1827, %v3997, %v3999
      %v4001 = vrot.slane %v2511, 1
      %v4002 = vsel %vm1827, %v3999, %v4001
      %v4003 = vrot.slane %v2512, 1
      %v4004 = vsel %vm1827, %v4001, %v4003
      %v4005 = vrot.slane %v2513, 1
      %v4006 = vsel %vm1827, %v4003, %v4005
      %v4007 = vrot.slane %v2514, 1
      %v4008 = vsel %vm1827, %v4005, %v4007
      %v4009 = vrot.slane %v2515, 1
      %v4010 = vsel %vm1827, %v4007, %v4009
      %v4011 = vrot.slane %v2516, 1
      %v4012 = vsel %vm1827, %v4009, %v4011
      %v4013 = vrot.slane %v2517, 1
      %v4014 = vsel %vm1827, %v4011, %v4013
      %v4015 = vrot.slane %v2518, 1
      %v4016 = vsel %vm1827, %v4013, %v4015
      %v4017 = vrot.slane %v2519, 1
      %v4018 = vsel %vm1827, %v4015, %v4017
      %v4019 = vrot.slane %v2520, 1
      %v4020 = vsel %vm1827, %v4017, %v4019
      %v4021 = vrot.slane %v2521, 1
      %v4022 = vsel %vm1827, %v4019, %v4021
      %v4023 = vrot.slane %v2522, 1
      %v4024 = vsel %vm1827, %v4021, %v4023
      %v4025 = vrot.slane %v2523, 1
      %v4026 = vsel %vm1827, %v4023, %v4025
      %v4027 = vrot.slane %v2524, 1
      %v4028 = vsel %vm1827, %v4025, %v4027
      %v4029 = vrot.slane %v2525, 1
      %v4030 = vsel %vm1827, %v4027, %v4029
      %v4031 = vrot.slane %v2526, 1
      %v4032 = vsel %vm1827, %v4029, %v4031
      %v4033 = vrot.slane %v3099, 1
      %v4034 = vsel %vm1827, %v4031, %v4033
      %v4039 = vunpack.c.l.b16 %v3950
      %v4040 = vunpack.c.l.b16 %v3951
      %v4041 = vunpack.c.l.b16 %v3952
      %v4042 = vunpack.c.l.b16 %v3953
      %v4043 = vpack.c.b16 %v4040, %v4039
      %v4044 = vpack.c.b16 %v4042, %v4041
      %v4048 = vsel %vm903, %v3956, 0
      %v4051 = vsel %vm903, %v3958, 0
      %v4054 = vsel %vm903, %v3960, 0
      %v4057 = vsel %vm903, %v3962, 0
      %v4060 = vsel %vm903, %v3964, 0
      %v4063 = vsel %vm903, %v3966, 0
      %v4066 = vsel %vm903, %v3968, 0
      %v4069 = vsel %vm903, %v3970, 0
      %v4072 = vsel %vm903, %v3972, 0
      %v4075 = vsel %vm903, %v3974, 0
      %v4078 = vsel %vm903, %v3976, 0
      %v4081 = vsel %vm903, %v3978, 0
      %v4084 = vsel %vm903, %v3980, 0
      %v4087 = vsel %vm903, %v3982, 0
      %v4090 = vsel %vm903, %v3984, 0
      %v4093 = vsel %vm903, %v3986, 0
      %v4096 = vsel %vm903, %v3988, 0
      %v4099 = vsel %vm903, %v3990, 0
      %v4102 = vsel %vm903, %v3992, 0
      %v4105 = vsel %vm903, %v3994, 0
      %v4108 = vsel %vm903, %v3996, 0
      %v4111 = vsel %vm903, %v3998, 0
      %v4114 = vsel %vm903, %v4000, 0
      %v4117 = vsel %vm903, %v4002, 0
      %v4120 = vsel %vm903, %v4004, 0
      %v4123 = vsel %vm903, %v4006, 0
      %v4126 = vsel %vm903, %v4008, 0
      %v4129 = vsel %vm903, %v4010, 0
      %v4132 = vsel %vm903, %v4012, 0
      %v4135 = vsel %vm903, %v4014, 0
      %v4138 = vsel %vm903, %v4016, 0
      %v4141 = vsel %vm903, %v4018, 0
      %v4144 = vsel %vm903, %v4020, 0
      %v4147 = vsel %vm903, %v4022, 0
      %v4150 = vsel %vm903, %v4024, 0
      %v4153 = vsel %vm903, %v4026, 0
      %v4156 = vsel %vm903, %v4028, 0
      %v4159 = vsel %vm903, %v4030, 0
      %v4162 = vsel %vm903, %v4032, 0
      %v4165 = vsel %vm903, %v4034, 0
      %4167 = vmatprep.subr.bf16.mxu0 0
      %4168 = vmatpush1.bf16.msra.mxu0 %v4043
      %4169 = vmatprep.subr.bf16.mxu0 0
      %4170 = vmatpush1.bf16.msra.mxu0 %v4044
      %4171 = vmatprep.subr.bf16.mxu0 0
      %4172 = vmatpush1.bf16.msra.mxu0 0
      %4173 = vmatprep.subr.bf16.mxu0 0
      %4174 = vmatpush1.bf16.msra.mxu0 0
      %4175 = vmatprep.subr.bf16.mxu0 0
      %4176 = vmatpush1.bf16.msra.mxu0 0
      %4177 = vmatprep.subr.bf16.mxu0 0
      %4178 = vmatpush1.bf16.msra.mxu0 0
      %4179 = vmatprep.subr.bf16.mxu0 0
      %4180 = vmatpush1.bf16.msra.mxu0 0
      %4181 = vmatprep.subr.bf16.mxu0 0
      %4182 = vmatpush1.bf16.msra.mxu0 0
      %4183 = vmatprep.subr.bf16.mxu0 0
      %4184 = vmatpush1.bf16.msra.mxu0 0
      %4185 = vmatprep.subr.bf16.mxu0 0
      %4186 = vmatpush1.bf16.msra.mxu0 0
      %4187 = vmatprep.subr.bf16.mxu0 0
      %4188 = vmatpush1.bf16.msra.mxu0 0
      %4189 = vmatprep.subr.bf16.mxu0 0
      %4190 = vmatpush1.bf16.msra.mxu0 0
      %4191 = vmatprep.subr.bf16.mxu0 0
      %4192 = vmatpush1.bf16.msra.mxu0 0
      %4193 = vmatprep.subr.bf16.mxu0 0
      %4194 = vmatpush1.bf16.msra.mxu0 0
      %4195 = vmatprep.subr.bf16.mxu0 0
      %4196 = vmatpush1.bf16.msra.mxu0 0
      %4197 = vmatprep.subr.bf16.mxu0 0
      %4198 = vmatpush1.bf16.msra.mxu0 0
      %4199 = vmatprep.mubr.bf16.mxu0 0
      %4200 = vmatmul.mubr.bf16.gmra.mrb[0].mxu0 %v4048
      %v4201 = vpop.f32.mrb[0].mxu0
      %v4202 = vadd.f32 0.0, %v4201
      %v4203 = vpop.f32.mrb[0].mxu0
      %v4204 = vpop.f32.mrb[0].mxu0
      %v4205 = vadd.f32 0.0, %v4204
      %v4206 = vpop.f32.mrb[0].mxu0
      %4207 = vmatprep.mubr.bf16.mxu0 0
      %4208 = vmatmul.mubr.bf16.gmra.mrb[0].mxu0 %v4051
      %v4209 = vpop.f32.mrb[0].mxu0
      %v4210 = vadd.f32 0.0, %v4209
      %v4211 = vpop.f32.mrb[0].mxu0
      %v4212 = vpop.f32.mrb[0].mxu0
      %v4213 = vadd.f32 0.0, %v4212
      %v4214 = vpop.f32.mrb[0].mxu0
      %4215 = vmatprep.mubr.bf16.mxu0 0
      %4216 = vmatmul.mubr.bf16.gmra.mrb[0].mxu0 %v4054
      %v4217 = vpop.f32.mrb[0].mxu0
      %v4218 = vadd.f32 0.0, %v4217
      %v4219 = vpop.f32.mrb[0].mxu0
      %v4220 = vpop.f32.mrb[0].mxu0
      %v4221 = vadd.f32 0.0, %v4220
      %v4222 = vpop.f32.mrb[0].mxu0
      %4223 = vmatprep.mubr.bf16.mxu0 0
      %4224 = vmatmul.mubr.bf16.gmra.mrb[0].mxu0 %v4057
      %v4225 = vpop.f32.mrb[0].mxu0
      %v4226 = vadd.f32 0.0, %v4225
      %v4227 = vpop.f32.mrb[0].mxu0
      %v4228 = vpop.f32.mrb[0].mxu0
      %v4229 = vadd.f32 0.0, %v4228
      %v4230 = vpop.f32.mrb[0].mxu0
      %4231 = vmatprep.mubr.bf16.mxu0 0
      %4232 = vmatmul.mubr.bf16.gmra.mrb[0].mxu0 %v4060
      %v4233 = vpop.f32.mrb[0].mxu0
      %v4234 = vadd.f32 0.0, %v4233
      %v4235 = vpop.f32.mrb[0].mxu0
      %v4236 = vpop.f32.mrb[0].mxu0
      %v4237 = vadd.f32 0.0, %v4236
      %v4238 = vpop.f32.mrb[0].mxu0
      %4239 = vmatprep.mubr.bf16.mxu0 0
      %4240 = vmatmul.mubr.bf16.gmra.mrb[0].mxu0 %v4063
      %v4241 = vpop.f32.mrb[0].mxu0
      %v4242 = vadd.f32 0.0, %v4241
      %v4243 = vpop.f32.mrb[0].mxu0
      %v4244 = vpop.f32.mrb[0].mxu0
      %v4245 = vadd.f32 0.0, %v4244
      %v4246 = vpop.f32.mrb[0].mxu0
      %4247 = vmatprep.mubr.bf16.mxu0 0
      %4248 = vmatmul.mubr.bf16.gmra.mrb[0].mxu0 %v4066
      %v4249 = vpop.f32.mrb[0].mxu0
      %v4250 = vadd.f32 0.0, %v4249
      %v4251 = vpop.f32.mrb[0].mxu0
      %v4252 = vpop.f32.mrb[0].mxu0
      %v4253 = vadd.f32 0.0, %v4252
      %v4254 = vpop.f32.mrb[0].mxu0
      %4255 = vmatprep.mubr.bf16.mxu0 0
      %4256 = vmatmul.mubr.bf16.gmra.mrb[0].mxu0 %v4069
      %v4257 = vpop.f32.mrb[0].mxu0
      %v4258 = vadd.f32 0.0, %v4257
      %v4259 = vpop.f32.mrb[0].mxu0
      %v4260 = vpop.f32.mrb[0].mxu0
      %v4261 = vadd.f32 0.0, %v4260
      %v4262 = vpop.f32.mrb[0].mxu0
      %4263 = vmatprep.mubr.bf16.mxu0 0
      %4264 = vmatmul.mubr.bf16.gmra.mrb[0].mxu0 %v4072
      %v4265 = vpop.f32.mrb[0].mxu0
      %v4266 = vadd.f32 0.0, %v4265
      %v4267 = vpop.f32.mrb[0].mxu0
      %v4268 = vpop.f32.mrb[0].mxu0
      %v4269 = vadd.f32 0.0, %v4268
      %v4270 = vpop.f32.mrb[0].mxu0
      %4271 = vmatprep.mubr.bf16.mxu0 0
      %4272 = vmatmul.mubr.bf16.gmra.mrb[0].mxu0 %v4075
      %v4273 = vpop.f32.mrb[0].mxu0
      %v4274 = vadd.f32 0.0, %v4273
      %v4275 = vpop.f32.mrb[0].mxu0
      %v4276 = vpop.f32.mrb[0].mxu0
      %v4277 = vadd.f32 0.0, %v4276
      %v4278 = vpop.f32.mrb[0].mxu0
      %4279 = vmatprep.mubr.bf16.mxu0 0
      %4280 = vmatmul.mubr.bf16.gmra.mrb[0].mxu0 %v4078
      %v4281 = vpop.f32.mrb[0].mxu0
      %v4282 = vadd.f32 0.0, %v4281
      %v4283 = vpop.f32.mrb[0].mxu0
      %v4284 = vpop.f32.mrb[0].mxu0
      %v4285 = vadd.f32 0.0, %v4284
      %v4286 = vpop.f32.mrb[0].mxu0
      %4287 = vmatprep.mubr.bf16.mxu0 0
      %4288 = vmatmul.mubr.bf16.gmra.mrb[0].mxu0 %v4081
      %v4289 = vpop.f32.mrb[0].mxu0
      %v4290 = vadd.f32 0.0, %v4289
      %v4291 = vpop.f32.mrb[0].mxu0
      %v4292 = vpop.f32.mrb[0].mxu0
      %v4293 = vadd.f32 0.0, %v4292
      %v4294 = vpop.f32.mrb[0].mxu0
      %4295 = vmatprep.mubr.bf16.mxu0 0
      %4296 = vmatmul.mubr.bf16.gmra.mrb[0].mxu0 %v4084
      %v4297 = vpop.f32.mrb[0].mxu0
      %v4298 = vadd.f32 0.0, %v4297
      %v4299 = vpop.f32.mrb[0].mxu0
      %v4300 = vpop.f32.mrb[0].mxu0
      %v4301 = vadd.f32 0.0, %v4300
      %v4302 = vpop.f32.mrb[0].mxu0
      %4303 = vmatprep.mubr.bf16.mxu0 0
      %4304 = vmatmul.mubr.bf16.gmra.mrb[0].mxu0 %v4087
      %v4305 = vpop.f32.mrb[0].mxu0
      %v4306 = vadd.f32 0.0, %v4305
      %v4307 = vpop.f32.mrb[0].mxu0
      %v4308 = vpop.f32.mrb[0].mxu0
      %v4309 = vadd.f32 0.0, %v4308
      %v4310 = vpop.f32.mrb[0].mxu0
      %4311 = vmatprep.mubr.bf16.mxu0 0
      %4312 = vmatmul.mubr.bf16.gmra.mrb[0].mxu0 %v4090
      %v4313 = vpop.f32.mrb[0].mxu0
      %v4314 = vadd.f32 0.0, %v4313
      %v4315 = vpop.f32.mrb[0].mxu0
      %v4316 = vpop.f32.mrb[0].mxu0
      %v4317 = vadd.f32 0.0, %v4316
      %v4318 = vpop.f32.mrb[0].mxu0
      %4319 = vmatprep.mubr.bf16.mxu0 0
      %4320 = vmatmul.mubr.bf16.gmra.mrb[0].mxu0 %v4093
      %v4321 = vpop.f32.mrb[0].mxu0
      %v4322 = vadd.f32 0.0, %v4321
      %v4323 = vpop.f32.mrb[0].mxu0
      %v4324 = vpop.f32.mrb[0].mxu0
      %v4325 = vadd.f32 0.0, %v4324
      %v4326 = vpop.f32.mrb[0].mxu0
      %4327 = vmatprep.mubr.bf16.mxu0 0
      %4328 = vmatmul.mubr.bf16.gmra.mrb[0].mxu0 %v4096
      %v4329 = vpop.f32.mrb[0].mxu0
      %v4330 = vadd.f32 0.0, %v4329
      %v4331 = vpop.f32.mrb[0].mxu0
      %v4332 = vpop.f32.mrb[0].mxu0
      %v4333 = vadd.f32 0.0, %v4332
      %v4334 = vpop.f32.mrb[0].mxu0
      %4335 = vmatprep.mubr.bf16.mxu0 0
      %4336 = vmatmul.mubr.bf16.gmra.mrb[0].mxu0 %v4099
      %v4337 = vpop.f32.mrb[0].mxu0
      %v4338 = vadd.f32 0.0, %v4337
      %v4339 = vpop.f32.mrb[0].mxu0
      %v4340 = vpop.f32.mrb[0].mxu0
      %v4341 = vadd.f32 0.0, %v4340
      %v4342 = vpop.f32.mrb[0].mxu0
      %4343 = vmatprep.mubr.bf16.mxu0 0
      %4344 = vmatmul.mubr.bf16.gmra.mrb[0].mxu0 %v4102
      %v4345 = vpop.f32.mrb[0].mxu0
      %v4346 = vadd.f32 0.0, %v4345
      %v4347 = vpop.f32.mrb[0].mxu0
      %v4348 = vpop.f32.mrb[0].mxu0
      %v4349 = vadd.f32 0.0, %v4348
      %v4350 = vpop.f32.mrb[0].mxu0
      %4351 = vmatprep.mubr.bf16.mxu0 0
      %4352 = vmatmul.mubr.bf16.gmra.mrb[0].mxu0 %v4105
      %v4353 = vpop.f32.mrb[0].mxu0
      %v4354 = vadd.f32 0.0, %v4353
      %v4355 = vpop.f32.mrb[0].mxu0
      %v4356 = vpop.f32.mrb[0].mxu0
      %v4357 = vadd.f32 0.0, %v4356
      %v4358 = vpop.f32.mrb[0].mxu0
      %4359 = vmatprep.mubr.bf16.mxu0 0
      %4360 = vmatmul.mubr.bf16.gmra.mrb[0].mxu0 %v4108
      %v4361 = vpop.f32.mrb[0].mxu0
      %v4362 = vadd.f32 0.0, %v4361
      %v4363 = vpop.f32.mrb[0].mxu0
      %v4364 = vpop.f32.mrb[0].mxu0
      %v4365 = vadd.f32 0.0, %v4364
      %v4366 = vpop.f32.mrb[0].mxu0
      %4367 = vmatprep.mubr.bf16.mxu0 0
      %4368 = vmatmul.mubr.bf16.gmra.mrb[0].mxu0 %v4111
      %v4369 = vpop.f32.mrb[0].mxu0
      %v4370 = vadd.f32 0.0, %v4369
      %v4371 = vpop.f32.mrb[0].mxu0
      %v4372 = vpop.f32.mrb[0].mxu0
      %v4373 = vadd.f32 0.0, %v4372
      %v4374 = vpop.f32.mrb[0].mxu0
      %4375 = vmatprep.mubr.bf16.mxu0 0
      %4376 = vmatmul.mubr.bf16.gmra.mrb[0].mxu0 %v4114
      %v4377 = vpop.f32.mrb[0].mxu0
      %v4378 = vadd.f32 0.0, %v4377
      %v4379 = vpop.f32.mrb[0].mxu0
      %v4380 = vpop.f32.mrb[0].mxu0
      %v4381 = vadd.f32 0.0, %v4380
      %v4382 = vpop.f32.mrb[0].mxu0
      %4383 = vmatprep.mubr.bf16.mxu0 0
      %4384 = vmatmul.mubr.bf16.gmra.mrb[0].mxu0 %v4117
      %v4385 = vpop.f32.mrb[0].mxu0
      %v4386 = vadd.f32 0.0, %v4385
      %v4387 = vpop.f32.mrb[0].mxu0
      %v4388 = vpop.f32.mrb[0].mxu0
      %v4389 = vadd.f32 0.0, %v4388
      %v4390 = vpop.f32.mrb[0].mxu0
      %4391 = vmatprep.mubr.bf16.mxu0 0
      %4392 = vmatmul.mubr.bf16.gmra.mrb[0].mxu0 %v4120
      %v4393 = vpop.f32.mrb[0].mxu0
      %v4394 = vadd.f32 0.0, %v4393
      %v4395 = vpop.f32.mrb[0].mxu0
      %v4396 = vpop.f32.mrb[0].mxu0
      %v4397 = vadd.f32 0.0, %v4396
      %v4398 = vpop.f32.mrb[0].mxu0
      %4399 = vmatprep.mubr.bf16.mxu0 0
      %4400 = vmatmul.mubr.bf16.gmra.mrb[0].mxu0 %v4123
      %v4401 = vpop.f32.mrb[0].mxu0
      %v4402 = vadd.f32 0.0, %v4401
      %v4403 = vpop.f32.mrb[0].mxu0
      %v4404 = vpop.f32.mrb[0].mxu0
      %v4405 = vadd.f32 0.0, %v4404
      %v4406 = vpop.f32.mrb[0].mxu0
      %4407 = vmatprep.mubr.bf16.mxu0 0
      %4408 = vmatmul.mubr.bf16.gmra.mrb[0].mxu0 %v4126
      %v4409 = vpop.f32.mrb[0].mxu0
      %v4410 = vadd.f32 0.0, %v4409
      %v4411 = vpop.f32.mrb[0].mxu0
      %v4412 = vpop.f32.mrb[0].mxu0
      %v4413 = vadd.f32 0.0, %v4412
      %v4414 = vpop.f32.mrb[0].mxu0
      %4415 = vmatprep.mubr.bf16.mxu0 0
      %4416 = vmatmul.mubr.bf16.gmra.mrb[0].mxu0 %v4129
      %v4417 = vpop.f32.mrb[0].mxu0
      %v4418 = vadd.f32 0.0, %v4417
      %v4419 = vpop.f32.mrb[0].mxu0
      %v4420 = vpop.f32.mrb[0].mxu0
      %v4421 = vadd.f32 0.0, %v4420
      %v4422 = vpop.f32.mrb[0].mxu0
      %4423 = vmatprep.mubr.bf16.mxu0 0
      %4424 = vmatmul.mubr.bf16.gmra.mrb[0].mxu0 %v4132
      %v4425 = vpop.f32.mrb[0].mxu0
      %v4426 = vadd.f32 0.0, %v4425
      %v4427 = vpop.f32.mrb[0].mxu0
      %v4428 = vpop.f32.mrb[0].mxu0
      %v4429 = vadd.f32 0.0, %v4428
      %v4430 = vpop.f32.mrb[0].mxu0
      %4431 = vmatprep.mubr.bf16.mxu0 0
      %4432 = vmatmul.mubr.bf16.gmra.mrb[0].mxu0 %v4135
      %v4433 = vpop.f32.mrb[0].mxu0
      %v4434 = vadd.f32 0.0, %v4433
      %v4435 = vpop.f32.mrb[0].mxu0
      %v4436 = vpop.f32.mrb[0].mxu0
      %v4437 = vadd.f32 0.0, %v4436
      %v4438 = vpop.f32.mrb[0].mxu0
      %4439 = vmatprep.mubr.bf16.mxu0 0
      %4440 = vmatmul.mubr.bf16.gmra.mrb[0].mxu0 %v4138
      %v4441 = vpop.f32.mrb[0].mxu0
      %v4442 = vadd.f32 0.0, %v4441
      %v4443 = vpop.f32.mrb[0].mxu0
      %v4444 = vpop.f32.mrb[0].mxu0
      %v4445 = vadd.f32 0.0, %v4444
      %v4446 = vpop.f32.mrb[0].mxu0
      %4447 = vmatprep.mubr.bf16.mxu0 0
      %4448 = vmatmul.mubr.bf16.gmra.mrb[0].mxu0 %v4141
      %v4449 = vpop.f32.mrb[0].mxu0
      %v4450 = vadd.f32 0.0, %v4449
      %v4451 = vpop.f32.mrb[0].mxu0
      %v4452 = vpop.f32.mrb[0].mxu0
      %v4453 = vadd.f32 0.0, %v4452
      %v4454 = vpop.f32.mrb[0].mxu0
      %4455 = vmatprep.mubr.bf16.mxu0 0
      %4456 = vmatmul.mubr.bf16.gmra.mrb[0].mxu0 %v4144
      %v4457 = vpop.f32.mrb[0].mxu0
      %v4458 = vadd.f32 0.0, %v4457
      %v4459 = vpop.f32.mrb[0].mxu0
      %v4460 = vpop.f32.mrb[0].mxu0
      %v4461 = vadd.f32 0.0, %v4460
      %v4462 = vpop.f32.mrb[0].mxu0
      %4463 = vmatprep.mubr.bf16.mxu0 0
      %4464 = vmatmul.mubr.bf16.gmra.mrb[0].mxu0 %v4147
      %v4465 = vpop.f32.mrb[0].mxu0
      %v4466 = vadd.f32 0.0, %v4465
      %v4467 = vpop.f32.mrb[0].mxu0
      %v4468 = vpop.f32.mrb[0].mxu0
      %v4469 = vadd.f32 0.0, %v4468
      %v4470 = vpop.f32.mrb[0].mxu0
      %4471 = vmatprep.mubr.bf16.mxu0 0
      %4472 = vmatmul.mubr.bf16.gmra.mrb[0].mxu0 %v4150
      %v4473 = vpop.f32.mrb[0].mxu0
      %v4474 = vadd.f32 0.0, %v4473
      %v4475 = vpop.f32.mrb[0].mxu0
      %v4476 = vpop.f32.mrb[0].mxu0
      %v4477 = vadd.f32 0.0, %v4476
      %v4478 = vpop.f32.mrb[0].mxu0
      %4479 = vmatprep.mubr.bf16.mxu0 0
      %4480 = vmatmul.mubr.bf16.gmra.mrb[0].mxu0 %v4153
      %v4481 = vpop.f32.mrb[0].mxu0
      %v4482 = vadd.f32 0.0, %v4481
      %v4483 = vpop.f32.mrb[0].mxu0
      %v4484 = vpop.f32.mrb[0].mxu0
      %v4485 = vadd.f32 0.0, %v4484
      %v4486 = vpop.f32.mrb[0].mxu0
      %4487 = vmatprep.mubr.bf16.mxu0 0
      %4488 = vmatmul.mubr.bf16.gmra.mrb[0].mxu0 %v4156
      %v4489 = vpop.f32.mrb[0].mxu0
      %v4490 = vadd.f32 0.0, %v4489
      %v4491 = vpop.f32.mrb[0].mxu0
      %v4492 = vpop.f32.mrb[0].mxu0
      %v4493 = vadd.f32 0.0, %v4492
      %v4494 = vpop.f32.mrb[0].mxu0
      %4495 = vmatprep.mubr.bf16.mxu0 0
      %4496 = vmatmul.mubr.bf16.gmra.mrb[0].mxu0 %v4159
      %v4497 = vpop.f32.mrb[0].mxu0
      %v4498 = vadd.f32 0.0, %v4497
      %v4499 = vpop.f32.mrb[0].mxu0
      %v4500 = vpop.f32.mrb[0].mxu0
      %v4501 = vadd.f32 0.0, %v4500
      %v4502 = vpop.f32.mrb[0].mxu0
      %4503 = vmatprep.mubr.bf16.mxu0 0
      %4504 = vmatmul.mubr.bf16.gmra.mrb[0].mxu0 %v4162
      %v4505 = vpop.f32.mrb[0].mxu0
      %v4506 = vadd.f32 0.0, %v4505
      %v4507 = vpop.f32.mrb[0].mxu0
      %v4508 = vpop.f32.mrb[0].mxu0
      %v4509 = vadd.f32 0.0, %v4508
      %v4510 = vpop.f32.mrb[0].mxu0
      %4511 = vmatprep.mubr.bf16.mxu0 0
      %4512 = vmatmul.mubr.bf16.gmra.mrb[0].mxu0 %v4165
      %v4513 = vpop.f32.mrb[0].mxu0
      %v4514 = vadd.f32 0.0, %v4513
      %v4515 = vpop.f32.mrb[0].mxu0
      %v4516 = vpop.f32.mrb[0].mxu0
      %v4517 = vadd.f32 0.0, %v4516
      %v4518 = vpop.f32.mrb[0].mxu0
      %4519 = vdwg.mxu0
      %v4520 = vadd.f32 %v3869, %v4202
      %v4521 = vadd.f32 %v3870, %v4205
      %v4522 = vadd.f32 %v3871, %v4210
      %v4523 = vadd.f32 %v3872, %v4213
      %v4524 = vadd.f32 %v3873, %v4218
      %v4525 = vadd.f32 %v3874, %v4221
      %v4526 = vadd.f32 %v3875, %v4226
      %v4527 = vadd.f32 %v3876, %v4229
      %v4528 = vadd.f32 %v3877, %v4234
      %v4529 = vadd.f32 %v3878, %v4237
      %v4530 = vadd.f32 %v3879, %v4242
      %v4531 = vadd.f32 %v3880, %v4245
      %v4532 = vadd.f32 %v3881, %v4250
      %v4533 = vadd.f32 %v3882, %v4253
      %v4534 = vadd.f32 %v3883, %v4258
      %v4535 = vadd.f32 %v3884, %v4261
      %v4536 = vadd.f32 %v3885, %v4266
      %v4537 = vadd.f32 %v3886, %v4269
      %v4538 = vadd.f32 %v3887, %v4274
      %v4539 = vadd.f32 %v3888, %v4277
      %v4540 = vadd.f32 %v3889, %v4282
      %v4541 = vadd.f32 %v3890, %v4285
      %v4542 = vadd.f32 %v3891, %v4290
      %v4543 = vadd.f32 %v3892, %v4293
      %v4544 = vadd.f32 %v3893, %v4298
      %v4545 = vadd.f32 %v3894, %v4301
      %v4546 = vadd.f32 %v3895, %v4306
      %v4547 = vadd.f32 %v3896, %v4309
      %v4548 = vadd.f32 %v3897, %v4314
      %v4549 = vadd.f32 %v3898, %v4317
      %v4550 = vadd.f32 %v3899, %v4322
      %v4551 = vadd.f32 %v3900, %v4325
      %v4552 = vadd.f32 %v3901, %v4330
      %v4553 = vadd.f32 %v3902, %v4333
      %v4554 = vadd.f32 %v3903, %v4338
      %v4555 = vadd.f32 %v3904, %v4341
      %v4556 = vadd.f32 %v3905, %v4346
      %v4557 = vadd.f32 %v3906, %v4349
      %v4558 = vadd.f32 %v3907, %v4354
      %v4559 = vadd.f32 %v3908, %v4357
      %v4560 = vadd.f32 %v3909, %v4362
      %v4561 = vadd.f32 %v3910, %v4365
      %v4562 = vadd.f32 %v3911, %v4370
      %v4563 = vadd.f32 %v3912, %v4373
      %v4564 = vadd.f32 %v3913, %v4378
      %v4565 = vadd.f32 %v3914, %v4381
      %v4566 = vadd.f32 %v3915, %v4386
      %v4567 = vadd.f32 %v3916, %v4389
      %v4568 = vadd.f32 %v3917, %v4394
      %v4569 = vadd.f32 %v3918, %v4397
      %v4570 = vadd.f32 %v3919, %v4402
      %v4571 = vadd.f32 %v3920, %v4405
      %v4572 = vadd.f32 %v3921, %v4410
      %v4573 = vadd.f32 %v3922, %v4413
      %v4574 = vadd.f32 %v3923, %v4418
      %v4575 = vadd.f32 %v3924, %v4421
      %v4576 = vadd.f32 %v3925, %v4426
      %v4577 = vadd.f32 %v3926, %v4429
      %v4578 = vadd.f32 %v3927, %v4434
      %v4579 = vadd.f32 %v3928, %v4437
      %v4580 = vadd.f32 %v3929, %v4442
      %v4581 = vadd.f32 %v3930, %v4445
      %v4582 = vadd.f32 %v3931, %v4450
      %v4583 = vadd.f32 %v3932, %v4453
      %v4584 = vadd.f32 %v3933, %v4458
      %v4585 = vadd.f32 %v3934, %v4461
      %v4586 = vadd.f32 %v3935, %v4466
      %v4587 = vadd.f32 %v3936, %v4469
      %v4588 = vadd.f32 %v3937, %v4474
      %v4589 = vadd.f32 %v3938, %v4477
      %v4590 = vadd.f32 %v3939, %v4482
      %v4591 = vadd.f32 %v3940, %v4485
      %v4592 = vadd.f32 %v3941, %v4490
      %v4593 = vadd.f32 %v3942, %v4493
      %v4594 = vadd.f32 %v3943, %v4498
      %v4595 = vadd.f32 %v3944, %v4501
      %v4596 = vadd.f32 %v3945, %v4506
      %v4597 = vadd.f32 %v3946, %v4509
      %v4598 = vadd.f32 %v3947, %v4514
      %v4599 = vadd.f32 %v3948, %v4517
      %s4600 = scalar_lea.vmem %s1, 96
      %v4601 = vld [vmem:[%s4600] sm:$0xf]
      %v4602 = vld [vmem:[%s4600 + $0x4] sm:$0xf]
      %v4603 = vld [vmem:[%s4600 + $0x8] sm:$0xf]
      %v4604 = vld [vmem:[%s4600 + $0xc] sm:$0xf]
      %v4609 = vunpack.c.l.b16 %v349
      %v4610 = vunpack.c.l.b16 %v350
      %v4611 = vunpack.c.l.b16 %v351
      %v4612 = vunpack.c.l.b16 %v352
      %v4613 = vpack.c.b16 %v2483, %v524
      %v4614 = vpack.c.b16 %v2485, %v2484
      %v4615 = vpack.c.b16 %v3098, %v2486
      %v4616 = vpack.c.b16 %v4610, %v4609
      %v4617 = vpack.c.b16 %v4612, %v4611
      %v4622 = vunpack.c.l.b16 %v4601
      %v4623 = vunpack.c.l.b16 %v4602
      %v4624 = vunpack.c.l.b16 %v4603
      %v4625 = vunpack.c.l.b16 %v4604
      %v4626 = vpack.c.b16 %v4623, %v4622
      %v4627 = vpack.c.b16 %v4625, %v4624
      %v4631 = vsel %vm903, %v4613, 0
      %v4634 = vsel %vm903, %v4614, 0
      %v4637 = vsel %vm903, %v4615, 0
      %v4640 = vsel %vm903, %v4616, 0
      %v4643 = vsel %vm903, %v4617, 0
      %4645 = vmatprep.subr.bf16.mxu0 0
      %4646 = vmatpush1.bf16.msra.mxu0 %v4626
      %4647 = vmatprep.subr.bf16.mxu0 0
      %4648 = vmatpush1.bf16.msra.mxu0 %v4627
      %4649 = vmatprep.subr.bf16.mxu0 0
      %4650 = vmatpush1.bf16.msra.mxu0 0
      %4651 = vmatprep.subr.bf16.mxu0 0
      %4652 = vmatpush1.bf16.msra.mxu0 0
      %4653 = vmatprep.subr.bf16.mxu0 0
      %4654 = vmatpush1.bf16.msra.mxu0 0
      %4655 = vmatprep.subr.bf16.mxu0 0
      %4656 = vmatpush1.bf16.msra.mxu0 0
      %4657 = vmatprep.subr.bf16.mxu0 0
      %4658 = vmatpush1.bf16.msra.mxu0 0
      %4659 = vmatprep.subr.bf16.mxu0 0
      %4660 = vmatpush1.bf16.msra.mxu0 0
      %4661 = vmatprep.subr.bf16.mxu0 0
      %4662 = vmatpush1.bf16.msra.mxu0 0
      %4663 = vmatprep.subr.bf16.mxu0 0
      %4664 = vmatpush1.bf16.msra.mxu0 0
      %4665 = vmatprep.subr.bf16.mxu0 0
      %4666 = vmatpush1.bf16.msra.mxu0 0
      %4667 = vmatprep.subr.bf16.mxu0 0
      %4668 = vmatpush1.bf16.msra.mxu0 0
      %4669 = vmatprep.subr.bf16.mxu0 0
      %4670 = vmatpush1.bf16.msra.mxu0 0
      %4671 = vmatprep.subr.bf16.mxu0 0
      %4672 = vmatpush1.bf16.msra.mxu0 0
      %4673 = vmatprep.subr.bf16.mxu0 0
      %4674 = vmatpush1.bf16.msra.mxu0 0
      %4675 = vmatprep.subr.bf16.mxu0 0
      %4676 = vmatpush1.bf16.msra.mxu0 0
      %4677 = vmatprep.mubr.bf16.mxu0 0
      %4678 = vmatmul.mubr.bf16.gmra.mrb[0].mxu0 %v1399
      %v4679 = vpop.f32.mrb[0].mxu0
      %v4680 = vadd.f32 0.0, %v4679
      %v4681 = vpop.f32.mrb[0].mxu0
      %v4682 = vpop.f32.mrb[0].mxu0
      %v4683 = vadd.f32 0.0, %v4682
      %v4684 = vpop.f32.mrb[0].mxu0
      %4685 = vmatprep.mubr.bf16.mxu0 0
      %4686 = vmatmul.mubr.bf16.gmra.mrb[0].mxu0 %v1401
      %v4687 = vpop.f32.mrb[0].mxu0
      %v4688 = vadd.f32 0.0, %v4687
      %v4689 = vpop.f32.mrb[0].mxu0
      %v4690 = vpop.f32.mrb[0].mxu0
      %v4691 = vadd.f32 0.0, %v4690
      %v4692 = vpop.f32.mrb[0].mxu0
      %4693 = vmatprep.mubr.bf16.mxu0 0
      %4694 = vmatmul.mubr.bf16.gmra.mrb[0].mxu0 %v1403
      %v4695 = vpop.f32.mrb[0].mxu0
      %v4696 = vadd.f32 0.0, %v4695
      %v4697 = vpop.f32.mrb[0].mxu0
      %v4698 = vpop.f32.mrb[0].mxu0
      %v4699 = vadd.f32 0.0, %v4698
      %v4700 = vpop.f32.mrb[0].mxu0
      %4701 = vmatprep.mubr.bf16.mxu0 0
      %4702 = vmatmul.mubr.bf16.gmra.mrb[0].mxu0 %v1405
      %v4703 = vpop.f32.mrb[0].mxu0
      %v4704 = vadd.f32 0.0, %v4703
      %v4705 = vpop.f32.mrb[0].mxu0
      %v4706 = vpop.f32.mrb[0].mxu0
      %v4707 = vadd.f32 0.0, %v4706
      %v4708 = vpop.f32.mrb[0].mxu0
      %4709 = vmatprep.mubr.bf16.mxu0 0
      %4710 = vmatmul.mubr.bf16.gmra.mrb[0].mxu0 %v1407
      %v4711 = vpop.f32.mrb[0].mxu0
      %v4712 = vadd.f32 0.0, %v4711
      %v4713 = vpop.f32.mrb[0].mxu0
      %v4714 = vpop.f32.mrb[0].mxu0
      %v4715 = vadd.f32 0.0, %v4714
      %v4716 = vpop.f32.mrb[0].mxu0
      %4717 = vmatprep.mubr.bf16.mxu0 0
      %4718 = vmatmul.mubr.bf16.gmra.mrb[0].mxu0 %v1409
      %v4719 = vpop.f32.mrb[0].mxu0
      %v4720 = vadd.f32 0.0, %v4719
      %v4721 = vpop.f32.mrb[0].mxu0
      %v4722 = vpop.f32.mrb[0].mxu0
      %v4723 = vadd.f32 0.0, %v4722
      %v4724 = vpop.f32.mrb[0].mxu0
      %4725 = vmatprep.mubr.bf16.mxu0 0
      %4726 = vmatmul.mubr.bf16.gmra.mrb[0].mxu0 %v1411
      %v4727 = vpop.f32.mrb[0].mxu0
      %v4728 = vadd.f32 0.0, %v4727
      %v4729 = vpop.f32.mrb[0].mxu0
      %v4730 = vpop.f32.mrb[0].mxu0
      %v4731 = vadd.f32 0.0, %v4730
      %v4732 = vpop.f32.mrb[0].mxu0
      %4733 = vmatprep.mubr.bf16.mxu0 0
      %4734 = vmatmul.mubr.bf16.gmra.mrb[0].mxu0 %v1413
      %v4735 = vpop.f32.mrb[0].mxu0
      %v4736 = vadd.f32 0.0, %v4735
      %v4737 = vpop.f32.mrb[0].mxu0
      %v4738 = vpop.f32.mrb[0].mxu0
      %v4739 = vadd.f32 0.0, %v4738
      %v4740 = vpop.f32.mrb[0].mxu0
      %4741 = vmatprep.mubr.bf16.mxu0 0
      %4742 = vmatmul.mubr.bf16.gmra.mrb[0].mxu0 %v1415
      %v4743 = vpop.f32.mrb[0].mxu0
      %v4744 = vadd.f32 0.0, %v4743
      %v4745 = vpop.f32.mrb[0].mxu0
      %v4746 = vpop.f32.mrb[0].mxu0
      %v4747 = vadd.f32 0.0, %v4746
      %v4748 = vpop.f32.mrb[0].mxu0
      %4749 = vmatprep.mubr.bf16.mxu0 0
      %4750 = vmatmul.mubr.bf16.gmra.mrb[0].mxu0 %v1417
      %v4751 = vpop.f32.mrb[0].mxu0
      %v4752 = vadd.f32 0.0, %v4751
      %v4753 = vpop.f32.mrb[0].mxu0
      %v4754 = vpop.f32.mrb[0].mxu0
      %v4755 = vadd.f32 0.0, %v4754
      %v4756 = vpop.f32.mrb[0].mxu0
      %4757 = vmatprep.mubr.bf16.mxu0 0
      %4758 = vmatmul.mubr.bf16.gmra.mrb[0].mxu0 %v1419
      %v4759 = vpop.f32.mrb[0].mxu0
      %v4760 = vadd.f32 0.0, %v4759
      %v4761 = vpop.f32.mrb[0].mxu0
      %v4762 = vpop.f32.mrb[0].mxu0
      %v4763 = vadd.f32 0.0, %v4762
      %v4764 = vpop.f32.mrb[0].mxu0
      %4765 = vmatprep.mubr.bf16.mxu0 0
      %4766 = vmatmul.mubr.bf16.gmra.mrb[0].mxu0 %v1421
      %v4767 = vpop.f32.mrb[0].mxu0
      %v4768 = vadd.f32 0.0, %v4767
      %v4769 = vpop.f32.mrb[0].mxu0
      %v4770 = vpop.f32.mrb[0].mxu0
      %v4771 = vadd.f32 0.0, %v4770
      %v4772 = vpop.f32.mrb[0].mxu0
      %4773 = vmatprep.mubr.bf16.mxu0 0
      %4774 = vmatmul.mubr.bf16.gmra.mrb[0].mxu0 %v1423
      %v4775 = vpop.f32.mrb[0].mxu0
      %v4776 = vadd.f32 0.0, %v4775
      %v4777 = vpop.f32.mrb[0].mxu0
      %v4778 = vpop.f32.mrb[0].mxu0
      %v4779 = vadd.f32 0.0, %v4778
      %v4780 = vpop.f32.mrb[0].mxu0
      %4781 = vmatprep.mubr.bf16.mxu0 0
      %4782 = vmatmul.mubr.bf16.gmra.mrb[0].mxu0 %v1425
      %v4783 = vpop.f32.mrb[0].mxu0
      %v4784 = vadd.f32 0.0, %v4783
      %v4785 = vpop.f32.mrb[0].mxu0
      %v4786 = vpop.f32.mrb[0].mxu0
      %v4787 = vadd.f32 0.0, %v4786
      %v4788 = vpop.f32.mrb[0].mxu0
      %4789 = vmatprep.mubr.bf16.mxu0 0
      %4790 = vmatmul.mubr.bf16.gmra.mrb[0].mxu0 %v1427
      %v4791 = vpop.f32.mrb[0].mxu0
      %v4792 = vadd.f32 0.0, %v4791
      %v4793 = vpop.f32.mrb[0].mxu0
      %v4794 = vpop.f32.mrb[0].mxu0
      %v4795 = vadd.f32 0.0, %v4794
      %v4796 = vpop.f32.mrb[0].mxu0
      %4797 = vmatprep.mubr.bf16.mxu0 0
      %4798 = vmatmul.mubr.bf16.gmra.mrb[0].mxu0 %v1429
      %v4799 = vpop.f32.mrb[0].mxu0
      %v4800 = vadd.f32 0.0, %v4799
      %v4801 = vpop.f32.mrb[0].mxu0
      %v4802 = vpop.f32.mrb[0].mxu0
      %v4803 = vadd.f32 0.0, %v4802
      %v4804 = vpop.f32.mrb[0].mxu0
      %4805 = vmatprep.mubr.bf16.mxu0 0
      %4806 = vmatmul.mubr.bf16.gmra.mrb[0].mxu0 %v1431
      %v4807 = vpop.f32.mrb[0].mxu0
      %v4808 = vadd.f32 0.0, %v4807
      %v4809 = vpop.f32.mrb[0].mxu0
      %v4810 = vpop.f32.mrb[0].mxu0
      %v4811 = vadd.f32 0.0, %v4810
      %v4812 = vpop.f32.mrb[0].mxu0
      %4813 = vmatprep.mubr.bf16.mxu0 0
      %4814 = vmatmul.mubr.bf16.gmra.mrb[0].mxu0 %v1433
      %v4815 = vpop.f32.mrb[0].mxu0
      %v4816 = vadd.f32 0.0, %v4815
      %v4817 = vpop.f32.mrb[0].mxu0
      %v4818 = vpop.f32.mrb[0].mxu0
      %v4819 = vadd.f32 0.0, %v4818
      %v4820 = vpop.f32.mrb[0].mxu0
      %4821 = vmatprep.mubr.bf16.mxu0 0
      %4822 = vmatmul.mubr.bf16.gmra.mrb[0].mxu0 %v1435
      %v4823 = vpop.f32.mrb[0].mxu0
      %v4824 = vadd.f32 0.0, %v4823
      %v4825 = vpop.f32.mrb[0].mxu0
      %v4826 = vpop.f32.mrb[0].mxu0
      %v4827 = vadd.f32 0.0, %v4826
      %v4828 = vpop.f32.mrb[0].mxu0
      %4829 = vmatprep.mubr.bf16.mxu0 0
      %4830 = vmatmul.mubr.bf16.gmra.mrb[0].mxu0 %v1437
      %v4831 = vpop.f32.mrb[0].mxu0
      %v4832 = vadd.f32 0.0, %v4831
      %v4833 = vpop.f32.mrb[0].mxu0
      %v4834 = vpop.f32.mrb[0].mxu0
      %v4835 = vadd.f32 0.0, %v4834
      %v4836 = vpop.f32.mrb[0].mxu0
      %4837 = vmatprep.mubr.bf16.mxu0 0
      %4838 = vmatmul.mubr.bf16.gmra.mrb[0].mxu0 %v1439
      %v4839 = vpop.f32.mrb[0].mxu0
      %v4840 = vadd.f32 0.0, %v4839
      %v4841 = vpop.f32.mrb[0].mxu0
      %v4842 = vpop.f32.mrb[0].mxu0
      %v4843 = vadd.f32 0.0, %v4842
      %v4844 = vpop.f32.mrb[0].mxu0
      %4845 = vmatprep.mubr.bf16.mxu0 0
      %4846 = vmatmul.mubr.bf16.gmra.mrb[0].mxu0 %v1441
      %v4847 = vpop.f32.mrb[0].mxu0
      %v4848 = vadd.f32 0.0, %v4847
      %v4849 = vpop.f32.mrb[0].mxu0
      %v4850 = vpop.f32.mrb[0].mxu0
      %v4851 = vadd.f32 0.0, %v4850
      %v4852 = vpop.f32.mrb[0].mxu0
      %4853 = vmatprep.mubr.bf16.mxu0 0
      %4854 = vmatmul.mubr.bf16.gmra.mrb[0].mxu0 %v1443
      %v4855 = vpop.f32.mrb[0].mxu0
      %v4856 = vadd.f32 0.0, %v4855
      %v4857 = vpop.f32.mrb[0].mxu0
      %v4858 = vpop.f32.mrb[0].mxu0
      %v4859 = vadd.f32 0.0, %v4858
      %v4860 = vpop.f32.mrb[0].mxu0
      %4861 = vmatprep.mubr.bf16.mxu0 0
      %4862 = vmatmul.mubr.bf16.gmra.mrb[0].mxu0 %v1445
      %v4863 = vpop.f32.mrb[0].mxu0
      %v4864 = vadd.f32 0.0, %v4863
      %v4865 = vpop.f32.mrb[0].mxu0
      %v4866 = vpop.f32.mrb[0].mxu0
      %v4867 = vadd.f32 0.0, %v4866
      %v4868 = vpop.f32.mrb[0].mxu0
      %4869 = vmatprep.mubr.bf16.mxu0 0
      %4870 = vmatmul.mubr.bf16.gmra.mrb[0].mxu0 %v1447
      %v4871 = vpop.f32.mrb[0].mxu0
      %v4872 = vadd.f32 0.0, %v4871
      %v4873 = vpop.f32.mrb[0].mxu0
      %v4874 = vpop.f32.mrb[0].mxu0
      %v4875 = vadd.f32 0.0, %v4874
      %v4876 = vpop.f32.mrb[0].mxu0
      %4877 = vmatprep.mubr.bf16.mxu0 0
      %4878 = vmatmul.mubr.bf16.gmra.mrb[0].mxu0 %v1449
      %v4879 = vpop.f32.mrb[0].mxu0
      %v4880 = vadd.f32 0.0, %v4879
      %v4881 = vpop.f32.mrb[0].mxu0
      %v4882 = vpop.f32.mrb[0].mxu0
      %v4883 = vadd.f32 0.0, %v4882
      %v4884 = vpop.f32.mrb[0].mxu0
      %4885 = vmatprep.mubr.bf16.mxu0 0
      %4886 = vmatmul.mubr.bf16.gmra.mrb[0].mxu0 %v1451
      %v4887 = vpop.f32.mrb[0].mxu0
      %v4888 = vadd.f32 0.0, %v4887
      %v4889 = vpop.f32.mrb[0].mxu0
      %v4890 = vpop.f32.mrb[0].mxu0
      %v4891 = vadd.f32 0.0, %v4890
      %v4892 = vpop.f32.mrb[0].mxu0
      %4893 = vmatprep.mubr.bf16.mxu0 0
      %4894 = vmatmul.mubr.bf16.gmra.mrb[0].mxu0 %v1453
      %v4895 = vpop.f32.mrb[0].mxu0
      %v4896 = vadd.f32 0.0, %v4895
      %v4897 = vpop.f32.mrb[0].mxu0
      %v4898 = vpop.f32.mrb[0].mxu0
      %v4899 = vadd.f32 0.0, %v4898
      %v4900 = vpop.f32.mrb[0].mxu0
      %4901 = vmatprep.mubr.bf16.mxu0 0
      %4902 = vmatmul.mubr.bf16.gmra.mrb[0].mxu0 %v1455
      %v4903 = vpop.f32.mrb[0].mxu0
      %v4904 = vadd.f32 0.0, %v4903
      %v4905 = vpop.f32.mrb[0].mxu0
      %v4906 = vpop.f32.mrb[0].mxu0
      %v4907 = vadd.f32 0.0, %v4906
      %v4908 = vpop.f32.mrb[0].mxu0
      %4909 = vmatprep.mubr.bf16.mxu0 0
      %4910 = vmatmul.mubr.bf16.gmra.mrb[0].mxu0 %v1457
      %v4911 = vpop.f32.mrb[0].mxu0
      %v4912 = vadd.f32 0.0, %v4911
      %v4913 = vpop.f32.mrb[0].mxu0
      %v4914 = vpop.f32.mrb[0].mxu0
      %v4915 = vadd.f32 0.0, %v4914
      %v4916 = vpop.f32.mrb[0].mxu0
      %4917 = vmatprep.mubr.bf16.mxu0 0
      %4918 = vmatmul.mubr.bf16.gmra.mrb[0].mxu0 %v1459
      %v4919 = vpop.f32.mrb[0].mxu0
      %v4920 = vadd.f32 0.0, %v4919
      %v4921 = vpop.f32.mrb[0].mxu0
      %v4922 = vpop.f32.mrb[0].mxu0
      %v4923 = vadd.f32 0.0, %v4922
      %v4924 = vpop.f32.mrb[0].mxu0
      %4925 = vmatprep.mubr.bf16.mxu0 0
      %4926 = vmatmul.mubr.bf16.gmra.mrb[0].mxu0 %v1461
      %v4927 = vpop.f32.mrb[0].mxu0
      %v4928 = vadd.f32 0.0, %v4927
      %v4929 = vpop.f32.mrb[0].mxu0
      %v4930 = vpop.f32.mrb[0].mxu0
      %v4931 = vadd.f32 0.0, %v4930
      %v4932 = vpop.f32.mrb[0].mxu0
      %4933 = vmatprep.mubr.bf16.mxu0 0
      %4934 = vmatmul.mubr.bf16.gmra.mrb[0].mxu0 %v1463
      %v4935 = vpop.f32.mrb[0].mxu0
      %v4936 = vadd.f32 0.0, %v4935
      %v4937 = vpop.f32.mrb[0].mxu0
      %v4938 = vpop.f32.mrb[0].mxu0
      %v4939 = vadd.f32 0.0, %v4938
      %v4940 = vpop.f32.mrb[0].mxu0
      %4941 = vmatprep.mubr.bf16.mxu0 0
      %4942 = vmatmul.mubr.bf16.gmra.mrb[0].mxu0 %v1465
      %v4943 = vpop.f32.mrb[0].mxu0
      %v4944 = vadd.f32 0.0, %v4943
      %v4945 = vpop.f32.mrb[0].mxu0
      %v4946 = vpop.f32.mrb[0].mxu0
      %v4947 = vadd.f32 0.0, %v4946
      %v4948 = vpop.f32.mrb[0].mxu0
      %4949 = vmatprep.mubr.bf16.mxu0 0
      %4950 = vmatmul.mubr.bf16.gmra.mrb[0].mxu0 %v1467
      %v4951 = vpop.f32.mrb[0].mxu0
      %v4952 = vadd.f32 0.0, %v4951
      %v4953 = vpop.f32.mrb[0].mxu0
      %v4954 = vpop.f32.mrb[0].mxu0
      %v4955 = vadd.f32 0.0, %v4954
      %v4956 = vpop.f32.mrb[0].mxu0
      %4957 = vmatprep.mubr.bf16.mxu0 0
      %4958 = vmatmul.mubr.bf16.gmra.mrb[0].mxu0 %v4631
      %v4959 = vpop.f32.mrb[0].mxu0
      %v4960 = vadd.f32 0.0, %v4959
      %v4961 = vpop.f32.mrb[0].mxu0
      %v4962 = vpop.f32.mrb[0].mxu0
      %v4963 = vadd.f32 0.0, %v4962
      %v4964 = vpop.f32.mrb[0].mxu0
      %4965 = vmatprep.mubr.bf16.mxu0 0
      %4966 = vmatmul.mubr.bf16.gmra.mrb[0].mxu0 %v4634
      %v4967 = vpop.f32.mrb[0].mxu0
      %v4968 = vadd.f32 0.0, %v4967
      %v4969 = vpop.f32.mrb[0].mxu0
      %v4970 = vpop.f32.mrb[0].mxu0
      %v4971 = vadd.f32 0.0, %v4970
      %v4972 = vpop.f32.mrb[0].mxu0
      %4973 = vmatprep.mubr.bf16.mxu0 0
      %4974 = vmatmul.mubr.bf16.gmra.mrb[0].mxu0 %v4637
      %v4975 = vpop.f32.mrb[0].mxu0
      %v4976 = vadd.f32 0.0, %v4975
      %v4977 = vpop.f32.mrb[0].mxu0
      %v4978 = vpop.f32.mrb[0].mxu0
      %v4979 = vadd.f32 0.0, %v4978
      %v4980 = vpop.f32.mrb[0].mxu0
      %4981 = vmatprep.mubr.bf16.mxu0 0
      %4982 = vmatmul.mubr.bf16.gmra.mrb[0].mxu0 %v4640
      %v4983 = vpop.f32.mrb[0].mxu0
      %v4984 = vadd.f32 0.0, %v4983
      %v4985 = vpop.f32.mrb[0].mxu0
      %v4986 = vpop.f32.mrb[0].mxu0
      %v4987 = vadd.f32 0.0, %v4986
      %v4988 = vpop.f32.mrb[0].mxu0
      %4989 = vmatprep.mubr.bf16.mxu0 0
      %4990 = vmatmul.mubr.bf16.gmra.mrb[0].mxu0 %v4643
      %v4991 = vpop.f32.mrb[0].mxu0
      %v4992 = vadd.f32 0.0, %v4991
      %v4993 = vpop.f32.mrb[0].mxu0
      %v4994 = vpop.f32.mrb[0].mxu0
      %v4995 = vadd.f32 0.0, %v4994
      %v4996 = vpop.f32.mrb[0].mxu0
      %4997 = vdwg.mxu0
      %v4998 = vadd.f32 %v4520, %v4680
      %v4999 = vadd.f32 %v4521, %v4683
      %v5000 = vadd.f32 %v4522, %v4688
      %v5001 = vadd.f32 %v4523, %v4691
      %v5002 = vadd.f32 %v4524, %v4696
      %v5003 = vadd.f32 %v4525, %v4699
      %v5004 = vadd.f32 %v4526, %v4704
      %v5005 = vadd.f32 %v4527, %v4707
      %v5006 = vadd.f32 %v4528, %v4712
      %v5007 = vadd.f32 %v4529, %v4715
      %v5008 = vadd.f32 %v4530, %v4720
      %v5009 = vadd.f32 %v4531, %v4723
      %v5010 = vadd.f32 %v4532, %v4728
      %v5011 = vadd.f32 %v4533, %v4731
      %v5012 = vadd.f32 %v4534, %v4736
      %v5013 = vadd.f32 %v4535, %v4739
      %v5014 = vadd.f32 %v4536, %v4744
      %v5015 = vadd.f32 %v4537, %v4747
      %v5016 = vadd.f32 %v4538, %v4752
      %v5017 = vadd.f32 %v4539, %v4755
      %v5018 = vadd.f32 %v4540, %v4760
      %v5019 = vadd.f32 %v4541, %v4763
      %v5020 = vadd.f32 %v4542, %v4768
      %v5021 = vadd.f32 %v4543, %v4771
      %v5022 = vadd.f32 %v4544, %v4776
      %v5023 = vadd.f32 %v4545, %v4779
      %v5024 = vadd.f32 %v4546, %v4784
      %v5025 = vadd.f32 %v4547, %v4787
      %v5026 = vadd.f32 %v4548, %v4792
      %v5027 = vadd.f32 %v4549, %v4795
      %v5028 = vadd.f32 %v4550, %v4800
      %v5029 = vadd.f32 %v4551, %v4803
      %v5030 = vadd.f32 %v4552, %v4808
      %v5031 = vadd.f32 %v4553, %v4811
      %v5032 = vadd.f32 %v4554, %v4816
      %v5033 = vadd.f32 %v4555, %v4819
      %v5034 = vadd.f32 %v4556, %v4824
      %v5035 = vadd.f32 %v4557, %v4827
      %v5036 = vadd.f32 %v4558, %v4832
      %v5037 = vadd.f32 %v4559, %v4835
      %v5038 = vadd.f32 %v4560, %v4840
      %v5039 = vadd.f32 %v4561, %v4843
      %v5040 = vadd.f32 %v4562, %v4848
      %v5041 = vadd.f32 %v4563, %v4851
      %v5042 = vadd.f32 %v4564, %v4856
      %v5043 = vadd.f32 %v4565, %v4859
      %v5044 = vadd.f32 %v4566, %v4864
      %v5045 = vadd.f32 %v4567, %v4867
      %v5046 = vadd.f32 %v4568, %v4872
      %v5047 = vadd.f32 %v4569, %v4875
      %v5048 = vadd.f32 %v4570, %v4880
      %v5049 = vadd.f32 %v4571, %v4883
      %v5050 = vadd.f32 %v4572, %v4888
      %v5051 = vadd.f32 %v4573, %v4891
      %v5052 = vadd.f32 %v4574, %v4896
      %v5053 = vadd.f32 %v4575, %v4899
      %v5054 = vadd.f32 %v4576, %v4904
      %v5055 = vadd.f32 %v4577, %v4907
      %v5056 = vadd.f32 %v4578, %v4912
      %v5057 = vadd.f32 %v4579, %v4915
      %v5058 = vadd.f32 %v4580, %v4920
      %v5059 = vadd.f32 %v4581, %v4923
      %v5060 = vadd.f32 %v4582, %v4928
      %v5061 = vadd.f32 %v4583, %v4931
      %v5062 = vadd.f32 %v4584, %v4936
      %v5063 = vadd.f32 %v4585, %v4939
      %v5064 = vadd.f32 %v4586, %v4944
      %v5065 = vadd.f32 %v4587, %v4947
      %v5066 = vadd.f32 %v4588, %v4952
      %v5067 = vadd.f32 %v4589, %v4955
      %v5068 = vadd.f32 %v4590, %v4960
      %v5069 = vadd.f32 %v4591, %v4963
      %v5070 = vadd.f32 %v4592, %v4968
      %v5071 = vadd.f32 %v4593, %v4971
      %v5072 = vadd.f32 %v4594, %v4976
      %v5073 = vadd.f32 %v4595, %v4979
      %v5074 = vadd.f32 %v4596, %v4984
      %v5075 = vadd.f32 %v4597, %v4987
      %v5076 = vadd.f32 %v4598, %v4992
      %v5077 = vadd.f32 %v4599, %v4995
      %s5078 = scalar_lea.vmem %s1, 112
      %v5079 = vld [vmem:[%s5078] sm:$0xf]
      %v5080 = vld [vmem:[%s5078 + $0x4] sm:$0xf]
      %v5081 = vld [vmem:[%s5078 + $0x8] sm:$0xf]
      %v5082 = vld [vmem:[%s5078 + $0xc] sm:$0xf]
      %v5084 = vunpack.c.l.b16 %v353
      %v5085 = vpack.c.b16 %v5084, %v5084
      %v5086 = vshll.u32 %v4613, 16
      %v5088 = vrot.slane %v5086, 1
      %v5089 = vsel %vm566, %v885, %v5088
      %v5090 = vshrl.u32 %v4613, 16
      %v5092 = vor.u32 %v5090, %v5088
      %v5093 = vshll.u32 %v4614, 16
      %v5095 = vrot.slane %v5093, 1
      %v5096 = vsel %vm566, %v5092, %v5095
      %v5097 = vshrl.u32 %v4614, 16
      %v5099 = vor.u32 %v5097, %v5095
      %v5100 = vshll.u32 %v4615, 16
      %v5102 = vrot.slane %v5100, 1
      %v5103 = vsel %vm566, %v5099, %v5102
      %v5104 = vshrl.u32 %v4615, 16
      %v5106 = vor.u32 %v5104, %v5102
      %v5107 = vshll.u32 %v4616, 16
      %v5109 = vrot.slane %v5107, 1
      %v5110 = vsel %vm566, %v5106, %v5109
      %v5111 = vshrl.u32 %v4616, 16
      %v5113 = vor.u32 %v5111, %v5109
      %v5114 = vshll.u32 %v4617, 16
      %v5116 = vrot.slane %v5114, 1
      %v5117 = vsel %vm566, %v5113, %v5116
      %v5118 = vshrl.u32 %v4617, 16
      %v5120 = vor.u32 %v5118, %v5116
      %v5122 = vshll.u32 %v5085, 16
      %v5124 = vrot.slane %v5122, 1
      %v5125 = vsel %vm566, %v5120, %v5124
      %v5130 = vunpack.c.l.b16 %v5079
      %v5131 = vunpack.c.l.b16 %v5080
      %v5132 = vunpack.c.l.b16 %v5081
      %v5133 = vunpack.c.l.b16 %v5082
      %v5134 = vpack.c.b16 %v5131, %v5130
      %v5135 = vpack.c.b16 %v5133, %v5132
      %v5139 = vsel %vm903, %v5089, 0
      %v5142 = vsel %vm903, %v5096, 0
      %v5145 = vsel %vm903, %v5103, 0
      %v5148 = vsel %vm903, %v5110, 0
      %v5151 = vsel %vm903, %v5117, 0
      %v5154 = vsel %vm903, %v5125, 0
      %5156 = vmatprep.subr.bf16.mxu0 0
      %5157 = vmatpush1.bf16.msra.mxu0 %v5134
      %5158 = vmatprep.subr.bf16.mxu0 0
      %5159 = vmatpush1.bf16.msra.mxu0 %v5135
      %5160 = vmatprep.subr.bf16.mxu0 0
      %5161 = vmatpush1.bf16.msra.mxu0 0
      %5162 = vmatprep.subr.bf16.mxu0 0
      %5163 = vmatpush1.bf16.msra.mxu0 0
      %5164 = vmatprep.subr.bf16.mxu0 0
      %5165 = vmatpush1.bf16.msra.mxu0 0
      %5166 = vmatprep.subr.bf16.mxu0 0
      %5167 = vmatpush1.bf16.msra.mxu0 0
      %5168 = vmatprep.subr.bf16.mxu0 0
      %5169 = vmatpush1.bf16.msra.mxu0 0
      %5170 = vmatprep.subr.bf16.mxu0 0
      %5171 = vmatpush1.bf16.msra.mxu0 0
      %5172 = vmatprep.subr.bf16.mxu0 0
      %5173 = vmatpush1.bf16.msra.mxu0 0
      %5174 = vmatprep.subr.bf16.mxu0 0
      %5175 = vmatpush1.bf16.msra.mxu0 0
      %5176 = vmatprep.subr.bf16.mxu0 0
      %5177 = vmatpush1.bf16.msra.mxu0 0
      %5178 = vmatprep.subr.bf16.mxu0 0
      %5179 = vmatpush1.bf16.msra.mxu0 0
      %5180 = vmatprep.subr.bf16.mxu0 0
      %5181 = vmatpush1.bf16.msra.mxu0 0
      %5182 = vmatprep.subr.bf16.mxu0 0
      %5183 = vmatpush1.bf16.msra.mxu0 0
      %5184 = vmatprep.subr.bf16.mxu0 0
      %5185 = vmatpush1.bf16.msra.mxu0 0
      %5186 = vmatprep.subr.bf16.mxu0 0
      %5187 = vmatpush1.bf16.msra.mxu0 0
      %5188 = vmatprep.mubr.bf16.mxu0 0
      %5189 = vmatmul.mubr.bf16.gmra.mrb[0].mxu0 %v920
      %v5190 = vpop.f32.mrb[0].mxu0
      %v5191 = vadd.f32 0.0, %v5190
      %v5192 = vpop.f32.mrb[0].mxu0
      %v5193 = vpop.f32.mrb[0].mxu0
      %v5194 = vadd.f32 0.0, %v5193
      %v5195 = vpop.f32.mrb[0].mxu0
      %5196 = vmatprep.mubr.bf16.mxu0 0
      %5197 = vmatmul.mubr.bf16.gmra.mrb[0].mxu0 %v923
      %v5198 = vpop.f32.mrb[0].mxu0
      %v5199 = vadd.f32 0.0, %v5198
      %v5200 = vpop.f32.mrb[0].mxu0
      %v5201 = vpop.f32.mrb[0].mxu0
      %v5202 = vadd.f32 0.0, %v5201
      %v5203 = vpop.f32.mrb[0].mxu0
      %5204 = vmatprep.mubr.bf16.mxu0 0
      %5205 = vmatmul.mubr.bf16.gmra.mrb[0].mxu0 %v926
      %v5206 = vpop.f32.mrb[0].mxu0
      %v5207 = vadd.f32 0.0, %v5206
      %v5208 = vpop.f32.mrb[0].mxu0
      %v5209 = vpop.f32.mrb[0].mxu0
      %v5210 = vadd.f32 0.0, %v5209
      %v5211 = vpop.f32.mrb[0].mxu0
      %5212 = vmatprep.mubr.bf16.mxu0 0
      %5213 = vmatmul.mubr.bf16.gmra.mrb[0].mxu0 %v929
      %v5214 = vpop.f32.mrb[0].mxu0
      %v5215 = vadd.f32 0.0, %v5214
      %v5216 = vpop.f32.mrb[0].mxu0
      %v5217 = vpop.f32.mrb[0].mxu0
      %v5218 = vadd.f32 0.0, %v5217
      %v5219 = vpop.f32.mrb[0].mxu0
      %5220 = vmatprep.mubr.bf16.mxu0 0
      %5221 = vmatmul.mubr.bf16.gmra.mrb[0].mxu0 %v932
      %v5222 = vpop.f32.mrb[0].mxu0
      %v5223 = vadd.f32 0.0, %v5222
      %v5224 = vpop.f32.mrb[0].mxu0
      %v5225 = vpop.f32.mrb[0].mxu0
      %v5226 = vadd.f32 0.0, %v5225
      %v5227 = vpop.f32.mrb[0].mxu0
      %5228 = vmatprep.mubr.bf16.mxu0 0
      %5229 = vmatmul.mubr.bf16.gmra.mrb[0].mxu0 %v935
      %v5230 = vpop.f32.mrb[0].mxu0
      %v5231 = vadd.f32 0.0, %v5230
      %v5232 = vpop.f32.mrb[0].mxu0
      %v5233 = vpop.f32.mrb[0].mxu0
      %v5234 = vadd.f32 0.0, %v5233
      %v5235 = vpop.f32.mrb[0].mxu0
      %5236 = vmatprep.mubr.bf16.mxu0 0
      %5237 = vmatmul.mubr.bf16.gmra.mrb[0].mxu0 %v938
      %v5238 = vpop.f32.mrb[0].mxu0
      %v5239 = vadd.f32 0.0, %v5238
      %v5240 = vpop.f32.mrb[0].mxu0
      %v5241 = vpop.f32.mrb[0].mxu0
      %v5242 = vadd.f32 0.0, %v5241
      %v5243 = vpop.f32.mrb[0].mxu0
      %5244 = vmatprep.mubr.bf16.mxu0 0
      %5245 = vmatmul.mubr.bf16.gmra.mrb[0].mxu0 %v941
      %v5246 = vpop.f32.mrb[0].mxu0
      %v5247 = vadd.f32 0.0, %v5246
      %v5248 = vpop.f32.mrb[0].mxu0
      %v5249 = vpop.f32.mrb[0].mxu0
      %v5250 = vadd.f32 0.0, %v5249
      %v5251 = vpop.f32.mrb[0].mxu0
      %5252 = vmatprep.mubr.bf16.mxu0 0
      %5253 = vmatmul.mubr.bf16.gmra.mrb[0].mxu0 %v944
      %v5254 = vpop.f32.mrb[0].mxu0
      %v5255 = vadd.f32 0.0, %v5254
      %v5256 = vpop.f32.mrb[0].mxu0
      %v5257 = vpop.f32.mrb[0].mxu0
      %v5258 = vadd.f32 0.0, %v5257
      %v5259 = vpop.f32.mrb[0].mxu0
      %5260 = vmatprep.mubr.bf16.mxu0 0
      %5261 = vmatmul.mubr.bf16.gmra.mrb[0].mxu0 %v947
      %v5262 = vpop.f32.mrb[0].mxu0
      %v5263 = vadd.f32 0.0, %v5262
      %v5264 = vpop.f32.mrb[0].mxu0
      %v5265 = vpop.f32.mrb[0].mxu0
      %v5266 = vadd.f32 0.0, %v5265
      %v5267 = vpop.f32.mrb[0].mxu0
      %5268 = vmatprep.mubr.bf16.mxu0 0
      %5269 = vmatmul.mubr.bf16.gmra.mrb[0].mxu0 %v950
      %v5270 = vpop.f32.mrb[0].mxu0
      %v5271 = vadd.f32 0.0, %v5270
      %v5272 = vpop.f32.mrb[0].mxu0
      %v5273 = vpop.f32.mrb[0].mxu0
      %v5274 = vadd.f32 0.0, %v5273
      %v5275 = vpop.f32.mrb[0].mxu0
      %5276 = vmatprep.mubr.bf16.mxu0 0
      %5277 = vmatmul.mubr.bf16.gmra.mrb[0].mxu0 %v953
      %v5278 = vpop.f32.mrb[0].mxu0
      %v5279 = vadd.f32 0.0, %v5278
      %v5280 = vpop.f32.mrb[0].mxu0
      %v5281 = vpop.f32.mrb[0].mxu0
      %v5282 = vadd.f32 0.0, %v5281
      %v5283 = vpop.f32.mrb[0].mxu0
      %5284 = vmatprep.mubr.bf16.mxu0 0
      %5285 = vmatmul.mubr.bf16.gmra.mrb[0].mxu0 %v956
      %v5286 = vpop.f32.mrb[0].mxu0
      %v5287 = vadd.f32 0.0, %v5286
      %v5288 = vpop.f32.mrb[0].mxu0
      %v5289 = vpop.f32.mrb[0].mxu0
      %v5290 = vadd.f32 0.0, %v5289
      %v5291 = vpop.f32.mrb[0].mxu0
      %5292 = vmatprep.mubr.bf16.mxu0 0
      %5293 = vmatmul.mubr.bf16.gmra.mrb[0].mxu0 %v959
      %v5294 = vpop.f32.mrb[0].mxu0
      %v5295 = vadd.f32 0.0, %v5294
      %v5296 = vpop.f32.mrb[0].mxu0
      %v5297 = vpop.f32.mrb[0].mxu0
      %v5298 = vadd.f32 0.0, %v5297
      %v5299 = vpop.f32.mrb[0].mxu0
      %5300 = vmatprep.mubr.bf16.mxu0 0
      %5301 = vmatmul.mubr.bf16.gmra.mrb[0].mxu0 %v962
      %v5302 = vpop.f32.mrb[0].mxu0
      %v5303 = vadd.f32 0.0, %v5302
      %v5304 = vpop.f32.mrb[0].mxu0
      %v5305 = vpop.f32.mrb[0].mxu0
      %v5306 = vadd.f32 0.0, %v5305
      %v5307 = vpop.f32.mrb[0].mxu0
      %5308 = vmatprep.mubr.bf16.mxu0 0
      %5309 = vmatmul.mubr.bf16.gmra.mrb[0].mxu0 %v965
      %v5310 = vpop.f32.mrb[0].mxu0
      %v5311 = vadd.f32 0.0, %v5310
      %v5312 = vpop.f32.mrb[0].mxu0
      %v5313 = vpop.f32.mrb[0].mxu0
      %v5314 = vadd.f32 0.0, %v5313
      %v5315 = vpop.f32.mrb[0].mxu0
      %5316 = vmatprep.mubr.bf16.mxu0 0
      %5317 = vmatmul.mubr.bf16.gmra.mrb[0].mxu0 %v968
      %v5318 = vpop.f32.mrb[0].mxu0
      %v5319 = vadd.f32 0.0, %v5318
      %v5320 = vpop.f32.mrb[0].mxu0
      %v5321 = vpop.f32.mrb[0].mxu0
      %v5322 = vadd.f32 0.0, %v5321
      %v5323 = vpop.f32.mrb[0].mxu0
      %5324 = vmatprep.mubr.bf16.mxu0 0
      %5325 = vmatmul.mubr.bf16.gmra.mrb[0].mxu0 %v971
      %v5326 = vpop.f32.mrb[0].mxu0
      %v5327 = vadd.f32 0.0, %v5326
      %v5328 = vpop.f32.mrb[0].mxu0
      %v5329 = vpop.f32.mrb[0].mxu0
      %v5330 = vadd.f32 0.0, %v5329
      %v5331 = vpop.f32.mrb[0].mxu0
      %5332 = vmatprep.mubr.bf16.mxu0 0
      %5333 = vmatmul.mubr.bf16.gmra.mrb[0].mxu0 %v974
      %v5334 = vpop.f32.mrb[0].mxu0
      %v5335 = vadd.f32 0.0, %v5334
      %v5336 = vpop.f32.mrb[0].mxu0
      %v5337 = vpop.f32.mrb[0].mxu0
      %v5338 = vadd.f32 0.0, %v5337
      %v5339 = vpop.f32.mrb[0].mxu0
      %5340 = vmatprep.mubr.bf16.mxu0 0
      %5341 = vmatmul.mubr.bf16.gmra.mrb[0].mxu0 %v977
      %v5342 = vpop.f32.mrb[0].mxu0
      %v5343 = vadd.f32 0.0, %v5342
      %v5344 = vpop.f32.mrb[0].mxu0
      %v5345 = vpop.f32.mrb[0].mxu0
      %v5346 = vadd.f32 0.0, %v5345
      %v5347 = vpop.f32.mrb[0].mxu0
      %5348 = vmatprep.mubr.bf16.mxu0 0
      %5349 = vmatmul.mubr.bf16.gmra.mrb[0].mxu0 %v980
      %v5350 = vpop.f32.mrb[0].mxu0
      %v5351 = vadd.f32 0.0, %v5350
      %v5352 = vpop.f32.mrb[0].mxu0
      %v5353 = vpop.f32.mrb[0].mxu0
      %v5354 = vadd.f32 0.0, %v5353
      %v5355 = vpop.f32.mrb[0].mxu0
      %5356 = vmatprep.mubr.bf16.mxu0 0
      %5357 = vmatmul.mubr.bf16.gmra.mrb[0].mxu0 %v983
      %v5358 = vpop.f32.mrb[0].mxu0
      %v5359 = vadd.f32 0.0, %v5358
      %v5360 = vpop.f32.mrb[0].mxu0
      %v5361 = vpop.f32.mrb[0].mxu0
      %v5362 = vadd.f32 0.0, %v5361
      %v5363 = vpop.f32.mrb[0].mxu0
      %5364 = vmatprep.mubr.bf16.mxu0 0
      %5365 = vmatmul.mubr.bf16.gmra.mrb[0].mxu0 %v986
      %v5366 = vpop.f32.mrb[0].mxu0
      %v5367 = vadd.f32 0.0, %v5366
      %v5368 = vpop.f32.mrb[0].mxu0
      %v5369 = vpop.f32.mrb[0].mxu0
      %v5370 = vadd.f32 0.0, %v5369
      %v5371 = vpop.f32.mrb[0].mxu0
      %5372 = vmatprep.mubr.bf16.mxu0 0
      %5373 = vmatmul.mubr.bf16.gmra.mrb[0].mxu0 %v989
      %v5374 = vpop.f32.mrb[0].mxu0
      %v5375 = vadd.f32 0.0, %v5374
      %v5376 = vpop.f32.mrb[0].mxu0
      %v5377 = vpop.f32.mrb[0].mxu0
      %v5378 = vadd.f32 0.0, %v5377
      %v5379 = vpop.f32.mrb[0].mxu0
      %5380 = vmatprep.mubr.bf16.mxu0 0
      %5381 = vmatmul.mubr.bf16.gmra.mrb[0].mxu0 %v992
      %v5382 = vpop.f32.mrb[0].mxu0
      %v5383 = vadd.f32 0.0, %v5382
      %v5384 = vpop.f32.mrb[0].mxu0
      %v5385 = vpop.f32.mrb[0].mxu0
      %v5386 = vadd.f32 0.0, %v5385
      %v5387 = vpop.f32.mrb[0].mxu0
      %5388 = vmatprep.mubr.bf16.mxu0 0
      %5389 = vmatmul.mubr.bf16.gmra.mrb[0].mxu0 %v995
      %v5390 = vpop.f32.mrb[0].mxu0
      %v5391 = vadd.f32 0.0, %v5390
      %v5392 = vpop.f32.mrb[0].mxu0
      %v5393 = vpop.f32.mrb[0].mxu0
      %v5394 = vadd.f32 0.0, %v5393
      %v5395 = vpop.f32.mrb[0].mxu0
      %5396 = vmatprep.mubr.bf16.mxu0 0
      %5397 = vmatmul.mubr.bf16.gmra.mrb[0].mxu0 %v998
      %v5398 = vpop.f32.mrb[0].mxu0
      %v5399 = vadd.f32 0.0, %v5398
      %v5400 = vpop.f32.mrb[0].mxu0
      %v5401 = vpop.f32.mrb[0].mxu0
      %v5402 = vadd.f32 0.0, %v5401
      %v5403 = vpop.f32.mrb[0].mxu0
      %5404 = vmatprep.mubr.bf16.mxu0 0
      %5405 = vmatmul.mubr.bf16.gmra.mrb[0].mxu0 %v1001
      %v5406 = vpop.f32.mrb[0].mxu0
      %v5407 = vadd.f32 0.0, %v5406
      %v5408 = vpop.f32.mrb[0].mxu0
      %v5409 = vpop.f32.mrb[0].mxu0
      %v5410 = vadd.f32 0.0, %v5409
      %v5411 = vpop.f32.mrb[0].mxu0
      %5412 = vmatprep.mubr.bf16.mxu0 0
      %5413 = vmatmul.mubr.bf16.gmra.mrb[0].mxu0 %v1004
      %v5414 = vpop.f32.mrb[0].mxu0
      %v5415 = vadd.f32 0.0, %v5414
      %v5416 = vpop.f32.mrb[0].mxu0
      %v5417 = vpop.f32.mrb[0].mxu0
      %v5418 = vadd.f32 0.0, %v5417
      %v5419 = vpop.f32.mrb[0].mxu0
      %5420 = vmatprep.mubr.bf16.mxu0 0
      %5421 = vmatmul.mubr.bf16.gmra.mrb[0].mxu0 %v1007
      %v5422 = vpop.f32.mrb[0].mxu0
      %v5423 = vadd.f32 0.0, %v5422
      %v5424 = vpop.f32.mrb[0].mxu0
      %v5425 = vpop.f32.mrb[0].mxu0
      %v5426 = vadd.f32 0.0, %v5425
      %v5427 = vpop.f32.mrb[0].mxu0
      %5428 = vmatprep.mubr.bf16.mxu0 0
      %5429 = vmatmul.mubr.bf16.gmra.mrb[0].mxu0 %v1010
      %v5430 = vpop.f32.mrb[0].mxu0
      %v5431 = vadd.f32 0.0, %v5430
      %v5432 = vpop.f32.mrb[0].mxu0
      %v5433 = vpop.f32.mrb[0].mxu0
      %v5434 = vadd.f32 0.0, %v5433
      %v5435 = vpop.f32.mrb[0].mxu0
      %5436 = vmatprep.mubr.bf16.mxu0 0
      %5437 = vmatmul.mubr.bf16.gmra.mrb[0].mxu0 %v1013
      %v5438 = vpop.f32.mrb[0].mxu0
      %v5439 = vadd.f32 0.0, %v5438
      %v5440 = vpop.f32.mrb[0].mxu0
      %v5441 = vpop.f32.mrb[0].mxu0
      %v5442 = vadd.f32 0.0, %v5441
      %v5443 = vpop.f32.mrb[0].mxu0
      %5444 = vmatprep.mubr.bf16.mxu0 0
      %5445 = vmatmul.mubr.bf16.gmra.mrb[0].mxu0 %v1016
      %v5446 = vpop.f32.mrb[0].mxu0
      %v5447 = vadd.f32 0.0, %v5446
      %v5448 = vpop.f32.mrb[0].mxu0
      %v5449 = vpop.f32.mrb[0].mxu0
      %v5450 = vadd.f32 0.0, %v5449
      %v5451 = vpop.f32.mrb[0].mxu0
      %5452 = vmatprep.mubr.bf16.mxu0 0
      %5453 = vmatmul.mubr.bf16.gmra.mrb[0].mxu0 %v1019
      %v5454 = vpop.f32.mrb[0].mxu0
      %v5455 = vadd.f32 0.0, %v5454
      %v5456 = vpop.f32.mrb[0].mxu0
      %v5457 = vpop.f32.mrb[0].mxu0
      %v5458 = vadd.f32 0.0, %v5457
      %v5459 = vpop.f32.mrb[0].mxu0
      %5460 = vmatprep.mubr.bf16.mxu0 0
      %5461 = vmatmul.mubr.bf16.gmra.mrb[0].mxu0 %v5139
      %v5462 = vpop.f32.mrb[0].mxu0
      %v5463 = vadd.f32 0.0, %v5462
      %v5464 = vpop.f32.mrb[0].mxu0
      %v5465 = vpop.f32.mrb[0].mxu0
      %v5466 = vadd.f32 0.0, %v5465
      %v5467 = vpop.f32.mrb[0].mxu0
      %5468 = vmatprep.mubr.bf16.mxu0 0
      %5469 = vmatmul.mubr.bf16.gmra.mrb[0].mxu0 %v5142
      %v5470 = vpop.f32.mrb[0].mxu0
      %v5471 = vadd.f32 0.0, %v5470
      %v5472 = vpop.f32.mrb[0].mxu0
      %v5473 = vpop.f32.mrb[0].mxu0
      %v5474 = vadd.f32 0.0, %v5473
      %v5475 = vpop.f32.mrb[0].mxu0
      %5476 = vmatprep.mubr.bf16.mxu0 0
      %5477 = vmatmul.mubr.bf16.gmra.mrb[0].mxu0 %v5145
      %v5478 = vpop.f32.mrb[0].mxu0
      %v5479 = vadd.f32 0.0, %v5478
      %v5480 = vpop.f32.mrb[0].mxu0
      %v5481 = vpop.f32.mrb[0].mxu0
      %v5482 = vadd.f32 0.0, %v5481
      %v5483 = vpop.f32.mrb[0].mxu0
      %5484 = vmatprep.mubr.bf16.mxu0 0
      %5485 = vmatmul.mubr.bf16.gmra.mrb[0].mxu0 %v5148
      %v5486 = vpop.f32.mrb[0].mxu0
      %v5487 = vadd.f32 0.0, %v5486
      %v5488 = vpop.f32.mrb[0].mxu0
      %v5489 = vpop.f32.mrb[0].mxu0
      %v5490 = vadd.f32 0.0, %v5489
      %v5491 = vpop.f32.mrb[0].mxu0
      %5492 = vmatprep.mubr.bf16.mxu0 0
      %5493 = vmatmul.mubr.bf16.gmra.mrb[0].mxu0 %v5151
      %v5494 = vpop.f32.mrb[0].mxu0
      %v5495 = vadd.f32 0.0, %v5494
      %v5496 = vpop.f32.mrb[0].mxu0
      %v5497 = vpop.f32.mrb[0].mxu0
      %v5498 = vadd.f32 0.0, %v5497
      %v5499 = vpop.f32.mrb[0].mxu0
      %5500 = vmatprep.mubr.bf16.mxu0 0
      %5501 = vmatmul.mubr.bf16.gmra.mrb[0].mxu0 %v5154
      %v5502 = vpop.f32.mrb[0].mxu0
      %v5503 = vadd.f32 0.0, %v5502
      %v5504 = vpop.f32.mrb[0].mxu0
      %v5505 = vpop.f32.mrb[0].mxu0
      %v5506 = vadd.f32 0.0, %v5505
      %v5507 = vpop.f32.mrb[0].mxu0
      %5508 = vdwg.mxu0
      %v5509 = vadd.f32 %v4998, %v5191
      %v5510 = vadd.f32 %v4999, %v5194
      %v5511 = vadd.f32 %v5000, %v5199
      %v5512 = vadd.f32 %v5001, %v5202
      %v5513 = vadd.f32 %v5002, %v5207
      %v5514 = vadd.f32 %v5003, %v5210
      %v5515 = vadd.f32 %v5004, %v5215
      %v5516 = vadd.f32 %v5005, %v5218
      %v5517 = vadd.f32 %v5006, %v5223
      %v5518 = vadd.f32 %v5007, %v5226
      %v5519 = vadd.f32 %v5008, %v5231
      %v5520 = vadd.f32 %v5009, %v5234
      %v5521 = vadd.f32 %v5010, %v5239
      %v5522 = vadd.f32 %v5011, %v5242
      %v5523 = vadd.f32 %v5012, %v5247
      %v5524 = vadd.f32 %v5013, %v5250
      %v5525 = vadd.f32 %v5014, %v5255
      %v5526 = vadd.f32 %v5015, %v5258
      %v5527 = vadd.f32 %v5016, %v5263
      %v5528 = vadd.f32 %v5017, %v5266
      %v5529 = vadd.f32 %v5018, %v5271
      %v5530 = vadd.f32 %v5019, %v5274
      %v5531 = vadd.f32 %v5020, %v5279
      %v5532 = vadd.f32 %v5021, %v5282
      %v5533 = vadd.f32 %v5022, %v5287
      %v5534 = vadd.f32 %v5023, %v5290
      %v5535 = vadd.f32 %v5024, %v5295
      %v5536 = vadd.f32 %v5025, %v5298
      %v5537 = vadd.f32 %v5026, %v5303
      %v5538 = vadd.f32 %v5027, %v5306
      %v5539 = vadd.f32 %v5028, %v5311
      %v5540 = vadd.f32 %v5029, %v5314
      %v5541 = vadd.f32 %v5030, %v5319
      %v5542 = vadd.f32 %v5031, %v5322
      %v5543 = vadd.f32 %v5032, %v5327
      %v5544 = vadd.f32 %v5033, %v5330
      %v5545 = vadd.f32 %v5034, %v5335
      %v5546 = vadd.f32 %v5035, %v5338
      %v5547 = vadd.f32 %v5036, %v5343
      %v5548 = vadd.f32 %v5037, %v5346
      %v5549 = vadd.f32 %v5038, %v5351
      %v5550 = vadd.f32 %v5039, %v5354
      %v5551 = vadd.f32 %v5040, %v5359
      %v5552 = vadd.f32 %v5041, %v5362
      %v5553 = vadd.f32 %v5042, %v5367
      %v5554 = vadd.f32 %v5043, %v5370
      %v5555 = vadd.f32 %v5044, %v5375
      %v5556 = vadd.f32 %v5045, %v5378
      %v5557 = vadd.f32 %v5046, %v5383
      %v5558 = vadd.f32 %v5047, %v5386
      %v5559 = vadd.f32 %v5048, %v5391
      %v5560 = vadd.f32 %v5049, %v5394
      %v5561 = vadd.f32 %v5050, %v5399
      %v5562 = vadd.f32 %v5051, %v5402
      %v5563 = vadd.f32 %v5052, %v5407
      %v5564 = vadd.f32 %v5053, %v5410
      %v5565 = vadd.f32 %v5054, %v5415
      %v5566 = vadd.f32 %v5055, %v5418
      %v5567 = vadd.f32 %v5056, %v5423
      %v5568 = vadd.f32 %v5057, %v5426
      %v5569 = vadd.f32 %v5058, %v5431
      %v5570 = vadd.f32 %v5059, %v5434
      %v5571 = vadd.f32 %v5060, %v5439
      %v5572 = vadd.f32 %v5061, %v5442
      %v5573 = vadd.f32 %v5062, %v5447
      %v5574 = vadd.f32 %v5063, %v5450
      %v5575 = vadd.f32 %v5064, %v5455
      %v5576 = vadd.f32 %v5065, %v5458
      %v5577 = vadd.f32 %v5066, %v5463
      %v5578 = vadd.f32 %v5067, %v5466
      %v5579 = vadd.f32 %v5068, %v5471
      %v5580 = vadd.f32 %v5069, %v5474
      %v5581 = vadd.f32 %v5070, %v5479
      %v5582 = vadd.f32 %v5071, %v5482
      %v5583 = vadd.f32 %v5072, %v5487
      %v5584 = vadd.f32 %v5073, %v5490
      %v5585 = vadd.f32 %v5074, %v5495
      %v5586 = vadd.f32 %v5075, %v5498
      %v5587 = vadd.f32 %v5076, %v5503
      %v5588 = vadd.f32 %v5077, %v5506
      %s5589 = scalar_lea.vmem %s1, 128
      %v5590 = vld [vmem:[%s5589] sm:$0xf]
      %v5591 = vld [vmem:[%s5589 + $0x4] sm:$0xf]
      %v5592 = vld [vmem:[%s5589 + $0x8] sm:$0xf]
      %v5593 = vld [vmem:[%s5589 + $0xc] sm:$0xf]
      %v5594 = vrot.slane %v4613, 1
      %v5595 = vsel %vm1827, %v1905, %v5594
      %v5596 = vrot.slane %v4614, 1
      %v5597 = vsel %vm1827, %v5594, %v5596
      %v5598 = vrot.slane %v4615, 1
      %v5599 = vsel %vm1827, %v5596, %v5598
      %v5600 = vrot.slane %v4616, 1
      %v5601 = vsel %vm1827, %v5598, %v5600
      %v5602 = vrot.slane %v4617, 1
      %v5603 = vsel %vm1827, %v5600, %v5602
      %v5604 = vrot.slane %v5085, 1
      %v5605 = vsel %vm1827, %v5602, %v5604
      %v5610 = vunpack.c.l.b16 %v5590
      %v5611 = vunpack.c.l.b16 %v5591
      %v5612 = vunpack.c.l.b16 %v5592
      %v5613 = vunpack.c.l.b16 %v5593
      %v5614 = vpack.c.b16 %v5611, %v5610
      %v5615 = vpack.c.b16 %v5613, %v5612
      %v5619 = vsel %vm903, %v5595, 0
      %v5622 = vsel %vm903, %v5597, 0
      %v5625 = vsel %vm903, %v5599, 0
      %v5628 = vsel %vm903, %v5601, 0
      %v5631 = vsel %vm903, %v5603, 0
      %v5634 = vsel %vm903, %v5605, 0
      %5636 = vmatprep.subr.bf16.mxu0 0
      %5637 = vmatpush1.bf16.msra.mxu0 %v5614
      %5638 = vmatprep.subr.bf16.mxu0 0
      %5639 = vmatpush1.bf16.msra.mxu0 %v5615
      %5640 = vmatprep.subr.bf16.mxu0 0
      %5641 = vmatpush1.bf16.msra.mxu0 0
      %5642 = vmatprep.subr.bf16.mxu0 0
      %5643 = vmatpush1.bf16.msra.mxu0 0
      %5644 = vmatprep.subr.bf16.mxu0 0
      %5645 = vmatpush1.bf16.msra.mxu0 0
      %5646 = vmatprep.subr.bf16.mxu0 0
      %5647 = vmatpush1.bf16.msra.mxu0 0
      %5648 = vmatprep.subr.bf16.mxu0 0
      %5649 = vmatpush1.bf16.msra.mxu0 0
      %5650 = vmatprep.subr.bf16.mxu0 0
      %5651 = vmatpush1.bf16.msra.mxu0 0
      %5652 = vmatprep.subr.bf16.mxu0 0
      %5653 = vmatpush1.bf16.msra.mxu0 0
      %5654 = vmatprep.subr.bf16.mxu0 0
      %5655 = vmatpush1.bf16.msra.mxu0 0
      %5656 = vmatprep.subr.bf16.mxu0 0
      %5657 = vmatpush1.bf16.msra.mxu0 0
      %5658 = vmatprep.subr.bf16.mxu0 0
      %5659 = vmatpush1.bf16.msra.mxu0 0
      %5660 = vmatprep.subr.bf16.mxu0 0
      %5661 = vmatpush1.bf16.msra.mxu0 0
      %5662 = vmatprep.subr.bf16.mxu0 0
      %5663 = vmatpush1.bf16.msra.mxu0 0
      %5664 = vmatprep.subr.bf16.mxu0 0
      %5665 = vmatpush1.bf16.msra.mxu0 0
      %5666 = vmatprep.subr.bf16.mxu0 0
      %5667 = vmatpush1.bf16.msra.mxu0 0
      %5668 = vmatprep.mubr.bf16.mxu0 0
      %5669 = vmatmul.mubr.bf16.gmra.mrb[0].mxu0 %v1937
      %v5670 = vpop.f32.mrb[0].mxu0
      %v5671 = vadd.f32 0.0, %v5670
      %v5672 = vpop.f32.mrb[0].mxu0
      %v5673 = vpop.f32.mrb[0].mxu0
      %v5674 = vadd.f32 0.0, %v5673
      %v5675 = vpop.f32.mrb[0].mxu0
      %5676 = vmatprep.mubr.bf16.mxu0 0
      %5677 = vmatmul.mubr.bf16.gmra.mrb[0].mxu0 %v1940
      %v5678 = vpop.f32.mrb[0].mxu0
      %v5679 = vadd.f32 0.0, %v5678
      %v5680 = vpop.f32.mrb[0].mxu0
      %v5681 = vpop.f32.mrb[0].mxu0
      %v5682 = vadd.f32 0.0, %v5681
      %v5683 = vpop.f32.mrb[0].mxu0
      %5684 = vmatprep.mubr.bf16.mxu0 0
      %5685 = vmatmul.mubr.bf16.gmra.mrb[0].mxu0 %v1943
      %v5686 = vpop.f32.mrb[0].mxu0
      %v5687 = vadd.f32 0.0, %v5686
      %v5688 = vpop.f32.mrb[0].mxu0
      %v5689 = vpop.f32.mrb[0].mxu0
      %v5690 = vadd.f32 0.0, %v5689
      %v5691 = vpop.f32.mrb[0].mxu0
      %5692 = vmatprep.mubr.bf16.mxu0 0
      %5693 = vmatmul.mubr.bf16.gmra.mrb[0].mxu0 %v1946
      %v5694 = vpop.f32.mrb[0].mxu0
      %v5695 = vadd.f32 0.0, %v5694
      %v5696 = vpop.f32.mrb[0].mxu0
      %v5697 = vpop.f32.mrb[0].mxu0
      %v5698 = vadd.f32 0.0, %v5697
      %v5699 = vpop.f32.mrb[0].mxu0
      %5700 = vmatprep.mubr.bf16.mxu0 0
      %5701 = vmatmul.mubr.bf16.gmra.mrb[0].mxu0 %v1949
      %v5702 = vpop.f32.mrb[0].mxu0
      %v5703 = vadd.f32 0.0, %v5702
      %v5704 = vpop.f32.mrb[0].mxu0
      %v5705 = vpop.f32.mrb[0].mxu0
      %v5706 = vadd.f32 0.0, %v5705
      %v5707 = vpop.f32.mrb[0].mxu0
      %5708 = vmatprep.mubr.bf16.mxu0 0
      %5709 = vmatmul.mubr.bf16.gmra.mrb[0].mxu0 %v1952
      %v5710 = vpop.f32.mrb[0].mxu0
      %v5711 = vadd.f32 0.0, %v5710
      %v5712 = vpop.f32.mrb[0].mxu0
      %v5713 = vpop.f32.mrb[0].mxu0
      %v5714 = vadd.f32 0.0, %v5713
      %v5715 = vpop.f32.mrb[0].mxu0
      %5716 = vmatprep.mubr.bf16.mxu0 0
      %5717 = vmatmul.mubr.bf16.gmra.mrb[0].mxu0 %v1955
      %v5718 = vpop.f32.mrb[0].mxu0
      %v5719 = vadd.f32 0.0, %v5718
      %v5720 = vpop.f32.mrb[0].mxu0
      %v5721 = vpop.f32.mrb[0].mxu0
      %v5722 = vadd.f32 0.0, %v5721
      %v5723 = vpop.f32.mrb[0].mxu0
      %5724 = vmatprep.mubr.bf16.mxu0 0
      %5725 = vmatmul.mubr.bf16.gmra.mrb[0].mxu0 %v1958
      %v5726 = vpop.f32.mrb[0].mxu0
      %v5727 = vadd.f32 0.0, %v5726
      %v5728 = vpop.f32.mrb[0].mxu0
      %v5729 = vpop.f32.mrb[0].mxu0
      %v5730 = vadd.f32 0.0, %v5729
      %v5731 = vpop.f32.mrb[0].mxu0
      %5732 = vmatprep.mubr.bf16.mxu0 0
      %5733 = vmatmul.mubr.bf16.gmra.mrb[0].mxu0 %v1961
      %v5734 = vpop.f32.mrb[0].mxu0
      %v5735 = vadd.f32 0.0, %v5734
      %v5736 = vpop.f32.mrb[0].mxu0
      %v5737 = vpop.f32.mrb[0].mxu0
      %v5738 = vadd.f32 0.0, %v5737
      %v5739 = vpop.f32.mrb[0].mxu0
      %5740 = vmatprep.mubr.bf16.mxu0 0
      %5741 = vmatmul.mubr.bf16.gmra.mrb[0].mxu0 %v1964
      %v5742 = vpop.f32.mrb[0].mxu0
      %v5743 = vadd.f32 0.0, %v5742
      %v5744 = vpop.f32.mrb[0].mxu0
      %v5745 = vpop.f32.mrb[0].mxu0
      %v5746 = vadd.f32 0.0, %v5745
      %v5747 = vpop.f32.mrb[0].mxu0
      %5748 = vmatprep.mubr.bf16.mxu0 0
      %5749 = vmatmul.mubr.bf16.gmra.mrb[0].mxu0 %v1967
      %v5750 = vpop.f32.mrb[0].mxu0
      %v5751 = vadd.f32 0.0, %v5750
      %v5752 = vpop.f32.mrb[0].mxu0
      %v5753 = vpop.f32.mrb[0].mxu0
      %v5754 = vadd.f32 0.0, %v5753
      %v5755 = vpop.f32.mrb[0].mxu0
      %5756 = vmatprep.mubr.bf16.mxu0 0
      %5757 = vmatmul.mubr.bf16.gmra.mrb[0].mxu0 %v1970
      %v5758 = vpop.f32.mrb[0].mxu0
      %v5759 = vadd.f32 0.0, %v5758
      %v5760 = vpop.f32.mrb[0].mxu0
      %v5761 = vpop.f32.mrb[0].mxu0
      %v5762 = vadd.f32 0.0, %v5761
      %v5763 = vpop.f32.mrb[0].mxu0
      %5764 = vmatprep.mubr.bf16.mxu0 0
      %5765 = vmatmul.mubr.bf16.gmra.mrb[0].mxu0 %v1973
      %v5766 = vpop.f32.mrb[0].mxu0
      %v5767 = vadd.f32 0.0, %v5766
      %v5768 = vpop.f32.mrb[0].mxu0
      %v5769 = vpop.f32.mrb[0].mxu0
      %v5770 = vadd.f32 0.0, %v5769
      %v5771 = vpop.f32.mrb[0].mxu0
      %5772 = vmatprep.mubr.bf16.mxu0 0
      %5773 = vmatmul.mubr.bf16.gmra.mrb[0].mxu0 %v1976
      %v5774 = vpop.f32.mrb[0].mxu0
      %v5775 = vadd.f32 0.0, %v5774
      %v5776 = vpop.f32.mrb[0].mxu0
      %v5777 = vpop.f32.mrb[0].mxu0
      %v5778 = vadd.f32 0.0, %v5777
      %v5779 = vpop.f32.mrb[0].mxu0
      %5780 = vmatprep.mubr.bf16.mxu0 0
      %5781 = vmatmul.mubr.bf16.gmra.mrb[0].mxu0 %v1979
      %v5782 = vpop.f32.mrb[0].mxu0
      %v5783 = vadd.f32 0.0, %v5782
      %v5784 = vpop.f32.mrb[0].mxu0
      %v5785 = vpop.f32.mrb[0].mxu0
      %v5786 = vadd.f32 0.0, %v5785
      %v5787 = vpop.f32.mrb[0].mxu0
      %5788 = vmatprep.mubr.bf16.mxu0 0
      %5789 = vmatmul.mubr.bf16.gmra.mrb[0].mxu0 %v1982
      %v5790 = vpop.f32.mrb[0].mxu0
      %v5791 = vadd.f32 0.0, %v5790
      %v5792 = vpop.f32.mrb[0].mxu0
      %v5793 = vpop.f32.mrb[0].mxu0
      %v5794 = vadd.f32 0.0, %v5793
      %v5795 = vpop.f32.mrb[0].mxu0
      %5796 = vmatprep.mubr.bf16.mxu0 0
      %5797 = vmatmul.mubr.bf16.gmra.mrb[0].mxu0 %v1985
      %v5798 = vpop.f32.mrb[0].mxu0
      %v5799 = vadd.f32 0.0, %v5798
      %v5800 = vpop.f32.mrb[0].mxu0
      %v5801 = vpop.f32.mrb[0].mxu0
      %v5802 = vadd.f32 0.0, %v5801
      %v5803 = vpop.f32.mrb[0].mxu0
      %5804 = vmatprep.mubr.bf16.mxu0 0
      %5805 = vmatmul.mubr.bf16.gmra.mrb[0].mxu0 %v1988
      %v5806 = vpop.f32.mrb[0].mxu0
      %v5807 = vadd.f32 0.0, %v5806
      %v5808 = vpop.f32.mrb[0].mxu0
      %v5809 = vpop.f32.mrb[0].mxu0
      %v5810 = vadd.f32 0.0, %v5809
      %v5811 = vpop.f32.mrb[0].mxu0
      %5812 = vmatprep.mubr.bf16.mxu0 0
      %5813 = vmatmul.mubr.bf16.gmra.mrb[0].mxu0 %v1991
      %v5814 = vpop.f32.mrb[0].mxu0
      %v5815 = vadd.f32 0.0, %v5814
      %v5816 = vpop.f32.mrb[0].mxu0
      %v5817 = vpop.f32.mrb[0].mxu0
      %v5818 = vadd.f32 0.0, %v5817
      %v5819 = vpop.f32.mrb[0].mxu0
      %5820 = vmatprep.mubr.bf16.mxu0 0
      %5821 = vmatmul.mubr.bf16.gmra.mrb[0].mxu0 %v1994
      %v5822 = vpop.f32.mrb[0].mxu0
      %v5823 = vadd.f32 0.0, %v5822
      %v5824 = vpop.f32.mrb[0].mxu0
      %v5825 = vpop.f32.mrb[0].mxu0
      %v5826 = vadd.f32 0.0, %v5825
      %v5827 = vpop.f32.mrb[0].mxu0
      %5828 = vmatprep.mubr.bf16.mxu0 0
      %5829 = vmatmul.mubr.bf16.gmra.mrb[0].mxu0 %v1997
      %v5830 = vpop.f32.mrb[0].mxu0
      %v5831 = vadd.f32 0.0, %v5830
      %v5832 = vpop.f32.mrb[0].mxu0
      %v5833 = vpop.f32.mrb[0].mxu0
      %v5834 = vadd.f32 0.0, %v5833
      %v5835 = vpop.f32.mrb[0].mxu0
      %5836 = vmatprep.mubr.bf16.mxu0 0
      %5837 = vmatmul.mubr.bf16.gmra.mrb[0].mxu0 %v2000
      %v5838 = vpop.f32.mrb[0].mxu0
      %v5839 = vadd.f32 0.0, %v5838
      %v5840 = vpop.f32.mrb[0].mxu0
      %v5841 = vpop.f32.mrb[0].mxu0
      %v5842 = vadd.f32 0.0, %v5841
      %v5843 = vpop.f32.mrb[0].mxu0
      %5844 = vmatprep.mubr.bf16.mxu0 0
      %5845 = vmatmul.mubr.bf16.gmra.mrb[0].mxu0 %v2003
      %v5846 = vpop.f32.mrb[0].mxu0
      %v5847 = vadd.f32 0.0, %v5846
      %v5848 = vpop.f32.mrb[0].mxu0
      %v5849 = vpop.f32.mrb[0].mxu0
      %v5850 = vadd.f32 0.0, %v5849
      %v5851 = vpop.f32.mrb[0].mxu0
      %5852 = vmatprep.mubr.bf16.mxu0 0
      %5853 = vmatmul.mubr.bf16.gmra.mrb[0].mxu0 %v2006
      %v5854 = vpop.f32.mrb[0].mxu0
      %v5855 = vadd.f32 0.0, %v5854
      %v5856 = vpop.f32.mrb[0].mxu0
      %v5857 = vpop.f32.mrb[0].mxu0
      %v5858 = vadd.f32 0.0, %v5857
      %v5859 = vpop.f32.mrb[0].mxu0
      %5860 = vmatprep.mubr.bf16.mxu0 0
      %5861 = vmatmul.mubr.bf16.gmra.mrb[0].mxu0 %v2009
      %v5862 = vpop.f32.mrb[0].mxu0
      %v5863 = vadd.f32 0.0, %v5862
      %v5864 = vpop.f32.mrb[0].mxu0
      %v5865 = vpop.f32.mrb[0].mxu0
      %v5866 = vadd.f32 0.0, %v5865
      %v5867 = vpop.f32.mrb[0].mxu0
      %5868 = vmatprep.mubr.bf16.mxu0 0
      %5869 = vmatmul.mubr.bf16.gmra.mrb[0].mxu0 %v2012
      %v5870 = vpop.f32.mrb[0].mxu0
      %v5871 = vadd.f32 0.0, %v5870
      %v5872 = vpop.f32.mrb[0].mxu0
      %v5873 = vpop.f32.mrb[0].mxu0
      %v5874 = vadd.f32 0.0, %v5873
      %v5875 = vpop.f32.mrb[0].mxu0
      %5876 = vmatprep.mubr.bf16.mxu0 0
      %5877 = vmatmul.mubr.bf16.gmra.mrb[0].mxu0 %v2015
      %v5878 = vpop.f32.mrb[0].mxu0
      %v5879 = vadd.f32 0.0, %v5878
      %v5880 = vpop.f32.mrb[0].mxu0
      %v5881 = vpop.f32.mrb[0].mxu0
      %v5882 = vadd.f32 0.0, %v5881
      %v5883 = vpop.f32.mrb[0].mxu0
      %5884 = vmatprep.mubr.bf16.mxu0 0
      %5885 = vmatmul.mubr.bf16.gmra.mrb[0].mxu0 %v2018
      %v5886 = vpop.f32.mrb[0].mxu0
      %v5887 = vadd.f32 0.0, %v5886
      %v5888 = vpop.f32.mrb[0].mxu0
      %v5889 = vpop.f32.mrb[0].mxu0
      %v5890 = vadd.f32 0.0, %v5889
      %v5891 = vpop.f32.mrb[0].mxu0
      %5892 = vmatprep.mubr.bf16.mxu0 0
      %5893 = vmatmul.mubr.bf16.gmra.mrb[0].mxu0 %v2021
      %v5894 = vpop.f32.mrb[0].mxu0
      %v5895 = vadd.f32 0.0, %v5894
      %v5896 = vpop.f32.mrb[0].mxu0
      %v5897 = vpop.f32.mrb[0].mxu0
      %v5898 = vadd.f32 0.0, %v5897
      %v5899 = vpop.f32.mrb[0].mxu0
      %5900 = vmatprep.mubr.bf16.mxu0 0
      %5901 = vmatmul.mubr.bf16.gmra.mrb[0].mxu0 %v2024
      %v5902 = vpop.f32.mrb[0].mxu0
      %v5903 = vadd.f32 0.0, %v5902
      %v5904 = vpop.f32.mrb[0].mxu0
      %v5905 = vpop.f32.mrb[0].mxu0
      %v5906 = vadd.f32 0.0, %v5905
      %v5907 = vpop.f32.mrb[0].mxu0
      %5908 = vmatprep.mubr.bf16.mxu0 0
      %5909 = vmatmul.mubr.bf16.gmra.mrb[0].mxu0 %v2027
      %v5910 = vpop.f32.mrb[0].mxu0
      %v5911 = vadd.f32 0.0, %v5910
      %v5912 = vpop.f32.mrb[0].mxu0
      %v5913 = vpop.f32.mrb[0].mxu0
      %v5914 = vadd.f32 0.0, %v5913
      %v5915 = vpop.f32.mrb[0].mxu0
      %5916 = vmatprep.mubr.bf16.mxu0 0
      %5917 = vmatmul.mubr.bf16.gmra.mrb[0].mxu0 %v2030
      %v5918 = vpop.f32.mrb[0].mxu0
      %v5919 = vadd.f32 0.0, %v5918
      %v5920 = vpop.f32.mrb[0].mxu0
      %v5921 = vpop.f32.mrb[0].mxu0
      %v5922 = vadd.f32 0.0, %v5921
      %v5923 = vpop.f32.mrb[0].mxu0
      %5924 = vmatprep.mubr.bf16.mxu0 0
      %5925 = vmatmul.mubr.bf16.gmra.mrb[0].mxu0 %v2033
      %v5926 = vpop.f32.mrb[0].mxu0
      %v5927 = vadd.f32 0.0, %v5926
      %v5928 = vpop.f32.mrb[0].mxu0
      %v5929 = vpop.f32.mrb[0].mxu0
      %v5930 = vadd.f32 0.0, %v5929
      %v5931 = vpop.f32.mrb[0].mxu0
      %5932 = vmatprep.mubr.bf16.mxu0 0
      %5933 = vmatmul.mubr.bf16.gmra.mrb[0].mxu0 %v2036
      %v5934 = vpop.f32.mrb[0].mxu0
      %v5935 = vadd.f32 0.0, %v5934
      %v5936 = vpop.f32.mrb[0].mxu0
      %v5937 = vpop.f32.mrb[0].mxu0
      %v5938 = vadd.f32 0.0, %v5937
      %v5939 = vpop.f32.mrb[0].mxu0
      %5940 = vmatprep.mubr.bf16.mxu0 0
      %5941 = vmatmul.mubr.bf16.gmra.mrb[0].mxu0 %v5619
      %v5942 = vpop.f32.mrb[0].mxu0
      %v5943 = vadd.f32 0.0, %v5942
      %v5944 = vpop.f32.mrb[0].mxu0
      %v5945 = vpop.f32.mrb[0].mxu0
      %v5946 = vadd.f32 0.0, %v5945
      %v5947 = vpop.f32.mrb[0].mxu0
      %5948 = vmatprep.mubr.bf16.mxu0 0
      %5949 = vmatmul.mubr.bf16.gmra.mrb[0].mxu0 %v5622
      %v5950 = vpop.f32.mrb[0].mxu0
      %v5951 = vadd.f32 0.0, %v5950
      %v5952 = vpop.f32.mrb[0].mxu0
      %v5953 = vpop.f32.mrb[0].mxu0
      %v5954 = vadd.f32 0.0, %v5953
      %v5955 = vpop.f32.mrb[0].mxu0
      %5956 = vmatprep.mubr.bf16.mxu0 0
      %5957 = vmatmul.mubr.bf16.gmra.mrb[0].mxu0 %v5625
      %v5958 = vpop.f32.mrb[0].mxu0
      %v5959 = vadd.f32 0.0, %v5958
      %v5960 = vpop.f32.mrb[0].mxu0
      %v5961 = vpop.f32.mrb[0].mxu0
      %v5962 = vadd.f32 0.0, %v5961
      %v5963 = vpop.f32.mrb[0].mxu0
      %5964 = vmatprep.mubr.bf16.mxu0 0
      %5965 = vmatmul.mubr.bf16.gmra.mrb[0].mxu0 %v5628
      %v5966 = vpop.f32.mrb[0].mxu0
      %v5967 = vadd.f32 0.0, %v5966
      %v5968 = vpop.f32.mrb[0].mxu0
      %v5969 = vpop.f32.mrb[0].mxu0
      %v5970 = vadd.f32 0.0, %v5969
      %v5971 = vpop.f32.mrb[0].mxu0
      %5972 = vmatprep.mubr.bf16.mxu0 0
      %5973 = vmatmul.mubr.bf16.gmra.mrb[0].mxu0 %v5631
      %v5974 = vpop.f32.mrb[0].mxu0
      %v5975 = vadd.f32 0.0, %v5974
      %v5976 = vpop.f32.mrb[0].mxu0
      %v5977 = vpop.f32.mrb[0].mxu0
      %v5978 = vadd.f32 0.0, %v5977
      %v5979 = vpop.f32.mrb[0].mxu0
      %5980 = vmatprep.mubr.bf16.mxu0 0
      %5981 = vmatmul.mubr.bf16.gmra.mrb[0].mxu0 %v5634
      %v5982 = vpop.f32.mrb[0].mxu0
      %v5983 = vadd.f32 0.0, %v5982
      %v5984 = vpop.f32.mrb[0].mxu0
      %v5985 = vpop.f32.mrb[0].mxu0
      %v5986 = vadd.f32 0.0, %v5985
      %v5987 = vpop.f32.mrb[0].mxu0
      %5988 = vdwg.mxu0
      %v5989 = vadd.f32 %v5509, %v5671
      %v5990 = vadd.f32 %v5510, %v5674
      %v5991 = vadd.f32 %v5511, %v5679
      %v5992 = vadd.f32 %v5512, %v5682
      %v5993 = vadd.f32 %v5513, %v5687
      %v5994 = vadd.f32 %v5514, %v5690
      %v5995 = vadd.f32 %v5515, %v5695
      %v5996 = vadd.f32 %v5516, %v5698
      %v5997 = vadd.f32 %v5517, %v5703
      %v5998 = vadd.f32 %v5518, %v5706
      %v5999 = vadd.f32 %v5519, %v5711
      %v6000 = vadd.f32 %v5520, %v5714
      %v6001 = vadd.f32 %v5521, %v5719
      %v6002 = vadd.f32 %v5522, %v5722
      %v6003 = vadd.f32 %v5523, %v5727
      %v6004 = vadd.f32 %v5524, %v5730
      %v6005 = vadd.f32 %v5525, %v5735
      %v6006 = vadd.f32 %v5526, %v5738
      %v6007 = vadd.f32 %v5527, %v5743
      %v6008 = vadd.f32 %v5528, %v5746
      %v6009 = vadd.f32 %v5529, %v5751
      %v6010 = vadd.f32 %v5530, %v5754
      %v6011 = vadd.f32 %v5531, %v5759
      %v6012 = vadd.f32 %v5532, %v5762
      %v6013 = vadd.f32 %v5533, %v5767
      %v6014 = vadd.f32 %v5534, %v5770
      %v6015 = vadd.f32 %v5535, %v5775
      %v6016 = vadd.f32 %v5536, %v5778
      %v6017 = vadd.f32 %v5537, %v5783
      %v6018 = vadd.f32 %v5538, %v5786
      %v6019 = vadd.f32 %v5539, %v5791
      %v6020 = vadd.f32 %v5540, %v5794
      %v6021 = vadd.f32 %v5541, %v5799
      %v6022 = vadd.f32 %v5542, %v5802
      %v6023 = vadd.f32 %v5543, %v5807
      %v6024 = vadd.f32 %v5544, %v5810
      %v6025 = vadd.f32 %v5545, %v5815
      %v6026 = vadd.f32 %v5546, %v5818
      %v6027 = vadd.f32 %v5547, %v5823
      %v6028 = vadd.f32 %v5548, %v5826
      %v6029 = vadd.f32 %v5549, %v5831
      %v6030 = vadd.f32 %v5550, %v5834
      %v6031 = vadd.f32 %v5551, %v5839
      %v6032 = vadd.f32 %v5552, %v5842
      %v6033 = vadd.f32 %v5553, %v5847
      %v6034 = vadd.f32 %v5554, %v5850
      %v6035 = vadd.f32 %v5555, %v5855
      %v6036 = vadd.f32 %v5556, %v5858
      %v6037 = vadd.f32 %v5557, %v5863
      %v6038 = vadd.f32 %v5558, %v5866
      %v6039 = vadd.f32 %v5559, %v5871
      %v6040 = vadd.f32 %v5560, %v5874
      %v6041 = vadd.f32 %v5561, %v5879
      %v6042 = vadd.f32 %v5562, %v5882
      %v6043 = vadd.f32 %v5563, %v5887
      %v6044 = vadd.f32 %v5564, %v5890
      %v6045 = vadd.f32 %v5565, %v5895
      %v6046 = vadd.f32 %v5566, %v5898
      %v6047 = vadd.f32 %v5567, %v5903
      %v6048 = vadd.f32 %v5568, %v5906
      %v6049 = vadd.f32 %v5569, %v5911
      %v6050 = vadd.f32 %v5570, %v5914
      %v6051 = vadd.f32 %v5571, %v5919
      %v6052 = vadd.f32 %v5572, %v5922
      %v6053 = vadd.f32 %v5573, %v5927
      %v6054 = vadd.f32 %v5574, %v5930
      %v6055 = vadd.f32 %v5575, %v5935
      %v6056 = vadd.f32 %v5576, %v5938
      %v6057 = vadd.f32 %v5577, %v5943
      %v6058 = vadd.f32 %v5578, %v5946
      %v6059 = vadd.f32 %v5579, %v5951
      %v6060 = vadd.f32 %v5580, %v5954
      %v6061 = vadd.f32 %v5581, %v5959
      %v6062 = vadd.f32 %v5582, %v5962
      %v6063 = vadd.f32 %v5583, %v5967
      %v6064 = vadd.f32 %v5584, %v5970
      %v6065 = vadd.f32 %v5585, %v5975
      %v6066 = vadd.f32 %v5586, %v5978
      %v6067 = vadd.f32 %v5587, %v5983
      %v6068 = vadd.f32 %v5588, %v5986
      %v6069 = vld [vmem:[%s2] sm:$0x1]
      %v6071 = vlaneseq
      %v6072 = vshrl.u32 %v6071, 7
      %v6073 = vsub.s32 0, %v6072
      %v6074 = vrot.slane %v6069, %v6073
      %v6076 = vadd.f32 %v5989, %v6074
      %v6077 = vadd.f32 %v5990, %v6074
      %v6078 = vadd.f32 %v5991, %v6074
      %v6079 = vadd.f32 %v5992, %v6074
      %v6080 = vadd.f32 %v5993, %v6074
      %v6081 = vadd.f32 %v5994, %v6074
      %v6082 = vadd.f32 %v5995, %v6074
      %v6083 = vadd.f32 %v5996, %v6074
      %v6084 = vadd.f32 %v5997, %v6074
      %v6085 = vadd.f32 %v5998, %v6074
      %v6086 = vadd.f32 %v5999, %v6074
      %v6087 = vadd.f32 %v6000, %v6074
      %v6088 = vadd.f32 %v6001, %v6074
      %v6089 = vadd.f32 %v6002, %v6074
      %v6090 = vadd.f32 %v6003, %v6074
      %v6091 = vadd.f32 %v6004, %v6074
      %v6092 = vadd.f32 %v6005, %v6074
      %v6093 = vadd.f32 %v6006, %v6074
      %v6094 = vadd.f32 %v6007, %v6074
      %v6095 = vadd.f32 %v6008, %v6074
      %v6096 = vadd.f32 %v6009, %v6074
      %v6097 = vadd.f32 %v6010, %v6074
      %v6098 = vadd.f32 %v6011, %v6074
      %v6099 = vadd.f32 %v6012, %v6074
      %v6100 = vadd.f32 %v6013, %v6074
      %v6101 = vadd.f32 %v6014, %v6074
      %v6102 = vadd.f32 %v6015, %v6074
      %v6103 = vadd.f32 %v6016, %v6074
      %v6104 = vadd.f32 %v6017, %v6074
      %v6105 = vadd.f32 %v6018, %v6074
      %v6106 = vadd.f32 %v6019, %v6074
      %v6107 = vadd.f32 %v6020, %v6074
      %v6108 = vadd.f32 %v6021, %v6074
      %v6109 = vadd.f32 %v6022, %v6074
      %v6110 = vadd.f32 %v6023, %v6074
      %v6111 = vadd.f32 %v6024, %v6074
      %v6112 = vadd.f32 %v6025, %v6074
      %v6113 = vadd.f32 %v6026, %v6074
      %v6114 = vadd.f32 %v6027, %v6074
      %v6115 = vadd.f32 %v6028, %v6074
      %v6116 = vadd.f32 %v6029, %v6074
      %v6117 = vadd.f32 %v6030, %v6074
      %v6118 = vadd.f32 %v6031, %v6074
      %v6119 = vadd.f32 %v6032, %v6074
      %v6120 = vadd.f32 %v6033, %v6074
      %v6121 = vadd.f32 %v6034, %v6074
      %v6122 = vadd.f32 %v6035, %v6074
      %v6123 = vadd.f32 %v6036, %v6074
      %v6124 = vadd.f32 %v6037, %v6074
      %v6125 = vadd.f32 %v6038, %v6074
      %v6126 = vadd.f32 %v6039, %v6074
      %v6127 = vadd.f32 %v6040, %v6074
      %v6128 = vadd.f32 %v6041, %v6074
      %v6129 = vadd.f32 %v6042, %v6074
      %v6130 = vadd.f32 %v6043, %v6074
      %v6131 = vadd.f32 %v6044, %v6074
      %v6132 = vadd.f32 %v6045, %v6074
      %v6133 = vadd.f32 %v6046, %v6074
      %v6134 = vadd.f32 %v6047, %v6074
      %v6135 = vadd.f32 %v6048, %v6074
      %v6136 = vadd.f32 %v6049, %v6074
      %v6137 = vadd.f32 %v6050, %v6074
      %v6138 = vadd.f32 %v6051, %v6074
      %v6139 = vadd.f32 %v6052, %v6074
      %v6140 = vadd.f32 %v6053, %v6074
      %v6141 = vadd.f32 %v6054, %v6074
      %v6142 = vadd.f32 %v6055, %v6074
      %v6143 = vadd.f32 %v6056, %v6074
      %v6144 = vadd.f32 %v6057, %v6074
      %v6145 = vadd.f32 %v6058, %v6074
      %v6146 = vadd.f32 %v6059, %v6074
      %v6147 = vadd.f32 %v6060, %v6074
      %v6148 = vadd.f32 %v6061, %v6074
      %v6149 = vadd.f32 %v6062, %v6074
      %v6150 = vadd.f32 %v6063, %v6074
      %v6151 = vadd.f32 %v6064, %v6074
      %v6152 = vadd.f32 %v6065, %v6074
      %v6153 = vadd.f32 %v6066, %v6074
      %v6154 = vadd.f32 %v6067, %v6074
      %v6155 = vadd.f32 %v6068, %v6074
      %v6156 = vxor.u32 %v6076, 2147483648
      %v6157 = vxor.u32 %v6077, 2147483648
      %v6158 = vxor.u32 %v6078, 2147483648
      %v6159 = vxor.u32 %v6079, 2147483648
      %v6160 = vxor.u32 %v6080, 2147483648
      %v6161 = vxor.u32 %v6081, 2147483648
      %v6162 = vxor.u32 %v6082, 2147483648
      %v6163 = vxor.u32 %v6083, 2147483648
      %v6164 = vxor.u32 %v6084, 2147483648
      %v6165 = vxor.u32 %v6085, 2147483648
      %v6166 = vxor.u32 %v6086, 2147483648
      %v6167 = vxor.u32 %v6087, 2147483648
      %v6168 = vxor.u32 %v6088, 2147483648
      %v6169 = vxor.u32 %v6089, 2147483648
      %v6170 = vxor.u32 %v6090, 2147483648
      %v6171 = vxor.u32 %v6091, 2147483648
      %v6172 = vxor.u32 %v6092, 2147483648
      %v6173 = vxor.u32 %v6093, 2147483648
      %v6174 = vxor.u32 %v6094, 2147483648
      %v6175 = vxor.u32 %v6095, 2147483648
      %v6176 = vxor.u32 %v6096, 2147483648
      %v6177 = vxor.u32 %v6097, 2147483648
      %v6178 = vxor.u32 %v6098, 2147483648
      %v6179 = vxor.u32 %v6099, 2147483648
      %v6180 = vxor.u32 %v6100, 2147483648
      %v6181 = vxor.u32 %v6101, 2147483648
      %v6182 = vxor.u32 %v6102, 2147483648
      %v6183 = vxor.u32 %v6103, 2147483648
      %v6184 = vxor.u32 %v6104, 2147483648
      %v6185 = vxor.u32 %v6105, 2147483648
      %v6186 = vxor.u32 %v6106, 2147483648
      %v6187 = vxor.u32 %v6107, 2147483648
      %v6188 = vxor.u32 %v6108, 2147483648
      %v6189 = vxor.u32 %v6109, 2147483648
      %v6190 = vxor.u32 %v6110, 2147483648
      %v6191 = vxor.u32 %v6111, 2147483648
      %v6192 = vxor.u32 %v6112, 2147483648
      %v6193 = vxor.u32 %v6113, 2147483648
      %v6194 = vxor.u32 %v6114, 2147483648
      %v6195 = vxor.u32 %v6115, 2147483648
      %v6196 = vxor.u32 %v6116, 2147483648
      %v6197 = vxor.u32 %v6117, 2147483648
      %v6198 = vxor.u32 %v6118, 2147483648
      %v6199 = vxor.u32 %v6119, 2147483648
      %v6200 = vxor.u32 %v6120, 2147483648
      %v6201 = vxor.u32 %v6121, 2147483648
      %v6202 = vxor.u32 %v6122, 2147483648
      %v6203 = vxor.u32 %v6123, 2147483648
      %v6204 = vxor.u32 %v6124, 2147483648
      %v6205 = vxor.u32 %v6125, 2147483648
      %v6206 = vxor.u32 %v6126, 2147483648
      %v6207 = vxor.u32 %v6127, 2147483648
      %v6208 = vxor.u32 %v6128, 2147483648
      %v6209 = vxor.u32 %v6129, 2147483648
      %v6210 = vxor.u32 %v6130, 2147483648
      %v6211 = vxor.u32 %v6131, 2147483648
      %v6212 = vxor.u32 %v6132, 2147483648
      %v6213 = vxor.u32 %v6133, 2147483648
      %v6214 = vxor.u32 %v6134, 2147483648
      %v6215 = vxor.u32 %v6135, 2147483648
      %v6216 = vxor.u32 %v6136, 2147483648
      %v6217 = vxor.u32 %v6137, 2147483648
      %v6218 = vxor.u32 %v6138, 2147483648
      %v6219 = vxor.u32 %v6139, 2147483648
      %v6220 = vxor.u32 %v6140, 2147483648
      %v6221 = vxor.u32 %v6141, 2147483648
      %v6222 = vxor.u32 %v6142, 2147483648
      %v6223 = vxor.u32 %v6143, 2147483648
      %v6224 = vxor.u32 %v6144, 2147483648
      %v6225 = vxor.u32 %v6145, 2147483648
      %v6226 = vxor.u32 %v6146, 2147483648
      %v6227 = vxor.u32 %v6147, 2147483648
      %v6228 = vxor.u32 %v6148, 2147483648
      %v6229 = vxor.u32 %v6149, 2147483648
      %v6230 = vxor.u32 %v6150, 2147483648
      %v6231 = vxor.u32 %v6151, 2147483648
      %v6232 = vxor.u32 %v6152, 2147483648
      %v6233 = vxor.u32 %v6153, 2147483648
      %v6234 = vxor.u32 %v6154, 2147483648
      %v6235 = vxor.u32 %v6155, 2147483648
      %v6236 = vmul.f32 %v6156, 1.442695
      %v6237 = vpow.pop %v6236
      %v6238 = vmul.f32 %v6157, 1.442695
      %v6239 = vpow.pop %v6238
      %v6240 = vmul.f32 %v6158, 1.442695
      %v6241 = vpow.pop %v6240
      %v6242 = vmul.f32 %v6159, 1.442695
      %v6243 = vpow.pop %v6242
      %v6244 = vmul.f32 %v6160, 1.442695
      %v6245 = vpow.pop %v6244
      %v6246 = vmul.f32 %v6161, 1.442695
      %v6247 = vpow.pop %v6246
      %v6248 = vmul.f32 %v6162, 1.442695
      %v6249 = vpow.pop %v6248
      %v6250 = vmul.f32 %v6163, 1.442695
      %v6251 = vpow.pop %v6250
      %v6252 = vmul.f32 %v6164, 1.442695
      %v6253 = vpow.pop %v6252
      %v6254 = vmul.f32 %v6165, 1.442695
      %v6255 = vpow.pop %v6254
      %v6256 = vmul.f32 %v6166, 1.442695
      %v6257 = vpow.pop %v6256
      %v6258 = vmul.f32 %v6167, 1.442695
      %v6259 = vpow.pop %v6258
      %v6260 = vmul.f32 %v6168, 1.442695
      %v6261 = vpow.pop %v6260
      %v6262 = vmul.f32 %v6169, 1.442695
      %v6263 = vpow.pop %v6262
      %v6264 = vmul.f32 %v6170, 1.442695
      %v6265 = vpow.pop %v6264
      %v6266 = vmul.f32 %v6171, 1.442695
      %v6267 = vpow.pop %v6266
      %v6268 = vmul.f32 %v6172, 1.442695
      %v6269 = vpow.pop %v6268
      %v6270 = vmul.f32 %v6173, 1.442695
      %v6271 = vpow.pop %v6270
      %v6272 = vmul.f32 %v6174, 1.442695
      %v6273 = vpow.pop %v6272
      %v6274 = vmul.f32 %v6175, 1.442695
      %v6275 = vpow.pop %v6274
      %v6276 = vmul.f32 %v6176, 1.442695
      %v6277 = vpow.pop %v6276
      %v6278 = vmul.f32 %v6177, 1.442695
      %v6279 = vpow.pop %v6278
      %v6280 = vmul.f32 %v6178, 1.442695
      %v6281 = vpow.pop %v6280
      %v6282 = vmul.f32 %v6179, 1.442695
      %v6283 = vpow.pop %v6282
      %v6284 = vmul.f32 %v6180, 1.442695
      %v6285 = vpow.pop %v6284
      %v6286 = vmul.f32 %v6181, 1.442695
      %v6287 = vpow.pop %v6286
      %v6288 = vmul.f32 %v6182, 1.442695
      %v6289 = vpow.pop %v6288
      %v6290 = vmul.f32 %v6183, 1.442695
      %v6291 = vpow.pop %v6290
      %v6292 = vmul.f32 %v6184, 1.442695
      %v6293 = vpow.pop %v6292
      %v6294 = vmul.f32 %v6185, 1.442695
      %v6295 = vpow.pop %v6294
      %v6296 = vmul.f32 %v6186, 1.442695
      %v6297 = vpow.pop %v6296
      %v6298 = vmul.f32 %v6187, 1.442695
      %v6299 = vpow.pop %v6298
      %v6300 = vmul.f32 %v6188, 1.442695
      %v6301 = vpow.pop %v6300
      %v6302 = vmul.f32 %v6189, 1.442695
      %v6303 = vpow.pop %v6302
      %v6304 = vmul.f32 %v6190, 1.442695
      %v6305 = vpow.pop %v6304
      %v6306 = vmul.f32 %v6191, 1.442695
      %v6307 = vpow.pop %v6306
      %v6308 = vmul.f32 %v6192, 1.442695
      %v6309 = vpow.pop %v6308
      %v6310 = vmul.f32 %v6193, 1.442695
      %v6311 = vpow.pop %v6310
      %v6312 = vmul.f32 %v6194, 1.442695
      %v6313 = vpow.pop %v6312
      %v6314 = vmul.f32 %v6195, 1.442695
      %v6315 = vpow.pop %v6314
      %v6316 = vmul.f32 %v6196, 1.442695
      %v6317 = vpow.pop %v6316
      %v6318 = vmul.f32 %v6197, 1.442695
      %v6319 = vpow.pop %v6318
      %v6320 = vmul.f32 %v6198, 1.442695
      %v6321 = vpow.pop %v6320
      %v6322 = vmul.f32 %v6199, 1.442695
      %v6323 = vpow.pop %v6322
      %v6324 = vmul.f32 %v6200, 1.442695
      %v6325 = vpow.pop %v6324
      %v6326 = vmul.f32 %v6201, 1.442695
      %v6327 = vpow.pop %v6326
      %v6328 = vmul.f32 %v6202, 1.442695
      %v6329 = vpow.pop %v6328
      %v6330 = vmul.f32 %v6203, 1.442695
      %v6331 = vpow.pop %v6330
      %v6332 = vmul.f32 %v6204, 1.442695
      %v6333 = vpow.pop %v6332
      %v6334 = vmul.f32 %v6205, 1.442695
      %v6335 = vpow.pop %v6334
      %v6336 = vmul.f32 %v6206, 1.442695
      %v6337 = vpow.pop %v6336
      %v6338 = vmul.f32 %v6207, 1.442695
      %v6339 = vpow.pop %v6338
      %v6340 = vmul.f32 %v6208, 1.442695
      %v6341 = vpow.pop %v6340
      %v6342 = vmul.f32 %v6209, 1.442695
      %v6343 = vpow.pop %v6342
      %v6344 = vmul.f32 %v6210, 1.442695
      %v6345 = vpow.pop %v6344
      %v6346 = vmul.f32 %v6211, 1.442695
      %v6347 = vpow.pop %v6346
      %v6348 = vmul.f32 %v6212, 1.442695
      %v6349 = vpow.pop %v6348
      %v6350 = vmul.f32 %v6213, 1.442695
      %v6351 = vpow.pop %v6350
      %v6352 = vmul.f32 %v6214, 1.442695
      %v6353 = vpow.pop %v6352
      %v6354 = vmul.f32 %v6215, 1.442695
      %v6355 = vpow.pop %v6354
      %v6356 = vmul.f32 %v6216, 1.442695
      %v6357 = vpow.pop %v6356
      %v6358 = vmul.f32 %v6217, 1.442695
      %v6359 = vpow.pop %v6358
      %v6360 = vmul.f32 %v6218, 1.442695
      %v6361 = vpow.pop %v6360
      %v6362 = vmul.f32 %v6219, 1.442695
      %v6363 = vpow.pop %v6362
      %v6364 = vmul.f32 %v6220, 1.442695
      %v6365 = vpow.pop %v6364
      %v6366 = vmul.f32 %v6221, 1.442695
      %v6367 = vpow.pop %v6366
      %v6368 = vmul.f32 %v6222, 1.442695
      %v6369 = vpow.pop %v6368
      %v6370 = vmul.f32 %v6223, 1.442695
      %v6371 = vpow.pop %v6370
      %v6372 = vmul.f32 %v6224, 1.442695
      %v6373 = vpow.pop %v6372
      %v6374 = vmul.f32 %v6225, 1.442695
      %v6375 = vpow.pop %v6374
      %v6376 = vmul.f32 %v6226, 1.442695
      %v6377 = vpow.pop %v6376
      %v6378 = vmul.f32 %v6227, 1.442695
      %v6379 = vpow.pop %v6378
      %v6380 = vmul.f32 %v6228, 1.442695
      %v6381 = vpow.pop %v6380
      %v6382 = vmul.f32 %v6229, 1.442695
      %v6383 = vpow.pop %v6382
      %v6384 = vmul.f32 %v6230, 1.442695
      %v6385 = vpow.pop %v6384
      %v6386 = vmul.f32 %v6231, 1.442695
      %v6387 = vpow.pop %v6386
      %v6388 = vmul.f32 %v6232, 1.442695
      %v6389 = vpow.pop %v6388
      %v6390 = vmul.f32 %v6233, 1.442695
      %v6391 = vpow.pop %v6390
      %v6392 = vmul.f32 %v6234, 1.442695
      %v6393 = vpow.pop %v6392
      %v6394 = vmul.f32 %v6235, 1.442695
      %v6395 = vpow.pop %v6394
      %v6396 = vadd.f32 %v6237, 1.0
      %v6397 = vadd.f32 %v6239, 1.0
      %v6398 = vadd.f32 %v6241, 1.0
      %v6399 = vadd.f32 %v6243, 1.0
      %v6400 = vadd.f32 %v6245, 1.0
      %v6401 = vadd.f32 %v6247, 1.0
      %v6402 = vadd.f32 %v6249, 1.0
      %v6403 = vadd.f32 %v6251, 1.0
      %v6404 = vadd.f32 %v6253, 1.0
      %v6405 = vadd.f32 %v6255, 1.0
      %v6406 = vadd.f32 %v6257, 1.0
      %v6407 = vadd.f32 %v6259, 1.0
      %v6408 = vadd.f32 %v6261, 1.0
      %v6409 = vadd.f32 %v6263, 1.0
      %v6410 = vadd.f32 %v6265, 1.0
      %v6411 = vadd.f32 %v6267, 1.0
      %v6412 = vadd.f32 %v6269, 1.0
      %v6413 = vadd.f32 %v6271, 1.0
      %v6414 = vadd.f32 %v6273, 1.0
      %v6415 = vadd.f32 %v6275, 1.0
      %v6416 = vadd.f32 %v6277, 1.0
      %v6417 = vadd.f32 %v6279, 1.0
      %v6418 = vadd.f32 %v6281, 1.0
      %v6419 = vadd.f32 %v6283, 1.0
      %v6420 = vadd.f32 %v6285, 1.0
      %v6421 = vadd.f32 %v6287, 1.0
      %v6422 = vadd.f32 %v6289, 1.0
      %v6423 = vadd.f32 %v6291, 1.0
      %v6424 = vadd.f32 %v6293, 1.0
      %v6425 = vadd.f32 %v6295, 1.0
      %v6426 = vadd.f32 %v6297, 1.0
      %v6427 = vadd.f32 %v6299, 1.0
      %v6428 = vadd.f32 %v6301, 1.0
      %v6429 = vadd.f32 %v6303, 1.0
      %v6430 = vadd.f32 %v6305, 1.0
      %v6431 = vadd.f32 %v6307, 1.0
      %v6432 = vadd.f32 %v6309, 1.0
      %v6433 = vadd.f32 %v6311, 1.0
      %v6434 = vadd.f32 %v6313, 1.0
      %v6435 = vadd.f32 %v6315, 1.0
      %v6436 = vadd.f32 %v6317, 1.0
      %v6437 = vadd.f32 %v6319, 1.0
      %v6438 = vadd.f32 %v6321, 1.0
      %v6439 = vadd.f32 %v6323, 1.0
      %v6440 = vadd.f32 %v6325, 1.0
      %v6441 = vadd.f32 %v6327, 1.0
      %v6442 = vadd.f32 %v6329, 1.0
      %v6443 = vadd.f32 %v6331, 1.0
      %v6444 = vadd.f32 %v6333, 1.0
      %v6445 = vadd.f32 %v6335, 1.0
      %v6446 = vadd.f32 %v6337, 1.0
      %v6447 = vadd.f32 %v6339, 1.0
      %v6448 = vadd.f32 %v6341, 1.0
      %v6449 = vadd.f32 %v6343, 1.0
      %v6450 = vadd.f32 %v6345, 1.0
      %v6451 = vadd.f32 %v6347, 1.0
      %v6452 = vadd.f32 %v6349, 1.0
      %v6453 = vadd.f32 %v6351, 1.0
      %v6454 = vadd.f32 %v6353, 1.0
      %v6455 = vadd.f32 %v6355, 1.0
      %v6456 = vadd.f32 %v6357, 1.0
      %v6457 = vadd.f32 %v6359, 1.0
      %v6458 = vadd.f32 %v6361, 1.0
      %v6459 = vadd.f32 %v6363, 1.0
      %v6460 = vadd.f32 %v6365, 1.0
      %v6461 = vadd.f32 %v6367, 1.0
      %v6462 = vadd.f32 %v6369, 1.0
      %v6463 = vadd.f32 %v6371, 1.0
      %v6464 = vadd.f32 %v6373, 1.0
      %v6465 = vadd.f32 %v6375, 1.0
      %v6466 = vadd.f32 %v6377, 1.0
      %v6467 = vadd.f32 %v6379, 1.0
      %v6468 = vadd.f32 %v6381, 1.0
      %v6469 = vadd.f32 %v6383, 1.0
      %v6470 = vadd.f32 %v6385, 1.0
      %v6471 = vadd.f32 %v6387, 1.0
      %v6472 = vadd.f32 %v6389, 1.0
      %v6473 = vadd.f32 %v6391, 1.0
      %v6474 = vadd.f32 %v6393, 1.0
      %v6475 = vadd.f32 %v6395, 1.0
      %v6476 = vrcp.pop %v6396
      %v6477 = vmul.f32 1.0, %v6476
      %v6478 = vrcp.pop %v6397
      %v6479 = vmul.f32 1.0, %v6478
      %v6480 = vrcp.pop %v6398
      %v6481 = vmul.f32 1.0, %v6480
      %v6482 = vrcp.pop %v6399
      %v6483 = vmul.f32 1.0, %v6482
      %v6484 = vrcp.pop %v6400
      %v6485 = vmul.f32 1.0, %v6484
      %v6486 = vrcp.pop %v6401
      %v6487 = vmul.f32 1.0, %v6486
      %v6488 = vrcp.pop %v6402
      %v6489 = vmul.f32 1.0, %v6488
      %v6490 = vrcp.pop %v6403
      %v6491 = vmul.f32 1.0, %v6490
      %v6492 = vrcp.pop %v6404
      %v6493 = vmul.f32 1.0, %v6492
      %v6494 = vrcp.pop %v6405
      %v6495 = vmul.f32 1.0, %v6494
      %v6496 = vrcp.pop %v6406
      %v6497 = vmul.f32 1.0, %v6496
      %v6498 = vrcp.pop %v6407
      %v6499 = vmul.f32 1.0, %v6498
      %v6500 = vrcp.pop %v6408
      %v6501 = vmul.f32 1.0, %v6500
      %v6502 = vrcp.pop %v6409
      %v6503 = vmul.f32 1.0, %v6502
      %v6504 = vrcp.pop %v6410
      %v6505 = vmul.f32 1.0, %v6504
      %v6506 = vrcp.pop %v6411
      %v6507 = vmul.f32 1.0, %v6506
      %v6508 = vrcp.pop %v6412
      %v6509 = vmul.f32 1.0, %v6508
      %v6510 = vrcp.pop %v6413
      %v6511 = vmul.f32 1.0, %v6510
      %v6512 = vrcp.pop %v6414
      %v6513 = vmul.f32 1.0, %v6512
      %v6514 = vrcp.pop %v6415
      %v6515 = vmul.f32 1.0, %v6514
      %v6516 = vrcp.pop %v6416
      %v6517 = vmul.f32 1.0, %v6516
      %v6518 = vrcp.pop %v6417
      %v6519 = vmul.f32 1.0, %v6518
      %v6520 = vrcp.pop %v6418
      %v6521 = vmul.f32 1.0, %v6520
      %v6522 = vrcp.pop %v6419
      %v6523 = vmul.f32 1.0, %v6522
      %v6524 = vrcp.pop %v6420
      %v6525 = vmul.f32 1.0, %v6524
      %v6526 = vrcp.pop %v6421
      %v6527 = vmul.f32 1.0, %v6526
      %v6528 = vrcp.pop %v6422
      %v6529 = vmul.f32 1.0, %v6528
      %v6530 = vrcp.pop %v6423
      %v6531 = vmul.f32 1.0, %v6530
      %v6532 = vrcp.pop %v6424
      %v6533 = vmul.f32 1.0, %v6532
      %v6534 = vrcp.pop %v6425
      %v6535 = vmul.f32 1.0, %v6534
      %v6536 = vrcp.pop %v6426
      %v6537 = vmul.f32 1.0, %v6536
      %v6538 = vrcp.pop %v6427
      %v6539 = vmul.f32 1.0, %v6538
      %v6540 = vrcp.pop %v6428
      %v6541 = vmul.f32 1.0, %v6540
      %v6542 = vrcp.pop %v6429
      %v6543 = vmul.f32 1.0, %v6542
      %v6544 = vrcp.pop %v6430
      %v6545 = vmul.f32 1.0, %v6544
      %v6546 = vrcp.pop %v6431
      %v6547 = vmul.f32 1.0, %v6546
      %v6548 = vrcp.pop %v6432
      %v6549 = vmul.f32 1.0, %v6548
      %v6550 = vrcp.pop %v6433
      %v6551 = vmul.f32 1.0, %v6550
      %v6552 = vrcp.pop %v6434
      %v6553 = vmul.f32 1.0, %v6552
      %v6554 = vrcp.pop %v6435
      %v6555 = vmul.f32 1.0, %v6554
      %v6556 = vrcp.pop %v6436
      %v6557 = vmul.f32 1.0, %v6556
      %v6558 = vrcp.pop %v6437
      %v6559 = vmul.f32 1.0, %v6558
      %v6560 = vrcp.pop %v6438
      %v6561 = vmul.f32 1.0, %v6560
      %v6562 = vrcp.pop %v6439
      %v6563 = vmul.f32 1.0, %v6562
      %v6564 = vrcp.pop %v6440
      %v6565 = vmul.f32 1.0, %v6564
      %v6566 = vrcp.pop %v6441
      %v6567 = vmul.f32 1.0, %v6566
      %v6568 = vrcp.pop %v6442
      %v6569 = vmul.f32 1.0, %v6568
      %v6570 = vrcp.pop %v6443
      %v6571 = vmul.f32 1.0, %v6570
      %v6572 = vrcp.pop %v6444
      %v6573 = vmul.f32 1.0, %v6572
      %v6574 = vrcp.pop %v6445
      %v6575 = vmul.f32 1.0, %v6574
      %v6576 = vrcp.pop %v6446
      %v6577 = vmul.f32 1.0, %v6576
      %v6578 = vrcp.pop %v6447
      %v6579 = vmul.f32 1.0, %v6578
      %v6580 = vrcp.pop %v6448
      %v6581 = vmul.f32 1.0, %v6580
      %v6582 = vrcp.pop %v6449
      %v6583 = vmul.f32 1.0, %v6582
      %v6584 = vrcp.pop %v6450
      %v6585 = vmul.f32 1.0, %v6584
      %v6586 = vrcp.pop %v6451
      %v6587 = vmul.f32 1.0, %v6586
      %v6588 = vrcp.pop %v6452
      %v6589 = vmul.f32 1.0, %v6588
      %v6590 = vrcp.pop %v6453
      %v6591 = vmul.f32 1.0, %v6590
      %v6592 = vrcp.pop %v6454
      %v6593 = vmul.f32 1.0, %v6592
      %v6594 = vrcp.pop %v6455
      %v6595 = vmul.f32 1.0, %v6594
      %v6596 = vrcp.pop %v6456
      %v6597 = vmul.f32 1.0, %v6596
      %v6598 = vrcp.pop %v6457
      %v6599 = vmul.f32 1.0, %v6598
      %v6600 = vrcp.pop %v6458
      %v6601 = vmul.f32 1.0, %v6600
      %v6602 = vrcp.pop %v6459
      %v6603 = vmul.f32 1.0, %v6602
      %v6604 = vrcp.pop %v6460
      %v6605 = vmul.f32 1.0, %v6604
      %v6606 = vrcp.pop %v6461
      %v6607 = vmul.f32 1.0, %v6606
      %v6608 = vrcp.pop %v6462
      %v6609 = vmul.f32 1.0, %v6608
      %v6610 = vrcp.pop %v6463
      %v6611 = vmul.f32 1.0, %v6610
      %v6612 = vrcp.pop %v6464
      %v6613 = vmul.f32 1.0, %v6612
      %v6614 = vrcp.pop %v6465
      %v6615 = vmul.f32 1.0, %v6614
      %v6616 = vrcp.pop %v6466
      %v6617 = vmul.f32 1.0, %v6616
      %v6618 = vrcp.pop %v6467
      %v6619 = vmul.f32 1.0, %v6618
      %v6620 = vrcp.pop %v6468
      %v6621 = vmul.f32 1.0, %v6620
      %v6622 = vrcp.pop %v6469
      %v6623 = vmul.f32 1.0, %v6622
      %v6624 = vrcp.pop %v6470
      %v6625 = vmul.f32 1.0, %v6624
      %v6626 = vrcp.pop %v6471
      %v6627 = vmul.f32 1.0, %v6626
      %v6628 = vrcp.pop %v6472
      %v6629 = vmul.f32 1.0, %v6628
      %v6630 = vrcp.pop %v6473
      %v6631 = vmul.f32 1.0, %v6630
      %v6632 = vrcp.pop %v6474
      %v6633 = vmul.f32 1.0, %v6632
      %v6634 = vrcp.pop %v6475
      %v6635 = vmul.f32 1.0, %v6634
      %v6636 = vmul.f32 %v6076, %v6477
      %v6637 = vmul.f32 %v6077, %v6479
      %v6638 = vmul.f32 %v6078, %v6481
      %v6639 = vmul.f32 %v6079, %v6483
      %v6640 = vmul.f32 %v6080, %v6485
      %v6641 = vmul.f32 %v6081, %v6487
      %v6642 = vmul.f32 %v6082, %v6489
      %v6643 = vmul.f32 %v6083, %v6491
      %v6644 = vmul.f32 %v6084, %v6493
      %v6645 = vmul.f32 %v6085, %v6495
      %v6646 = vmul.f32 %v6086, %v6497
      %v6647 = vmul.f32 %v6087, %v6499
      %v6648 = vmul.f32 %v6088, %v6501
      %v6649 = vmul.f32 %v6089, %v6503
      %v6650 = vmul.f32 %v6090, %v6505
      %v6651 = vmul.f32 %v6091, %v6507
      %v6652 = vmul.f32 %v6092, %v6509
      %v6653 = vmul.f32 %v6093, %v6511
      %v6654 = vmul.f32 %v6094, %v6513
      %v6655 = vmul.f32 %v6095, %v6515
      %v6656 = vmul.f32 %v6096, %v6517
      %v6657 = vmul.f32 %v6097, %v6519
      %v6658 = vmul.f32 %v6098, %v6521
      %v6659 = vmul.f32 %v6099, %v6523
      %v6660 = vmul.f32 %v6100, %v6525
      %v6661 = vmul.f32 %v6101, %v6527
      %v6662 = vmul.f32 %v6102, %v6529
      %v6663 = vmul.f32 %v6103, %v6531
      %v6664 = vmul.f32 %v6104, %v6533
      %v6665 = vmul.f32 %v6105, %v6535
      %v6666 = vmul.f32 %v6106, %v6537
      %v6667 = vmul.f32 %v6107, %v6539
      %v6668 = vmul.f32 %v6108, %v6541
      %v6669 = vmul.f32 %v6109, %v6543
      %v6670 = vmul.f32 %v6110, %v6545
      %v6671 = vmul.f32 %v6111, %v6547
      %v6672 = vmul.f32 %v6112, %v6549
      %v6673 = vmul.f32 %v6113, %v6551
      %v6674 = vmul.f32 %v6114, %v6553
      %v6675 = vmul.f32 %v6115, %v6555
      %v6676 = vmul.f32 %v6116, %v6557
      %v6677 = vmul.f32 %v6117, %v6559
      %v6678 = vmul.f32 %v6118, %v6561
      %v6679 = vmul.f32 %v6119, %v6563
      %v6680 = vmul.f32 %v6120, %v6565
      %v6681 = vmul.f32 %v6121, %v6567
      %v6682 = vmul.f32 %v6122, %v6569
      %v6683 = vmul.f32 %v6123, %v6571
      %v6684 = vmul.f32 %v6124, %v6573
      %v6685 = vmul.f32 %v6125, %v6575
      %v6686 = vmul.f32 %v6126, %v6577
      %v6687 = vmul.f32 %v6127, %v6579
      %v6688 = vmul.f32 %v6128, %v6581
      %v6689 = vmul.f32 %v6129, %v6583
      %v6690 = vmul.f32 %v6130, %v6585
      %v6691 = vmul.f32 %v6131, %v6587
      %v6692 = vmul.f32 %v6132, %v6589
      %v6693 = vmul.f32 %v6133, %v6591
      %v6694 = vmul.f32 %v6134, %v6593
      %v6695 = vmul.f32 %v6135, %v6595
      %v6696 = vmul.f32 %v6136, %v6597
      %v6697 = vmul.f32 %v6137, %v6599
      %v6698 = vmul.f32 %v6138, %v6601
      %v6699 = vmul.f32 %v6139, %v6603
      %v6700 = vmul.f32 %v6140, %v6605
      %v6701 = vmul.f32 %v6141, %v6607
      %v6702 = vmul.f32 %v6142, %v6609
      %v6703 = vmul.f32 %v6143, %v6611
      %v6704 = vmul.f32 %v6144, %v6613
      %v6705 = vmul.f32 %v6145, %v6615
      %v6706 = vmul.f32 %v6146, %v6617
      %v6707 = vmul.f32 %v6147, %v6619
      %v6708 = vmul.f32 %v6148, %v6621
      %v6709 = vmul.f32 %v6149, %v6623
      %v6710 = vmul.f32 %v6150, %v6625
      %v6711 = vmul.f32 %v6151, %v6627
      %v6712 = vmul.f32 %v6152, %v6629
      %v6713 = vmul.f32 %v6153, %v6631
      %v6714 = vmul.f32 %v6154, %v6633
      %v6715 = vmul.f32 %v6155, %v6635
      %v6716 = vpack.c.bf16 %v6637, %v6636
      %v6717 = vpack.c.bf16 %v6639, %v6638
      %v6718 = vpack.c.bf16 %v6641, %v6640
      %v6719 = vpack.c.bf16 %v6643, %v6642
      %v6720 = vpack.c.bf16 %v6645, %v6644
      %v6721 = vpack.c.bf16 %v6647, %v6646
      %v6722 = vpack.c.bf16 %v6649, %v6648
      %v6723 = vpack.c.bf16 %v6651, %v6650
      %v6724 = vpack.c.bf16 %v6653, %v6652
      %v6725 = vpack.c.bf16 %v6655, %v6654
      %v6726 = vpack.c.bf16 %v6657, %v6656
      %v6727 = vpack.c.bf16 %v6659, %v6658
      %v6728 = vpack.c.bf16 %v6661, %v6660
      %v6729 = vpack.c.bf16 %v6663, %v6662
      %v6730 = vpack.c.bf16 %v6665, %v6664
      %v6731 = vpack.c.bf16 %v6667, %v6666
      %v6732 = vpack.c.bf16 %v6669, %v6668
      %v6733 = vpack.c.bf16 %v6671, %v6670
      %v6734 = vpack.c.bf16 %v6673, %v6672
      %v6735 = vpack.c.bf16 %v6675, %v6674
      %v6736 = vpack.c.bf16 %v6677, %v6676
      %v6737 = vpack.c.bf16 %v6679, %v6678
      %v6738 = vpack.c.bf16 %v6681, %v6680
      %v6739 = vpack.c.bf16 %v6683, %v6682
      %v6740 = vpack.c.bf16 %v6685, %v6684
      %v6741 = vpack.c.bf16 %v6687, %v6686
      %v6742 = vpack.c.bf16 %v6689, %v6688
      %v6743 = vpack.c.bf16 %v6691, %v6690
      %v6744 = vpack.c.bf16 %v6693, %v6692
      %v6745 = vpack.c.bf16 %v6695, %v6694
      %v6746 = vpack.c.bf16 %v6697, %v6696
      %v6747 = vpack.c.bf16 %v6699, %v6698
      %v6748 = vpack.c.bf16 %v6701, %v6700
      %v6749 = vpack.c.bf16 %v6703, %v6702
      %v6750 = vpack.c.bf16 %v6705, %v6704
      %v6751 = vpack.c.bf16 %v6707, %v6706
      %v6752 = vpack.c.bf16 %v6709, %v6708
      %v6753 = vpack.c.bf16 %v6711, %v6710
      %v6754 = vpack.c.bf16 %v6713, %v6712
      %v6755 = vpack.c.bf16 %v6715, %v6714
      %v6756 = vld [vmem:[%s3] sm:$0xf]
      %v6757 = vld [vmem:[%s3 + $0x4] sm:$0xf]
      %v6758 = vld [vmem:[%s3 + $0x8] sm:$0xf]
      %v6759 = vld [vmem:[%s3 + $0xc] sm:$0xf]
      %v6760 = vld [vmem:[%s4] sm:$0x1]
      %v6762 = vlaneseq
      %v6763 = vshrl.u32 %v6762, 7
      %v6764 = vsub.s32 0, %v6763
      %v6765 = vrot.slane %v6760, %v6764
      %v6771 = vunpack.c.l.b16 %v6756
      %v6772 = vunpack.c.l.b16 %v6757
      %v6773 = vunpack.c.l.b16 %v6758
      %v6774 = vunpack.c.l.b16 %v6759
      %v6775 = vpack.c.b16 %v6772, %v6771
      %v6776 = vpack.c.b16 %v6774, %v6773
      %v6780 = vsel %vm903, %v6716, 0
      %v6783 = vsel %vm903, %v6717, 0
      %v6786 = vsel %vm903, %v6718, 0
      %v6789 = vsel %vm903, %v6719, 0
      %v6792 = vsel %vm903, %v6720, 0
      %v6795 = vsel %vm903, %v6721, 0
      %v6798 = vsel %vm903, %v6722, 0
      %v6801 = vsel %vm903, %v6723, 0
      %v6804 = vsel %vm903, %v6724, 0
      %v6807 = vsel %vm903, %v6725, 0
      %v6810 = vsel %vm903, %v6726, 0
      %v6813 = vsel %vm903, %v6727, 0
      %v6816 = vsel %vm903, %v6728, 0
      %v6819 = vsel %vm903, %v6729, 0
      %v6822 = vsel %vm903, %v6730, 0
      %v6825 = vsel %vm903, %v6731, 0
      %v6828 = vsel %vm903, %v6732, 0
      %v6831 = vsel %vm903, %v6733, 0
      %v6834 = vsel %vm903, %v6734, 0
      %v6837 = vsel %vm903, %v6735, 0
      %v6840 = vsel %vm903, %v6736, 0
      %v6843 = vsel %vm903, %v6737, 0
      %v6846 = vsel %vm903, %v6738, 0
      %v6849 = vsel %vm903, %v6739, 0
      %v6852 = vsel %vm903, %v6740, 0
      %v6855 = vsel %vm903, %v6741, 0
      %v6858 = vsel %vm903, %v6742, 0
      %v6861 = vsel %vm903, %v6743, 0
      %v6864 = vsel %vm903, %v6744, 0
      %v6867 = vsel %vm903, %v6745, 0
      %v6870 = vsel %vm903, %v6746, 0
      %v6873 = vsel %vm903, %v6747, 0
      %v6876 = vsel %vm903, %v6748, 0
      %v6879 = vsel %vm903, %v6749, 0
      %v6882 = vsel %vm903, %v6750, 0
      %v6885 = vsel %vm903, %v6751, 0
      %v6888 = vsel %vm903, %v6752, 0
      %v6891 = vsel %vm903, %v6753, 0
      %v6894 = vsel %vm903, %v6754, 0
      %v6897 = vsel %vm903, %v6755, 0
      %6899 = vmatprep.subr.bf16.mxu0 0
      %6900 = vmatpush1.bf16.msra.mxu0 %v6775
      %6901 = vmatprep.subr.bf16.mxu0 0
      %6902 = vmatpush1.bf16.msra.mxu0 %v6776
      %6903 = vmatprep.subr.bf16.mxu0 0
      %6904 = vmatpush1.bf16.msra.mxu0 0
      %6905 = vmatprep.subr.bf16.mxu0 0
      %6906 = vmatpush1.bf16.msra.mxu0 0
      %6907 = vmatprep.subr.bf16.mxu0 0
      %6908 = vmatpush1.bf16.msra.mxu0 0
      %6909 = vmatprep.subr.bf16.mxu0 0
      %6910 = vmatpush1.bf16.msra.mxu0 0
      %6911 = vmatprep.subr.bf16.mxu0 0
      %6912 = vmatpush1.bf16.msra.mxu0 0
      %6913 = vmatprep.subr.bf16.mxu0 0
      %6914 = vmatpush1.bf16.msra.mxu0 0
      %6915 = vmatprep.subr.bf16.mxu0 0
      %6916 = vmatpush1.bf16.msra.mxu0 0
      %6917 = vmatprep.subr.bf16.mxu0 0
      %6918 = vmatpush1.bf16.msra.mxu0 0
      %6919 = vmatprep.subr.bf16.mxu0 0
      %6920 = vmatpush1.bf16.msra.mxu0 0
      %6921 = vmatprep.subr.bf16.mxu0 0
      %6922 = vmatpush1.bf16.msra.mxu0 0
      %6923 = vmatprep.subr.bf16.mxu0 0
      %6924 = vmatpush1.bf16.msra.mxu0 0
      %6925 = vmatprep.subr.bf16.mxu0 0
      %6926 = vmatpush1.bf16.msra.mxu0 0
      %6927 = vmatprep.subr.bf16.mxu0 0
      %6928 = vmatpush1.bf16.msra.mxu0 0
      %6929 = vmatprep.subr.bf16.mxu0 0
      %6930 = vmatpush1.bf16.msra.mxu0 0
      %6931 = vmatprep.mubr.bf16.mxu0 0
      %6932 = vmatmul.mubr.bf16.gmra.mrb[0].mxu0 %v6780
      %v6933 = vpop.f32.mrb[0].mxu0
      %v6934 = vadd.f32 %v6765, %v6933
      %v6935 = vpop.f32.mrb[0].mxu0
      %v6936 = vpop.f32.mrb[0].mxu0
      %v6937 = vadd.f32 %v6765, %v6936
      %v6938 = vpop.f32.mrb[0].mxu0
      %6939 = vmatprep.mubr.bf16.mxu0 0
      %6940 = vmatmul.mubr.bf16.gmra.mrb[0].mxu0 %v6783
      %v6941 = vpop.f32.mrb[0].mxu0
      %v6942 = vadd.f32 %v6765, %v6941
      %v6943 = vpop.f32.mrb[0].mxu0
      %v6944 = vpop.f32.mrb[0].mxu0
      %v6945 = vadd.f32 %v6765, %v6944
      %v6946 = vpop.f32.mrb[0].mxu0
      %6947 = vmatprep.mubr.bf16.mxu0 0
      %6948 = vmatmul.mubr.bf16.gmra.mrb[0].mxu0 %v6786
      %v6949 = vpop.f32.mrb[0].mxu0
      %v6950 = vadd.f32 %v6765, %v6949
      %v6951 = vpop.f32.mrb[0].mxu0
      %v6952 = vpop.f32.mrb[0].mxu0
      %v6953 = vadd.f32 %v6765, %v6952
      %v6954 = vpop.f32.mrb[0].mxu0
      %6955 = vmatprep.mubr.bf16.mxu0 0
      %6956 = vmatmul.mubr.bf16.gmra.mrb[0].mxu0 %v6789
      %v6957 = vpop.f32.mrb[0].mxu0
      %v6958 = vadd.f32 %v6765, %v6957
      %v6959 = vpop.f32.mrb[0].mxu0
      %v6960 = vpop.f32.mrb[0].mxu0
      %v6961 = vadd.f32 %v6765, %v6960
      %v6962 = vpop.f32.mrb[0].mxu0
      %6963 = vmatprep.mubr.bf16.mxu0 0
      %6964 = vmatmul.mubr.bf16.gmra.mrb[0].mxu0 %v6792
      %v6965 = vpop.f32.mrb[0].mxu0
      %v6966 = vadd.f32 %v6765, %v6965
      %v6967 = vpop.f32.mrb[0].mxu0
      %v6968 = vpop.f32.mrb[0].mxu0
      %v6969 = vadd.f32 %v6765, %v6968
      %v6970 = vpop.f32.mrb[0].mxu0
      %6971 = vmatprep.mubr.bf16.mxu0 0
      %6972 = vmatmul.mubr.bf16.gmra.mrb[0].mxu0 %v6795
      %v6973 = vpop.f32.mrb[0].mxu0
      %v6974 = vadd.f32 %v6765, %v6973
      %v6975 = vpop.f32.mrb[0].mxu0
      %v6976 = vpop.f32.mrb[0].mxu0
      %v6977 = vadd.f32 %v6765, %v6976
      %v6978 = vpop.f32.mrb[0].mxu0
      %6979 = vmatprep.mubr.bf16.mxu0 0
      %6980 = vmatmul.mubr.bf16.gmra.mrb[0].mxu0 %v6798
      %v6981 = vpop.f32.mrb[0].mxu0
      %v6982 = vadd.f32 %v6765, %v6981
      %v6983 = vpop.f32.mrb[0].mxu0
      %v6984 = vpop.f32.mrb[0].mxu0
      %v6985 = vadd.f32 %v6765, %v6984
      %v6986 = vpop.f32.mrb[0].mxu0
      %6987 = vmatprep.mubr.bf16.mxu0 0
      %6988 = vmatmul.mubr.bf16.gmra.mrb[0].mxu0 %v6801
      %v6989 = vpop.f32.mrb[0].mxu0
      %v6990 = vadd.f32 %v6765, %v6989
      %v6991 = vpop.f32.mrb[0].mxu0
      %v6992 = vpop.f32.mrb[0].mxu0
      %v6993 = vadd.f32 %v6765, %v6992
      %v6994 = vpop.f32.mrb[0].mxu0
      %6995 = vmatprep.mubr.bf16.mxu0 0
      %6996 = vmatmul.mubr.bf16.gmra.mrb[0].mxu0 %v6804
      %v6997 = vpop.f32.mrb[0].mxu0
      %v6998 = vadd.f32 %v6765, %v6997
      %v6999 = vpop.f32.mrb[0].mxu0
      %v7000 = vpop.f32.mrb[0].mxu0
      %v7001 = vadd.f32 %v6765, %v7000
      %v7002 = vpop.f32.mrb[0].mxu0
      %7003 = vmatprep.mubr.bf16.mxu0 0
      %7004 = vmatmul.mubr.bf16.gmra.mrb[0].mxu0 %v6807
      %v7005 = vpop.f32.mrb[0].mxu0
      %v7006 = vadd.f32 %v6765, %v7005
      %v7007 = vpop.f32.mrb[0].mxu0
      %v7008 = vpop.f32.mrb[0].mxu0
      %v7009 = vadd.f32 %v6765, %v7008
      %v7010 = vpop.f32.mrb[0].mxu0
      %7011 = vmatprep.mubr.bf16.mxu0 0
      %7012 = vmatmul.mubr.bf16.gmra.mrb[0].mxu0 %v6810
      %v7013 = vpop.f32.mrb[0].mxu0
      %v7014 = vadd.f32 %v6765, %v7013
      %v7015 = vpop.f32.mrb[0].mxu0
      %v7016 = vpop.f32.mrb[0].mxu0
      %v7017 = vadd.f32 %v6765, %v7016
      %v7018 = vpop.f32.mrb[0].mxu0
      %7019 = vmatprep.mubr.bf16.mxu0 0
      %7020 = vmatmul.mubr.bf16.gmra.mrb[0].mxu0 %v6813
      %v7021 = vpop.f32.mrb[0].mxu0
      %v7022 = vadd.f32 %v6765, %v7021
      %v7023 = vpop.f32.mrb[0].mxu0
      %v7024 = vpop.f32.mrb[0].mxu0
      %v7025 = vadd.f32 %v6765, %v7024
      %v7026 = vpop.f32.mrb[0].mxu0
      %7027 = vmatprep.mubr.bf16.mxu0 0
      %7028 = vmatmul.mubr.bf16.gmra.mrb[0].mxu0 %v6816
      %v7029 = vpop.f32.mrb[0].mxu0
      %v7030 = vadd.f32 %v6765, %v7029
      %v7031 = vpop.f32.mrb[0].mxu0
      %v7032 = vpop.f32.mrb[0].mxu0
      %v7033 = vadd.f32 %v6765, %v7032
      %v7034 = vpop.f32.mrb[0].mxu0
      %7035 = vmatprep.mubr.bf16.mxu0 0
      %7036 = vmatmul.mubr.bf16.gmra.mrb[0].mxu0 %v6819
      %v7037 = vpop.f32.mrb[0].mxu0
      %v7038 = vadd.f32 %v6765, %v7037
      %v7039 = vpop.f32.mrb[0].mxu0
      %v7040 = vpop.f32.mrb[0].mxu0
      %v7041 = vadd.f32 %v6765, %v7040
      %v7042 = vpop.f32.mrb[0].mxu0
      %7043 = vmatprep.mubr.bf16.mxu0 0
      %7044 = vmatmul.mubr.bf16.gmra.mrb[0].mxu0 %v6822
      %v7045 = vpop.f32.mrb[0].mxu0
      %v7046 = vadd.f32 %v6765, %v7045
      %v7047 = vpop.f32.mrb[0].mxu0
      %v7048 = vpop.f32.mrb[0].mxu0
      %v7049 = vadd.f32 %v6765, %v7048
      %v7050 = vpop.f32.mrb[0].mxu0
      %7051 = vmatprep.mubr.bf16.mxu0 0
      %7052 = vmatmul.mubr.bf16.gmra.mrb[0].mxu0 %v6825
      %v7053 = vpop.f32.mrb[0].mxu0
      %v7054 = vadd.f32 %v6765, %v7053
      %v7055 = vpop.f32.mrb[0].mxu0
      %v7056 = vpop.f32.mrb[0].mxu0
      %v7057 = vadd.f32 %v6765, %v7056
      %v7058 = vpop.f32.mrb[0].mxu0
      %7059 = vmatprep.mubr.bf16.mxu0 0
      %7060 = vmatmul.mubr.bf16.gmra.mrb[0].mxu0 %v6828
      %v7061 = vpop.f32.mrb[0].mxu0
      %v7062 = vadd.f32 %v6765, %v7061
      %v7063 = vpop.f32.mrb[0].mxu0
      %v7064 = vpop.f32.mrb[0].mxu0
      %v7065 = vadd.f32 %v6765, %v7064
      %v7066 = vpop.f32.mrb[0].mxu0
      %7067 = vmatprep.mubr.bf16.mxu0 0
      %7068 = vmatmul.mubr.bf16.gmra.mrb[0].mxu0 %v6831
      %v7069 = vpop.f32.mrb[0].mxu0
      %v7070 = vadd.f32 %v6765, %v7069
      %v7071 = vpop.f32.mrb[0].mxu0
      %v7072 = vpop.f32.mrb[0].mxu0
      %v7073 = vadd.f32 %v6765, %v7072
      %v7074 = vpop.f32.mrb[0].mxu0
      %7075 = vmatprep.mubr.bf16.mxu0 0
      %7076 = vmatmul.mubr.bf16.gmra.mrb[0].mxu0 %v6834
      %v7077 = vpop.f32.mrb[0].mxu0
      %v7078 = vadd.f32 %v6765, %v7077
      %v7079 = vpop.f32.mrb[0].mxu0
      %v7080 = vpop.f32.mrb[0].mxu0
      %v7081 = vadd.f32 %v6765, %v7080
      %v7082 = vpop.f32.mrb[0].mxu0
      %7083 = vmatprep.mubr.bf16.mxu0 0
      %7084 = vmatmul.mubr.bf16.gmra.mrb[0].mxu0 %v6837
      %v7085 = vpop.f32.mrb[0].mxu0
      %v7086 = vadd.f32 %v6765, %v7085
      %v7087 = vpop.f32.mrb[0].mxu0
      %v7088 = vpop.f32.mrb[0].mxu0
      %v7089 = vadd.f32 %v6765, %v7088
      %v7090 = vpop.f32.mrb[0].mxu0
      %7091 = vmatprep.mubr.bf16.mxu0 0
      %7092 = vmatmul.mubr.bf16.gmra.mrb[0].mxu0 %v6840
      %v7093 = vpop.f32.mrb[0].mxu0
      %v7094 = vadd.f32 %v6765, %v7093
      %v7095 = vpop.f32.mrb[0].mxu0
      %v7096 = vpop.f32.mrb[0].mxu0
      %v7097 = vadd.f32 %v6765, %v7096
      %v7098 = vpop.f32.mrb[0].mxu0
      %7099 = vmatprep.mubr.bf16.mxu0 0
      %7100 = vmatmul.mubr.bf16.gmra.mrb[0].mxu0 %v6843
      %v7101 = vpop.f32.mrb[0].mxu0
      %v7102 = vadd.f32 %v6765, %v7101
      %v7103 = vpop.f32.mrb[0].mxu0
      %v7104 = vpop.f32.mrb[0].mxu0
      %v7105 = vadd.f32 %v6765, %v7104
      %v7106 = vpop.f32.mrb[0].mxu0
      %7107 = vmatprep.mubr.bf16.mxu0 0
      %7108 = vmatmul.mubr.bf16.gmra.mrb[0].mxu0 %v6846
      %v7109 = vpop.f32.mrb[0].mxu0
      %v7110 = vadd.f32 %v6765, %v7109
      %v7111 = vpop.f32.mrb[0].mxu0
      %v7112 = vpop.f32.mrb[0].mxu0
      %v7113 = vadd.f32 %v6765, %v7112
      %v7114 = vpop.f32.mrb[0].mxu0
      %7115 = vmatprep.mubr.bf16.mxu0 0
      %7116 = vmatmul.mubr.bf16.gmra.mrb[0].mxu0 %v6849
      %v7117 = vpop.f32.mrb[0].mxu0
      %v7118 = vadd.f32 %v6765, %v7117
      %v7119 = vpop.f32.mrb[0].mxu0
      %v7120 = vpop.f32.mrb[0].mxu0
      %v7121 = vadd.f32 %v6765, %v7120
      %v7122 = vpop.f32.mrb[0].mxu0
      %7123 = vmatprep.mubr.bf16.mxu0 0
      %7124 = vmatmul.mubr.bf16.gmra.mrb[0].mxu0 %v6852
      %v7125 = vpop.f32.mrb[0].mxu0
      %v7126 = vadd.f32 %v6765, %v7125
      %v7127 = vpop.f32.mrb[0].mxu0
      %v7128 = vpop.f32.mrb[0].mxu0
      %v7129 = vadd.f32 %v6765, %v7128
      %v7130 = vpop.f32.mrb[0].mxu0
      %7131 = vmatprep.mubr.bf16.mxu0 0
      %7132 = vmatmul.mubr.bf16.gmra.mrb[0].mxu0 %v6855
      %v7133 = vpop.f32.mrb[0].mxu0
      %v7134 = vadd.f32 %v6765, %v7133
      %v7135 = vpop.f32.mrb[0].mxu0
      %v7136 = vpop.f32.mrb[0].mxu0
      %v7137 = vadd.f32 %v6765, %v7136
      %v7138 = vpop.f32.mrb[0].mxu0
      %7139 = vmatprep.mubr.bf16.mxu0 0
      %7140 = vmatmul.mubr.bf16.gmra.mrb[0].mxu0 %v6858
      %v7141 = vpop.f32.mrb[0].mxu0
      %v7142 = vadd.f32 %v6765, %v7141
      %v7143 = vpop.f32.mrb[0].mxu0
      %v7144 = vpop.f32.mrb[0].mxu0
      %v7145 = vadd.f32 %v6765, %v7144
      %v7146 = vpop.f32.mrb[0].mxu0
      %7147 = vmatprep.mubr.bf16.mxu0 0
      %7148 = vmatmul.mubr.bf16.gmra.mrb[0].mxu0 %v6861
      %v7149 = vpop.f32.mrb[0].mxu0
      %v7150 = vadd.f32 %v6765, %v7149
      %v7151 = vpop.f32.mrb[0].mxu0
      %v7152 = vpop.f32.mrb[0].mxu0
      %v7153 = vadd.f32 %v6765, %v7152
      %v7154 = vpop.f32.mrb[0].mxu0
      %7155 = vmatprep.mubr.bf16.mxu0 0
      %7156 = vmatmul.mubr.bf16.gmra.mrb[0].mxu0 %v6864
      %v7157 = vpop.f32.mrb[0].mxu0
      %v7158 = vadd.f32 %v6765, %v7157
      %v7159 = vpop.f32.mrb[0].mxu0
      %v7160 = vpop.f32.mrb[0].mxu0
      %v7161 = vadd.f32 %v6765, %v7160
      %v7162 = vpop.f32.mrb[0].mxu0
      %7163 = vmatprep.mubr.bf16.mxu0 0
      %7164 = vmatmul.mubr.bf16.gmra.mrb[0].mxu0 %v6867
      %v7165 = vpop.f32.mrb[0].mxu0
      %v7166 = vadd.f32 %v6765, %v7165
      %v7167 = vpop.f32.mrb[0].mxu0
      %v7168 = vpop.f32.mrb[0].mxu0
      %v7169 = vadd.f32 %v6765, %v7168
      %v7170 = vpop.f32.mrb[0].mxu0
      %7171 = vmatprep.mubr.bf16.mxu0 0
      %7172 = vmatmul.mubr.bf16.gmra.mrb[0].mxu0 %v6870
      %v7173 = vpop.f32.mrb[0].mxu0
      %v7174 = vadd.f32 %v6765, %v7173
      %v7175 = vpop.f32.mrb[0].mxu0
      %v7176 = vpop.f32.mrb[0].mxu0
      %v7177 = vadd.f32 %v6765, %v7176
      %v7178 = vpop.f32.mrb[0].mxu0
      %7179 = vmatprep.mubr.bf16.mxu0 0
      %7180 = vmatmul.mubr.bf16.gmra.mrb[0].mxu0 %v6873
      %v7181 = vpop.f32.mrb[0].mxu0
      %v7182 = vadd.f32 %v6765, %v7181
      %v7183 = vpop.f32.mrb[0].mxu0
      %v7184 = vpop.f32.mrb[0].mxu0
      %v7185 = vadd.f32 %v6765, %v7184
      %v7186 = vpop.f32.mrb[0].mxu0
      %7187 = vmatprep.mubr.bf16.mxu0 0
      %7188 = vmatmul.mubr.bf16.gmra.mrb[0].mxu0 %v6876
      %v7189 = vpop.f32.mrb[0].mxu0
      %v7190 = vadd.f32 %v6765, %v7189
      %v7191 = vpop.f32.mrb[0].mxu0
      %v7192 = vpop.f32.mrb[0].mxu0
      %v7193 = vadd.f32 %v6765, %v7192
      %v7194 = vpop.f32.mrb[0].mxu0
      %7195 = vmatprep.mubr.bf16.mxu0 0
      %7196 = vmatmul.mubr.bf16.gmra.mrb[0].mxu0 %v6879
      %v7197 = vpop.f32.mrb[0].mxu0
      %v7198 = vadd.f32 %v6765, %v7197
      %v7199 = vpop.f32.mrb[0].mxu0
      %v7200 = vpop.f32.mrb[0].mxu0
      %v7201 = vadd.f32 %v6765, %v7200
      %v7202 = vpop.f32.mrb[0].mxu0
      %7203 = vmatprep.mubr.bf16.mxu0 0
      %7204 = vmatmul.mubr.bf16.gmra.mrb[0].mxu0 %v6882
      %v7205 = vpop.f32.mrb[0].mxu0
      %v7206 = vadd.f32 %v6765, %v7205
      %v7207 = vpop.f32.mrb[0].mxu0
      %v7208 = vpop.f32.mrb[0].mxu0
      %v7209 = vadd.f32 %v6765, %v7208
      %v7210 = vpop.f32.mrb[0].mxu0
      %7211 = vmatprep.mubr.bf16.mxu0 0
      %7212 = vmatmul.mubr.bf16.gmra.mrb[0].mxu0 %v6885
      %v7213 = vpop.f32.mrb[0].mxu0
      %v7214 = vadd.f32 %v6765, %v7213
      %v7215 = vpop.f32.mrb[0].mxu0
      %v7216 = vpop.f32.mrb[0].mxu0
      %v7217 = vadd.f32 %v6765, %v7216
      %v7218 = vpop.f32.mrb[0].mxu0
      %7219 = vmatprep.mubr.bf16.mxu0 0
      %7220 = vmatmul.mubr.bf16.gmra.mrb[0].mxu0 %v6888
      %v7221 = vpop.f32.mrb[0].mxu0
      %v7222 = vadd.f32 %v6765, %v7221
      %v7223 = vpop.f32.mrb[0].mxu0
      %v7224 = vpop.f32.mrb[0].mxu0
      %v7225 = vadd.f32 %v6765, %v7224
      %v7226 = vpop.f32.mrb[0].mxu0
      %7227 = vmatprep.mubr.bf16.mxu0 0
      %7228 = vmatmul.mubr.bf16.gmra.mrb[0].mxu0 %v6891
      %v7229 = vpop.f32.mrb[0].mxu0
      %v7230 = vadd.f32 %v6765, %v7229
      %v7231 = vpop.f32.mrb[0].mxu0
      %v7232 = vpop.f32.mrb[0].mxu0
      %v7233 = vadd.f32 %v6765, %v7232
      %v7234 = vpop.f32.mrb[0].mxu0
      %7235 = vmatprep.mubr.bf16.mxu0 0
      %7236 = vmatmul.mubr.bf16.gmra.mrb[0].mxu0 %v6894
      %v7237 = vpop.f32.mrb[0].mxu0
      %v7238 = vadd.f32 %v6765, %v7237
      %v7239 = vpop.f32.mrb[0].mxu0
      %v7240 = vpop.f32.mrb[0].mxu0
      %v7241 = vadd.f32 %v6765, %v7240
      %v7242 = vpop.f32.mrb[0].mxu0
      %7243 = vmatprep.mubr.bf16.mxu0 0
      %7244 = vmatmul.mubr.bf16.gmra.mrb[0].mxu0 %v6897
      %v7245 = vpop.f32.mrb[0].mxu0
      %v7246 = vadd.f32 %v6765, %v7245
      %v7247 = vpop.f32.mrb[0].mxu0
      %v7248 = vpop.f32.mrb[0].mxu0
      %v7249 = vadd.f32 %v6765, %v7248
      %v7250 = vpop.f32.mrb[0].mxu0
      %7251 = vdwg.mxu0
      %v7252 = vxor.u32 %v6934, 2147483648
      %v7253 = vxor.u32 %v6937, 2147483648
      %v7254 = vxor.u32 %v6942, 2147483648
      %v7255 = vxor.u32 %v6945, 2147483648
      %v7256 = vxor.u32 %v6950, 2147483648
      %v7257 = vxor.u32 %v6953, 2147483648
      %v7258 = vxor.u32 %v6958, 2147483648
      %v7259 = vxor.u32 %v6961, 2147483648
      %v7260 = vxor.u32 %v6966, 2147483648
      %v7261 = vxor.u32 %v6969, 2147483648
      %v7262 = vxor.u32 %v6974, 2147483648
      %v7263 = vxor.u32 %v6977, 2147483648
      %v7264 = vxor.u32 %v6982, 2147483648
      %v7265 = vxor.u32 %v6985, 2147483648
      %v7266 = vxor.u32 %v6990, 2147483648
      %v7267 = vxor.u32 %v6993, 2147483648
      %v7268 = vxor.u32 %v6998, 2147483648
      %v7269 = vxor.u32 %v7001, 2147483648
      %v7270 = vxor.u32 %v7006, 2147483648
      %v7271 = vxor.u32 %v7009, 2147483648
      %v7272 = vxor.u32 %v7014, 2147483648
      %v7273 = vxor.u32 %v7017, 2147483648
      %v7274 = vxor.u32 %v7022, 2147483648
      %v7275 = vxor.u32 %v7025, 2147483648
      %v7276 = vxor.u32 %v7030, 2147483648
      %v7277 = vxor.u32 %v7033, 2147483648
      %v7278 = vxor.u32 %v7038, 2147483648
      %v7279 = vxor.u32 %v7041, 2147483648
      %v7280 = vxor.u32 %v7046, 2147483648
      %v7281 = vxor.u32 %v7049, 2147483648
      %v7282 = vxor.u32 %v7054, 2147483648
      %v7283 = vxor.u32 %v7057, 2147483648
      %v7284 = vxor.u32 %v7062, 2147483648
      %v7285 = vxor.u32 %v7065, 2147483648
      %v7286 = vxor.u32 %v7070, 2147483648
      %v7287 = vxor.u32 %v7073, 2147483648
      %v7288 = vxor.u32 %v7078, 2147483648
      %v7289 = vxor.u32 %v7081, 2147483648
      %v7290 = vxor.u32 %v7086, 2147483648
      %v7291 = vxor.u32 %v7089, 2147483648
      %v7292 = vxor.u32 %v7094, 2147483648
      %v7293 = vxor.u32 %v7097, 2147483648
      %v7294 = vxor.u32 %v7102, 2147483648
      %v7295 = vxor.u32 %v7105, 2147483648
      %v7296 = vxor.u32 %v7110, 2147483648
      %v7297 = vxor.u32 %v7113, 2147483648
      %v7298 = vxor.u32 %v7118, 2147483648
      %v7299 = vxor.u32 %v7121, 2147483648
      %v7300 = vxor.u32 %v7126, 2147483648
      %v7301 = vxor.u32 %v7129, 2147483648
      %v7302 = vxor.u32 %v7134, 2147483648
      %v7303 = vxor.u32 %v7137, 2147483648
      %v7304 = vxor.u32 %v7142, 2147483648
      %v7305 = vxor.u32 %v7145, 2147483648
      %v7306 = vxor.u32 %v7150, 2147483648
      %v7307 = vxor.u32 %v7153, 2147483648
      %v7308 = vxor.u32 %v7158, 2147483648
      %v7309 = vxor.u32 %v7161, 2147483648
      %v7310 = vxor.u32 %v7166, 2147483648
      %v7311 = vxor.u32 %v7169, 2147483648
      %v7312 = vxor.u32 %v7174, 2147483648
      %v7313 = vxor.u32 %v7177, 2147483648
      %v7314 = vxor.u32 %v7182, 2147483648
      %v7315 = vxor.u32 %v7185, 2147483648
      %v7316 = vxor.u32 %v7190, 2147483648
      %v7317 = vxor.u32 %v7193, 2147483648
      %v7318 = vxor.u32 %v7198, 2147483648
      %v7319 = vxor.u32 %v7201, 2147483648
      %v7320 = vxor.u32 %v7206, 2147483648
      %v7321 = vxor.u32 %v7209, 2147483648
      %v7322 = vxor.u32 %v7214, 2147483648
      %v7323 = vxor.u32 %v7217, 2147483648
      %v7324 = vxor.u32 %v7222, 2147483648
      %v7325 = vxor.u32 %v7225, 2147483648
      %v7326 = vxor.u32 %v7230, 2147483648
      %v7327 = vxor.u32 %v7233, 2147483648
      %v7328 = vxor.u32 %v7238, 2147483648
      %v7329 = vxor.u32 %v7241, 2147483648
      %v7330 = vxor.u32 %v7246, 2147483648
      %v7331 = vxor.u32 %v7249, 2147483648
      %v7332 = vmul.f32 %v7252, 1.442695
      %v7333 = vpow.pop %v7332
      %v7334 = vmul.f32 %v7253, 1.442695
      %v7335 = vpow.pop %v7334
      %v7336 = vmul.f32 %v7254, 1.442695
      %v7337 = vpow.pop %v7336
      %v7338 = vmul.f32 %v7255, 1.442695
      %v7339 = vpow.pop %v7338
      %v7340 = vmul.f32 %v7256, 1.442695
      %v7341 = vpow.pop %v7340
      %v7342 = vmul.f32 %v7257, 1.442695
      %v7343 = vpow.pop %v7342
      %v7344 = vmul.f32 %v7258, 1.442695
      %v7345 = vpow.pop %v7344
      %v7346 = vmul.f32 %v7259, 1.442695
      %v7347 = vpow.pop %v7346
      %v7348 = vmul.f32 %v7260, 1.442695
      %v7349 = vpow.pop %v7348
      %v7350 = vmul.f32 %v7261, 1.442695
      %v7351 = vpow.pop %v7350
      %v7352 = vmul.f32 %v7262, 1.442695
      %v7353 = vpow.pop %v7352
      %v7354 = vmul.f32 %v7263, 1.442695
      %v7355 = vpow.pop %v7354
      %v7356 = vmul.f32 %v7264, 1.442695
      %v7357 = vpow.pop %v7356
      %v7358 = vmul.f32 %v7265, 1.442695
      %v7359 = vpow.pop %v7358
      %v7360 = vmul.f32 %v7266, 1.442695
      %v7361 = vpow.pop %v7360
      %v7362 = vmul.f32 %v7267, 1.442695
      %v7363 = vpow.pop %v7362
      %v7364 = vmul.f32 %v7268, 1.442695
      %v7365 = vpow.pop %v7364
      %v7366 = vmul.f32 %v7269, 1.442695
      %v7367 = vpow.pop %v7366
      %v7368 = vmul.f32 %v7270, 1.442695
      %v7369 = vpow.pop %v7368
      %v7370 = vmul.f32 %v7271, 1.442695
      %v7371 = vpow.pop %v7370
      %v7372 = vmul.f32 %v7272, 1.442695
      %v7373 = vpow.pop %v7372
      %v7374 = vmul.f32 %v7273, 1.442695
      %v7375 = vpow.pop %v7374
      %v7376 = vmul.f32 %v7274, 1.442695
      %v7377 = vpow.pop %v7376
      %v7378 = vmul.f32 %v7275, 1.442695
      %v7379 = vpow.pop %v7378
      %v7380 = vmul.f32 %v7276, 1.442695
      %v7381 = vpow.pop %v7380
      %v7382 = vmul.f32 %v7277, 1.442695
      %v7383 = vpow.pop %v7382
      %v7384 = vmul.f32 %v7278, 1.442695
      %v7385 = vpow.pop %v7384
      %v7386 = vmul.f32 %v7279, 1.442695
      %v7387 = vpow.pop %v7386
      %v7388 = vmul.f32 %v7280, 1.442695
      %v7389 = vpow.pop %v7388
      %v7390 = vmul.f32 %v7281, 1.442695
      %v7391 = vpow.pop %v7390
      %v7392 = vmul.f32 %v7282, 1.442695
      %v7393 = vpow.pop %v7392
      %v7394 = vmul.f32 %v7283, 1.442695
      %v7395 = vpow.pop %v7394
      %v7396 = vmul.f32 %v7284, 1.442695
      %v7397 = vpow.pop %v7396
      %v7398 = vmul.f32 %v7285, 1.442695
      %v7399 = vpow.pop %v7398
      %v7400 = vmul.f32 %v7286, 1.442695
      %v7401 = vpow.pop %v7400
      %v7402 = vmul.f32 %v7287, 1.442695
      %v7403 = vpow.pop %v7402
      %v7404 = vmul.f32 %v7288, 1.442695
      %v7405 = vpow.pop %v7404
      %v7406 = vmul.f32 %v7289, 1.442695
      %v7407 = vpow.pop %v7406
      %v7408 = vmul.f32 %v7290, 1.442695
      %v7409 = vpow.pop %v7408
      %v7410 = vmul.f32 %v7291, 1.442695
      %v7411 = vpow.pop %v7410
      %v7412 = vmul.f32 %v7292, 1.442695
      %v7413 = vpow.pop %v7412
      %v7414 = vmul.f32 %v7293, 1.442695
      %v7415 = vpow.pop %v7414
      %v7416 = vmul.f32 %v7294, 1.442695
      %v7417 = vpow.pop %v7416
      %v7418 = vmul.f32 %v7295, 1.442695
      %v7419 = vpow.pop %v7418
      %v7420 = vmul.f32 %v7296, 1.442695
      %v7421 = vpow.pop %v7420
      %v7422 = vmul.f32 %v7297, 1.442695
      %v7423 = vpow.pop %v7422
      %v7424 = vmul.f32 %v7298, 1.442695
      %v7425 = vpow.pop %v7424
      %v7426 = vmul.f32 %v7299, 1.442695
      %v7427 = vpow.pop %v7426
      %v7428 = vmul.f32 %v7300, 1.442695
      %v7429 = vpow.pop %v7428
      %v7430 = vmul.f32 %v7301, 1.442695
      %v7431 = vpow.pop %v7430
      %v7432 = vmul.f32 %v7302, 1.442695
      %v7433 = vpow.pop %v7432
      %v7434 = vmul.f32 %v7303, 1.442695
      %v7435 = vpow.pop %v7434
      %v7436 = vmul.f32 %v7304, 1.442695
      %v7437 = vpow.pop %v7436
      %v7438 = vmul.f32 %v7305, 1.442695
      %v7439 = vpow.pop %v7438
      %v7440 = vmul.f32 %v7306, 1.442695
      %v7441 = vpow.pop %v7440
      %v7442 = vmul.f32 %v7307, 1.442695
      %v7443 = vpow.pop %v7442
      %v7444 = vmul.f32 %v7308, 1.442695
      %v7445 = vpow.pop %v7444
      %v7446 = vmul.f32 %v7309, 1.442695
      %v7447 = vpow.pop %v7446
      %v7448 = vmul.f32 %v7310, 1.442695
      %v7449 = vpow.pop %v7448
      %v7450 = vmul.f32 %v7311, 1.442695
      %v7451 = vpow.pop %v7450
      %v7452 = vmul.f32 %v7312, 1.442695
      %v7453 = vpow.pop %v7452
      %v7454 = vmul.f32 %v7313, 1.442695
      %v7455 = vpow.pop %v7454
      %v7456 = vmul.f32 %v7314, 1.442695
      %v7457 = vpow.pop %v7456
      %v7458 = vmul.f32 %v7315, 1.442695
      %v7459 = vpow.pop %v7458
      %v7460 = vmul.f32 %v7316, 1.442695
      %v7461 = vpow.pop %v7460
      %v7462 = vmul.f32 %v7317, 1.442695
      %v7463 = vpow.pop %v7462
      %v7464 = vmul.f32 %v7318, 1.442695
      %v7465 = vpow.pop %v7464
      %v7466 = vmul.f32 %v7319, 1.442695
      %v7467 = vpow.pop %v7466
      %v7468 = vmul.f32 %v7320, 1.442695
      %v7469 = vpow.pop %v7468
      %v7470 = vmul.f32 %v7321, 1.442695
      %v7471 = vpow.pop %v7470
      %v7472 = vmul.f32 %v7322, 1.442695
      %v7473 = vpow.pop %v7472
      %v7474 = vmul.f32 %v7323, 1.442695
      %v7475 = vpow.pop %v7474
      %v7476 = vmul.f32 %v7324, 1.442695
      %v7477 = vpow.pop %v7476
      %v7478 = vmul.f32 %v7325, 1.442695
      %v7479 = vpow.pop %v7478
      %v7480 = vmul.f32 %v7326, 1.442695
      %v7481 = vpow.pop %v7480
      %v7482 = vmul.f32 %v7327, 1.442695
      %v7483 = vpow.pop %v7482
      %v7484 = vmul.f32 %v7328, 1.442695
      %v7485 = vpow.pop %v7484
      %v7486 = vmul.f32 %v7329, 1.442695
      %v7487 = vpow.pop %v7486
      %v7488 = vmul.f32 %v7330, 1.442695
      %v7489 = vpow.pop %v7488
      %v7490 = vmul.f32 %v7331, 1.442695
      %v7491 = vpow.pop %v7490
      %v7492 = vadd.f32 %v7333, 1.0
      %v7493 = vadd.f32 %v7335, 1.0
      %v7494 = vadd.f32 %v7337, 1.0
      %v7495 = vadd.f32 %v7339, 1.0
      %v7496 = vadd.f32 %v7341, 1.0
      %v7497 = vadd.f32 %v7343, 1.0
      %v7498 = vadd.f32 %v7345, 1.0
      %v7499 = vadd.f32 %v7347, 1.0
      %v7500 = vadd.f32 %v7349, 1.0
      %v7501 = vadd.f32 %v7351, 1.0
      %v7502 = vadd.f32 %v7353, 1.0
      %v7503 = vadd.f32 %v7355, 1.0
      %v7504 = vadd.f32 %v7357, 1.0
      %v7505 = vadd.f32 %v7359, 1.0
      %v7506 = vadd.f32 %v7361, 1.0
      %v7507 = vadd.f32 %v7363, 1.0
      %v7508 = vadd.f32 %v7365, 1.0
      %v7509 = vadd.f32 %v7367, 1.0
      %v7510 = vadd.f32 %v7369, 1.0
      %v7511 = vadd.f32 %v7371, 1.0
      %v7512 = vadd.f32 %v7373, 1.0
      %v7513 = vadd.f32 %v7375, 1.0
      %v7514 = vadd.f32 %v7377, 1.0
      %v7515 = vadd.f32 %v7379, 1.0
      %v7516 = vadd.f32 %v7381, 1.0
      %v7517 = vadd.f32 %v7383, 1.0
      %v7518 = vadd.f32 %v7385, 1.0
      %v7519 = vadd.f32 %v7387, 1.0
      %v7520 = vadd.f32 %v7389, 1.0
      %v7521 = vadd.f32 %v7391, 1.0
      %v7522 = vadd.f32 %v7393, 1.0
      %v7523 = vadd.f32 %v7395, 1.0
      %v7524 = vadd.f32 %v7397, 1.0
      %v7525 = vadd.f32 %v7399, 1.0
      %v7526 = vadd.f32 %v7401, 1.0
      %v7527 = vadd.f32 %v7403, 1.0
      %v7528 = vadd.f32 %v7405, 1.0
      %v7529 = vadd.f32 %v7407, 1.0
      %v7530 = vadd.f32 %v7409, 1.0
      %v7531 = vadd.f32 %v7411, 1.0
      %v7532 = vadd.f32 %v7413, 1.0
      %v7533 = vadd.f32 %v7415, 1.0
      %v7534 = vadd.f32 %v7417, 1.0
      %v7535 = vadd.f32 %v7419, 1.0
      %v7536 = vadd.f32 %v7421, 1.0
      %v7537 = vadd.f32 %v7423, 1.0
      %v7538 = vadd.f32 %v7425, 1.0
      %v7539 = vadd.f32 %v7427, 1.0
      %v7540 = vadd.f32 %v7429, 1.0
      %v7541 = vadd.f32 %v7431, 1.0
      %v7542 = vadd.f32 %v7433, 1.0
      %v7543 = vadd.f32 %v7435, 1.0
      %v7544 = vadd.f32 %v7437, 1.0
      %v7545 = vadd.f32 %v7439, 1.0
      %v7546 = vadd.f32 %v7441, 1.0
      %v7547 = vadd.f32 %v7443, 1.0
      %v7548 = vadd.f32 %v7445, 1.0
      %v7549 = vadd.f32 %v7447, 1.0
      %v7550 = vadd.f32 %v7449, 1.0
      %v7551 = vadd.f32 %v7451, 1.0
      %v7552 = vadd.f32 %v7453, 1.0
      %v7553 = vadd.f32 %v7455, 1.0
      %v7554 = vadd.f32 %v7457, 1.0
      %v7555 = vadd.f32 %v7459, 1.0
      %v7556 = vadd.f32 %v7461, 1.0
      %v7557 = vadd.f32 %v7463, 1.0
      %v7558 = vadd.f32 %v7465, 1.0
      %v7559 = vadd.f32 %v7467, 1.0
      %v7560 = vadd.f32 %v7469, 1.0
      %v7561 = vadd.f32 %v7471, 1.0
      %v7562 = vadd.f32 %v7473, 1.0
      %v7563 = vadd.f32 %v7475, 1.0
      %v7564 = vadd.f32 %v7477, 1.0
      %v7565 = vadd.f32 %v7479, 1.0
      %v7566 = vadd.f32 %v7481, 1.0
      %v7567 = vadd.f32 %v7483, 1.0
      %v7568 = vadd.f32 %v7485, 1.0
      %v7569 = vadd.f32 %v7487, 1.0
      %v7570 = vadd.f32 %v7489, 1.0
      %v7571 = vadd.f32 %v7491, 1.0
      %v7572 = vrcp.pop %v7492
      %v7573 = vmul.f32 1.0, %v7572
      %v7574 = vrcp.pop %v7493
      %v7575 = vmul.f32 1.0, %v7574
      %v7576 = vrcp.pop %v7494
      %v7577 = vmul.f32 1.0, %v7576
      %v7578 = vrcp.pop %v7495
      %v7579 = vmul.f32 1.0, %v7578
      %v7580 = vrcp.pop %v7496
      %v7581 = vmul.f32 1.0, %v7580
      %v7582 = vrcp.pop %v7497
      %v7583 = vmul.f32 1.0, %v7582
      %v7584 = vrcp.pop %v7498
      %v7585 = vmul.f32 1.0, %v7584
      %v7586 = vrcp.pop %v7499
      %v7587 = vmul.f32 1.0, %v7586
      %v7588 = vrcp.pop %v7500
      %v7589 = vmul.f32 1.0, %v7588
      %v7590 = vrcp.pop %v7501
      %v7591 = vmul.f32 1.0, %v7590
      %v7592 = vrcp.pop %v7502
      %v7593 = vmul.f32 1.0, %v7592
      %v7594 = vrcp.pop %v7503
      %v7595 = vmul.f32 1.0, %v7594
      %v7596 = vrcp.pop %v7504
      %v7597 = vmul.f32 1.0, %v7596
      %v7598 = vrcp.pop %v7505
      %v7599 = vmul.f32 1.0, %v7598
      %v7600 = vrcp.pop %v7506
      %v7601 = vmul.f32 1.0, %v7600
      %v7602 = vrcp.pop %v7507
      %v7603 = vmul.f32 1.0, %v7602
      %v7604 = vrcp.pop %v7508
      %v7605 = vmul.f32 1.0, %v7604
      %v7606 = vrcp.pop %v7509
      %v7607 = vmul.f32 1.0, %v7606
      %v7608 = vrcp.pop %v7510
      %v7609 = vmul.f32 1.0, %v7608
      %v7610 = vrcp.pop %v7511
      %v7611 = vmul.f32 1.0, %v7610
      %v7612 = vrcp.pop %v7512
      %v7613 = vmul.f32 1.0, %v7612
      %v7614 = vrcp.pop %v7513
      %v7615 = vmul.f32 1.0, %v7614
      %v7616 = vrcp.pop %v7514
      %v7617 = vmul.f32 1.0, %v7616
      %v7618 = vrcp.pop %v7515
      %v7619 = vmul.f32 1.0, %v7618
      %v7620 = vrcp.pop %v7516
      %v7621 = vmul.f32 1.0, %v7620
      %v7622 = vrcp.pop %v7517
      %v7623 = vmul.f32 1.0, %v7622
      %v7624 = vrcp.pop %v7518
      %v7625 = vmul.f32 1.0, %v7624
      %v7626 = vrcp.pop %v7519
      %v7627 = vmul.f32 1.0, %v7626
      %v7628 = vrcp.pop %v7520
      %v7629 = vmul.f32 1.0, %v7628
      %v7630 = vrcp.pop %v7521
      %v7631 = vmul.f32 1.0, %v7630
      %v7632 = vrcp.pop %v7522
      %v7633 = vmul.f32 1.0, %v7632
      %v7634 = vrcp.pop %v7523
      %v7635 = vmul.f32 1.0, %v7634
      %v7636 = vrcp.pop %v7524
      %v7637 = vmul.f32 1.0, %v7636
      %v7638 = vrcp.pop %v7525
      %v7639 = vmul.f32 1.0, %v7638
      %v7640 = vrcp.pop %v7526
      %v7641 = vmul.f32 1.0, %v7640
      %v7642 = vrcp.pop %v7527
      %v7643 = vmul.f32 1.0, %v7642
      %v7644 = vrcp.pop %v7528
      %v7645 = vmul.f32 1.0, %v7644
      %v7646 = vrcp.pop %v7529
      %v7647 = vmul.f32 1.0, %v7646
      %v7648 = vrcp.pop %v7530
      %v7649 = vmul.f32 1.0, %v7648
      %v7650 = vrcp.pop %v7531
      %v7651 = vmul.f32 1.0, %v7650
      %v7652 = vrcp.pop %v7532
      %v7653 = vmul.f32 1.0, %v7652
      %v7654 = vrcp.pop %v7533
      %v7655 = vmul.f32 1.0, %v7654
      %v7656 = vrcp.pop %v7534
      %v7657 = vmul.f32 1.0, %v7656
      %v7658 = vrcp.pop %v7535
      %v7659 = vmul.f32 1.0, %v7658
      %v7660 = vrcp.pop %v7536
      %v7661 = vmul.f32 1.0, %v7660
      %v7662 = vrcp.pop %v7537
      %v7663 = vmul.f32 1.0, %v7662
      %v7664 = vrcp.pop %v7538
      %v7665 = vmul.f32 1.0, %v7664
      %v7666 = vrcp.pop %v7539
      %v7667 = vmul.f32 1.0, %v7666
      %v7668 = vrcp.pop %v7540
      %v7669 = vmul.f32 1.0, %v7668
      %v7670 = vrcp.pop %v7541
      %v7671 = vmul.f32 1.0, %v7670
      %v7672 = vrcp.pop %v7542
      %v7673 = vmul.f32 1.0, %v7672
      %v7674 = vrcp.pop %v7543
      %v7675 = vmul.f32 1.0, %v7674
      %v7676 = vrcp.pop %v7544
      %v7677 = vmul.f32 1.0, %v7676
      %v7678 = vrcp.pop %v7545
      %v7679 = vmul.f32 1.0, %v7678
      %v7680 = vrcp.pop %v7546
      %v7681 = vmul.f32 1.0, %v7680
      %v7682 = vrcp.pop %v7547
      %v7683 = vmul.f32 1.0, %v7682
      %v7684 = vrcp.pop %v7548
      %v7685 = vmul.f32 1.0, %v7684
      %v7686 = vrcp.pop %v7549
      %v7687 = vmul.f32 1.0, %v7686
      %v7688 = vrcp.pop %v7550
      %v7689 = vmul.f32 1.0, %v7688
      %v7690 = vrcp.pop %v7551
      %v7691 = vmul.f32 1.0, %v7690
      %v7692 = vrcp.pop %v7552
      %v7693 = vmul.f32 1.0, %v7692
      %v7694 = vrcp.pop %v7553
      %v7695 = vmul.f32 1.0, %v7694
      %v7696 = vrcp.pop %v7554
      %v7697 = vmul.f32 1.0, %v7696
      %v7698 = vrcp.pop %v7555
      %v7699 = vmul.f32 1.0, %v7698
      %v7700 = vrcp.pop %v7556
      %v7701 = vmul.f32 1.0, %v7700
      %v7702 = vrcp.pop %v7557
      %v7703 = vmul.f32 1.0, %v7702
      %v7704 = vrcp.pop %v7558
      %v7705 = vmul.f32 1.0, %v7704
      %v7706 = vrcp.pop %v7559
      %v7707 = vmul.f32 1.0, %v7706
      %v7708 = vrcp.pop %v7560
      %v7709 = vmul.f32 1.0, %v7708
      %v7710 = vrcp.pop %v7561
      %v7711 = vmul.f32 1.0, %v7710
      %v7712 = vrcp.pop %v7562
      %v7713 = vmul.f32 1.0, %v7712
      %v7714 = vrcp.pop %v7563
      %v7715 = vmul.f32 1.0, %v7714
      %v7716 = vrcp.pop %v7564
      %v7717 = vmul.f32 1.0, %v7716
      %v7718 = vrcp.pop %v7565
      %v7719 = vmul.f32 1.0, %v7718
      %v7720 = vrcp.pop %v7566
      %v7721 = vmul.f32 1.0, %v7720
      %v7722 = vrcp.pop %v7567
      %v7723 = vmul.f32 1.0, %v7722
      %v7724 = vrcp.pop %v7568
      %v7725 = vmul.f32 1.0, %v7724
      %v7726 = vrcp.pop %v7569
      %v7727 = vmul.f32 1.0, %v7726
      %v7728 = vrcp.pop %v7570
      %v7729 = vmul.f32 1.0, %v7728
      %v7730 = vrcp.pop %v7571
      %v7731 = vmul.f32 1.0, %v7730
      %v7732 = vmul.f32 %v6934, %v7573
      %v7733 = vmul.f32 %v6937, %v7575
      %v7734 = vmul.f32 %v6942, %v7577
      %v7735 = vmul.f32 %v6945, %v7579
      %v7736 = vmul.f32 %v6950, %v7581
      %v7737 = vmul.f32 %v6953, %v7583
      %v7738 = vmul.f32 %v6958, %v7585
      %v7739 = vmul.f32 %v6961, %v7587
      %v7740 = vmul.f32 %v6966, %v7589
      %v7741 = vmul.f32 %v6969, %v7591
      %v7742 = vmul.f32 %v6974, %v7593
      %v7743 = vmul.f32 %v6977, %v7595
      %v7744 = vmul.f32 %v6982, %v7597
      %v7745 = vmul.f32 %v6985, %v7599
      %v7746 = vmul.f32 %v6990, %v7601
      %v7747 = vmul.f32 %v6993, %v7603
      %v7748 = vmul.f32 %v6998, %v7605
      %v7749 = vmul.f32 %v7001, %v7607
      %v7750 = vmul.f32 %v7006, %v7609
      %v7751 = vmul.f32 %v7009, %v7611
      %v7752 = vmul.f32 %v7014, %v7613
      %v7753 = vmul.f32 %v7017, %v7615
      %v7754 = vmul.f32 %v7022, %v7617
      %v7755 = vmul.f32 %v7025, %v7619
      %v7756 = vmul.f32 %v7030, %v7621
      %v7757 = vmul.f32 %v7033, %v7623
      %v7758 = vmul.f32 %v7038, %v7625
      %v7759 = vmul.f32 %v7041, %v7627
      %v7760 = vmul.f32 %v7046, %v7629
      %v7761 = vmul.f32 %v7049, %v7631
      %v7762 = vmul.f32 %v7054, %v7633
      %v7763 = vmul.f32 %v7057, %v7635
      %v7764 = vmul.f32 %v7062, %v7637
      %v7765 = vmul.f32 %v7065, %v7639
      %v7766 = vmul.f32 %v7070, %v7641
      %v7767 = vmul.f32 %v7073, %v7643
      %v7768 = vmul.f32 %v7078, %v7645
      %v7769 = vmul.f32 %v7081, %v7647
      %v7770 = vmul.f32 %v7086, %v7649
      %v7771 = vmul.f32 %v7089, %v7651
      %v7772 = vmul.f32 %v7094, %v7653
      %v7773 = vmul.f32 %v7097, %v7655
      %v7774 = vmul.f32 %v7102, %v7657
      %v7775 = vmul.f32 %v7105, %v7659
      %v7776 = vmul.f32 %v7110, %v7661
      %v7777 = vmul.f32 %v7113, %v7663
      %v7778 = vmul.f32 %v7118, %v7665
      %v7779 = vmul.f32 %v7121, %v7667
      %v7780 = vmul.f32 %v7126, %v7669
      %v7781 = vmul.f32 %v7129, %v7671
      %v7782 = vmul.f32 %v7134, %v7673
      %v7783 = vmul.f32 %v7137, %v7675
      %v7784 = vmul.f32 %v7142, %v7677
      %v7785 = vmul.f32 %v7145, %v7679
      %v7786 = vmul.f32 %v7150, %v7681
      %v7787 = vmul.f32 %v7153, %v7683
      %v7788 = vmul.f32 %v7158, %v7685
      %v7789 = vmul.f32 %v7161, %v7687
      %v7790 = vmul.f32 %v7166, %v7689
      %v7791 = vmul.f32 %v7169, %v7691
      %v7792 = vmul.f32 %v7174, %v7693
      %v7793 = vmul.f32 %v7177, %v7695
      %v7794 = vmul.f32 %v7182, %v7697
      %v7795 = vmul.f32 %v7185, %v7699
      %v7796 = vmul.f32 %v7190, %v7701
      %v7797 = vmul.f32 %v7193, %v7703
      %v7798 = vmul.f32 %v7198, %v7705
      %v7799 = vmul.f32 %v7201, %v7707
      %v7800 = vmul.f32 %v7206, %v7709
      %v7801 = vmul.f32 %v7209, %v7711
      %v7802 = vmul.f32 %v7214, %v7713
      %v7803 = vmul.f32 %v7217, %v7715
      %v7804 = vmul.f32 %v7222, %v7717
      %v7805 = vmul.f32 %v7225, %v7719
      %v7806 = vmul.f32 %v7230, %v7721
      %v7807 = vmul.f32 %v7233, %v7723
      %v7808 = vmul.f32 %v7238, %v7725
      %v7809 = vmul.f32 %v7241, %v7727
      %v7810 = vmul.f32 %v7246, %v7729
      %v7811 = vmul.f32 %v7249, %v7731
      %7812 = vst.msk [vmem:[%s260] sm:$0xff] %vm903, %v7732
      %7813 = vst.msk [vmem:[%s260 + $0x8] sm:$0xff] %vm903, %v7733
      %7814 = vst.msk [vmem:[%s260 + $0x10] sm:$0xff] %vm903, %v7734
      %7815 = vst.msk [vmem:[%s260 + $0x18] sm:$0xff] %vm903, %v7735
      %7816 = vst.msk [vmem:[%s260 + $0x20] sm:$0xff] %vm903, %v7736
      %7817 = vst.msk [vmem:[%s260 + $0x28] sm:$0xff] %vm903, %v7737
      %7818 = vst.msk [vmem:[%s260 + $0x30] sm:$0xff] %vm903, %v7738
      %7819 = vst.msk [vmem:[%s260 + $0x38] sm:$0xff] %vm903, %v7739
      %7820 = vst.msk [vmem:[%s260 + $0x40] sm:$0xff] %vm903, %v7740
      %7821 = vst.msk [vmem:[%s260 + $0x48] sm:$0xff] %vm903, %v7741
      %7822 = vst.msk [vmem:[%s260 + $0x50] sm:$0xff] %vm903, %v7742
      %7823 = vst.msk [vmem:[%s260 + $0x58] sm:$0xff] %vm903, %v7743
      %7824 = vst.msk [vmem:[%s260 + $0x60] sm:$0xff] %vm903, %v7744
      %7825 = vst.msk [vmem:[%s260 + $0x68] sm:$0xff] %vm903, %v7745
      %7826 = vst.msk [vmem:[%s260 + $0x70] sm:$0xff] %vm903, %v7746
      %7827 = vst.msk [vmem:[%s260 + $0x78] sm:$0xff] %vm903, %v7747
      %7828 = vst.msk [vmem:[%s260 + $0x80] sm:$0xff] %vm903, %v7748
      %7829 = vst.msk [vmem:[%s260 + $0x88] sm:$0xff] %vm903, %v7749
      %7830 = vst.msk [vmem:[%s260 + $0x90] sm:$0xff] %vm903, %v7750
      %7831 = vst.msk [vmem:[%s260 + $0x98] sm:$0xff] %vm903, %v7751
      %7832 = vst.msk [vmem:[%s260 + $0xa0] sm:$0xff] %vm903, %v7752
      %7833 = vst.msk [vmem:[%s260 + $0xa8] sm:$0xff] %vm903, %v7753
      %7834 = vst.msk [vmem:[%s260 + $0xb0] sm:$0xff] %vm903, %v7754
      %7835 = vst.msk [vmem:[%s260 + $0xb8] sm:$0xff] %vm903, %v7755
      %7836 = vst.msk [vmem:[%s260 + $0xc0] sm:$0xff] %vm903, %v7756
      %7837 = vst.msk [vmem:[%s260 + $0xc8] sm:$0xff] %vm903, %v7757
      %7838 = vst.msk [vmem:[%s260 + $0xd0] sm:$0xff] %vm903, %v7758
      %7839 = vst.msk [vmem:[%s260 + $0xd8] sm:$0xff] %vm903, %v7759
      %7840 = vst.msk [vmem:[%s260 + $0xe0] sm:$0xff] %vm903, %v7760
      %7841 = vst.msk [vmem:[%s260 + $0xe8] sm:$0xff] %vm903, %v7761
      %7842 = vst.msk [vmem:[%s260 + $0xf0] sm:$0xff] %vm903, %v7762
      %7843 = vst.msk [vmem:[%s260 + $0xf8] sm:$0xff] %vm903, %v7763
      %7844 = vst.msk [vmem:[%s260 + $0x100] sm:$0xff] %vm903, %v7764
      %7845 = vst.msk [vmem:[%s260 + $0x108] sm:$0xff] %vm903, %v7765
      %7846 = vst.msk [vmem:[%s260 + $0x110] sm:$0xff] %vm903, %v7766
      %7847 = vst.msk [vmem:[%s260 + $0x118] sm:$0xff] %vm903, %v7767
      %7848 = vst.msk [vmem:[%s260 + $0x120] sm:$0xff] %vm903, %v7768
      %7849 = vst.msk [vmem:[%s260 + $0x128] sm:$0xff] %vm903, %v7769
      %7850 = vst.msk [vmem:[%s260 + $0x130] sm:$0xff] %vm903, %v7770
      %7851 = vst.msk [vmem:[%s260 + $0x138] sm:$0xff] %vm903, %v7771
      %7852 = vst.msk [vmem:[%s260 + $0x140] sm:$0xff] %vm903, %v7772
      %7853 = vst.msk [vmem:[%s260 + $0x148] sm:$0xff] %vm903, %v7773
      %7854 = vst.msk [vmem:[%s260 + $0x150] sm:$0xff] %vm903, %v7774
      %7855 = vst.msk [vmem:[%s260 + $0x158] sm:$0xff] %vm903, %v7775
      %7856 = vst.msk [vmem:[%s260 + $0x160] sm:$0xff] %vm903, %v7776
      %7857 = vst.msk [vmem:[%s260 + $0x168] sm:$0xff] %vm903, %v7777
      %7858 = vst.msk [vmem:[%s260 + $0x170] sm:$0xff] %vm903, %v7778
      %7859 = vst.msk [vmem:[%s260 + $0x178] sm:$0xff] %vm903, %v7779
      %7860 = vst.msk [vmem:[%s260 + $0x180] sm:$0xff] %vm903, %v7780
      %7861 = vst.msk [vmem:[%s260 + $0x188] sm:$0xff] %vm903, %v7781
      %7862 = vst.msk [vmem:[%s260 + $0x190] sm:$0xff] %vm903, %v7782
      %7863 = vst.msk [vmem:[%s260 + $0x198] sm:$0xff] %vm903, %v7783
      %7864 = vst.msk [vmem:[%s260 + $0x1a0] sm:$0xff] %vm903, %v7784
      %7865 = vst.msk [vmem:[%s260 + $0x1a8] sm:$0xff] %vm903, %v7785
      %7866 = vst.msk [vmem:[%s260 + $0x1b0] sm:$0xff] %vm903, %v7786
      %7867 = vst.msk [vmem:[%s260 + $0x1b8] sm:$0xff] %vm903, %v7787
      %7868 = vst.msk [vmem:[%s260 + $0x1c0] sm:$0xff] %vm903, %v7788
      %7869 = vst.msk [vmem:[%s260 + $0x1c8] sm:$0xff] %vm903, %v7789
      %7870 = vst.msk [vmem:[%s260 + $0x1d0] sm:$0xff] %vm903, %v7790
      %7871 = vst.msk [vmem:[%s260 + $0x1d8] sm:$0xff] %vm903, %v7791
      %7872 = vst.msk [vmem:[%s260 + $0x1e0] sm:$0xff] %vm903, %v7792
      %7873 = vst.msk [vmem:[%s260 + $0x1e8] sm:$0xff] %vm903, %v7793
      %7874 = vst.msk [vmem:[%s260 + $0x1f0] sm:$0xff] %vm903, %v7794
      %7875 = vst.msk [vmem:[%s260 + $0x1f8] sm:$0xff] %vm903, %v7795
      %7876 = vst.msk [vmem:[%s260 + $0x200] sm:$0xff] %vm903, %v7796
      %7877 = vst.msk [vmem:[%s260 + $0x208] sm:$0xff] %vm903, %v7797
      %7878 = vst.msk [vmem:[%s260 + $0x210] sm:$0xff] %vm903, %v7798
      %7879 = vst.msk [vmem:[%s260 + $0x218] sm:$0xff] %vm903, %v7799
      %7880 = vst.msk [vmem:[%s260 + $0x220] sm:$0xff] %vm903, %v7800
      %7881 = vst.msk [vmem:[%s260 + $0x228] sm:$0xff] %vm903, %v7801
      %7882 = vst.msk [vmem:[%s260 + $0x230] sm:$0xff] %vm903, %v7802
      %7883 = vst.msk [vmem:[%s260 + $0x238] sm:$0xff] %vm903, %v7803
      %7884 = vst.msk [vmem:[%s260 + $0x240] sm:$0xff] %vm903, %v7804
      %7885 = vst.msk [vmem:[%s260 + $0x248] sm:$0xff] %vm903, %v7805
      %7886 = vst.msk [vmem:[%s260 + $0x250] sm:$0xff] %vm903, %v7806
      %7887 = vst.msk [vmem:[%s260 + $0x258] sm:$0xff] %vm903, %v7807
      %7888 = vst.msk [vmem:[%s260 + $0x260] sm:$0xff] %vm903, %v7808
      %7889 = vst.msk [vmem:[%s260 + $0x268] sm:$0xff] %vm903, %v7809
      %7890 = vst.msk [vmem:[%s260 + $0x270] sm:$0xff] %vm903, %v7810
      %7891 = vst.msk [vmem:[%s260 + $0x278] sm:$0xff] %vm903, %v7811
      %s7892 = smul.u32 80, %s21
      %p7893 = scmp.lt.s32.totalorder %s20, 1
      %s7894 = scalar_select %p7893, %s20, 1
      %p7895 = scmp.lt.s32.totalorder %s7892, 159
      %s7896 = scalar_select %p7895, %s7892, 159
      %s7897 = smul.addr %s7894, 160
      %s7898 = sadd.s32 %s7896, %s7897
      %s7899 = smul.addr %s7898, 8
      %s7900 = scalar_lea.vmem %s5, %s7899
      // Predicated region
      $region41: #{proto_forward.3} parent=39 // pred_check
        %p7901 = pneg %p160
      $region42: #{proto_forward.3} parent=39 // pred_check_branch
        %7903 = sbr.rel (%p7901) target = $region44
      $region43: #{proto_forward.3} parent=39 // pred_region
        %s7904 = smul.u32 80, %s21
      $region44: #{proto_forward.3} parent=39 // pred_fallthru
        _
    $region40: #{proto_forward.3} parent=5 // pred_fallthru
      _
    %p7905 = scmp.le.s32.totalorder 2, %s11
    // Predicated region
    $region45: #{proto_forward.3} parent=5 // pred_check
      %p7906 = pneg %p7905
    $region46: #{proto_forward.3} parent=5 // pred_check_branch
      %7908 = sbr.rel (%p7906) target = $region48
    $region47: #{proto_forward.3} parent=5 // pred_region
      %s7909 = ssub.s32 %s11, 2
      // Predicated region
      $region49: #{proto_forward.3} parent=47 // pred_check
        %p7910 = pneg %p166
      $region50: #{proto_forward.3} parent=47 // pred_check_branch
        %7912 = sbr.rel (%p7910) target = $region52
      $region51: #{proto_forward.3} parent=47 // pred_region
        %s7913 = smul.u32 80, %s23
        %p7914 = scmp.lt.s32.totalorder %s22, 1
        %s7915 = scalar_select %p7914, %s22, 1
        %p7916 = scmp.lt.s32.totalorder %s7913, 159
        %s7917 = scalar_select %p7916, %s7913, 159
        %s7918 = smul.addr %s7915, 160
        %s7919 = sadd.s32 %s7917, %s7918
        %s7920 = smul.addr %s7919, 8
        %s7921 = scalar_lea.vmem %s5, %s7920
      $region52: #{proto_forward.3} parent=47 // pred_fallthru
        _
    $region48: #{proto_forward.3} parent=5 // pred_fallthru
      _
  $region6: #{proto_forward.3} parent=0 // loop_footer
    %s15 = sadd.s32 1, %s11
  $region7: #{proto_forward.3} parent=0 // loop_footer_branch
    %10 = sbr.rel target = $region3
  $region8: #{proto_forward.3} parent=0 // loop_exit
    _

</llo_original>
